<compile_context>
chip_gen: v5e
topology: v5e:2x2
jax: 0.10.0
libtpu: 0.0.40
codegen_flags: <defaults>
</compile_context>

<pallas_src>
import numpy as np
import jax
import jax.numpy as jnp
from jax import lax
from jax.experimental import pallas as pl
from jax.experimental.pallas import tpu as pltpu

IGNORE_ID = -1
NEG_INF = -1e9          # finite big-negative mask value (avoids -inf -> NaN)


def _round_up(x, m):
    return ((x + m - 1) // m) * m


def _pick_batch_block(B, T):
    """Pack enough examples per grid step that the fused matmuls see >=256
    rows, while keeping >=2 grid steps (megacore / v7x 2 TCs) when B allows."""
    want = max(1, -(-256 // max(T, 1)))
    divs = [d for d in range(1, B + 1) if B % d == 0]
    bb = max([d for d in divs if d <= want] or [1])
    if B // bb < 2:
        two_step = [d for d in divs if B // d >= 2]
        if two_step:
            bb = max(two_step)
    return bb


# --------------------------------------------------------------------------
# Fused decoder layer kernel
# --------------------------------------------------------------------------
def make_fused_layer_call(B, Bb, T, Ti, D, H, d_k, d_v, d_ff):
    """self-attn + cross-attn + FFN (+ LN + non-pad mask) in one pallas_call.

    T / Ti are the padded (multiple of 16 / 8) sequence lengths.
    """
    Hdk, Hdv = H * d_k, H * d_v
    qkv_w = 2 * Hdk + Hdv          # [Wq | Wk | Wv] fused width (self-attn)
    kv_w = Hdk + Hdv               # [Wk | Wv] fused width (cross-attn)
    R = Bb * T                     # rows handled per grid step
    n_blk = B // Bb
    inv_temp = 1.0 / float(np.sqrt(d_k))
    inv_D = 1.0 / float(D)

    # Heads per 128-lane slab: smallest divisor of H whose q/k and v widths are
    # 128-lane multiples (e.g. d_k=d_v=64 -> hg=2).  If no aligned grouping is
    # possible (toy dims), hg=1 reproduces plain per-head processing.
    hg = 1
    for cand in range(1, H + 1):
        if H % cand == 0 and (cand * d_k) % 128 == 0 and (cand * d_v) % 128 == 0:
            hg = cand
            break
    n_groups = H // hg

    def kernel(dlen_ref, elen_ref,                        # SMEM scalar prefetch
               dec_ref, enc_ref,                          # activations (bf16)
               swqkv, sbqkv, swfc, sbfc, sg, sbt,         # self-attention
               cwq, cbq, cwkv, cbkv, cwfc, cbfc, cg, cbt,  # cross-attention
               fw1, fb1, fw2, fb2, fg, fbt,               # FFN
               o_ref,                                     # output (Bb, T, D) bf16
               ctx_sc):                                   # VMEM scratch (R, Hdv) bf16
        b0 = pl.program_id(0) * Bb

        def layer_norm(y, gain, bias):
            # one-pass stats: var = E[x^2] - E[x]^2  (one XLU reduction fewer)
            m = jnp.sum(y, axis=-1, keepdims=True) * inv_D
            ex2 = jnp.sum(y * y, axis=-1, keepdims=True) * inv_D
            var = ex2 - m * m
            return (y - m) * lax.rsqrt(var + 1e-5) * gain + bias

        # ---- masks built in-kernel from scalar-prefetched lengths ----
        q_idx = lax.broadcasted_iota(jnp.int32, (T, 1), 0)
        k_idx = lax.broadcasted_iota(jnp.int32, (1, T), 1)
        e_idx = lax.broadcasted_iota(jnp.int32, (1, Ti), 1)
        row_idx = lax.broadcasted_iota(jnp.int32, (R, 1), 0)

        dlens = [dlen_ref[b0 + i] for i in range(Bb)]
        elens = [elen_ref[b0 + i] for i in range(Bb)]

        # non-pad mask for the whole packed row block (R, 1)
        npm = jnp.zeros((R, 1), jnp.float32)
        for i in range(Bb):
            in_ex = jnp.logical_and(row_idx >= i * T, row_idx < i * T + dlens[i])
            npm = npm + in_ex.astype(jnp.float32)

        slf_bias = [jnp.where(jnp.logical_or(k_idx > q_idx, k_idx >= dlens[i]),
                              NEG_INF, 0.0) for i in range(Bb)]        # (T, T)
        enc_bias = [jnp.where(e_idx >= elens[i], NEG_INF, 0.0)
                    for i in range(Bb)]                                # (1, Ti)

        def attend_example(q_f, k_f, v_f, bias, i):
            """Multi-head attention for one example; writes head contexts into
            ctx_sc rows [i*T:(i+1)*T] with 128-lane-aligned slab stores."""
            qb_ = q_f.astype(jnp.bfloat16)
            kb_ = k_f.astype(jnp.bfloat16)
            vb_ = v_f.astype(jnp.bfloat16)
            for gi in range(n_groups):                 # static unroll
                gk, gv = gi * hg * d_k, gi * hg * d_v
                qg = qb_[:, gk:gk + hg * d_k]          # lane-aligned slab slice
                kg = kb_[:, gk:gk + hg * d_k]
                vg = vb_[:, gv:gv + hg * d_v]
                outs = []
                for j in range(hg):                    # per-head MXU work
                    qh = qg[:, j * d_k:(j + 1) * d_k]
                    kh = kg[:, j * d_k:(j + 1) * d_k]
                    vh = vg[:, j * d_v:(j + 1) * d_v]
                    s = lax.dot_general(qh, kh, (((1,), (1,)), ((), ())),
                                        preferred_element_type=jnp.float32)
                    s = s * inv_temp + bias
                    s = s - jnp.max(s, axis=-1, keepdims=True)
                    p = jnp.exp(s)
                    p = p * pl.reciprocal(jnp.sum(p, axis=-1, keepdims=True),
                                          approx=True)
                    outs.append(jnp.dot(p.astype(jnp.bfloat16), vh,
                                        preferred_element_type=jnp.float32
                                        ).astype(jnp.bfloat16))
                slab = outs[0] if hg == 1 else jnp.concatenate(outs, axis=1)
                ctx_sc[i * T:(i + 1) * T, gv:gv + hg * d_v] = slab

        x_bf = dec_ref[...].reshape(R, D)              # (R, D) bf16
        x_f32 = x_bf.astype(jnp.float32)

        # ======== self-attention (fused QKV projection over all Bb*T rows) ====
        qkv = jnp.dot(x_bf, swqkv[...],
                      preferred_element_type=jnp.float32) + sbqkv[...]
        for i in range(Bb):
            r0 = i * T
            attend_example(qkv[r0:r0 + T, :Hdk], qkv[r0:r0 + T, Hdk:2 * Hdk],
                           qkv[r0:r0 + T, 2 * Hdk:], slf_bias[i], i)
        y = jnp.dot(ctx_sc[...], swfc[...], preferred_element_type=jnp.float32)
        x1 = layer_norm(y + sbfc[...] + x_f32, sg[...], sbt[...]) * npm

        # ======== decoder-encoder attention (fused KV projection) ============
        enc_rows = enc_ref[...].reshape(Bb * Ti, D)    # bf16
        qc = jnp.dot(x1.astype(jnp.bfloat16), cwq[...],
                     preferred_element_type=jnp.float32) + cbq[...]
        kvc = jnp.dot(enc_rows, cwkv[...],
                      preferred_element_type=jnp.float32) + cbkv[...]
        for i in range(Bb):
            r0, e0 = i * T, i * Ti
            attend_example(qc[r0:r0 + T], kvc[e0:e0 + Ti, :Hdk],
                           kvc[e0:e0 + Ti, Hdk:], enc_bias[i], i)
        y = jnp.dot(ctx_sc[...], cwfc[...], preferred_element_type=jnp.float32)
        x2 = layer_norm(y + cbfc[...] + x1, cg[...], cbt[...]) * npm

        # ======== position-wise FFN ==========================================
        hmid = jnp.dot(x2.astype(jnp.bfloat16), fw1[...],
                       preferred_element_type=jnp.float32) + fb1[...]
        hmid = jnp.maximum(hmid, 0.0)
        y = jnp.dot(hmid.astype(jnp.bfloat16), fw2[...],
                    preferred_element_type=jnp.float32) + fb2[...] + x2
        y = layer_norm(y, fg[...], fbt[...]) * npm
        o_ref[...] = y.astype(jnp.bfloat16).reshape(Bb, T, D)

    def batch_spec(L):
        return pl.BlockSpec((Bb, L, D), lambda b, dl, el: (b, 0, 0))

    def const_spec(shape):
        nd = len(shape)
        return pl.BlockSpec(shape, lambda b, dl, el, _nd=nd: (0,) * _nd)

    in_specs = [
        batch_spec(T),                                      # dec (bf16)
        batch_spec(Ti),                                     # enc (bf16)
        const_spec((D, qkv_w)), const_spec((1, qkv_w)),     # self Wqkv, bqkv
        const_spec((Hdv, D)), const_spec((1, D)),           # self Wfc, bfc
        const_spec((1, D)), const_spec((1, D)),             # self LN g, b
        const_spec((D, Hdk)), const_spec((1, Hdk)),         # cross Wq, bq
        const_spec((D, kv_w)), const_spec((1, kv_w)),       # cross Wkv, bkv
        const_spec((Hdv, D)), const_spec((1, D)),           # cross Wfc, bfc
        const_spec((1, D)), const_spec((1, D)),             # cross LN g, b
        const_spec((D, d_ff)), const_spec((1, d_ff)),       # FFN W1, b1
        const_spec((d_ff, D)), const_spec((1, D)),          # FFN W2, b2
        const_spec((1, D)), const_spec((1, D)),             # FFN LN g, b
    ]

    # advisory cost hint so XLA can schedule surrounding glue around the call
    flops = (2 * B * T * D * qkv_w + 2 * B * T * D * Hdk + 2 * B * Ti * D * kv_w
             + 4 * B * T * Hdv * D + 4 * B * T * D * d_ff
             + 2 * B * H * T * (T + Ti) * (d_k + d_v))
    transc = B * H * T * (T + Ti) + 6 * B * T
    w_bytes = 2 * (D * qkv_w + D * Hdk + D * kv_w + 2 * Hdv * D + 2 * D * d_ff)
    act_bytes = 2 * (2 * B * T * D + B * Ti * D)
    cost = pl.CostEstimate(flops=int(flops), transcendentals=int(transc),
                           bytes_accessed=int(w_bytes + act_bytes))

    grid_spec = pltpu.PrefetchScalarGridSpec(
        num_scalar_prefetch=2,
        grid=(n_blk,),
        in_specs=in_specs,
        out_specs=pl.BlockSpec((Bb, T, D), lambda b, dl, el: (b, 0, 0)),
        scratch_shapes=[pltpu.VMEM((R, Hdv), jnp.bfloat16)],
    )
    return pl.pallas_call(
        kernel,
        out_shape=jax.ShapeDtypeStruct((B, T, D), jnp.bfloat16),
        grid_spec=grid_spec,
        compiler_params=pltpu.CompilerParams(
            dimension_semantics=("parallel",),
            vmem_limit_bytes=32 * 1024 * 1024),
        cost_estimate=cost,
    )


# --------------------------------------------------------------------------
# Tied-weight vocab projection (lane-dense tiles, weight-tile resident)
# --------------------------------------------------------------------------
def make_proj_call(R_pad, D, V_pad, TM, TV):
    # grid: vocab tiles OUTER, row tiles INNER -> the (D, TV) weight tile is
    # resident across the inner loop; the D x V embedding is read from HBM once.
    grid = (V_pad // TV, R_pad // TM)

    def kernel(x_ref, w_ref, o_ref):
        o_ref[...] = jnp.dot(x_ref[...], w_ref[...],
                             preferred_element_type=jnp.float32)

    flops = 2 * R_pad * D * V_pad
    bytes_acc = R_pad * D * 2 * (V_pad // TV) + D * V_pad * 2 + R_pad * V_pad * 4
    return pl.pallas_call(
        kernel,
        out_shape=jax.ShapeDtypeStruct((R_pad, V_pad), jnp.float32),
        grid=grid,
        in_specs=[pl.BlockSpec((TM, D), lambda i, j: (j, 0)),   # rows re-streamed
                  pl.BlockSpec((D, TV), lambda i, j: (0, i))],  # weight resident
        out_specs=pl.BlockSpec((TM, TV), lambda i, j: (j, i)),
        compiler_params=pltpu.CompilerParams(
            dimension_semantics=("parallel", "parallel"),
            vmem_limit_bytes=32 * 1024 * 1024),
        cost_estimate=pl.CostEstimate(flops=int(flops), transcendentals=0,
                                      bytes_accessed=int(bytes_acc)),
    )


# --------------------------------------------------------------------------
# Parameters, positional encoding, packing, jitted apply
# --------------------------------------------------------------------------
def positional_encoding(T, D):
    position = np.arange(T, dtype=np.float32)[:, None]
    div_term = np.exp(np.arange(0, D, 2, dtype=np.float32) * -(np.log(10000.0) / D))
    pe = np.zeros((T, D), dtype=np.float32)
    pe[:, 0::2] = np.sin(position * div_term)
    pe[:, 1::2] = np.cos(position * div_term)
    return jnp.asarray(pe)


def init_params(key, cfg):
    V, D = cfg["n_tgt_vocab"], cfg["d_model"]
    H, d_k, d_v, d_ff = cfg["n_head"], cfg["d_k"], cfg["d_v"], cfg["d_inner"]
    keys = jax.random.split(key, 1 + cfg["n_layers"])
    params = {"emb": jax.random.normal(keys[0], (V, D), jnp.float32) * 0.1}

    def rn(k, shape, scale):
        return jax.random.normal(k, shape, jnp.float32) * scale

    layers = []
    for l in range(cfg["n_layers"]):
        lk = jax.random.split(keys[1 + l], 24)
        layer = {}
        for j, name in enumerate(["slf", "enc"]):
            o = j * 10
            layer[name] = {
                "wq": rn(lk[o + 0], (D, H * d_k), np.sqrt(2.0 / (D + d_k))),
                "bq": rn(lk[o + 1], (1, H * d_k), 0.02),
                "wk": rn(lk[o + 2], (D, H * d_k), np.sqrt(2.0 / (D + d_k))),
                "bk": rn(lk[o + 3], (1, H * d_k), 0.02),
                "wv": rn(lk[o + 4], (D, H * d_v), np.sqrt(2.0 / (D + d_v))),
                "bv": rn(lk[o + 5], (1, H * d_v), 0.02),
                "wfc": rn(lk[o + 6], (H * d_v, D), np.sqrt(2.0 / (H * d_v + D))),
                "bfc": rn(lk[o + 7], (1, D), 0.02),
                "ln_g": jnp.ones((1, D), jnp.float32),
                "ln_b": jnp.zeros((1, D), jnp.float32),
            }
        layer["ffn"] = {
            "w1": rn(lk[20], (D, d_ff), np.sqrt(2.0 / (D + d_ff))),
            "b1": rn(lk[21], (1, d_ff), 0.02),
            "w2": rn(lk[22], (d_ff, D), np.sqrt(2.0 / (D + d_ff))),
            "b2": rn(lk[23], (1, D), 0.02),
            "ln_g": jnp.ones((1, D), jnp.float32),
            "ln_b": jnp.zeros((1, D), jnp.float32),
        }
        layers.append(layer)
    params["layers"] = layers
    return params


def pack_layer_params(layer):
    """Fuse QKV / KV weights and cast MXU operands to bf16 (biases stay f32)."""
    bf = lambda a: a.astype(jnp.bfloat16)
    s, e, f = layer["slf"], layer["enc"], layer["ffn"]
    return (
        bf(jnp.concatenate([s["wq"], s["wk"], s["wv"]], axis=1)),
        jnp.concatenate([s["bq"], s["bk"], s["bv"]], axis=1),
        bf(s["wfc"]), s["bfc"], s["ln_g"], s["ln_b"],
        bf(e["wq"]), e["bq"],
        bf(jnp.concatenate([e["wk"], e["wv"]], axis=1)),
        jnp.concatenate([e["bk"], e["bv"]], axis=1),
        bf(e["wfc"]), e["bfc"], e["ln_g"], e["ln_b"],
        bf(f["w1"]), f["b1"], bf(f["w2"]), f["b2"], f["ln_g"], f["ln_b"],
    )


_APPLY_CACHE = {}


def get_apply_fn(B, T_orig, Ti_orig, cfg):
    """Build (once per static shape) the jitted decoder stack. Returns (fn, T_pad)."""
    V, D = cfg["n_tgt_vocab"], cfg["d_model"]
    H, d_k, d_v, d_ff = cfg["n_head"], cfg["d_k"], cfg["d_v"], cfg["d_inner"]
    n_layers = cfg["n_layers"]

    T_pad = _round_up(T_orig, 16)       # sublane-friendly for bf16 row blocks
    Ti_pad = _round_up(Ti_orig, 8)
    Bb = _pick_batch_block(B, T_pad)

    key = (B, Bb, T_pad, Ti_pad, V, D, H, d_k, d_v, d_ff, n_layers)
    if key in _APPLY_CACHE:
        return _APPLY_CACHE[key]

    fused_layer = make_fused_layer_call(B, Bb, T_pad, Ti_pad, D, H, d_k, d_v, d_ff)

    V_pad = _round_up(V, 128)
    TV = next(t for t in (1024, 512, 256, 128) if V_pad % t == 0)
    rows = B * T_pad
    if rows >= 256:
        R_pad, TM = _round_up(rows, 256), 256
    else:
        R_pad, TM = _round_up(rows, 8), _round_up(rows, 8)
    proj = make_proj_call(R_pad, D, V_pad, TM, TV)
    x_scale = float(np.sqrt(D))          # tgt_emb_prj_weight_sharing=True

    def apply(ys_in, dec_lens, enc_lens, enc_out, emb, pe, layer_params):
        dec = (jnp.take(emb, ys_in, axis=0) * x_scale + pe[None]
               ).astype(jnp.bfloat16)                             # (B, T_pad, D)
        enc_bf = jnp.pad(enc_out, ((0, 0), (0, Ti_pad - Ti_orig), (0, 0))
                         ).astype(jnp.bfloat16)
        for lp in layer_params:
            dec = fused_layer(dec_lens, enc_lens, dec, enc_bf, *lp)
        # tied-weight vocab projection (vocab padded to lane-dense tiles)
        w = jnp.pad(jnp.transpose(emb), ((0, 0), (0, V_pad - V))
                    ).astype(jnp.bfloat16)
        x = jnp.pad(dec.reshape(rows, D), ((0, R_pad - rows), (0, 0)))
        logits = proj(x, w)
        return logits[:rows, :V].reshape(B, T_pad, V)

    entry = (jax.jit(apply), T_pad)
    _APPLY_CACHE[key] = entry
    return entry


def decoder_forward(params, padded_input, enc_out, enc_lens, cfg):
    """Mirrors Decoder.forward (eval mode).  padded_input: numpy (B, To)."""
    B, _ = padded_input.shape
    D = cfg["d_model"]
    Ti = enc_out.shape[1]
    sos_id, eos_id = cfg["sos_id"], cfg["eos_id"]

    # --- preprocess (ragged <sos>/<eos> padding) -- host glue, like torch ---
    lengths = (padded_input != IGNORE_ID).sum(axis=1)
    T = int(lengths.max()) + 1   # NOTE: data-dependent -> new compile per new T
    apply, T_pad = get_apply_fn(B, T, Ti, cfg)

    ys_in = np.full((B, T_pad), eos_id, dtype=np.int32)
    ys_out = np.full((B, T), IGNORE_ID, dtype=np.int32)
    ys_in[:, 0] = sos_id
    for i in range(B):
        L = int(lengths[i])
        ys_in[i, 1:1 + L] = padded_input[i, :L]
        ys_out[i, :L] = padded_input[i, :L]
        ys_out[i, L] = eos_id

    dec_lens = jnp.asarray(np.asarray(lengths) + 1, dtype=jnp.int32)  # <sos> + tokens
    enc_lens_j = jnp.asarray(enc_lens, dtype=jnp.int32)
    ys_in_j = jnp.asarray(ys_in)

    layer_params = tuple(pack_layer_params(l) for l in params["layers"])
    pe = positional_encoding(T_pad, D)

    pred_full = apply(ys_in_j, dec_lens, enc_lens_j, enc_out, params["emb"],
                      pe, layer_params)
    pred = pred_full[:, :T]
    gold = jnp.asarray(ys_out)
    return pred, gold, ys_in_j


# --------------------------------------------------------------------------
# Pure-JAX reference (module semantics, bf16-in/f32-acc matmul precision and
# bf16 inter-layer activations matching the kernels) for validation
# --------------------------------------------------------------------------
def _bf16_dot(a, b):
    return jnp.dot(a.astype(jnp.bfloat16), b.astype(jnp.bfloat16),
                   preferred_element_type=jnp.float32)


def _ln_ref(x, g, b, eps=1e-5):
    m = x.mean(-1, keepdims=True)
    v = ((x - m) ** 2).mean(-1, keepdims=True)
    return (x - m) / jnp.sqrt(v + eps) * g + b


def _mha_ref(q_in, kv_in, p, mask, npm, H, d_k, d_v):
    B, Lq, _ = q_in.shape
    Lk = kv_in.shape[1]
    q = _bf16_dot(q_in, p["wq"]) + p["bq"][0]
    k = _bf16_dot(kv_in, p["wk"]) + p["bk"][0]
    v = _bf16_dot(kv_in, p["wv"]) + p["bv"][0]
    q = jnp.transpose(q.reshape(B, Lq, H, d_k), (0, 2, 1, 3))
    k = jnp.transpose(k.reshape(B, Lk, H, d_k), (0, 2, 1, 3))
    v = jnp.transpose(v.reshape(B, Lk, H, d_v), (0, 2, 1, 3))
    s = jnp.einsum("bhqd,bhkd->bhqk", q.astype(jnp.bfloat16),
                   k.astype(jnp.bfloat16),
                   preferred_element_type=jnp.float32) / np.sqrt(d_k)
    s = jnp.where(mask[:, None], NEG_INF, s)
    a = jax.nn.softmax(s, axis=-1)
    o = jnp.einsum("bhqk,bhkd->bhqd", a.astype(jnp.bfloat16),
                   v.astype(jnp.bfloat16),
                   preferred_element_type=jnp.float32)
    o = jnp.transpose(o, (0, 2, 1, 3)).reshape(B, Lq, H * d_v)
    o = _bf16_dot(o, p["wfc"]) + p["bfc"][0]
    return _ln_ref(o + q_in, p["ln_g"][0], p["ln_b"][0]) * npm


def _ffn_ref(x, p, npm):
    h = jnp.maximum(_bf16_dot(x, p["w1"]) + p["b1"][0], 0.0)
    y = _bf16_dot(h, p["w2"]) + p["b2"][0]
    return _ln_ref(y + x, p["ln_g"][0], p["ln_b"][0]) * npm


def decoder_ref(params, ys_in, enc_out, enc_lens, cfg):
    eos = cfg["eos_id"]
    D = cfg["d_model"]
    H, d_k, d_v = cfg["n_head"], cfg["d_k"], cfg["d_v"]
    B, T = ys_in.shape
    Ti = enc_out.shape[1]

    npm = (ys_in != eos).astype(jnp.float32)[:, :, None]
    subseq = jnp.triu(jnp.ones((T, T), bool), k=1)
    keypad = (ys_in == eos)[:, None, :]
    slf_mask = jnp.logical_or(keypad, subseq[None])
    enc_valid = jnp.arange(Ti)[None, :] < jnp.asarray(enc_lens)[:, None]
    dec_enc_mask = jnp.broadcast_to((~enc_valid)[:, None, :], (B, T, Ti))

    dec = jnp.take(params["emb"], ys_in, axis=0) * float(np.sqrt(D)) \
        + positional_encoding(T, D)[None]
    dec = dec.astype(jnp.bfloat16).astype(jnp.float32)
    for layer in params["layers"]:
        dec = _mha_ref(dec, dec, layer["slf"], slf_mask, npm, H, d_k, d_v)
        dec = _mha_ref(dec, enc_out, layer["enc"], dec_enc_mask, npm, H, d_k, d_v)
        dec = _ffn_ref(dec, layer["ffn"], npm)
        dec = dec.astype(jnp.bfloat16).astype(jnp.float32)   # bf16 HBM round-trip
    return _bf16_dot(dec, jnp.transpose(params["emb"]))


# --------------------------------------------------------------------------
if __name__ == "__main__":
    cfg = dict(sos_id=1, eos_id=2, n_tgt_vocab=16, d_model=32, n_head=2,
               d_k=16, d_v=16, d_inner=64, n_layers=2)
    B, To, Ti = 4, 6, 10

    key = jax.random.PRNGKey(0)
    k_par, k_enc, k_tok = jax.random.split(key, 3)

    params = init_params(k_par, cfg)
    enc_out = jax.random.normal(k_enc, (B, Ti, cfg["d_model"]), jnp.float32) * 0.5
    enc_lens = np.array([10, 6, 9, 4], dtype=np.int32)

    padded_input = np.array(
        jax.random.randint(k_tok, (B, To), 3, cfg["n_tgt_vocab"]), dtype=np.int32)
    padded_input[1, 4:] = IGNORE_ID     # second utterance has length 4
    padded_input[3, 2:] = IGNORE_ID     # fourth utterance has length 2

    pred, gold, ys_in_j = decoder_forward(params, padded_input, enc_out,
                                          enc_lens, cfg)
    pred = jax.block_until_ready(pred)
    gold = jax.block_until_ready(gold)

    # validate against a pure-JAX reference of the same math
    pred_ref = decoder_ref(params, ys_in_j, enc_out, enc_lens, cfg)[:, :pred.shape[1]]
    np.testing.assert_allclose(np.asarray(pred), np.asarray(pred_ref),
                               rtol=3e-2, atol=3e-2)
    assert pred.shape == (B, gold.shape[1], cfg["n_tgt_vocab"])
    assert np.all(np.isfinite(np.asarray(pred)))

    print("KERNEL_OK")
</pallas_src>

<mosaic_0001>
module attributes {stable_mosaic.version = 11 : i64} {
  func.func @kernel(%arg0: i32, %arg1: i32, %arg2: memref<64x32xbf16, #tpu.memory_space<vmem>>, %arg3: memref<32x128xbf16, #tpu.memory_space<vmem>>, %arg4: memref<64x128xf32, #tpu.memory_space<vmem>>) attributes {dimension_semantics = [#tpu.dimension_semantics<parallel>, #tpu.dimension_semantics<parallel>], iteration_bounds = array<i64: 1, 1>, scalar_prefetch = 0 : i64, scratch_operands = 0 : i64, tpu.core_type = #tpu.core_type<tc>, window_params = [{transform_indices = @transform_0, window_bounds = array<i64: 64, 32>}, {transform_indices = @transform_1, window_bounds = array<i64: 32, 128>}, {transform_indices = @transform_2, window_bounds = array<i64: 64, 128>}]} {
    %c0 = arith.constant 0 : index
    %c0_0 = arith.constant 0 : index
    %0 = vector.load %arg2[%c0, %c0_0] : memref<64x32xbf16, #tpu.memory_space<vmem>>, vector<64x32xbf16>
    %c0_1 = arith.constant 0 : index
    %c0_2 = arith.constant 0 : index
    %1 = vector.load %arg3[%c0_1, %c0_2] : memref<32x128xbf16, #tpu.memory_space<vmem>>, vector<32x128xbf16>
    %cst = arith.constant dense<0.000000e+00> : vector<64x128xf32>
    %2 = tpu.matmul %0, %1, %cst {dimension_numbers = #tpu.dot_dimension_numbers<[1], [0], [0], [1], [0, 0, 1, 1], [], []>} : vector<64x32xbf16>, vector<32x128xbf16>, vector<64x128xf32> -> vector<64x128xf32>
    %c0_3 = arith.constant 0 : index
    %c0_4 = arith.constant 0 : index
    %3 = vector.load %arg4[%c0_3, %c0_4] : memref<64x128xf32, #tpu.memory_space<vmem>>, vector<64x128xf32>
    tpu.vector_store %arg4[%c0_3, %c0_4], %2 {strides = array<i32>} : memref<64x128xf32, #tpu.memory_space<vmem>>, vector<64x128xf32>,
    return
  }
  func.func @transform_0(%arg0: i32, %arg1: i32) -> (i32, i32) {
    %c0_i32 = arith.constant 0 : i32
    %c0_i32_0 = arith.constant 0 : i32
    return %arg1, %c0_i32 : i32, i32
  }
  func.func @transform_1(%arg0: i32, %arg1: i32) -> (i32, i32) {
    %c0_i32 = arith.constant 0 : i32
    %c0_i32_0 = arith.constant 0 : i32
    return %c0_i32, %arg0 : i32, i32
  }
  func.func @transform_2(%arg0: i32, %arg1: i32) -> (i32, i32) {
    %c0_i32 = arith.constant 0 : i32
    return %arg1, %arg0 : i32, i32
  }
}

module attributes {stable_mosaic.version = 11 : i64} {
  func.func @kernel(%arg0: i32, %arg1: memref<4xi32, #tpu.memory_space<smem>>, %arg2: memref<4xi32, #tpu.memory_space<smem>>, %arg3: memref<2x16x32xbf16, #tpu.memory_space<vmem>>, %arg4: memref<2x16x32xbf16, #tpu.memory_space<vmem>>, %arg5: memref<32x96xbf16, #tpu.memory_space<vmem>>, %arg6: memref<1x96xf32, #tpu.memory_space<vmem>>, %arg7: memref<32x32xbf16, #tpu.memory_space<vmem>>, %arg8: memref<1x32xf32, #tpu.memory_space<vmem>>, %arg9: memref<1x32xf32, #tpu.memory_space<vmem>>, %arg10: memref<1x32xf32, #tpu.memory_space<vmem>>, %arg11: memref<32x32xbf16, #tpu.memory_space<vmem>>, %arg12: memref<1x32xf32, #tpu.memory_space<vmem>>, %arg13: memref<32x64xbf16, #tpu.memory_space<vmem>>, %arg14: memref<1x64xf32, #tpu.memory_space<vmem>>, %arg15: memref<32x32xbf16, #tpu.memory_space<vmem>>, %arg16: memref<1x32xf32, #tpu.memory_space<vmem>>, %arg17: memref<1x32xf32, #tpu.memory_space<vmem>>, %arg18: memref<1x32xf32, #tpu.memory_space<vmem>>, %arg19: memref<32x64xbf16, #tpu.memory_space<vmem>>, %arg20: memref<1x64xf32, #tpu.memory_space<vmem>>, %arg21: memref<64x32xbf16, #tpu.memory_space<vmem>>, %arg22: memref<1x32xf32, #tpu.memory_space<vmem>>, %arg23: memref<1x32xf32, #tpu.memory_space<vmem>>, %arg24: memref<1x32xf32, #tpu.memory_space<vmem>>, %arg25: memref<2x16x32xbf16, #tpu.memory_space<vmem>>, %arg26: memref<32x32xbf16, #tpu.memory_space<vmem>>) attributes {dimension_semantics = [#tpu.dimension_semantics<parallel>], iteration_bounds = array<i64: 2>, scalar_prefetch = 2 : i64, scratch_operands = 1 : i64, tpu.core_type = #tpu.core_type<tc>, window_params = [{transform_indices = @transform_0, window_bounds = array<i64: 2, 16, 32>}, {transform_indices = @transform_1, window_bounds = array<i64: 2, 16, 32>}, {pipeline_mode = #tpu.pipeline_mode<synchronous>, transform_indices = @transform_2, window_bounds = array<i64: 32, 96>}, {pipeline_mode = #tpu.pipeline_mode<synchronous>, transform_indices = @transform_3, window_bounds = array<i64: 1, 96>}, {pipeline_mode = #tpu.pipeline_mode<synchronous>, transform_indices = @transform_4, window_bounds = array<i64: 32, 32>}, {pipeline_mode = #tpu.pipeline_mode<synchronous>, transform_indices = @transform_5, window_bounds = array<i64: 1, 32>}, {pipeline_mode = #tpu.pipeline_mode<synchronous>, transform_indices = @transform_6, window_bounds = array<i64: 1, 32>}, {pipeline_mode = #tpu.pipeline_mode<synchronous>, transform_indices = @transform_7, window_bounds = array<i64: 1, 32>}, {pipeline_mode = #tpu.pipeline_mode<synchronous>, transform_indices = @transform_8, window_bounds = array<i64: 32, 32>}, {pipeline_mode = #tpu.pipeline_mode<synchronous>, transform_indices = @transform_9, window_bounds = array<i64: 1, 32>}, {pipeline_mode = #tpu.pipeline_mode<synchronous>, transform_indices = @transform_10, window_bounds = array<i64: 32, 64>}, {pipeline_mode = #tpu.pipeline_mode<synchronous>, transform_indices = @transform_11, window_bounds = array<i64: 1, 64>}, {pipeline_mode = #tpu.pipeline_mode<synchronous>, transform_indices = @transform_12, window_bounds = array<i64: 32, 32>}, {pipeline_mode = #tpu.pipeline_mode<synchronous>, transform_indices = @transform_13, window_bounds = array<i64: 1, 32>}, {pipeline_mode = #tpu.pipeline_mode<synchronous>, transform_indices = @transform_14, window_bounds = array<i64: 1, 32>}, {pipeline_mode = #tpu.pipeline_mode<synchronous>, transform_indices = @transform_15, window_bounds = array<i64: 1, 32>}, {pipeline_mode = #tpu.pipeline_mode<synchronous>, transform_indices = @transform_16, window_bounds = array<i64: 32, 64>}, {pipeline_mode = #tpu.pipeline_mode<synchronous>, transform_indices = @transform_17, window_bounds = array<i64: 1, 64>}, {pipeline_mode = #tpu.pipeline_mode<synchronous>, transform_indices = @transform_18, window_bounds = array<i64: 64, 32>}, {pipeline_mode = #tpu.pipeline_mode<synchronous>, transform_indices = @transform_19, window_bounds = array<i64: 1, 32>}, {pipeline_mode = #tpu.pipeline_mode<synchronous>, transform_indices = @transform_20, window_bounds = array<i64: 1, 32>}, {pipeline_mode = #tpu.pipeline_mode<synchronous>, transform_indices = @transform_21, window_bounds = array<i64: 1, 32>}, {transform_indices = @transform_22, window_bounds = array<i64: 2, 16, 32>}]} {
    %c2_i32 = arith.constant 2 : i32
    %0 = arith.muli %arg0, %c2_i32 : i32
    %1 = tpu.iota {dimensions = array<i32: 0>} : vector<16x1xi32>
    %2 = tpu.iota {dimensions = array<i32: 1>} : vector<1x16xi32>
    %3 = tpu.iota {dimensions = array<i32: 1>} : vector<1x16xi32>
    %4 = tpu.iota {dimensions = array<i32: 0>} : vector<32x1xi32>
    %c0_i32 = arith.constant 0 : i32
    %5 = arith.addi %0, %c0_i32 : i32
    %6 = arith.index_cast %5 : i32 to index
    %7 = memref.load %arg1[%6] : memref<4xi32, #tpu.memory_space<smem>>
    %c1_i32 = arith.constant 1 : i32
    %8 = arith.addi %0, %c1_i32 : i32
    %9 = arith.index_cast %8 : i32 to index
    %10 = memref.load %arg1[%9] : memref<4xi32, #tpu.memory_space<smem>>
    %c0_i32_0 = arith.constant 0 : i32
    %11 = arith.addi %0, %c0_i32_0 : i32
    %12 = arith.index_cast %11 : i32 to index
    %13 = memref.load %arg2[%12] : memref<4xi32, #tpu.memory_space<smem>>
    %c1_i32_1 = arith.constant 1 : i32
    %14 = arith.addi %0, %c1_i32_1 : i32
    %15 = arith.index_cast %14 : i32 to index
    %16 = memref.load %arg2[%15] : memref<4xi32, #tpu.memory_space<smem>>
    %cst = arith.constant 0.000000e+00 : f32
    %17 = vector.broadcast %cst : f32 to vector<32x1xf32>
    %c0_i32_2 = arith.constant 0 : i32
    %18 = vector.broadcast %c0_i32_2 : i32 to vector<32x1xi32>
    %19 = arith.cmpi sge, %4, %18 : vector<32x1xi32>
    %c0_i32_3 = arith.constant 0 : i32
    %20 = arith.addi %c0_i32_3, %7 : i32
    %21 = vector.broadcast %20 : i32 to vector<32x1xi32>
    %22 = arith.cmpi slt, %4, %21 : vector<32x1xi32>
    %23 = arith.andi %19, %22 : vector<32x1xi1>
    %24 = arith.extui %23 : vector<32x1xi1> to vector<32x1xi32>
    %25 = arith.sitofp %24 : vector<32x1xi32> to vector<32x1xf32>
    %26 = arith.addf %17, %25 : vector<32x1xf32>
    %c16_i32 = arith.constant 16 : i32
    %27 = vector.broadcast %c16_i32 : i32 to vector<32x1xi32>
    %28 = arith.cmpi sge, %4, %27 : vector<32x1xi32>
    %c16_i32_4 = arith.constant 16 : i32
    %29 = arith.addi %c16_i32_4, %10 : i32
    %30 = vector.broadcast %29 : i32 to vector<32x1xi32>
    %31 = arith.cmpi slt, %4, %30 : vector<32x1xi32>
    %32 = arith.andi %28, %31 : vector<32x1xi1>
    %33 = arith.extui %32 : vector<32x1xi1> to vector<32x1xi32>
    %34 = arith.sitofp %33 : vector<32x1xi32> to vector<32x1xf32>
    %35 = arith.addf %26, %34 : vector<32x1xf32>
    %36 = vector.broadcast %2 : vector<1x16xi32> to vector<16x16xi32>
    %37 = vector.broadcast %1 : vector<16x1xi32> to vector<16x16xi32>
    %38 = arith.cmpi sgt, %36, %37 : vector<16x16xi32>
    %39 = vector.broadcast %7 : i32 to vector<1x16xi32>
    %40 = arith.cmpi sge, %2, %39 : vector<1x16xi32>
    %41 = vector.broadcast %40 : vector<1x16xi1> to vector<16x16xi1>
    %42 = arith.ori %38, %41 : vector<16x16xi1>
    %cst_5 = arith.constant -1.000000e+09 : f32
    %cst_6 = arith.constant 0.000000e+00 : f32
    %43 = vector.broadcast %cst_5 : f32 to vector<16x16xf32>
    %44 = vector.broadcast %cst_6 : f32 to vector<16x16xf32>
    %45 = arith.select %42, %43, %44 : vector<16x16xi1>, vector<16x16xf32>
    %46 = vector.broadcast %2 : vector<1x16xi32> to vector<16x16xi32>
    %47 = vector.broadcast %1 : vector<16x1xi32> to vector<16x16xi32>
    %48 = arith.cmpi sgt, %46, %47 : vector<16x16xi32>
    %49 = vector.broadcast %10 : i32 to vector<1x16xi32>
    %50 = arith.cmpi sge, %2, %49 : vector<1x16xi32>
    %51 = vector.broadcast %50 : vector<1x16xi1> to vector<16x16xi1>
    %52 = arith.ori %48, %51 : vector<16x16xi1>
    %cst_7 = arith.constant -1.000000e+09 : f32
    %cst_8 = arith.constant 0.000000e+00 : f32
    %53 = vector.broadcast %cst_7 : f32 to vector<16x16xf32>
    %54 = vector.broadcast %cst_8 : f32 to vector<16x16xf32>
    %55 = arith.select %52, %53, %54 : vector<16x16xi1>, vector<16x16xf32>
    %56 = vector.broadcast %13 : i32 to vector<1x16xi32>
    %57 = arith.cmpi sge, %3, %56 : vector<1x16xi32>
    %cst_9 = arith.constant -1.000000e+09 : f32
    %cst_10 = arith.constant 0.000000e+00 : f32
    %58 = vector.broadcast %cst_9 : f32 to vector<1x16xf32>
    %59 = vector.broadcast %cst_10 : f32 to vector<1x16xf32>
    %60 = arith.select %57, %58, %59 : vector<1x16xi1>, vector<1x16xf32>
    %61 = vector.broadcast %16 : i32 to vector<1x16xi32>
    %62 = arith.cmpi sge, %3, %61 : vector<1x16xi32>
    %cst_11 = arith.constant -1.000000e+09 : f32
    %cst_12 = arith.constant 0.000000e+00 : f32
    %63 = vector.broadcast %cst_11 : f32 to vector<1x16xf32>
    %64 = vector.broadcast %cst_12 : f32 to vector<1x16xf32>
    %65 = arith.select %62, %63, %64 : vector<1x16xi1>, vector<1x16xf32>
    %c0 = arith.constant 0 : index
    %c0_13 = arith.constant 0 : index
    %c0_14 = arith.constant 0 : index
    %66 = vector.load %arg3[%c0, %c0_13, %c0_14] : memref<2x16x32xbf16, #tpu.memory_space<vmem>>, vector<2x16x32xbf16>
    %67 = vector.shape_cast %66 : vector<2x16x32xbf16> to vector<32x32xbf16>
    %68 = arith.extf %67 : vector<32x32xbf16> to vector<32x32xf32>
    %c0_15 = arith.constant 0 : index
    %c0_16 = arith.constant 0 : index
    %69 = vector.load %arg5[%c0_15, %c0_16] : memref<32x96xbf16, #tpu.memory_space<vmem>>, vector<32x96xbf16>
    %cst_17 = arith.constant dense<0.000000e+00> : vector<32x96xf32>
    %70 = tpu.matmul %67, %69, %cst_17 {dimension_numbers = #tpu.dot_dimension_numbers<[1], [0], [0], [1], [0, 0, 1, 1], [], []>} : vector<32x32xbf16>, vector<32x96xbf16>, vector<32x96xf32> -> vector<32x96xf32>
    %c0_18 = arith.constant 0 : index
    %c0_19 = arith.constant 0 : index
    %71 = vector.load %arg6[%c0_18, %c0_19] : memref<1x96xf32, #tpu.memory_space<vmem>>, vector<1x96xf32>
    %72 = vector.broadcast %71 : vector<1x96xf32> to vector<32x96xf32>
    %73 = arith.addf %70, %72 : vector<32x96xf32>
    %74 = vector.extract_strided_slice %73 {offsets = [0, 0], sizes = [16, 32], strides = [1, 1]} : vector<32x96xf32> to vector<16x32xf32>
    %75 = vector.extract_strided_slice %73 {offsets = [0, 32], sizes = [16, 32], strides = [1, 1]} : vector<32x96xf32> to vector<16x32xf32>
    %76 = vector.extract_strided_slice %73 {offsets = [0, 64], sizes = [16, 32], strides = [1, 1]} : vector<32x96xf32> to vector<16x32xf32>
    %77 = arith.truncf %74 : vector<16x32xf32> to vector<16x32xbf16>
    %78 = arith.truncf %75 : vector<16x32xf32> to vector<16x32xbf16>
    %79 = arith.truncf %76 : vector<16x32xf32> to vector<16x32xbf16>
    %80 = vector.extract_strided_slice %77 {offsets = [0, 0], sizes = [16, 16], strides = [1, 1]} : vector<16x32xbf16> to vector<16x16xbf16>
    %81 = vector.extract_strided_slice %78 {offsets = [0, 0], sizes = [16, 16], strides = [1, 1]} : vector<16x32xbf16> to vector<16x16xbf16>
    %82 = vector.extract_strided_slice %79 {offsets = [0, 0], sizes = [16, 16], strides = [1, 1]} : vector<16x32xbf16> to vector<16x16xbf16>
    %cst_20 = arith.constant dense<0.000000e+00> : vector<16x16xf32>
    %83 = tpu.matmul %80, %81, %cst_20 {dimension_numbers = #tpu.dot_dimension_numbers<[1], [1], [0], [0], [0, 0, 1, 0], [], []>} : vector<16x16xbf16>, vector<16x16xbf16>, vector<16x16xf32> -> vector<16x16xf32>
    %cst_21 = arith.constant 2.500000e-01 : f32
    %84 = vector.broadcast %cst_21 : f32 to vector<16x16xf32>
    %85 = arith.mulf %83, %84 : vector<16x16xf32>
    %86 = arith.addf %85, %45 : vector<16x16xf32>
    %cst_22 = arith.constant dense<0xFF800000> : vector<16xf32>
    %87 = vector.multi_reduction <maximumf>, %86, %cst_22 [1] : vector<16x16xf32> to vector<16xf32>
    %88 = vector.shape_cast %87 : vector<16xf32> to vector<16x1xf32>
    %89 = vector.broadcast %88 : vector<16x1xf32> to vector<16x16xf32>
    %90 = arith.subf %86, %89 : vector<16x16xf32>
    %91 = math.exp %90 : vector<16x16xf32>
    %cst_23 = arith.constant dense<0.000000e+00> : vector<16xf32>
    %92 = vector.multi_reduction <add>, %91, %cst_23 [1] : vector<16x16xf32> to vector<16xf32>
    %93 = vector.shape_cast %92 : vector<16xf32> to vector<16x1xf32>
    %94 = tpu.reciprocal %93 {approx = true} : vector<16x1xf32> -> vector<16x1xf32>
    %95 = vector.broadcast %94 : vector<16x1xf32> to vector<16x16xf32>
    %96 = arith.mulf %91, %95 : vector<16x16xf32>
    %97 = arith.truncf %96 : vector<16x16xf32> to vector<16x16xbf16>
    %cst_24 = arith.constant dense<0.000000e+00> : vector<16x16xf32>
    %98 = tpu.matmul %97, %82, %cst_24 {dimension_numbers = #tpu.dot_dimension_numbers<[1], [0], [0], [1], [0, 0, 1, 1], [], []>} : vector<16x16xbf16>, vector<16x16xbf16>, vector<16x16xf32> -> vector<16x16xf32>
    %99 = arith.truncf %98 : vector<16x16xf32> to vector<16x16xbf16>
    %c0_25 = arith.constant 0 : index
    %c0_26 = arith.constant 0 : index
    %100 = vector.load %arg26[%c0_25, %c0_26] : memref<32x32xbf16, #tpu.memory_space<vmem>>, vector<16x16xbf16>
    tpu.vector_store %arg26[%c0_25, %c0_26], %99 {strides = array<i32>} : memref<32x32xbf16, #tpu.memory_space<vmem>>, vector<16x16xbf16>,
    %101 = vector.extract_strided_slice %77 {offsets = [0, 16], sizes = [16, 16], strides = [1, 1]} : vector<16x32xbf16> to vector<16x16xbf16>
    %102 = vector.extract_strided_slice %78 {offsets = [0, 16], sizes = [16, 16], strides = [1, 1]} : vector<16x32xbf16> to vector<16x16xbf16>
    %103 = vector.extract_strided_slice %79 {offsets = [0, 16], sizes = [16, 16], strides = [1, 1]} : vector<16x32xbf16> to vector<16x16xbf16>
    %cst_27 = arith.constant dense<0.000000e+00> : vector<16x16xf32>
    %104 = tpu.matmul %101, %102, %cst_27 {dimension_numbers = #tpu.dot_dimension_numbers<[1], [1], [0], [0], [0, 0, 1, 0], [], []>} : vector<16x16xbf16>, vector<16x16xbf16>, vector<16x16xf32> -> vector<16x16xf32>
    %cst_28 = arith.constant 2.500000e-01 : f32
    %105 = vector.broadcast %cst_28 : f32 to vector<16x16xf32>
    %106 = arith.mulf %104, %105 : vector<16x16xf32>
    %107 = arith.addf %106, %45 : vector<16x16xf32>
    %cst_29 = arith.constant dense<0xFF800000> : vector<16xf32>
    %108 = vector.multi_reduction <maximumf>, %107, %cst_29 [1] : vector<16x16xf32> to vector<16xf32>
    %109 = vector.shape_cast %108 : vector<16xf32> to vector<16x1xf32>
    %110 = vector.broadcast %109 : vector<16x1xf32> to vector<16x16xf32>
    %111 = arith.subf %107, %110 : vector<16x16xf32>
    %112 = math.exp %111 : vector<16x16xf32>
    %cst_30 = arith.constant dense<0.000000e+00> : vector<16xf32>
    %113 = vector.multi_reduction <add>, %112, %cst_30 [1] : vector<16x16xf32> to vector<16xf32>
    %114 = vector.shape_cast %113 : vector<16xf32> to vector<16x1xf32>
    %115 = tpu.reciprocal %114 {approx = true} : vector<16x1xf32> -> vector<16x1xf32>
    %116 = vector.broadcast %115 : vector<16x1xf32> to vector<16x16xf32>
    %117 = arith.mulf %112, %116 : vector<16x16xf32>
    %118 = arith.truncf %117 : vector<16x16xf32> to vector<16x16xbf16>
    %cst_31 = arith.constant dense<0.000000e+00> : vector<16x16xf32>
    %119 = tpu.matmul %118, %103, %cst_31 {dimension_numbers = #tpu.dot_dimension_numbers<[1], [0], [0], [1], [0, 0, 1, 1], [], []>} : vector<16x16xbf16>, vector<16x16xbf16>, vector<16x16xf32> -> vector<16x16xf32>
    %120 = arith.truncf %119 : vector<16x16xf32> to vector<16x16xbf16>
    %c0_32 = arith.constant 0 : index
    %c16 = arith.constant 16 : index
    %121 = vector.load %arg26[%c0_32, %c16] : memref<32x32xbf16, #tpu.memory_space<vmem>>, vector<16x16xbf16>
    tpu.vector_store %arg26[%c0_32, %c16], %120 {strides = array<i32>} : memref<32x32xbf16, #tpu.memory_space<vmem>>, vector<16x16xbf16>,
    %122 = vector.extract_strided_slice %73 {offsets = [16, 0], sizes = [16, 32], strides = [1, 1]} : vector<32x96xf32> to vector<16x32xf32>
    %123 = vector.extract_strided_slice %73 {offsets = [16, 32], sizes = [16, 32], strides = [1, 1]} : vector<32x96xf32> to vector<16x32xf32>
    %124 = vector.extract_strided_slice %73 {offsets = [16, 64], sizes = [16, 32], strides = [1, 1]} : vector<32x96xf32> to vector<16x32xf32>
    %125 = arith.truncf %122 : vector<16x32xf32> to vector<16x32xbf16>
    %126 = arith.truncf %123 : vector<16x32xf32> to vector<16x32xbf16>
    %127 = arith.truncf %124 : vector<16x32xf32> to vector<16x32xbf16>
    %128 = vector.extract_strided_slice %125 {offsets = [0, 0], sizes = [16, 16], strides = [1, 1]} : vector<16x32xbf16> to vector<16x16xbf16>
    %129 = vector.extract_strided_slice %126 {offsets = [0, 0], sizes = [16, 16], strides = [1, 1]} : vector<16x32xbf16> to vector<16x16xbf16>
    %130 = vector.extract_strided_slice %127 {offsets = [0, 0], sizes = [16, 16], strides = [1, 1]} : vector<16x32xbf16> to vector<16x16xbf16>
    %cst_33 = arith.constant dense<0.000000e+00> : vector<16x16xf32>
    %131 = tpu.matmul %128, %129, %cst_33 {dimension_numbers = #tpu.dot_dimension_numbers<[1], [1], [0], [0], [0, 0, 1, 0], [], []>} : vector<16x16xbf16>, vector<16x16xbf16>, vector<16x16xf32> -> vector<16x16xf32>
    %cst_34 = arith.constant 2.500000e-01 : f32
    %132 = vector.broadcast %cst_34 : f32 to vector<16x16xf32>
    %133 = arith.mulf %131, %132 : vector<16x16xf32>
    %134 = arith.addf %133, %55 : vector<16x16xf32>
    %cst_35 = arith.constant dense<0xFF800000> : vector<16xf32>
    %135 = vector.multi_reduction <maximumf>, %134, %cst_35 [1] : vector<16x16xf32> to vector<16xf32>
    %136 = vector.shape_cast %135 : vector<16xf32> to vector<16x1xf32>
    %137 = vector.broadcast %136 : vector<16x1xf32> to vector<16x16xf32>
    %138 = arith.subf %134, %137 : vector<16x16xf32>
    %139 = math.exp %138 : vector<16x16xf32>
    %cst_36 = arith.constant dense<0.000000e+00> : vector<16xf32>
    %140 = vector.multi_reduction <add>, %139, %cst_36 [1] : vector<16x16xf32> to vector<16xf32>
    %141 = vector.shape_cast %140 : vector<16xf32> to vector<16x1xf32>
    %142 = tpu.reciprocal %141 {approx = true} : vector<16x1xf32> -> vector<16x1xf32>
    %143 = vector.broadcast %142 : vector<16x1xf32> to vector<16x16xf32>
    %144 = arith.mulf %139, %143 : vector<16x16xf32>
    %145 = arith.truncf %144 : vector<16x16xf32> to vector<16x16xbf16>
    %cst_37 = arith.constant dense<0.000000e+00> : vector<16x16xf32>
    %146 = tpu.matmul %145, %130, %cst_37 {dimension_numbers = #tpu.dot_dimension_numbers<[1], [0], [0], [1], [0, 0, 1, 1], [], []>} : vector<16x16xbf16>, vector<16x16xbf16>, vector<16x16xf32> -> vector<16x16xf32>
    %147 = arith.truncf %146 : vector<16x16xf32> to vector<16x16xbf16>
    %c16_38 = arith.constant 16 : index
    %c0_39 = arith.constant 0 : index
    %148 = vector.load %arg26[%c16_38, %c0_39] : memref<32x32xbf16, #tpu.memory_space<vmem>>, vector<16x16xbf16>
    tpu.vector_store %arg26[%c16_38, %c0_39], %147 {strides = array<i32>} : memref<32x32xbf16, #tpu.memory_space<vmem>>, vector<16x16xbf16>,
    %149 = vector.extract_strided_slice %125 {offsets = [0, 16], sizes = [16, 16], strides = [1, 1]} : vector<16x32xbf16> to vector<16x16xbf16>
    %150 = vector.extract_strided_slice %126 {offsets = [0, 16], sizes = [16, 16], strides = [1, 1]} : vector<16x32xbf16> to vector<16x16xbf16>
    %151 = vector.extract_strided_slice %127 {offsets = [0, 16], sizes = [16, 16], strides = [1, 1]} : vector<16x32xbf16> to vector<16x16xbf16>
    %cst_40 = arith.constant dense<0.000000e+00> : vector<16x16xf32>
    %152 = tpu.matmul %149, %150, %cst_40 {dimension_numbers = #tpu.dot_dimension_numbers<[1], [1], [0], [0], [0, 0, 1, 0], [], []>} : vector<16x16xbf16>, vector<16x16xbf16>, vector<16x16xf32> -> vector<16x16xf32>
    %cst_41 = arith.constant 2.500000e-01 : f32
    %153 = vector.broadcast %cst_41 : f32 to vector<16x16xf32>
    %154 = arith.mulf %152, %153 : vector<16x16xf32>
    %155 = arith.addf %154, %55 : vector<16x16xf32>
    %cst_42 = arith.constant dense<0xFF800000> : vector<16xf32>
    %156 = vector.multi_reduction <maximumf>, %155, %cst_42 [1] : vector<16x16xf32> to vector<16xf32>
    %157 = vector.shape_cast %156 : vector<16xf32> to vector<16x1xf32>
    %158 = vector.broadcast %157 : vector<16x1xf32> to vector<16x16xf32>
    %159 = arith.subf %155, %158 : vector<16x16xf32>
    %160 = math.exp %159 : vector<16x16xf32>
    %cst_43 = arith.constant dense<0.000000e+00> : vector<16xf32>
    %161 = vector.multi_reduction <add>, %160, %cst_43 [1] : vector<16x16xf32> to vector<16xf32>
    %162 = vector.shape_cast %161 : vector<16xf32> to vector<16x1xf32>
    %163 = tpu.reciprocal %162 {approx = true} : vector<16x1xf32> -> vector<16x1xf32>
    %164 = vector.broadcast %163 : vector<16x1xf32> to vector<16x16xf32>
    %165 = arith.mulf %160, %164 : vector<16x16xf32>
    %166 = arith.truncf %165 : vector<16x16xf32> to vector<16x16xbf16>
    %cst_44 = arith.constant dense<0.000000e+00> : vector<16x16xf32>
    %167 = tpu.matmul %166, %151, %cst_44 {dimension_numbers = #tpu.dot_dimension_numbers<[1], [0], [0], [1], [0, 0, 1, 1], [], []>} : vector<16x16xbf16>, vector<16x16xbf16>, vector<16x16xf32> -> vector<16x16xf32>
    %168 = arith.truncf %167 : vector<16x16xf32> to vector<16x16xbf16>
    %c16_45 = arith.constant 16 : index
    %c16_46 = arith.constant 16 : index
    %169 = vector.load %arg26[%c16_45, %c16_46] : memref<32x32xbf16, #tpu.memory_space<vmem>>, vector<16x16xbf16>
    tpu.vector_store %arg26[%c16_45, %c16_46], %168 {strides = array<i32>} : memref<32x32xbf16, #tpu.memory_space<vmem>>, vector<16x16xbf16>,
    %c0_47 = arith.constant 0 : index
    %c0_48 = arith.constant 0 : index
    %170 = vector.load %arg26[%c0_47, %c0_48] : memref<32x32xbf16, #tpu.memory_space<vmem>>, vector<32x32xbf16>
    %c0_49 = arith.constant 0 : index
    %c0_50 = arith.constant 0 : index
    %171 = vector.load %arg7[%c0_49, %c0_50] : memref<32x32xbf16, #tpu.memory_space<vmem>>, vector<32x32xbf16>
    %cst_51 = arith.constant dense<0.000000e+00> : vector<32x32xf32>
    %172 = tpu.matmul %170, %171, %cst_51 {dimension_numbers = #tpu.dot_dimension_numbers<[1], [0], [0], [1], [0, 0, 1, 1], [], []>} : vector<32x32xbf16>, vector<32x32xbf16>, vector<32x32xf32> -> vector<32x32xf32>
    %c0_52 = arith.constant 0 : index
    %c0_53 = arith.constant 0 : index
    %173 = vector.load %arg8[%c0_52, %c0_53] : memref<1x32xf32, #tpu.memory_space<vmem>>, vector<1x32xf32>
    %174 = vector.broadcast %173 : vector<1x32xf32> to vector<32x32xf32>
    %175 = arith.addf %172, %174 : vector<32x32xf32>
    %176 = arith.addf %175, %68 : vector<32x32xf32>
    %c0_54 = arith.constant 0 : index
    %c0_55 = arith.constant 0 : index
    %177 = vector.load %arg9[%c0_54, %c0_55] : memref<1x32xf32, #tpu.memory_space<vmem>>, vector<1x32xf32>
    %c0_56 = arith.constant 0 : index
    %c0_57 = arith.constant 0 : index
    %178 = vector.load %arg10[%c0_56, %c0_57] : memref<1x32xf32, #tpu.memory_space<vmem>>, vector<1x32xf32>
    %cst_58 = arith.constant dense<0.000000e+00> : vector<32xf32>
    %179 = vector.multi_reduction <add>, %176, %cst_58 [1] : vector<32x32xf32> to vector<32xf32>
    %180 = vector.shape_cast %179 : vector<32xf32> to vector<32x1xf32>
    %cst_59 = arith.constant 3.125000e-02 : f32
    %181 = vector.broadcast %cst_59 : f32 to vector<32x1xf32>
    %182 = arith.mulf %180, %181 : vector<32x1xf32>
    %183 = arith.mulf %176, %176 : vector<32x32xf32>
    %cst_60 = arith.constant dense<0.000000e+00> : vector<32xf32>
    %184 = vector.multi_reduction <add>, %183, %cst_60 [1] : vector<32x32xf32> to vector<32xf32>
    %185 = vector.shape_cast %184 : vector<32xf32> to vector<32x1xf32>
    %cst_61 = arith.constant 3.125000e-02 : f32
    %186 = vector.broadcast %cst_61 : f32 to vector<32x1xf32>
    %187 = arith.mulf %185, %186 : vector<32x1xf32>
    %188 = arith.mulf %182, %182 : vector<32x1xf32>
    %189 = arith.subf %187, %188 : vector<32x1xf32>
    %190 = vector.broadcast %182 : vector<32x1xf32> to vector<32x32xf32>
    %191 = arith.subf %176, %190 : vector<32x32xf32>
    %cst_62 = arith.constant 9.99999974E-6 : f32
    %192 = vector.broadcast %cst_62 : f32 to vector<32x1xf32>
    %193 = arith.addf %189, %192 : vector<32x1xf32>
    %194 = math.rsqrt %193 : vector<32x1xf32>
    %195 = vector.broadcast %194 : vector<32x1xf32> to vector<32x32xf32>
    %196 = arith.mulf %191, %195 : vector<32x32xf32>
    %197 = vector.broadcast %177 : vector<1x32xf32> to vector<32x32xf32>
    %198 = arith.mulf %196, %197 : vector<32x32xf32>
    %199 = vector.broadcast %178 : vector<1x32xf32> to vector<32x32xf32>
    %200 = arith.addf %198, %199 : vector<32x32xf32>
    %201 = vector.broadcast %35 : vector<32x1xf32> to vector<32x32xf32>
    %202 = arith.mulf %200, %201 : vector<32x32xf32>
    %c0_63 = arith.constant 0 : index
    %c0_64 = arith.constant 0 : index
    %c0_65 = arith.constant 0 : index
    %203 = vector.load %arg4[%c0_63, %c0_64, %c0_65] : memref<2x16x32xbf16, #tpu.memory_space<vmem>>, vector<2x16x32xbf16>
    %204 = vector.shape_cast %203 : vector<2x16x32xbf16> to vector<32x32xbf16>
    %205 = arith.truncf %202 : vector<32x32xf32> to vector<32x32xbf16>
    %c0_66 = arith.constant 0 : index
    %c0_67 = arith.constant 0 : index
    %206 = vector.load %arg11[%c0_66, %c0_67] : memref<32x32xbf16, #tpu.memory_space<vmem>>, vector<32x32xbf16>
    %cst_68 = arith.constant dense<0.000000e+00> : vector<32x32xf32>
    %207 = tpu.matmul %205, %206, %cst_68 {dimension_numbers = #tpu.dot_dimension_numbers<[1], [0], [0], [1], [0, 0, 1, 1], [], []>} : vector<32x32xbf16>, vector<32x32xbf16>, vector<32x32xf32> -> vector<32x32xf32>
    %c0_69 = arith.constant 0 : index
    %c0_70 = arith.constant 0 : index
    %208 = vector.load %arg12[%c0_69, %c0_70] : memref<1x32xf32, #tpu.memory_space<vmem>>, vector<1x32xf32>
    %209 = vector.broadcast %208 : vector<1x32xf32> to vector<32x32xf32>
    %210 = arith.addf %207, %209 : vector<32x32xf32>
    %c0_71 = arith.constant 0 : index
    %c0_72 = arith.constant 0 : index
    %211 = vector.load %arg13[%c0_71, %c0_72] : memref<32x64xbf16, #tpu.memory_space<vmem>>, vector<32x64xbf16>
    %cst_73 = arith.constant dense<0.000000e+00> : vector<32x64xf32>
    %212 = tpu.matmul %204, %211, %cst_73 {dimension_numbers = #tpu.dot_dimension_numbers<[1], [0], [0], [1], [0, 0, 1, 1], [], []>} : vector<32x32xbf16>, vector<32x64xbf16>, vector<32x64xf32> -> vector<32x64xf32>
    %c0_74 = arith.constant 0 : index
    %c0_75 = arith.constant 0 : index
    %213 = vector.load %arg14[%c0_74, %c0_75] : memref<1x64xf32, #tpu.memory_space<vmem>>, vector<1x64xf32>
    %214 = vector.broadcast %213 : vector<1x64xf32> to vector<32x64xf32>
    %215 = arith.addf %212, %214 : vector<32x64xf32>
    %216 = vector.extract_strided_slice %210 {offsets = [0, 0], sizes = [16, 32], strides = [1, 1]} : vector<32x32xf32> to vector<16x32xf32>
    %217 = vector.extract_strided_slice %215 {offsets = [0, 0], sizes = [16, 32], strides = [1, 1]} : vector<32x64xf32> to vector<16x32xf32>
    %218 = vector.extract_strided_slice %215 {offsets = [0, 32], sizes = [16, 32], strides = [1, 1]} : vector<32x64xf32> to vector<16x32xf32>
    %219 = arith.truncf %216 : vector<16x32xf32> to vector<16x32xbf16>
    %220 = arith.truncf %217 : vector<16x32xf32> to vector<16x32xbf16>
    %221 = arith.truncf %218 : vector<16x32xf32> to vector<16x32xbf16>
    %222 = vector.extract_strided_slice %219 {offsets = [0, 0], sizes = [16, 16], strides = [1, 1]} : vector<16x32xbf16> to vector<16x16xbf16>
    %223 = vector.extract_strided_slice %220 {offsets = [0, 0], sizes = [16, 16], strides = [1, 1]} : vector<16x32xbf16> to vector<16x16xbf16>
    %224 = vector.extract_strided_slice %221 {offsets = [0, 0], sizes = [16, 16], strides = [1, 1]} : vector<16x32xbf16> to vector<16x16xbf16>
    %cst_76 = arith.constant dense<0.000000e+00> : vector<16x16xf32>
    %225 = tpu.matmul %222, %223, %cst_76 {dimension_numbers = #tpu.dot_dimension_numbers<[1], [1], [0], [0], [0, 0, 1, 0], [], []>} : vector<16x16xbf16>, vector<16x16xbf16>, vector<16x16xf32> -> vector<16x16xf32>
    %cst_77 = arith.constant 2.500000e-01 : f32
    %226 = vector.broadcast %cst_77 : f32 to vector<16x16xf32>
    %227 = arith.mulf %225, %226 : vector<16x16xf32>
    %228 = vector.broadcast %60 : vector<1x16xf32> to vector<16x16xf32>
    %229 = arith.addf %227, %228 : vector<16x16xf32>
    %cst_78 = arith.constant dense<0xFF800000> : vector<16xf32>
    %230 = vector.multi_reduction <maximumf>, %229, %cst_78 [1] : vector<16x16xf32> to vector<16xf32>
    %231 = vector.shape_cast %230 : vector<16xf32> to vector<16x1xf32>
    %232 = vector.broadcast %231 : vector<16x1xf32> to vector<16x16xf32>
    %233 = arith.subf %229, %232 : vector<16x16xf32>
    %234 = math.exp %233 : vector<16x16xf32>
    %cst_79 = arith.constant dense<0.000000e+00> : vector<16xf32>
    %235 = vector.multi_reduction <add>, %234, %cst_79 [1] : vector<16x16xf32> to vector<16xf32>
    %236 = vector.shape_cast %235 : vector<16xf32> to vector<16x1xf32>
    %237 = tpu.reciprocal %236 {approx = true} : vector<16x1xf32> -> vector<16x1xf32>
    %238 = vector.broadcast %237 : vector<16x1xf32> to vector<16x16xf32>
    %239 = arith.mulf %234, %238 : vector<16x16xf32>
    %240 = arith.truncf %239 : vector<16x16xf32> to vector<16x16xbf16>
    %cst_80 = arith.constant dense<0.000000e+00> : vector<16x16xf32>
    %241 = tpu.matmul %240, %224, %cst_80 {dimension_numbers = #tpu.dot_dimension_numbers<[1], [0], [0], [1], [0, 0, 1, 1], [], []>} : vector<16x16xbf16>, vector<16x16xbf16>, vector<16x16xf32> -> vector<16x16xf32>
    %242 = arith.truncf %241 : vector<16x16xf32> to vector<16x16xbf16>
    %c0_81 = arith.constant 0 : index
    %c0_82 = arith.constant 0 : index
    %243 = vector.load %arg26[%c0_81, %c0_82] : memref<32x32xbf16, #tpu.memory_space<vmem>>, vector<16x16xbf16>
    tpu.vector_store %arg26[%c0_81, %c0_82], %242 {strides = array<i32>} : memref<32x32xbf16, #tpu.memory_space<vmem>>, vector<16x16xbf16>,
    %244 = vector.extract_strided_slice %219 {offsets = [0, 16], sizes = [16, 16], strides = [1, 1]} : vector<16x32xbf16> to vector<16x16xbf16>
    %245 = vector.extract_strided_slice %220 {offsets = [0, 16], sizes = [16, 16], strides = [1, 1]} : vector<16x32xbf16> to vector<16x16xbf16>
    %246 = vector.extract_strided_slice %221 {offsets = [0, 16], sizes = [16, 16], strides = [1, 1]} : vector<16x32xbf16> to vector<16x16xbf16>
    %cst_83 = arith.constant dense<0.000000e+00> : vector<16x16xf32>
    %247 = tpu.matmul %244, %245, %cst_83 {dimension_numbers = #tpu.dot_dimension_numbers<[1], [1], [0], [0], [0, 0, 1, 0], [], []>} : vector<16x16xbf16>, vector<16x16xbf16>, vector<16x16xf32> -> vector<16x16xf32>
    %cst_84 = arith.constant 2.500000e-01 : f32
    %248 = vector.broadcast %cst_84 : f32 to vector<16x16xf32>
    %249 = arith.mulf %247, %248 : vector<16x16xf32>
    %250 = vector.broadcast %60 : vector<1x16xf32> to vector<16x16xf32>
    %251 = arith.addf %249, %250 : vector<16x16xf32>
    %cst_85 = arith.constant dense<0xFF800000> : vector<16xf32>
    %252 = vector.multi_reduction <maximumf>, %251, %cst_85 [1] : vector<16x16xf32> to vector<16xf32>
    %253 = vector.shape_cast %252 : vector<16xf32> to vector<16x1xf32>
    %254 = vector.broadcast %253 : vector<16x1xf32> to vector<16x16xf32>
    %255 = arith.subf %251, %254 : vector<16x16xf32>
    %256 = math.exp %255 : vector<16x16xf32>
    %cst_86 = arith.constant dense<0.000000e+00> : vector<16xf32>
    %257 = vector.multi_reduction <add>, %256, %cst_86 [1] : vector<16x16xf32> to vector<16xf32>
    %258 = vector.shape_cast %257 : vector<16xf32> to vector<16x1xf32>
    %259 = tpu.reciprocal %258 {approx = true} : vector<16x1xf32> -> vector<16x1xf32>
    %260 = vector.broadcast %259 : vector<16x1xf32> to vector<16x16xf32>
    %261 = arith.mulf %256, %260 : vector<16x16xf32>
    %262 = arith.truncf %261 : vector<16x16xf32> to vector<16x16xbf16>
    %cst_87 = arith.constant dense<0.000000e+00> : vector<16x16xf32>
    %263 = tpu.matmul %262, %246, %cst_87 {dimension_numbers = #tpu.dot_dimension_numbers<[1], [0], [0], [1], [0, 0, 1, 1], [], []>} : vector<16x16xbf16>, vector<16x16xbf16>, vector<16x16xf32> -> vector<16x16xf32>
    %264 = arith.truncf %263 : vector<16x16xf32> to vector<16x16xbf16>
    %c0_88 = arith.constant 0 : index
    %c16_89 = arith.constant 16 : index
    %265 = vector.load %arg26[%c0_88, %c16_89] : memref<32x32xbf16, #tpu.memory_space<vmem>>, vector<16x16xbf16>
    tpu.vector_store %arg26[%c0_88, %c16_89], %264 {strides = array<i32>} : memref<32x32xbf16, #tpu.memory_space<vmem>>, vector<16x16xbf16>,
    %266 = vector.extract_strided_slice %210 {offsets = [16, 0], sizes = [16, 32], strides = [1, 1]} : vector<32x32xf32> to vector<16x32xf32>
    %267 = vector.extract_strided_slice %215 {offsets = [16, 0], sizes = [16, 32], strides = [1, 1]} : vector<32x64xf32> to vector<16x32xf32>
    %268 = vector.extract_strided_slice %215 {offsets = [16, 32], sizes = [16, 32], strides = [1, 1]} : vector<32x64xf32> to vector<16x32xf32>
    %269 = arith.truncf %266 : vector<16x32xf32> to vector<16x32xbf16>
    %270 = arith.truncf %267 : vector<16x32xf32> to vector<16x32xbf16>
    %271 = arith.truncf %268 : vector<16x32xf32> to vector<16x32xbf16>
    %272 = vector.extract_strided_slice %269 {offsets = [0, 0], sizes = [16, 16], strides = [1, 1]} : vector<16x32xbf16> to vector<16x16xbf16>
    %273 = vector.extract_strided_slice %270 {offsets = [0, 0], sizes = [16, 16], strides = [1, 1]} : vector<16x32xbf16> to vector<16x16xbf16>
    %274 = vector.extract_strided_slice %271 {offsets = [0, 0], sizes = [16, 16], strides = [1, 1]} : vector<16x32xbf16> to vector<16x16xbf16>
    %cst_90 = arith.constant dense<0.000000e+00> : vector<16x16xf32>
    %275 = tpu.matmul %272, %273, %cst_90 {dimension_numbers = #tpu.dot_dimension_numbers<[1], [1], [0], [0], [0, 0, 1, 0], [], []>} : vector<16x16xbf16>, vector<16x16xbf16>, vector<16x16xf32> -> vector<16x16xf32>
    %cst_91 = arith.constant 2.500000e-01 : f32
    %276 = vector.broadcast %cst_91 : f32 to vector<16x16xf32>
    %277 = arith.mulf %275, %276 : vector<16x16xf32>
    %278 = vector.broadcast %65 : vector<1x16xf32> to vector<16x16xf32>
    %279 = arith.addf %277, %278 : vector<16x16xf32>
    %cst_92 = arith.constant dense<0xFF800000> : vector<16xf32>
    %280 = vector.multi_reduction <maximumf>, %279, %cst_92 [1] : vector<16x16xf32> to vector<16xf32>
    %281 = vector.shape_cast %280 : vector<16xf32> to vector<16x1xf32>
    %282 = vector.broadcast %281 : vector<16x1xf32> to vector<16x16xf32>
    %283 = arith.subf %279, %282 : vector<16x16xf32>
    %284 = math.exp %283 : vector<16x16xf32>
    %cst_93 = arith.constant dense<0.000000e+00> : vector<16xf32>
    %285 = vector.multi_reduction <add>, %284, %cst_93 [1] : vector<16x16xf32> to vector<16xf32>
    %286 = vector.shape_cast %285 : vector<16xf32> to vector<16x1xf32>
    %287 = tpu.reciprocal %286 {approx = true} : vector<16x1xf32> -> vector<16x1xf32>
    %288 = vector.broadcast %287 : vector<16x1xf32> to vector<16x16xf32>
    %289 = arith.mulf %284, %288 : vector<16x16xf32>
    %290 = arith.truncf %289 : vector<16x16xf32> to vector<16x16xbf16>
    %cst_94 = arith.constant dense<0.000000e+00> : vector<16x16xf32>
    %291 = tpu.matmul %290, %274, %cst_94 {dimension_numbers = #tpu.dot_dimension_numbers<[1], [0], [0], [1], [0, 0, 1, 1], [], []>} : vector<16x16xbf16>, vector<16x16xbf16>, vector<16x16xf32> -> vector<16x16xf32>
    %292 = arith.truncf %291 : vector<16x16xf32> to vector<16x16xbf16>
    %c16_95 = arith.constant 16 : index
    %c0_96 = arith.constant 0 : index
    %293 = vector.load %arg26[%c16_95, %c0_96] : memref<32x32xbf16, #tpu.memory_space<vmem>>, vector<16x16xbf16>
    tpu.vector_store %arg26[%c16_95, %c0_96], %292 {strides = array<i32>} : memref<32x32xbf16, #tpu.memory_space<vmem>>, vector<16x16xbf16>,
    %294 = vector.extract_strided_slice %269 {offsets = [0, 16], sizes = [16, 16], strides = [1, 1]} : vector<16x32xbf16> to vector<16x16xbf16>
    %295 = vector.extract_strided_slice %270 {offsets = [0, 16], sizes = [16, 16], strides = [1, 1]} : vector<16x32xbf16> to vector<16x16xbf16>
    %296 = vector.extract_strided_slice %271 {offsets = [0, 16], sizes = [16, 16], strides = [1, 1]} : vector<16x32xbf16> to vector<16x16xbf16>
    %cst_97 = arith.constant dense<0.000000e+00> : vector<16x16xf32>
    %297 = tpu.matmul %294, %295, %cst_97 {dimension_numbers = #tpu.dot_dimension_numbers<[1], [1], [0], [0], [0, 0, 1, 0], [], []>} : vector<16x16xbf16>, vector<16x16xbf16>, vector<16x16xf32> -> vector<16x16xf32>
    %cst_98 = arith.constant 2.500000e-01 : f32
    %298 = vector.broadcast %cst_98 : f32 to vector<16x16xf32>
    %299 = arith.mulf %297, %298 : vector<16x16xf32>
    %300 = vector.broadcast %65 : vector<1x16xf32> to vector<16x16xf32>
    %301 = arith.addf %299, %300 : vector<16x16xf32>
    %cst_99 = arith.constant dense<0xFF800000> : vector<16xf32>
    %302 = vector.multi_reduction <maximumf>, %301, %cst_99 [1] : vector<16x16xf32> to vector<16xf32>
    %303 = vector.shape_cast %302 : vector<16xf32> to vector<16x1xf32>
    %304 = vector.broadcast %303 : vector<16x1xf32> to vector<16x16xf32>
    %305 = arith.subf %301, %304 : vector<16x16xf32>
    %306 = math.exp %305 : vector<16x16xf32>
    %cst_100 = arith.constant dense<0.000000e+00> : vector<16xf32>
    %307 = vector.multi_reduction <add>, %306, %cst_100 [1] : vector<16x16xf32> to vector<16xf32>
    %308 = vector.shape_cast %307 : vector<16xf32> to vector<16x1xf32>
    %309 = tpu.reciprocal %308 {approx = true} : vector<16x1xf32> -> vector<16x1xf32>
    %310 = vector.broadcast %309 : vector<16x1xf32> to vector<16x16xf32>
    %311 = arith.mulf %306, %310 : vector<16x16xf32>
    %312 = arith.truncf %311 : vector<16x16xf32> to vector<16x16xbf16>
    %cst_101 = arith.constant dense<0.000000e+00> : vector<16x16xf32>
    %313 = tpu.matmul %312, %296, %cst_101 {dimension_numbers = #tpu.dot_dimension_numbers<[1], [0], [0], [1], [0, 0, 1, 1], [], []>} : vector<16x16xbf16>, vector<16x16xbf16>, vector<16x16xf32> -> vector<16x16xf32>
    %314 = arith.truncf %313 : vector<16x16xf32> to vector<16x16xbf16>
    %c16_102 = arith.constant 16 : index
    %c16_103 = arith.constant 16 : index
    %315 = vector.load %arg26[%c16_102, %c16_103] : memref<32x32xbf16, #tpu.memory_space<vmem>>, vector<16x16xbf16>
    tpu.vector_store %arg26[%c16_102, %c16_103], %314 {strides = array<i32>} : memref<32x32xbf16, #tpu.memory_space<vmem>>, vector<16x16xbf16>,
    %c0_104 = arith.constant 0 : index
    %c0_105 = arith.constant 0 : index
    %316 = vector.load %arg26[%c0_104, %c0_105] : memref<32x32xbf16, #tpu.memory_space<vmem>>, vector<32x32xbf16>
    %c0_106 = arith.constant 0 : index
    %c0_107 = arith.constant 0 : index
    %317 = vector.load %arg15[%c0_106, %c0_107] : memref<32x32xbf16, #tpu.memory_space<vmem>>, vector<32x32xbf16>
    %cst_108 = arith.constant dense<0.000000e+00> : vector<32x32xf32>
    %318 = tpu.matmul %316, %317, %cst_108 {dimension_numbers = #tpu.dot_dimension_numbers<[1], [0], [0], [1], [0, 0, 1, 1], [], []>} : vector<32x32xbf16>, vector<32x32xbf16>, vector<32x32xf32> -> vector<32x32xf32>
    %c0_109 = arith.constant 0 : index
    %c0_110 = arith.constant 0 : index
    %319 = vector.load %arg16[%c0_109, %c0_110] : memref<1x32xf32, #tpu.memory_space<vmem>>, vector<1x32xf32>
    %320 = vector.broadcast %319 : vector<1x32xf32> to vector<32x32xf32>
    %321 = arith.addf %318, %320 : vector<32x32xf32>
    %322 = arith.addf %321, %202 : vector<32x32xf32>
    %c0_111 = arith.constant 0 : index
    %c0_112 = arith.constant 0 : index
    %323 = vector.load %arg17[%c0_111, %c0_112] : memref<1x32xf32, #tpu.memory_space<vmem>>, vector<1x32xf32>
    %c0_113 = arith.constant 0 : index
    %c0_114 = arith.constant 0 : index
    %324 = vector.load %arg18[%c0_113, %c0_114] : memref<1x32xf32, #tpu.memory_space<vmem>>, vector<1x32xf32>
    %cst_115 = arith.constant dense<0.000000e+00> : vector<32xf32>
    %325 = vector.multi_reduction <add>, %322, %cst_115 [1] : vector<32x32xf32> to vector<32xf32>
    %326 = vector.shape_cast %325 : vector<32xf32> to vector<32x1xf32>
    %cst_116 = arith.constant 3.125000e-02 : f32
    %327 = vector.broadcast %cst_116 : f32 to vector<32x1xf32>
    %328 = arith.mulf %326, %327 : vector<32x1xf32>
    %329 = arith.mulf %322, %322 : vector<32x32xf32>
    %cst_117 = arith.constant dense<0.000000e+00> : vector<32xf32>
    %330 = vector.multi_reduction <add>, %329, %cst_117 [1] : vector<32x32xf32> to vector<32xf32>
    %331 = vector.shape_cast %330 : vector<32xf32> to vector<32x1xf32>
    %cst_118 = arith.constant 3.125000e-02 : f32
    %332 = vector.broadcast %cst_118 : f32 to vector<32x1xf32>
    %333 = arith.mulf %331, %332 : vector<32x1xf32>
    %334 = arith.mulf %328, %328 : vector<32x1xf32>
    %335 = arith.subf %333, %334 : vector<32x1xf32>
    %336 = vector.broadcast %328 : vector<32x1xf32> to vector<32x32xf32>
    %337 = arith.subf %322, %336 : vector<32x32xf32>
    %cst_119 = arith.constant 9.99999974E-6 : f32
    %338 = vector.broadcast %cst_119 : f32 to vector<32x1xf32>
    %339 = arith.addf %335, %338 : vector<32x1xf32>
    %340 = math.rsqrt %339 : vector<32x1xf32>
    %341 = vector.broadcast %340 : vector<32x1xf32> to vector<32x32xf32>
    %342 = arith.mulf %337, %341 : vector<32x32xf32>
    %343 = vector.broadcast %323 : vector<1x32xf32> to vector<32x32xf32>
    %344 = arith.mulf %342, %343 : vector<32x32xf32>
    %345 = vector.broadcast %324 : vector<1x32xf32> to vector<32x32xf32>
    %346 = arith.addf %344, %345 : vector<32x32xf32>
    %347 = vector.broadcast %35 : vector<32x1xf32> to vector<32x32xf32>
    %348 = arith.mulf %346, %347 : vector<32x32xf32>
    %349 = arith.truncf %348 : vector<32x32xf32> to vector<32x32xbf16>
    %c0_120 = arith.constant 0 : index
    %c0_121 = arith.constant 0 : index
    %350 = vector.load %arg19[%c0_120, %c0_121] : memref<32x64xbf16, #tpu.memory_space<vmem>>, vector<32x64xbf16>
    %cst_122 = arith.constant dense<0.000000e+00> : vector<32x64xf32>
    %351 = tpu.matmul %349, %350, %cst_122 {dimension_numbers = #tpu.dot_dimension_numbers<[1], [0], [0], [1], [0, 0, 1, 1], [], []>} : vector<32x32xbf16>, vector<32x64xbf16>, vector<32x64xf32> -> vector<32x64xf32>
    %c0_123 = arith.constant 0 : index
    %c0_124 = arith.constant 0 : index
    %352 = vector.load %arg20[%c0_123, %c0_124] : memref<1x64xf32, #tpu.memory_space<vmem>>, vector<1x64xf32>
    %353 = vector.broadcast %352 : vector<1x64xf32> to vector<32x64xf32>
    %354 = arith.addf %351, %353 : vector<32x64xf32>
    %cst_125 = arith.constant 0.000000e+00 : f32
    %355 = vector.broadcast %cst_125 : f32 to vector<32x64xf32>
    %356 = arith.maximumf %354, %355 : vector<32x64xf32>
    %357 = arith.truncf %356 : vector<32x64xf32> to vector<32x64xbf16>
    %c0_126 = arith.constant 0 : index
    %c0_127 = arith.constant 0 : index
    %358 = vector.load %arg21[%c0_126, %c0_127] : memref<64x32xbf16, #tpu.memory_space<vmem>>, vector<64x32xbf16>
    %cst_128 = arith.constant dense<0.000000e+00> : vector<32x32xf32>
    %359 = tpu.matmul %357, %358, %cst_128 {dimension_numbers = #tpu.dot_dimension_numbers<[1], [0], [0], [1], [0, 0, 1, 1], [], []>} : vector<32x64xbf16>, vector<64x32xbf16>, vector<32x32xf32> -> vector<32x32xf32>
    %c0_129 = arith.constant 0 : index
    %c0_130 = arith.constant 0 : index
    %360 = vector.load %arg22[%c0_129, %c0_130] : memref<1x32xf32, #tpu.memory_space<vmem>>, vector<1x32xf32>
    %361 = vector.broadcast %360 : vector<1x32xf32> to vector<32x32xf32>
    %362 = arith.addf %359, %361 : vector<32x32xf32>
    %363 = arith.addf %362, %348 : vector<32x32xf32>
    %c0_131 = arith.constant 0 : index
    %c0_132 = arith.constant 0 : index
    %364 = vector.load %arg23[%c0_131, %c0_132] : memref<1x32xf32, #tpu.memory_space<vmem>>, vector<1x32xf32>
    %c0_133 = arith.constant 0 : index
    %c0_134 = arith.constant 0 : index
    %365 = vector.load %arg24[%c0_133, %c0_134] : memref<1x32xf32, #tpu.memory_space<vmem>>, vector<1x32xf32>
    %cst_135 = arith.constant dense<0.000000e+00> : vector<32xf32>
    %366 = vector.multi_reduction <add>, %363, %cst_135 [1] : vector<32x32xf32> to vector<32xf32>
    %367 = vector.shape_cast %366 : vector<32xf32> to vector<32x1xf32>
    %cst_136 = arith.constant 3.125000e-02 : f32
    %368 = vector.broadcast %cst_136 : f32 to vector<32x1xf32>
    %369 = arith.mulf %367, %368 : vector<32x1xf32>
    %370 = arith.mulf %363, %363 : vector<32x32xf32>
    %cst_137 = arith.constant dense<0.000000e+00> : vector<32xf32>
    %371 = vector.multi_reduction <add>, %370, %cst_137 [1] : vector<32x32xf32> to vector<32xf32>
    %372 = vector.shape_cast %371 : vector<32xf32> to vector<32x1xf32>
    %cst_138 = arith.constant 3.125000e-02 : f32
    %373 = vector.broadcast %cst_138 : f32 to vector<32x1xf32>
    %374 = arith.mulf %372, %373 : vector<32x1xf32>
    %375 = arith.mulf %369, %369 : vector<32x1xf32>
    %376 = arith.subf %374, %375 : vector<32x1xf32>
    %377 = vector.broadcast %369 : vector<32x1xf32> to vector<32x32xf32>
    %378 = arith.subf %363, %377 : vector<32x32xf32>
    %cst_139 = arith.constant 9.99999974E-6 : f32
    %379 = vector.broadcast %cst_139 : f32 to vector<32x1xf32>
    %380 = arith.addf %376, %379 : vector<32x1xf32>
    %381 = math.rsqrt %380 : vector<32x1xf32>
    %382 = vector.broadcast %381 : vector<32x1xf32> to vector<32x32xf32>
    %383 = arith.mulf %378, %382 : vector<32x32xf32>
    %384 = vector.broadcast %364 : vector<1x32xf32> to vector<32x32xf32>
    %385 = arith.mulf %383, %384 : vector<32x32xf32>
    %386 = vector.broadcast %365 : vector<1x32xf32> to vector<32x32xf32>
    %387 = arith.addf %385, %386 : vector<32x32xf32>
    %388 = vector.broadcast %35 : vector<32x1xf32> to vector<32x32xf32>
    %389 = arith.mulf %387, %388 : vector<32x32xf32>
    %390 = arith.truncf %389 : vector<32x32xf32> to vector<32x32xbf16>
    %391 = vector.shape_cast %390 : vector<32x32xbf16> to vector<2x16x32xbf16>
    %c0_140 = arith.constant 0 : index
    %c0_141 = arith.constant 0 : index
    %c0_142 = arith.constant 0 : index
    %392 = vector.load %arg25[%c0_140, %c0_141, %c0_142] : memref<2x16x32xbf16, #tpu.memory_space<vmem>>, vector<2x16x32xbf16>
    tpu.vector_store %arg25[%c0_140, %c0_141, %c0_142], %391 {strides = array<i32>} : memref<2x16x32xbf16, #tpu.memory_space<vmem>>, vector<2x16x32xbf16>,
    return
  }
  func.func @transform_0(%arg0: i32, %arg1: memref<4xi32, #tpu.memory_space<smem>>, %arg2: memref<4xi32, #tpu.memory_space<smem>>) -> (i32, i32, i32) {
    %c0_i32 = arith.constant 0 : i32
    %c0_i32_0 = arith.constant 0 : i32
    %c0_i32_1 = arith.constant 0 : i32
    return %arg0, %c0_i32, %c0_i32_0 : i32, i32, i32
  }
  func.func @transform_1(%arg0: i32, %arg1: memref<4xi32, #tpu.memory_space<smem>>, %arg2: memref<4xi32, #tpu.memory_space<smem>>) -> (i32, i32, i32) {
    %c0_i32 = arith.constant 0 : i32
    %c0_i32_0 = arith.constant 0 : i32
    %c0_i32_1 = arith.constant 0 : i32
    return %arg0, %c0_i32, %c0_i32_0 : i32, i32, i32
  }
  func.func @transform_2(%arg0: i32, %arg1: memref<4xi32, #tpu.memory_space<smem>>, %arg2: memref<4xi32, #tpu.memory_space<smem>>) -> (i32, i32) {
    %c0_i32 = arith.constant 0 : i32
    %c0_i32_0 = arith.constant 0 : i32
    %c0_i32_1 = arith.constant 0 : i32
    return %c0_i32, %c0_i32_0 : i32, i32
  }
  func.func @transform_3(%arg0: i32, %arg1: memref<4xi32, #tpu.memory_space<smem>>, %arg2: memref<4xi32, #tpu.memory_space<smem>>) -> (i32, i32) {
    %c0_i32 = arith.constant 0 : i32
    %c0_i32_0 = arith.constant 0 : i32
    %c0_i32_1 = arith.constant 0 : i32
    return %c0_i32, %c0_i32_0 : i32, i32
  }
  func.func @transform_4(%arg0: i32, %arg1: memref<4xi32, #tpu.memory_space<smem>>, %arg2: memref<4xi32, #tpu.memory_space<smem>>) -> (i32, i32) {
    %c0_i32 = arith.constant 0 : i32
    %c0_i32_0 = arith.constant 0 : i32
    %c0_i32_1 = arith.constant 0 : i32
    return %c0_i32, %c0_i32_0 : i32, i32
  }
  func.func @transform_5(%arg0: i32, %arg1: memref<4xi32, #tpu.memory_space<smem>>, %arg2: memref<4xi32, #tpu.memory_space<smem>>) -> (i32, i32) {
    %c0_i32 = arith.constant 0 : i32
    %c0_i32_0 = arith.constant 0 : i32
    %c0_i32_1 = arith.constant 0 : i32
    return %c0_i32, %c0_i32_0 : i32, i32
  }
  func.func @transform_6(%arg0: i32, %arg1: memref<4xi32, #tpu.memory_space<smem>>, %arg2: memref<4xi32, #tpu.memory_space<smem>>) -> (i32, i32) {
    %c0_i32 = arith.constant 0 : i32
    %c0_i32_0 = arith.constant 0 : i32
    %c0_i32_1 = arith.constant 0 : i32
    return %c0_i32, %c0_i32_0 : i32, i32
  }
  func.func @transform_7(%arg0: i32, %arg1: memref<4xi32, #tpu.memory_space<smem>>, %arg2: memref<4xi32, #tpu.memory_space<smem>>) -> (i32, i32) {
    %c0_i32 = arith.constant 0 : i32
    %c0_i32_0 = arith.constant 0 : i32
    %c0_i32_1 = arith.constant 0 : i32
    return %c0_i32, %c0_i32_0 : i32, i32
  }
  func.func @transform_8(%arg0: i32, %arg1: memref<4xi32, #tpu.memory_space<smem>>, %arg2: memref<4xi32, #tpu.memory_space<smem>>) -> (i32, i32) {
    %c0_i32 = arith.constant 0 : i32
    %c0_i32_0 = arith.constant 0 : i32
    %c0_i32_1 = arith.constant 0 : i32
    return %c0_i32, %c0_i32_0 : i32, i32
  }
  func.func @transform_9(%arg0: i32, %arg1: memref<4xi32, #tpu.memory_space<smem>>, %arg2: memref<4xi32, #tpu.memory_space<smem>>) -> (i32, i32) {
    %c0_i32 = arith.constant 0 : i32
    %c0_i32_0 = arith.constant 0 : i32
    %c0_i32_1 = arith.constant 0 : i32
    return %c0_i32, %c0_i32_0 : i32, i32
  }
  func.func @transform_10(%arg0: i32, %arg1: memref<4xi32, #tpu.memory_space<smem>>, %arg2: memref<4xi32, #tpu.memory_space<smem>>) -> (i32, i32) {
    %c0_i32 = arith.constant 0 : i32
    %c0_i32_0 = arith.constant 0 : i32
    %c0_i32_1 = arith.constant 0 : i32
    return %c0_i32, %c0_i32_0 : i32, i32
  }
  func.func @transform_11(%arg0: i32, %arg1: memref<4xi32, #tpu.memory_space<smem>>, %arg2: memref<4xi32, #tpu.memory_space<smem>>) -> (i32, i32) {
    %c0_i32 = arith.constant 0 : i32
    %c0_i32_0 = arith.constant 0 : i32
    %c0_i32_1 = arith.constant 0 : i32
    return %c0_i32, %c0_i32_0 : i32, i32
  }
  func.func @transform_12(%arg0: i32, %arg1: memref<4xi32, #tpu.memory_space<smem>>, %arg2: memref<4xi32, #tpu.memory_space<smem>>) -> (i32, i32) {
    %c0_i32 = arith.constant 0 : i32
    %c0_i32_0 = arith.constant 0 : i32
    %c0_i32_1 = arith.constant 0 : i32
    return %c0_i32, %c0_i32_0 : i32, i32
  }
  func.func @transform_13(%arg0: i32, %arg1: memref<4xi32, #tpu.memory_space<smem>>, %arg2: memref<4xi32, #tpu.memory_space<smem>>) -> (i32, i32) {
    %c0_i32 = arith.constant 0 : i32
    %c0_i32_0 = arith.constant 0 : i32
    %c0_i32_1 = arith.constant 0 : i32
    return %c0_i32, %c0_i32_0 : i32, i32
  }
  func.func @transform_14(%arg0: i32, %arg1: memref<4xi32, #tpu.memory_space<smem>>, %arg2: memref<4xi32, #tpu.memory_space<smem>>) -> (i32, i32) {
    %c0_i32 = arith.constant 0 : i32
    %c0_i32_0 = arith.constant 0 : i32
    %c0_i32_1 = arith.constant 0 : i32
    return %c0_i32, %c0_i32_0 : i32, i32
  }
  func.func @transform_15(%arg0: i32, %arg1: memref<4xi32, #tpu.memory_space<smem>>, %arg2: memref<4xi32, #tpu.memory_space<smem>>) -> (i32, i32) {
    %c0_i32 = arith.constant 0 : i32
    %c0_i32_0 = arith.constant 0 : i32
    %c0_i32_1 = arith.constant 0 : i32
    return %c0_i32, %c0_i32_0 : i32, i32
  }
  func.func @transform_16(%arg0: i32, %arg1: memref<4xi32, #tpu.memory_space<smem>>, %arg2: memref<4xi32, #tpu.memory_space<smem>>) -> (i32, i32) {
    %c0_i32 = arith.constant 0 : i32
    %c0_i32_0 = arith.constant 0 : i32
    %c0_i32_1 = arith.constant 0 : i32
    return %c0_i32, %c0_i32_0 : i32, i32
  }
  func.func @transform_17(%arg0: i32, %arg1: memref<4xi32, #tpu.memory_space<smem>>, %arg2: memref<4xi32, #tpu.memory_space<smem>>) -> (i32, i32) {
    %c0_i32 = arith.constant 0 : i32
    %c0_i32_0 = arith.constant 0 : i32
    %c0_i32_1 = arith.constant 0 : i32
    return %c0_i32, %c0_i32_0 : i32, i32
  }
  func.func @transform_18(%arg0: i32, %arg1: memref<4xi32, #tpu.memory_space<smem>>, %arg2: memref<4xi32, #tpu.memory_space<smem>>) -> (i32, i32) {
    %c0_i32 = arith.constant 0 : i32
    %c0_i32_0 = arith.constant 0 : i32
    %c0_i32_1 = arith.constant 0 : i32
    return %c0_i32, %c0_i32_0 : i32, i32
  }
  func.func @transform_19(%arg0: i32, %arg1: memref<4xi32, #tpu.memory_space<smem>>, %arg2: memref<4xi32, #tpu.memory_space<smem>>) -> (i32, i32) {
    %c0_i32 = arith.constant 0 : i32
    %c0_i32_0 = arith.constant 0 : i32
    %c0_i32_1 = arith.constant 0 : i32
    return %c0_i32, %c0_i32_0 : i32, i32
  }
  func.func @transform_20(%arg0: i32, %arg1: memref<4xi32, #tpu.memory_space<smem>>, %arg2: memref<4xi32, #tpu.memory_space<smem>>) -> (i32, i32) {
    %c0_i32 = arith.constant 0 : i32
    %c0_i32_0 = arith.constant 0 : i32
    %c0_i32_1 = arith.constant 0 : i32
    return %c0_i32, %c0_i32_0 : i32, i32
  }
  func.func @transform_21(%arg0: i32, %arg1: memref<4xi32, #tpu.memory_space<smem>>, %arg2: memref<4xi32, #tpu.memory_space<smem>>) -> (i32, i32) {
    %c0_i32 = arith.constant 0 : i32
    %c0_i32_0 = arith.constant 0 : i32
    %c0_i32_1 = arith.constant 0 : i32
    return %c0_i32, %c0_i32_0 : i32, i32
  }
  func.func @transform_22(%arg0: i32, %arg1: memref<4xi32, #tpu.memory_space<smem>>, %arg2: memref<4xi32, #tpu.memory_space<smem>>) -> (i32, i32, i32) {
    %c0_i32 = arith.constant 0 : i32
    %c0_i32_0 = arith.constant 0 : i32
    %c0_i32_1 = arith.constant 0 : i32
    return %arg0, %c0_i32, %c0_i32_0 : i32, i32, i32
  }
}

module attributes {stable_mosaic.version = 11 : i64} {
  func.func @kernel(%arg0: i32, %arg1: memref<4xi32, #tpu.memory_space<smem>>, %arg2: memref<4xi32, #tpu.memory_space<smem>>, %arg3: memref<2x16x32xbf16, #tpu.memory_space<vmem>>, %arg4: memref<2x16x32xbf16, #tpu.memory_space<vmem>>, %arg5: memref<32x96xbf16, #tpu.memory_space<vmem>>, %arg6: memref<1x96xf32, #tpu.memory_space<vmem>>, %arg7: memref<32x32xbf16, #tpu.memory_space<vmem>>, %arg8: memref<1x32xf32, #tpu.memory_space<vmem>>, %arg9: memref<1x32xf32, #tpu.memory_space<vmem>>, %arg10: memref<1x32xf32, #tpu.memory_space<vmem>>, %arg11: memref<32x32xbf16, #tpu.memory_space<vmem>>, %arg12: memref<1x32xf32, #tpu.memory_space<vmem>>, %arg13: memref<32x64xbf16, #tpu.memory_space<vmem>>, %arg14: memref<1x64xf32, #tpu.memory_space<vmem>>, %arg15: memref<32x32xbf16, #tpu.memory_space<vmem>>, %arg16: memref<1x32xf32, #tpu.memory_space<vmem>>, %arg17: memref<1x32xf32, #tpu.memory_space<vmem>>, %arg18: memref<1x32xf32, #tpu.memory_space<vmem>>, %arg19: memref<32x64xbf16, #tpu.memory_space<vmem>>, %arg20: memref<1x64xf32, #tpu.memory_space<vmem>>, %arg21: memref<64x32xbf16, #tpu.memory_space<vmem>>, %arg22: memref<1x32xf32, #tpu.memory_space<vmem>>, %arg23: memref<1x32xf32, #tpu.memory_space<vmem>>, %arg24: memref<1x32xf32, #tpu.memory_space<vmem>>, %arg25: memref<2x16x32xbf16, #tpu.memory_space<vmem>>, %arg26: memref<32x32xbf16, #tpu.memory_space<vmem>>) attributes {dimension_semantics = [#tpu.dimension_semantics<parallel>], iteration_bounds = array<i64: 2>, scalar_prefetch = 2 : i64, scratch_operands = 1 : i64, tpu.core_type = #tpu.core_type<tc>, window_params = [{transform_indices = @transform_0, window_bounds = array<i64: 2, 16, 32>}, {transform_indices = @transform_1, window_bounds = array<i64: 2, 16, 32>}, {pipeline_mode = #tpu.pipeline_mode<synchronous>, transform_indices = @transform_2, window_bounds = array<i64: 32, 96>}, {pipeline_mode = #tpu.pipeline_mode<synchronous>, transform_indices = @transform_3, window_bounds = array<i64: 1, 96>}, {pipeline_mode = #tpu.pipeline_mode<synchronous>, transform_indices = @transform_4, window_bounds = array<i64: 32, 32>}, {pipeline_mode = #tpu.pipeline_mode<synchronous>, transform_indices = @transform_5, window_bounds = array<i64: 1, 32>}, {pipeline_mode = #tpu.pipeline_mode<synchronous>, transform_indices = @transform_6, window_bounds = array<i64: 1, 32>}, {pipeline_mode = #tpu.pipeline_mode<synchronous>, transform_indices = @transform_7, window_bounds = array<i64: 1, 32>}, {pipeline_mode = #tpu.pipeline_mode<synchronous>, transform_indices = @transform_8, window_bounds = array<i64: 32, 32>}, {pipeline_mode = #tpu.pipeline_mode<synchronous>, transform_indices = @transform_9, window_bounds = array<i64: 1, 32>}, {pipeline_mode = #tpu.pipeline_mode<synchronous>, transform_indices = @transform_10, window_bounds = array<i64: 32, 64>}, {pipeline_mode = #tpu.pipeline_mode<synchronous>, transform_indices = @transform_11, window_bounds = array<i64: 1, 64>}, {pipeline_mode = #tpu.pipeline_mode<synchronous>, transform_indices = @transform_12, window_bounds = array<i64: 32, 32>}, {pipeline_mode = #tpu.pipeline_mode<synchronous>, transform_indices = @transform_13, window_bounds = array<i64: 1, 32>}, {pipeline_mode = #tpu.pipeline_mode<synchronous>, transform_indices = @transform_14, window_bounds = array<i64: 1, 32>}, {pipeline_mode = #tpu.pipeline_mode<synchronous>, transform_indices = @transform_15, window_bounds = array<i64: 1, 32>}, {pipeline_mode = #tpu.pipeline_mode<synchronous>, transform_indices = @transform_16, window_bounds = array<i64: 32, 64>}, {pipeline_mode = #tpu.pipeline_mode<synchronous>, transform_indices = @transform_17, window_bounds = array<i64: 1, 64>}, {pipeline_mode = #tpu.pipeline_mode<synchronous>, transform_indices = @transform_18, window_bounds = array<i64: 64, 32>}, {pipeline_mode = #tpu.pipeline_mode<synchronous>, transform_indices = @transform_19, window_bounds = array<i64: 1, 32>}, {pipeline_mode = #tpu.pipeline_mode<synchronous>, transform_indices = @transform_20, window_bounds = array<i64: 1, 32>}, {pipeline_mode = #tpu.pipeline_mode<synchronous>, transform_indices = @transform_21, window_bounds = array<i64: 1, 32>}, {transform_indices = @transform_22, window_bounds = array<i64: 2, 16, 32>}]} {
    %c2_i32 = arith.constant 2 : i32
    %0 = arith.muli %arg0, %c2_i32 : i32
    %1 = tpu.iota {dimensions = array<i32: 0>} : vector<16x1xi32>
    %2 = tpu.iota {dimensions = array<i32: 1>} : vector<1x16xi32>
    %3 = tpu.iota {dimensions = array<i32: 1>} : vector<1x16xi32>
    %4 = tpu.iota {dimensions = array<i32: 0>} : vector<32x1xi32>
    %c0_i32 = arith.constant 0 : i32
    %5 = arith.addi %0, %c0_i32 : i32
    %6 = arith.index_cast %5 : i32 to index
    %7 = memref.load %arg1[%6] : memref<4xi32, #tpu.memory_space<smem>>
    %c1_i32 = arith.constant 1 : i32
    %8 = arith.addi %0, %c1_i32 : i32
    %9 = arith.index_cast %8 : i32 to index
    %10 = memref.load %arg1[%9] : memref<4xi32, #tpu.memory_space<smem>>
    %c0_i32_0 = arith.constant 0 : i32
    %11 = arith.addi %0, %c0_i32_0 : i32
    %12 = arith.index_cast %11 : i32 to index
    %13 = memref.load %arg2[%12] : memref<4xi32, #tpu.memory_space<smem>>
    %c1_i32_1 = arith.constant 1 : i32
    %14 = arith.addi %0, %c1_i32_1 : i32
    %15 = arith.index_cast %14 : i32 to index
    %16 = memref.load %arg2[%15] : memref<4xi32, #tpu.memory_space<smem>>
    %cst = arith.constant 0.000000e+00 : f32
    %17 = vector.broadcast %cst : f32 to vector<32x1xf32>
    %c0_i32_2 = arith.constant 0 : i32
    %18 = vector.broadcast %c0_i32_2 : i32 to vector<32x1xi32>
    %19 = arith.cmpi sge, %4, %18 : vector<32x1xi32>
    %c0_i32_3 = arith.constant 0 : i32
    %20 = arith.addi %c0_i32_3, %7 : i32
    %21 = vector.broadcast %20 : i32 to vector<32x1xi32>
    %22 = arith.cmpi slt, %4, %21 : vector<32x1xi32>
    %23 = arith.andi %19, %22 : vector<32x1xi1>
    %24 = arith.extui %23 : vector<32x1xi1> to vector<32x1xi32>
    %25 = arith.sitofp %24 : vector<32x1xi32> to vector<32x1xf32>
    %26 = arith.addf %17, %25 : vector<32x1xf32>
    %c16_i32 = arith.constant 16 : i32
    %27 = vector.broadcast %c16_i32 : i32 to vector<32x1xi32>
    %28 = arith.cmpi sge, %4, %27 : vector<32x1xi32>
    %c16_i32_4 = arith.constant 16 : i32
    %29 = arith.addi %c16_i32_4, %10 : i32
    %30 = vector.broadcast %29 : i32 to vector<32x1xi32>
    %31 = arith.cmpi slt, %4, %30 : vector<32x1xi32>
    %32 = arith.andi %28, %31 : vector<32x1xi1>
    %33 = arith.extui %32 : vector<32x1xi1> to vector<32x1xi32>
    %34 = arith.sitofp %33 : vector<32x1xi32> to vector<32x1xf32>
    %35 = arith.addf %26, %34 : vector<32x1xf32>
    %36 = vector.broadcast %2 : vector<1x16xi32> to vector<16x16xi32>
    %37 = vector.broadcast %1 : vector<16x1xi32> to vector<16x16xi32>
    %38 = arith.cmpi sgt, %36, %37 : vector<16x16xi32>
    %39 = vector.broadcast %7 : i32 to vector<1x16xi32>
    %40 = arith.cmpi sge, %2, %39 : vector<1x16xi32>
    %41 = vector.broadcast %40 : vector<1x16xi1> to vector<16x16xi1>
    %42 = arith.ori %38, %41 : vector<16x16xi1>
    %cst_5 = arith.constant -1.000000e+09 : f32
    %cst_6 = arith.constant 0.000000e+00 : f32
    %43 = vector.broadcast %cst_5 : f32 to vector<16x16xf32>
    %44 = vector.broadcast %cst_6 : f32 to vector<16x16xf32>
    %45 = arith.select %42, %43, %44 : vector<16x16xi1>, vector<16x16xf32>
    %46 = vector.broadcast %2 : vector<1x16xi32> to vector<16x16xi32>
    %47 = vector.broadcast %1 : vector<16x1xi32> to vector<16x16xi32>
    %48 = arith.cmpi sgt, %46, %47 : vector<16x16xi32>
    %49 = vector.broadcast %10 : i32 to vector<1x16xi32>
    %50 = arith.cmpi sge, %2, %49 : vector<1x16xi32>
    %51 = vector.broadcast %50 : vector<1x16xi1> to vector<16x16xi1>
    %52 = arith.ori %48, %51 : vector<16x16xi1>
    %cst_7 = arith.constant -1.000000e+09 : f32
    %cst_8 = arith.constant 0.000000e+00 : f32
    %53 = vector.broadcast %cst_7 : f32 to vector<16x16xf32>
    %54 = vector.broadcast %cst_8 : f32 to vector<16x16xf32>
    %55 = arith.select %52, %53, %54 : vector<16x16xi1>, vector<16x16xf32>
    %56 = vector.broadcast %13 : i32 to vector<1x16xi32>
    %57 = arith.cmpi sge, %3, %56 : vector<1x16xi32>
    %cst_9 = arith.constant -1.000000e+09 : f32
    %cst_10 = arith.constant 0.000000e+00 : f32
    %58 = vector.broadcast %cst_9 : f32 to vector<1x16xf32>
    %59 = vector.broadcast %cst_10 : f32 to vector<1x16xf32>
    %60 = arith.select %57, %58, %59 : vector<1x16xi1>, vector<1x16xf32>
    %61 = vector.broadcast %16 : i32 to vector<1x16xi32>
    %62 = arith.cmpi sge, %3, %61 : vector<1x16xi32>
    %cst_11 = arith.constant -1.000000e+09 : f32
    %cst_12 = arith.constant 0.000000e+00 : f32
    %63 = vector.broadcast %cst_11 : f32 to vector<1x16xf32>
    %64 = vector.broadcast %cst_12 : f32 to vector<1x16xf32>
    %65 = arith.select %62, %63, %64 : vector<1x16xi1>, vector<1x16xf32>
    %c0 = arith.constant 0 : index
    %c0_13 = arith.constant 0 : index
    %c0_14 = arith.constant 0 : index
    %66 = vector.load %arg3[%c0, %c0_13, %c0_14] : memref<2x16x32xbf16, #tpu.memory_space<vmem>>, vector<2x16x32xbf16>
    %67 = vector.shape_cast %66 : vector<2x16x32xbf16> to vector<32x32xbf16>
    %68 = arith.extf %67 : vector<32x32xbf16> to vector<32x32xf32>
    %c0_15 = arith.constant 0 : index
    %c0_16 = arith.constant 0 : index
    %69 = vector.load %arg5[%c0_15, %c0_16] : memref<32x96xbf16, #tpu.memory_space<vmem>>, vector<32x96xbf16>
    %cst_17 = arith.constant dense<0.000000e+00> : vector<32x96xf32>
    %70 = tpu.matmul %67, %69, %cst_17 {dimension_numbers = #tpu.dot_dimension_numbers<[1], [0], [0], [1], [0, 0, 1, 1], [], []>} : vector<32x32xbf16>, vector<32x96xbf16>, vector<32x96xf32> -> vector<32x96xf32>
    %c0_18 = arith.constant 0 : index
    %c0_19 = arith.constant 0 : index
    %71 = vector.load %arg6[%c0_18, %c0_19] : memref<1x96xf32, #tpu.memory_space<vmem>>, vector<1x96xf32>
    %72 = vector.broadcast %71 : vector<1x96xf32> to vector<32x96xf32>
    %73 = arith.addf %70, %72 : vector<32x96xf32>
    %74 = vector.extract_strided_slice %73 {offsets = [0, 0], sizes = [16, 32], strides = [1, 1]} : vector<32x96xf32> to vector<16x32xf32>
    %75 = vector.extract_strided_slice %73 {offsets = [0, 32], sizes = [16, 32], strides = [1, 1]} : vector<32x96xf32> to vector<16x32xf32>
    %76 = vector.extract_strided_slice %73 {offsets = [0, 64], sizes = [16, 32], strides = [1, 1]} : vector<32x96xf32> to vector<16x32xf32>
    %77 = arith.truncf %74 : vector<16x32xf32> to vector<16x32xbf16>
    %78 = arith.truncf %75 : vector<16x32xf32> to vector<16x32xbf16>
    %79 = arith.truncf %76 : vector<16x32xf32> to vector<16x32xbf16>
    %80 = vector.extract_strided_slice %77 {offsets = [0, 0], sizes = [16, 16], strides = [1, 1]} : vector<16x32xbf16> to vector<16x16xbf16>
    %81 = vector.extract_strided_slice %78 {offsets = [0, 0], sizes = [16, 16], strides = [1, 1]} : vector<16x32xbf16> to vector<16x16xbf16>
    %82 = vector.extract_strided_slice %79 {offsets = [0, 0], sizes = [16, 16], strides = [1, 1]} : vector<16x32xbf16> to vector<16x16xbf16>
    %cst_20 = arith.constant dense<0.000000e+00> : vector<16x16xf32>
    %83 = tpu.matmul %80, %81, %cst_20 {dimension_numbers = #tpu.dot_dimension_numbers<[1], [1], [0], [0], [0, 0, 1, 0], [], []>} : vector<16x16xbf16>, vector<16x16xbf16>, vector<16x16xf32> -> vector<16x16xf32>
    %cst_21 = arith.constant 2.500000e-01 : f32
    %84 = vector.broadcast %cst_21 : f32 to vector<16x16xf32>
    %85 = arith.mulf %83, %84 : vector<16x16xf32>
    %86 = arith.addf %85, %45 : vector<16x16xf32>
    %cst_22 = arith.constant dense<0xFF800000> : vector<16xf32>
    %87 = vector.multi_reduction <maximumf>, %86, %cst_22 [1] : vector<16x16xf32> to vector<16xf32>
    %88 = vector.shape_cast %87 : vector<16xf32> to vector<16x1xf32>
    %89 = vector.broadcast %88 : vector<16x1xf32> to vector<16x16xf32>
    %90 = arith.subf %86, %89 : vector<16x16xf32>
    %91 = math.exp %90 : vector<16x16xf32>
    %cst_23 = arith.constant dense<0.000000e+00> : vector<16xf32>
    %92 = vector.multi_reduction <add>, %91, %cst_23 [1] : vector<16x16xf32> to vector<16xf32>
    %93 = vector.shape_cast %92 : vector<16xf32> to vector<16x1xf32>
    %94 = tpu.reciprocal %93 {approx = true} : vector<16x1xf32> -> vector<16x1xf32>
    %95 = vector.broadcast %94 : vector<16x1xf32> to vector<16x16xf32>
    %96 = arith.mulf %91, %95 : vector<16x16xf32>
    %97 = arith.truncf %96 : vector<16x16xf32> to vector<16x16xbf16>
    %cst_24 = arith.constant dense<0.000000e+00> : vector<16x16xf32>
    %98 = tpu.matmul %97, %82, %cst_24 {dimension_numbers = #tpu.dot_dimension_numbers<[1], [0], [0], [1], [0, 0, 1, 1], [], []>} : vector<16x16xbf16>, vector<16x16xbf16>, vector<16x16xf32> -> vector<16x16xf32>
    %99 = arith.truncf %98 : vector<16x16xf32> to vector<16x16xbf16>
    %c0_25 = arith.constant 0 : index
    %c0_26 = arith.constant 0 : index
    %100 = vector.load %arg26[%c0_25, %c0_26] : memref<32x32xbf16, #tpu.memory_space<vmem>>, vector<16x16xbf16>
    tpu.vector_store %arg26[%c0_25, %c0_26], %99 {strides = array<i32>} : memref<32x32xbf16, #tpu.memory_space<vmem>>, vector<16x16xbf16>,
    %101 = vector.extract_strided_slice %77 {offsets = [0, 16], sizes = [16, 16], strides = [1, 1]} : vector<16x32xbf16> to vector<16x16xbf16>
    %102 = vector.extract_strided_slice %78 {offsets = [0, 16], sizes = [16, 16], strides = [1, 1]} : vector<16x32xbf16> to vector<16x16xbf16>
    %103 = vector.extract_strided_slice %79 {offsets = [0, 16], sizes = [16, 16], strides = [1, 1]} : vector<16x32xbf16> to vector<16x16xbf16>
    %cst_27 = arith.constant dense<0.000000e+00> : vector<16x16xf32>
    %104 = tpu.matmul %101, %102, %cst_27 {dimension_numbers = #tpu.dot_dimension_numbers<[1], [1], [0], [0], [0, 0, 1, 0], [], []>} : vector<16x16xbf16>, vector<16x16xbf16>, vector<16x16xf32> -> vector<16x16xf32>
    %cst_28 = arith.constant 2.500000e-01 : f32
    %105 = vector.broadcast %cst_28 : f32 to vector<16x16xf32>
    %106 = arith.mulf %104, %105 : vector<16x16xf32>
    %107 = arith.addf %106, %45 : vector<16x16xf32>
    %cst_29 = arith.constant dense<0xFF800000> : vector<16xf32>
    %108 = vector.multi_reduction <maximumf>, %107, %cst_29 [1] : vector<16x16xf32> to vector<16xf32>
    %109 = vector.shape_cast %108 : vector<16xf32> to vector<16x1xf32>
    %110 = vector.broadcast %109 : vector<16x1xf32> to vector<16x16xf32>
    %111 = arith.subf %107, %110 : vector<16x16xf32>
    %112 = math.exp %111 : vector<16x16xf32>
    %cst_30 = arith.constant dense<0.000000e+00> : vector<16xf32>
    %113 = vector.multi_reduction <add>, %112, %cst_30 [1] : vector<16x16xf32> to vector<16xf32>
    %114 = vector.shape_cast %113 : vector<16xf32> to vector<16x1xf32>
    %115 = tpu.reciprocal %114 {approx = true} : vector<16x1xf32> -> vector<16x1xf32>
    %116 = vector.broadcast %115 : vector<16x1xf32> to vector<16x16xf32>
    %117 = arith.mulf %112, %116 : vector<16x16xf32>
    %118 = arith.truncf %117 : vector<16x16xf32> to vector<16x16xbf16>
    %cst_31 = arith.constant dense<0.000000e+00> : vector<16x16xf32>
    %119 = tpu.matmul %118, %103, %cst_31 {dimension_numbers = #tpu.dot_dimension_numbers<[1], [0], [0], [1], [0, 0, 1, 1], [], []>} : vector<16x16xbf16>, vector<16x16xbf16>, vector<16x16xf32> -> vector<16x16xf32>
    %120 = arith.truncf %119 : vector<16x16xf32> to vector<16x16xbf16>
    %c0_32 = arith.constant 0 : index
    %c16 = arith.constant 16 : index
    %121 = vector.load %arg26[%c0_32, %c16] : memref<32x32xbf16, #tpu.memory_space<vmem>>, vector<16x16xbf16>
    tpu.vector_store %arg26[%c0_32, %c16], %120 {strides = array<i32>} : memref<32x32xbf16, #tpu.memory_space<vmem>>, vector<16x16xbf16>,
    %122 = vector.extract_strided_slice %73 {offsets = [16, 0], sizes = [16, 32], strides = [1, 1]} : vector<32x96xf32> to vector<16x32xf32>
    %123 = vector.extract_strided_slice %73 {offsets = [16, 32], sizes = [16, 32], strides = [1, 1]} : vector<32x96xf32> to vector<16x32xf32>
    %124 = vector.extract_strided_slice %73 {offsets = [16, 64], sizes = [16, 32], strides = [1, 1]} : vector<32x96xf32> to vector<16x32xf32>
    %125 = arith.truncf %122 : vector<16x32xf32> to vector<16x32xbf16>
    %126 = arith.truncf %123 : vector<16x32xf32> to vector<16x32xbf16>
    %127 = arith.truncf %124 : vector<16x32xf32> to vector<16x32xbf16>
    %128 = vector.extract_strided_slice %125 {offsets = [0, 0], sizes = [16, 16], strides = [1, 1]} : vector<16x32xbf16> to vector<16x16xbf16>
    %129 = vector.extract_strided_slice %126 {offsets = [0, 0], sizes = [16, 16], strides = [1, 1]} : vector<16x32xbf16> to vector<16x16xbf16>
    %130 = vector.extract_strided_slice %127 {offsets = [0, 0], sizes = [16, 16], strides = [1, 1]} : vector<16x32xbf16> to vector<16x16xbf16>
    %cst_33 = arith.constant dense<0.000000e+00> : vector<16x16xf32>
    %131 = tpu.matmul %128, %129, %cst_33 {dimension_numbers = #tpu.dot_dimension_numbers<[1], [1], [0], [0], [0, 0, 1, 0], [], []>} : vector<16x16xbf16>, vector<16x16xbf16>, vector<16x16xf32> -> vector<16x16xf32>
    %cst_34 = arith.constant 2.500000e-01 : f32
    %132 = vector.broadcast %cst_34 : f32 to vector<16x16xf32>
    %133 = arith.mulf %131, %132 : vector<16x16xf32>
    %134 = arith.addf %133, %55 : vector<16x16xf32>
    %cst_35 = arith.constant dense<0xFF800000> : vector<16xf32>
    %135 = vector.multi_reduction <maximumf>, %134, %cst_35 [1] : vector<16x16xf32> to vector<16xf32>
    %136 = vector.shape_cast %135 : vector<16xf32> to vector<16x1xf32>
    %137 = vector.broadcast %136 : vector<16x1xf32> to vector<16x16xf32>
    %138 = arith.subf %134, %137 : vector<16x16xf32>
    %139 = math.exp %138 : vector<16x16xf32>
    %cst_36 = arith.constant dense<0.000000e+00> : vector<16xf32>
    %140 = vector.multi_reduction <add>, %139, %cst_36 [1] : vector<16x16xf32> to vector<16xf32>
    %141 = vector.shape_cast %140 : vector<16xf32> to vector<16x1xf32>
    %142 = tpu.reciprocal %141 {approx = true} : vector<16x1xf32> -> vector<16x1xf32>
    %143 = vector.broadcast %142 : vector<16x1xf32> to vector<16x16xf32>
    %144 = arith.mulf %139, %143 : vector<16x16xf32>
    %145 = arith.truncf %144 : vector<16x16xf32> to vector<16x16xbf16>
    %cst_37 = arith.constant dense<0.000000e+00> : vector<16x16xf32>
    %146 = tpu.matmul %145, %130, %cst_37 {dimension_numbers = #tpu.dot_dimension_numbers<[1], [0], [0], [1], [0, 0, 1, 1], [], []>} : vector<16x16xbf16>, vector<16x16xbf16>, vector<16x16xf32> -> vector<16x16xf32>
    %147 = arith.truncf %146 : vector<16x16xf32> to vector<16x16xbf16>
    %c16_38 = arith.constant 16 : index
    %c0_39 = arith.constant 0 : index
    %148 = vector.load %arg26[%c16_38, %c0_39] : memref<32x32xbf16, #tpu.memory_space<vmem>>, vector<16x16xbf16>
    tpu.vector_store %arg26[%c16_38, %c0_39], %147 {strides = array<i32>} : memref<32x32xbf16, #tpu.memory_space<vmem>>, vector<16x16xbf16>,
    %149 = vector.extract_strided_slice %125 {offsets = [0, 16], sizes = [16, 16], strides = [1, 1]} : vector<16x32xbf16> to vector<16x16xbf16>
    %150 = vector.extract_strided_slice %126 {offsets = [0, 16], sizes = [16, 16], strides = [1, 1]} : vector<16x32xbf16> to vector<16x16xbf16>
    %151 = vector.extract_strided_slice %127 {offsets = [0, 16], sizes = [16, 16], strides = [1, 1]} : vector<16x32xbf16> to vector<16x16xbf16>
    %cst_40 = arith.constant dense<0.000000e+00> : vector<16x16xf32>
    %152 = tpu.matmul %149, %150, %cst_40 {dimension_numbers = #tpu.dot_dimension_numbers<[1], [1], [0], [0], [0, 0, 1, 0], [], []>} : vector<16x16xbf16>, vector<16x16xbf16>, vector<16x16xf32> -> vector<16x16xf32>
    %cst_41 = arith.constant 2.500000e-01 : f32
    %153 = vector.broadcast %cst_41 : f32 to vector<16x16xf32>
    %154 = arith.mulf %152, %153 : vector<16x16xf32>
    %155 = arith.addf %154, %55 : vector<16x16xf32>
    %cst_42 = arith.constant dense<0xFF800000> : vector<16xf32>
    %156 = vector.multi_reduction <maximumf>, %155, %cst_42 [1] : vector<16x16xf32> to vector<16xf32>
    %157 = vector.shape_cast %156 : vector<16xf32> to vector<16x1xf32>
    %158 = vector.broadcast %157 : vector<16x1xf32> to vector<16x16xf32>
    %159 = arith.subf %155, %158 : vector<16x16xf32>
    %160 = math.exp %159 : vector<16x16xf32>
    %cst_43 = arith.constant dense<0.000000e+00> : vector<16xf32>
    %161 = vector.multi_reduction <add>, %160, %cst_43 [1] : vector<16x16xf32> to vector<16xf32>
    %162 = vector.shape_cast %161 : vector<16xf32> to vector<16x1xf32>
    %163 = tpu.reciprocal %162 {approx = true} : vector<16x1xf32> -> vector<16x1xf32>
    %164 = vector.broadcast %163 : vector<16x1xf32> to vector<16x16xf32>
    %165 = arith.mulf %160, %164 : vector<16x16xf32>
    %166 = arith.truncf %165 : vector<16x16xf32> to vector<16x16xbf16>
    %cst_44 = arith.constant dense<0.000000e+00> : vector<16x16xf32>
    %167 = tpu.matmul %166, %151, %cst_44 {dimension_numbers = #tpu.dot_dimension_numbers<[1], [0], [0], [1], [0, 0, 1, 1], [], []>} : vector<16x16xbf16>, vector<16x16xbf16>, vector<16x16xf32> -> vector<16x16xf32>
    %168 = arith.truncf %167 : vector<16x16xf32> to vector<16x16xbf16>
    %c16_45 = arith.constant 16 : index
    %c16_46 = arith.constant 16 : index
    %169 = vector.load %arg26[%c16_45, %c16_46] : memref<32x32xbf16, #tpu.memory_space<vmem>>, vector<16x16xbf16>
    tpu.vector_store %arg26[%c16_45, %c16_46], %168 {strides = array<i32>} : memref<32x32xbf16, #tpu.memory_space<vmem>>, vector<16x16xbf16>,
    %c0_47 = arith.constant 0 : index
    %c0_48 = arith.constant 0 : index
    %170 = vector.load %arg26[%c0_47, %c0_48] : memref<32x32xbf16, #tpu.memory_space<vmem>>, vector<32x32xbf16>
    %c0_49 = arith.constant 0 : index
    %c0_50 = arith.constant 0 : index
    %171 = vector.load %arg7[%c0_49, %c0_50] : memref<32x32xbf16, #tpu.memory_space<vmem>>, vector<32x32xbf16>
    %cst_51 = arith.constant dense<0.000000e+00> : vector<32x32xf32>
    %172 = tpu.matmul %170, %171, %cst_51 {dimension_numbers = #tpu.dot_dimension_numbers<[1], [0], [0], [1], [0, 0, 1, 1], [], []>} : vector<32x32xbf16>, vector<32x32xbf16>, vector<32x32xf32> -> vector<32x32xf32>
    %c0_52 = arith.constant 0 : index
    %c0_53 = arith.constant 0 : index
    %173 = vector.load %arg8[%c0_52, %c0_53] : memref<1x32xf32, #tpu.memory_space<vmem>>, vector<1x32xf32>
    %174 = vector.broadcast %173 : vector<1x32xf32> to vector<32x32xf32>
    %175 = arith.addf %172, %174 : vector<32x32xf32>
    %176 = arith.addf %175, %68 : vector<32x32xf32>
    %c0_54 = arith.constant 0 : index
    %c0_55 = arith.constant 0 : index
    %177 = vector.load %arg9[%c0_54, %c0_55] : memref<1x32xf32, #tpu.memory_space<vmem>>, vector<1x32xf32>
    %c0_56 = arith.constant 0 : index
    %c0_57 = arith.constant 0 : index
    %178 = vector.load %arg10[%c0_56, %c0_57] : memref<1x32xf32, #tpu.memory_space<vmem>>, vector<1x32xf32>
    %cst_58 = arith.constant dense<0.000000e+00> : vector<32xf32>
    %179 = vector.multi_reduction <add>, %176, %cst_58 [1] : vector<32x32xf32> to vector<32xf32>
    %180 = vector.shape_cast %179 : vector<32xf32> to vector<32x1xf32>
    %cst_59 = arith.constant 3.125000e-02 : f32
    %181 = vector.broadcast %cst_59 : f32 to vector<32x1xf32>
    %182 = arith.mulf %180, %181 : vector<32x1xf32>
    %183 = arith.mulf %176, %176 : vector<32x32xf32>
    %cst_60 = arith.constant dense<0.000000e+00> : vector<32xf32>
    %184 = vector.multi_reduction <add>, %183, %cst_60 [1] : vector<32x32xf32> to vector<32xf32>
    %185 = vector.shape_cast %184 : vector<32xf32> to vector<32x1xf32>
    %cst_61 = arith.constant 3.125000e-02 : f32
    %186 = vector.broadcast %cst_61 : f32 to vector<32x1xf32>
    %187 = arith.mulf %185, %186 : vector<32x1xf32>
    %188 = arith.mulf %182, %182 : vector<32x1xf32>
    %189 = arith.subf %187, %188 : vector<32x1xf32>
    %190 = vector.broadcast %182 : vector<32x1xf32> to vector<32x32xf32>
    %191 = arith.subf %176, %190 : vector<32x32xf32>
    %cst_62 = arith.constant 9.99999974E-6 : f32
    %192 = vector.broadcast %cst_62 : f32 to vector<32x1xf32>
    %193 = arith.addf %189, %192 : vector<32x1xf32>
    %194 = math.rsqrt %193 : vector<32x1xf32>
    %195 = vector.broadcast %194 : vector<32x1xf32> to vector<32x32xf32>
    %196 = arith.mulf %191, %195 : vector<32x32xf32>
    %197 = vector.broadcast %177 : vector<1x32xf32> to vector<32x32xf32>
    %198 = arith.mulf %196, %197 : vector<32x32xf32>
    %199 = vector.broadcast %178 : vector<1x32xf32> to vector<32x32xf32>
    %200 = arith.addf %198, %199 : vector<32x32xf32>
    %201 = vector.broadcast %35 : vector<32x1xf32> to vector<32x32xf32>
    %202 = arith.mulf %200, %201 : vector<32x32xf32>
    %c0_63 = arith.constant 0 : index
    %c0_64 = arith.constant 0 : index
    %c0_65 = arith.constant 0 : index
    %203 = vector.load %arg4[%c0_63, %c0_64, %c0_65] : memref<2x16x32xbf16, #tpu.memory_space<vmem>>, vector<2x16x32xbf16>
    %204 = vector.shape_cast %203 : vector<2x16x32xbf16> to vector<32x32xbf16>
    %205 = arith.truncf %202 : vector<32x32xf32> to vector<32x32xbf16>
    %c0_66 = arith.constant 0 : index
    %c0_67 = arith.constant 0 : index
    %206 = vector.load %arg11[%c0_66, %c0_67] : memref<32x32xbf16, #tpu.memory_space<vmem>>, vector<32x32xbf16>
    %cst_68 = arith.constant dense<0.000000e+00> : vector<32x32xf32>
    %207 = tpu.matmul %205, %206, %cst_68 {dimension_numbers = #tpu.dot_dimension_numbers<[1], [0], [0], [1], [0, 0, 1, 1], [], []>} : vector<32x32xbf16>, vector<32x32xbf16>, vector<32x32xf32> -> vector<32x32xf32>
    %c0_69 = arith.constant 0 : index
    %c0_70 = arith.constant 0 : index
    %208 = vector.load %arg12[%c0_69, %c0_70] : memref<1x32xf32, #tpu.memory_space<vmem>>, vector<1x32xf32>
    %209 = vector.broadcast %208 : vector<1x32xf32> to vector<32x32xf32>
    %210 = arith.addf %207, %209 : vector<32x32xf32>
    %c0_71 = arith.constant 0 : index
    %c0_72 = arith.constant 0 : index
    %211 = vector.load %arg13[%c0_71, %c0_72] : memref<32x64xbf16, #tpu.memory_space<vmem>>, vector<32x64xbf16>
    %cst_73 = arith.constant dense<0.000000e+00> : vector<32x64xf32>
    %212 = tpu.matmul %204, %211, %cst_73 {dimension_numbers = #tpu.dot_dimension_numbers<[1], [0], [0], [1], [0, 0, 1, 1], [], []>} : vector<32x32xbf16>, vector<32x64xbf16>, vector<32x64xf32> -> vector<32x64xf32>
    %c0_74 = arith.constant 0 : index
    %c0_75 = arith.constant 0 : index
    %213 = vector.load %arg14[%c0_74, %c0_75] : memref<1x64xf32, #tpu.memory_space<vmem>>, vector<1x64xf32>
    %214 = vector.broadcast %213 : vector<1x64xf32> to vector<32x64xf32>
    %215 = arith.addf %212, %214 : vector<32x64xf32>
    %216 = vector.extract_strided_slice %210 {offsets = [0, 0], sizes = [16, 32], strides = [1, 1]} : vector<32x32xf32> to vector<16x32xf32>
    %217 = vector.extract_strided_slice %215 {offsets = [0, 0], sizes = [16, 32], strides = [1, 1]} : vector<32x64xf32> to vector<16x32xf32>
    %218 = vector.extract_strided_slice %215 {offsets = [0, 32], sizes = [16, 32], strides = [1, 1]} : vector<32x64xf32> to vector<16x32xf32>
    %219 = arith.truncf %216 : vector<16x32xf32> to vector<16x32xbf16>
    %220 = arith.truncf %217 : vector<16x32xf32> to vector<16x32xbf16>
    %221 = arith.truncf %218 : vector<16x32xf32> to vector<16x32xbf16>
    %222 = vector.extract_strided_slice %219 {offsets = [0, 0], sizes = [16, 16], strides = [1, 1]} : vector<16x32xbf16> to vector<16x16xbf16>
    %223 = vector.extract_strided_slice %220 {offsets = [0, 0], sizes = [16, 16], strides = [1, 1]} : vector<16x32xbf16> to vector<16x16xbf16>
    %224 = vector.extract_strided_slice %221 {offsets = [0, 0], sizes = [16, 16], strides = [1, 1]} : vector<16x32xbf16> to vector<16x16xbf16>
    %cst_76 = arith.constant dense<0.000000e+00> : vector<16x16xf32>
    %225 = tpu.matmul %222, %223, %cst_76 {dimension_numbers = #tpu.dot_dimension_numbers<[1], [1], [0], [0], [0, 0, 1, 0], [], []>} : vector<16x16xbf16>, vector<16x16xbf16>, vector<16x16xf32> -> vector<16x16xf32>
    %cst_77 = arith.constant 2.500000e-01 : f32
    %226 = vector.broadcast %cst_77 : f32 to vector<16x16xf32>
    %227 = arith.mulf %225, %226 : vector<16x16xf32>
    %228 = vector.broadcast %60 : vector<1x16xf32> to vector<16x16xf32>
    %229 = arith.addf %227, %228 : vector<16x16xf32>
    %cst_78 = arith.constant dense<0xFF800000> : vector<16xf32>
    %230 = vector.multi_reduction <maximumf>, %229, %cst_78 [1] : vector<16x16xf32> to vector<16xf32>
    %231 = vector.shape_cast %230 : vector<16xf32> to vector<16x1xf32>
    %232 = vector.broadcast %231 : vector<16x1xf32> to vector<16x16xf32>
    %233 = arith.subf %229, %232 : vector<16x16xf32>
    %234 = math.exp %233 : vector<16x16xf32>
    %cst_79 = arith.constant dense<0.000000e+00> : vector<16xf32>
    %235 = vector.multi_reduction <add>, %234, %cst_79 [1] : vector<16x16xf32> to vector<16xf32>
    %236 = vector.shape_cast %235 : vector<16xf32> to vector<16x1xf32>
    %237 = tpu.reciprocal %236 {approx = true} : vector<16x1xf32> -> vector<16x1xf32>
    %238 = vector.broadcast %237 : vector<16x1xf32> to vector<16x16xf32>
    %239 = arith.mulf %234, %238 : vector<16x16xf32>
    %240 = arith.truncf %239 : vector<16x16xf32> to vector<16x16xbf16>
    %cst_80 = arith.constant dense<0.000000e+00> : vector<16x16xf32>
    %241 = tpu.matmul %240, %224, %cst_80 {dimension_numbers = #tpu.dot_dimension_numbers<[1], [0], [0], [1], [0, 0, 1, 1], [], []>} : vector<16x16xbf16>, vector<16x16xbf16>, vector<16x16xf32> -> vector<16x16xf32>
    %242 = arith.truncf %241 : vector<16x16xf32> to vector<16x16xbf16>
    %c0_81 = arith.constant 0 : index
    %c0_82 = arith.constant 0 : index
    %243 = vector.load %arg26[%c0_81, %c0_82] : memref<32x32xbf16, #tpu.memory_space<vmem>>, vector<16x16xbf16>
    tpu.vector_store %arg26[%c0_81, %c0_82], %242 {strides = array<i32>} : memref<32x32xbf16, #tpu.memory_space<vmem>>, vector<16x16xbf16>,
    %244 = vector.extract_strided_slice %219 {offsets = [0, 16], sizes = [16, 16], strides = [1, 1]} : vector<16x32xbf16> to vector<16x16xbf16>
    %245 = vector.extract_strided_slice %220 {offsets = [0, 16], sizes = [16, 16], strides = [1, 1]} : vector<16x32xbf16> to vector<16x16xbf16>
    %246 = vector.extract_strided_slice %221 {offsets = [0, 16], sizes = [16, 16], strides = [1, 1]} : vector<16x32xbf16> to vector<16x16xbf16>
    %cst_83 = arith.constant dense<0.000000e+00> : vector<16x16xf32>
    %247 = tpu.matmul %244, %245, %cst_83 {dimension_numbers = #tpu.dot_dimension_numbers<[1], [1], [0], [0], [0, 0, 1, 0], [], []>} : vector<16x16xbf16>, vector<16x16xbf16>, vector<16x16xf32> -> vector<16x16xf32>
    %cst_84 = arith.constant 2.500000e-01 : f32
    %248 = vector.broadcast %cst_84 : f32 to vector<16x16xf32>
    %249 = arith.mulf %247, %248 : vector<16x16xf32>
    %250 = vector.broadcast %60 : vector<1x16xf32> to vector<16x16xf32>
    %251 = arith.addf %249, %250 : vector<16x16xf32>
    %cst_85 = arith.constant dense<0xFF800000> : vector<16xf32>
    %252 = vector.multi_reduction <maximumf>, %251, %cst_85 [1] : vector<16x16xf32> to vector<16xf32>
    %253 = vector.shape_cast %252 : vector<16xf32> to vector<16x1xf32>
    %254 = vector.broadcast %253 : vector<16x1xf32> to vector<16x16xf32>
    %255 = arith.subf %251, %254 : vector<16x16xf32>
    %256 = math.exp %255 : vector<16x16xf32>
    %cst_86 = arith.constant dense<0.000000e+00> : vector<16xf32>
    %257 = vector.multi_reduction <add>, %256, %cst_86 [1] : vector<16x16xf32> to vector<16xf32>
    %258 = vector.shape_cast %257 : vector<16xf32> to vector<16x1xf32>
    %259 = tpu.reciprocal %258 {approx = true} : vector<16x1xf32> -> vector<16x1xf32>
    %260 = vector.broadcast %259 : vector<16x1xf32> to vector<16x16xf32>
    %261 = arith.mulf %256, %260 : vector<16x16xf32>
    %262 = arith.truncf %261 : vector<16x16xf32> to vector<16x16xbf16>
    %cst_87 = arith.constant dense<0.000000e+00> : vector<16x16xf32>
    %263 = tpu.matmul %262, %246, %cst_87 {dimension_numbers = #tpu.dot_dimension_numbers<[1], [0], [0], [1], [0, 0, 1, 1], [], []>} : vector<16x16xbf16>, vector<16x16xbf16>, vector<16x16xf32> -> vector<16x16xf32>
    %264 = arith.truncf %263 : vector<16x16xf32> to vector<16x16xbf16>
    %c0_88 = arith.constant 0 : index
    %c16_89 = arith.constant 16 : index
    %265 = vector.load %arg26[%c0_88, %c16_89] : memref<32x32xbf16, #tpu.memory_space<vmem>>, vector<16x16xbf16>
    tpu.vector_store %arg26[%c0_88, %c16_89], %264 {strides = array<i32>} : memref<32x32xbf16, #tpu.memory_space<vmem>>, vector<16x16xbf16>,
    %266 = vector.extract_strided_slice %210 {offsets = [16, 0], sizes = [16, 32], strides = [1, 1]} : vector<32x32xf32> to vector<16x32xf32>
    %267 = vector.extract_strided_slice %215 {offsets = [16, 0], sizes = [16, 32], strides = [1, 1]} : vector<32x64xf32> to vector<16x32xf32>
    %268 = vector.extract_strided_slice %215 {offsets = [16, 32], sizes = [16, 32], strides = [1, 1]} : vector<32x64xf32> to vector<16x32xf32>
    %269 = arith.truncf %266 : vector<16x32xf32> to vector<16x32xbf16>
    %270 = arith.truncf %267 : vector<16x32xf32> to vector<16x32xbf16>
    %271 = arith.truncf %268 : vector<16x32xf32> to vector<16x32xbf16>
    %272 = vector.extract_strided_slice %269 {offsets = [0, 0], sizes = [16, 16], strides = [1, 1]} : vector<16x32xbf16> to vector<16x16xbf16>
    %273 = vector.extract_strided_slice %270 {offsets = [0, 0], sizes = [16, 16], strides = [1, 1]} : vector<16x32xbf16> to vector<16x16xbf16>
    %274 = vector.extract_strided_slice %271 {offsets = [0, 0], sizes = [16, 16], strides = [1, 1]} : vector<16x32xbf16> to vector<16x16xbf16>
    %cst_90 = arith.constant dense<0.000000e+00> : vector<16x16xf32>
    %275 = tpu.matmul %272, %273, %cst_90 {dimension_numbers = #tpu.dot_dimension_numbers<[1], [1], [0], [0], [0, 0, 1, 0], [], []>} : vector<16x16xbf16>, vector<16x16xbf16>, vector<16x16xf32> -> vector<16x16xf32>
    %cst_91 = arith.constant 2.500000e-01 : f32
    %276 = vector.broadcast %cst_91 : f32 to vector<16x16xf32>
    %277 = arith.mulf %275, %276 : vector<16x16xf32>
    %278 = vector.broadcast %65 : vector<1x16xf32> to vector<16x16xf32>
    %279 = arith.addf %277, %278 : vector<16x16xf32>
    %cst_92 = arith.constant dense<0xFF800000> : vector<16xf32>
    %280 = vector.multi_reduction <maximumf>, %279, %cst_92 [1] : vector<16x16xf32> to vector<16xf32>
    %281 = vector.shape_cast %280 : vector<16xf32> to vector<16x1xf32>
    %282 = vector.broadcast %281 : vector<16x1xf32> to vector<16x16xf32>
    %283 = arith.subf %279, %282 : vector<16x16xf32>
    %284 = math.exp %283 : vector<16x16xf32>
    %cst_93 = arith.constant dense<0.000000e+00> : vector<16xf32>
    %285 = vector.multi_reduction <add>, %284, %cst_93 [1] : vector<16x16xf32> to vector<16xf32>
    %286 = vector.shape_cast %285 : vector<16xf32> to vector<16x1xf32>
    %287 = tpu.reciprocal %286 {approx = true} : vector<16x1xf32> -> vector<16x1xf32>
    %288 = vector.broadcast %287 : vector<16x1xf32> to vector<16x16xf32>
    %289 = arith.mulf %284, %288 : vector<16x16xf32>
    %290 = arith.truncf %289 : vector<16x16xf32> to vector<16x16xbf16>
    %cst_94 = arith.constant dense<0.000000e+00> : vector<16x16xf32>
    %291 = tpu.matmul %290, %274, %cst_94 {dimension_numbers = #tpu.dot_dimension_numbers<[1], [0], [0], [1], [0, 0, 1, 1], [], []>} : vector<16x16xbf16>, vector<16x16xbf16>, vector<16x16xf32> -> vector<16x16xf32>
    %292 = arith.truncf %291 : vector<16x16xf32> to vector<16x16xbf16>
    %c16_95 = arith.constant 16 : index
    %c0_96 = arith.constant 0 : index
    %293 = vector.load %arg26[%c16_95, %c0_96] : memref<32x32xbf16, #tpu.memory_space<vmem>>, vector<16x16xbf16>
    tpu.vector_store %arg26[%c16_95, %c0_96], %292 {strides = array<i32>} : memref<32x32xbf16, #tpu.memory_space<vmem>>, vector<16x16xbf16>,
    %294 = vector.extract_strided_slice %269 {offsets = [0, 16], sizes = [16, 16], strides = [1, 1]} : vector<16x32xbf16> to vector<16x16xbf16>
    %295 = vector.extract_strided_slice %270 {offsets = [0, 16], sizes = [16, 16], strides = [1, 1]} : vector<16x32xbf16> to vector<16x16xbf16>
    %296 = vector.extract_strided_slice %271 {offsets = [0, 16], sizes = [16, 16], strides = [1, 1]} : vector<16x32xbf16> to vector<16x16xbf16>
    %cst_97 = arith.constant dense<0.000000e+00> : vector<16x16xf32>
    %297 = tpu.matmul %294, %295, %cst_97 {dimension_numbers = #tpu.dot_dimension_numbers<[1], [1], [0], [0], [0, 0, 1, 0], [], []>} : vector<16x16xbf16>, vector<16x16xbf16>, vector<16x16xf32> -> vector<16x16xf32>
    %cst_98 = arith.constant 2.500000e-01 : f32
    %298 = vector.broadcast %cst_98 : f32 to vector<16x16xf32>
    %299 = arith.mulf %297, %298 : vector<16x16xf32>
    %300 = vector.broadcast %65 : vector<1x16xf32> to vector<16x16xf32>
    %301 = arith.addf %299, %300 : vector<16x16xf32>
    %cst_99 = arith.constant dense<0xFF800000> : vector<16xf32>
    %302 = vector.multi_reduction <maximumf>, %301, %cst_99 [1] : vector<16x16xf32> to vector<16xf32>
    %303 = vector.shape_cast %302 : vector<16xf32> to vector<16x1xf32>
    %304 = vector.broadcast %303 : vector<16x1xf32> to vector<16x16xf32>
    %305 = arith.subf %301, %304 : vector<16x16xf32>
    %306 = math.exp %305 : vector<16x16xf32>
    %cst_100 = arith.constant dense<0.000000e+00> : vector<16xf32>
    %307 = vector.multi_reduction <add>, %306, %cst_100 [1] : vector<16x16xf32> to vector<16xf32>
    %308 = vector.shape_cast %307 : vector<16xf32> to vector<16x1xf32>
    %309 = tpu.reciprocal %308 {approx = true} : vector<16x1xf32> -> vector<16x1xf32>
    %310 = vector.broadcast %309 : vector<16x1xf32> to vector<16x16xf32>
    %311 = arith.mulf %306, %310 : vector<16x16xf32>
    %312 = arith.truncf %311 : vector<16x16xf32> to vector<16x16xbf16>
    %cst_101 = arith.constant dense<0.000000e+00> : vector<16x16xf32>
    %313 = tpu.matmul %312, %296, %cst_101 {dimension_numbers = #tpu.dot_dimension_numbers<[1], [0], [0], [1], [0, 0, 1, 1], [], []>} : vector<16x16xbf16>, vector<16x16xbf16>, vector<16x16xf32> -> vector<16x16xf32>
    %314 = arith.truncf %313 : vector<16x16xf32> to vector<16x16xbf16>
    %c16_102 = arith.constant 16 : index
    %c16_103 = arith.constant 16 : index
    %315 = vector.load %arg26[%c16_102, %c16_103] : memref<32x32xbf16, #tpu.memory_space<vmem>>, vector<16x16xbf16>
    tpu.vector_store %arg26[%c16_102, %c16_103], %314 {strides = array<i32>} : memref<32x32xbf16, #tpu.memory_space<vmem>>, vector<16x16xbf16>,
    %c0_104 = arith.constant 0 : index
    %c0_105 = arith.constant 0 : index
    %316 = vector.load %arg26[%c0_104, %c0_105] : memref<32x32xbf16, #tpu.memory_space<vmem>>, vector<32x32xbf16>
    %c0_106 = arith.constant 0 : index
    %c0_107 = arith.constant 0 : index
    %317 = vector.load %arg15[%c0_106, %c0_107] : memref<32x32xbf16, #tpu.memory_space<vmem>>, vector<32x32xbf16>
    %cst_108 = arith.constant dense<0.000000e+00> : vector<32x32xf32>
    %318 = tpu.matmul %316, %317, %cst_108 {dimension_numbers = #tpu.dot_dimension_numbers<[1], [0], [0], [1], [0, 0, 1, 1], [], []>} : vector<32x32xbf16>, vector<32x32xbf16>, vector<32x32xf32> -> vector<32x32xf32>
    %c0_109 = arith.constant 0 : index
    %c0_110 = arith.constant 0 : index
    %319 = vector.load %arg16[%c0_109, %c0_110] : memref<1x32xf32, #tpu.memory_space<vmem>>, vector<1x32xf32>
    %320 = vector.broadcast %319 : vector<1x32xf32> to vector<32x32xf32>
    %321 = arith.addf %318, %320 : vector<32x32xf32>
    %322 = arith.addf %321, %202 : vector<32x32xf32>
    %c0_111 = arith.constant 0 : index
    %c0_112 = arith.constant 0 : index
    %323 = vector.load %arg17[%c0_111, %c0_112] : memref<1x32xf32, #tpu.memory_space<vmem>>, vector<1x32xf32>
    %c0_113 = arith.constant 0 : index
    %c0_114 = arith.constant 0 : index
    %324 = vector.load %arg18[%c0_113, %c0_114] : memref<1x32xf32, #tpu.memory_space<vmem>>, vector<1x32xf32>
    %cst_115 = arith.constant dense<0.000000e+00> : vector<32xf32>
    %325 = vector.multi_reduction <add>, %322, %cst_115 [1] : vector<32x32xf32> to vector<32xf32>
    %326 = vector.shape_cast %325 : vector<32xf32> to vector<32x1xf32>
    %cst_116 = arith.constant 3.125000e-02 : f32
    %327 = vector.broadcast %cst_116 : f32 to vector<32x1xf32>
    %328 = arith.mulf %326, %327 : vector<32x1xf32>
    %329 = arith.mulf %322, %322 : vector<32x32xf32>
    %cst_117 = arith.constant dense<0.000000e+00> : vector<32xf32>
    %330 = vector.multi_reduction <add>, %329, %cst_117 [1] : vector<32x32xf32> to vector<32xf32>
    %331 = vector.shape_cast %330 : vector<32xf32> to vector<32x1xf32>
    %cst_118 = arith.constant 3.125000e-02 : f32
    %332 = vector.broadcast %cst_118 : f32 to vector<32x1xf32>
    %333 = arith.mulf %331, %332 : vector<32x1xf32>
    %334 = arith.mulf %328, %328 : vector<32x1xf32>
    %335 = arith.subf %333, %334 : vector<32x1xf32>
    %336 = vector.broadcast %328 : vector<32x1xf32> to vector<32x32xf32>
    %337 = arith.subf %322, %336 : vector<32x32xf32>
    %cst_119 = arith.constant 9.99999974E-6 : f32
    %338 = vector.broadcast %cst_119 : f32 to vector<32x1xf32>
    %339 = arith.addf %335, %338 : vector<32x1xf32>
    %340 = math.rsqrt %339 : vector<32x1xf32>
    %341 = vector.broadcast %340 : vector<32x1xf32> to vector<32x32xf32>
    %342 = arith.mulf %337, %341 : vector<32x32xf32>
    %343 = vector.broadcast %323 : vector<1x32xf32> to vector<32x32xf32>
    %344 = arith.mulf %342, %343 : vector<32x32xf32>
    %345 = vector.broadcast %324 : vector<1x32xf32> to vector<32x32xf32>
    %346 = arith.addf %344, %345 : vector<32x32xf32>
    %347 = vector.broadcast %35 : vector<32x1xf32> to vector<32x32xf32>
    %348 = arith.mulf %346, %347 : vector<32x32xf32>
    %349 = arith.truncf %348 : vector<32x32xf32> to vector<32x32xbf16>
    %c0_120 = arith.constant 0 : index
    %c0_121 = arith.constant 0 : index
    %350 = vector.load %arg19[%c0_120, %c0_121] : memref<32x64xbf16, #tpu.memory_space<vmem>>, vector<32x64xbf16>
    %cst_122 = arith.constant dense<0.000000e+00> : vector<32x64xf32>
    %351 = tpu.matmul %349, %350, %cst_122 {dimension_numbers = #tpu.dot_dimension_numbers<[1], [0], [0], [1], [0, 0, 1, 1], [], []>} : vector<32x32xbf16>, vector<32x64xbf16>, vector<32x64xf32> -> vector<32x64xf32>
    %c0_123 = arith.constant 0 : index
    %c0_124 = arith.constant 0 : index
    %352 = vector.load %arg20[%c0_123, %c0_124] : memref<1x64xf32, #tpu.memory_space<vmem>>, vector<1x64xf32>
    %353 = vector.broadcast %352 : vector<1x64xf32> to vector<32x64xf32>
    %354 = arith.addf %351, %353 : vector<32x64xf32>
    %cst_125 = arith.constant 0.000000e+00 : f32
    %355 = vector.broadcast %cst_125 : f32 to vector<32x64xf32>
    %356 = arith.maximumf %354, %355 : vector<32x64xf32>
    %357 = arith.truncf %356 : vector<32x64xf32> to vector<32x64xbf16>
    %c0_126 = arith.constant 0 : index
    %c0_127 = arith.constant 0 : index
    %358 = vector.load %arg21[%c0_126, %c0_127] : memref<64x32xbf16, #tpu.memory_space<vmem>>, vector<64x32xbf16>
    %cst_128 = arith.constant dense<0.000000e+00> : vector<32x32xf32>
    %359 = tpu.matmul %357, %358, %cst_128 {dimension_numbers = #tpu.dot_dimension_numbers<[1], [0], [0], [1], [0, 0, 1, 1], [], []>} : vector<32x64xbf16>, vector<64x32xbf16>, vector<32x32xf32> -> vector<32x32xf32>
    %c0_129 = arith.constant 0 : index
    %c0_130 = arith.constant 0 : index
    %360 = vector.load %arg22[%c0_129, %c0_130] : memref<1x32xf32, #tpu.memory_space<vmem>>, vector<1x32xf32>
    %361 = vector.broadcast %360 : vector<1x32xf32> to vector<32x32xf32>
    %362 = arith.addf %359, %361 : vector<32x32xf32>
    %363 = arith.addf %362, %348 : vector<32x32xf32>
    %c0_131 = arith.constant 0 : index
    %c0_132 = arith.constant 0 : index
    %364 = vector.load %arg23[%c0_131, %c0_132] : memref<1x32xf32, #tpu.memory_space<vmem>>, vector<1x32xf32>
    %c0_133 = arith.constant 0 : index
    %c0_134 = arith.constant 0 : index
    %365 = vector.load %arg24[%c0_133, %c0_134] : memref<1x32xf32, #tpu.memory_space<vmem>>, vector<1x32xf32>
    %cst_135 = arith.constant dense<0.000000e+00> : vector<32xf32>
    %366 = vector.multi_reduction <add>, %363, %cst_135 [1] : vector<32x32xf32> to vector<32xf32>
    %367 = vector.shape_cast %366 : vector<32xf32> to vector<32x1xf32>
    %cst_136 = arith.constant 3.125000e-02 : f32
    %368 = vector.broadcast %cst_136 : f32 to vector<32x1xf32>
    %369 = arith.mulf %367, %368 : vector<32x1xf32>
    %370 = arith.mulf %363, %363 : vector<32x32xf32>
    %cst_137 = arith.constant dense<0.000000e+00> : vector<32xf32>
    %371 = vector.multi_reduction <add>, %370, %cst_137 [1] : vector<32x32xf32> to vector<32xf32>
    %372 = vector.shape_cast %371 : vector<32xf32> to vector<32x1xf32>
    %cst_138 = arith.constant 3.125000e-02 : f32
    %373 = vector.broadcast %cst_138 : f32 to vector<32x1xf32>
    %374 = arith.mulf %372, %373 : vector<32x1xf32>
    %375 = arith.mulf %369, %369 : vector<32x1xf32>
    %376 = arith.subf %374, %375 : vector<32x1xf32>
    %377 = vector.broadcast %369 : vector<32x1xf32> to vector<32x32xf32>
    %378 = arith.subf %363, %377 : vector<32x32xf32>
    %cst_139 = arith.constant 9.99999974E-6 : f32
    %379 = vector.broadcast %cst_139 : f32 to vector<32x1xf32>
    %380 = arith.addf %376, %379 : vector<32x1xf32>
    %381 = math.rsqrt %380 : vector<32x1xf32>
    %382 = vector.broadcast %381 : vector<32x1xf32> to vector<32x32xf32>
    %383 = arith.mulf %378, %382 : vector<32x32xf32>
    %384 = vector.broadcast %364 : vector<1x32xf32> to vector<32x32xf32>
    %385 = arith.mulf %383, %384 : vector<32x32xf32>
    %386 = vector.broadcast %365 : vector<1x32xf32> to vector<32x32xf32>
    %387 = arith.addf %385, %386 : vector<32x32xf32>
    %388 = vector.broadcast %35 : vector<32x1xf32> to vector<32x32xf32>
    %389 = arith.mulf %387, %388 : vector<32x32xf32>
    %390 = arith.truncf %389 : vector<32x32xf32> to vector<32x32xbf16>
    %391 = vector.shape_cast %390 : vector<32x32xbf16> to vector<2x16x32xbf16>
    %c0_140 = arith.constant 0 : index
    %c0_141 = arith.constant 0 : index
    %c0_142 = arith.constant 0 : index
    %392 = vector.load %arg25[%c0_140, %c0_141, %c0_142] : memref<2x16x32xbf16, #tpu.memory_space<vmem>>, vector<2x16x32xbf16>
    tpu.vector_store %arg25[%c0_140, %c0_141, %c0_142], %391 {strides = array<i32>} : memref<2x16x32xbf16, #tpu.memory_space<vmem>>, vector<2x16x32xbf16>,
    return
  }
  func.func @transform_0(%arg0: i32, %arg1: memref<4xi32, #tpu.memory_space<smem>>, %arg2: memref<4xi32, #tpu.memory_space<smem>>) -> (i32, i32, i32) {
    %c0_i32 = arith.constant 0 : i32
    %c0_i32_0 = arith.constant 0 : i32
    %c0_i32_1 = arith.constant 0 : i32
    return %arg0, %c0_i32, %c0_i32_0 : i32, i32, i32
  }
  func.func @transform_1(%arg0: i32, %arg1: memref<4xi32, #tpu.memory_space<smem>>, %arg2: memref<4xi32, #tpu.memory_space<smem>>) -> (i32, i32, i32) {
    %c0_i32 = arith.constant 0 : i32
    %c0_i32_0 = arith.constant 0 : i32
    %c0_i32_1 = arith.constant 0 : i32
    return %arg0, %c0_i32, %c0_i32_0 : i32, i32, i32
  }
  func.func @transform_2(%arg0: i32, %arg1: memref<4xi32, #tpu.memory_space<smem>>, %arg2: memref<4xi32, #tpu.memory_space<smem>>) -> (i32, i32) {
    %c0_i32 = arith.constant 0 : i32
    %c0_i32_0 = arith.constant 0 : i32
    %c0_i32_1 = arith.constant 0 : i32
    return %c0_i32, %c0_i32_0 : i32, i32
  }
  func.func @transform_3(%arg0: i32, %arg1: memref<4xi32, #tpu.memory_space<smem>>, %arg2: memref<4xi32, #tpu.memory_space<smem>>) -> (i32, i32) {
    %c0_i32 = arith.constant 0 : i32
    %c0_i32_0 = arith.constant 0 : i32
    %c0_i32_1 = arith.constant 0 : i32
    return %c0_i32, %c0_i32_0 : i32, i32
  }
  func.func @transform_4(%arg0: i32, %arg1: memref<4xi32, #tpu.memory_space<smem>>, %arg2: memref<4xi32, #tpu.memory_space<smem>>) -> (i32, i32) {
    %c0_i32 = arith.constant 0 : i32
    %c0_i32_0 = arith.constant 0 : i32
    %c0_i32_1 = arith.constant 0 : i32
    return %c0_i32, %c0_i32_0 : i32, i32
  }
  func.func @transform_5(%arg0: i32, %arg1: memref<4xi32, #tpu.memory_space<smem>>, %arg2: memref<4xi32, #tpu.memory_space<smem>>) -> (i32, i32) {
    %c0_i32 = arith.constant 0 : i32
    %c0_i32_0 = arith.constant 0 : i32
    %c0_i32_1 = arith.constant 0 : i32
    return %c0_i32, %c0_i32_0 : i32, i32
  }
  func.func @transform_6(%arg0: i32, %arg1: memref<4xi32, #tpu.memory_space<smem>>, %arg2: memref<4xi32, #tpu.memory_space<smem>>) -> (i32, i32) {
    %c0_i32 = arith.constant 0 : i32
    %c0_i32_0 = arith.constant 0 : i32
    %c0_i32_1 = arith.constant 0 : i32
    return %c0_i32, %c0_i32_0 : i32, i32
  }
  func.func @transform_7(%arg0: i32, %arg1: memref<4xi32, #tpu.memory_space<smem>>, %arg2: memref<4xi32, #tpu.memory_space<smem>>) -> (i32, i32) {
    %c0_i32 = arith.constant 0 : i32
    %c0_i32_0 = arith.constant 0 : i32
    %c0_i32_1 = arith.constant 0 : i32
    return %c0_i32, %c0_i32_0 : i32, i32
  }
  func.func @transform_8(%arg0: i32, %arg1: memref<4xi32, #tpu.memory_space<smem>>, %arg2: memref<4xi32, #tpu.memory_space<smem>>) -> (i32, i32) {
    %c0_i32 = arith.constant 0 : i32
    %c0_i32_0 = arith.constant 0 : i32
    %c0_i32_1 = arith.constant 0 : i32
    return %c0_i32, %c0_i32_0 : i32, i32
  }
  func.func @transform_9(%arg0: i32, %arg1: memref<4xi32, #tpu.memory_space<smem>>, %arg2: memref<4xi32, #tpu.memory_space<smem>>) -> (i32, i32) {
    %c0_i32 = arith.constant 0 : i32
    %c0_i32_0 = arith.constant 0 : i32
    %c0_i32_1 = arith.constant 0 : i32
    return %c0_i32, %c0_i32_0 : i32, i32
  }
  func.func @transform_10(%arg0: i32, %arg1: memref<4xi32, #tpu.memory_space<smem>>, %arg2: memref<4xi32, #tpu.memory_space<smem>>) -> (i32, i32) {
    %c0_i32 = arith.constant 0 : i32
    %c0_i32_0 = arith.constant 0 : i32
    %c0_i32_1 = arith.constant 0 : i32
    return %c0_i32, %c0_i32_0 : i32, i32
  }
  func.func @transform_11(%arg0: i32, %arg1: memref<4xi32, #tpu.memory_space<smem>>, %arg2: memref<4xi32, #tpu.memory_space<smem>>) -> (i32, i32) {
    %c0_i32 = arith.constant 0 : i32
    %c0_i32_0 = arith.constant 0 : i32
    %c0_i32_1 = arith.constant 0 : i32
    return %c0_i32, %c0_i32_0 : i32, i32
  }
  func.func @transform_12(%arg0: i32, %arg1: memref<4xi32, #tpu.memory_space<smem>>, %arg2: memref<4xi32, #tpu.memory_space<smem>>) -> (i32, i32) {
    %c0_i32 = arith.constant 0 : i32
    %c0_i32_0 = arith.constant 0 : i32
    %c0_i32_1 = arith.constant 0 : i32
    return %c0_i32, %c0_i32_0 : i32, i32
  }
  func.func @transform_13(%arg0: i32, %arg1: memref<4xi32, #tpu.memory_space<smem>>, %arg2: memref<4xi32, #tpu.memory_space<smem>>) -> (i32, i32) {
    %c0_i32 = arith.constant 0 : i32
    %c0_i32_0 = arith.constant 0 : i32
    %c0_i32_1 = arith.constant 0 : i32
    return %c0_i32, %c0_i32_0 : i32, i32
  }
  func.func @transform_14(%arg0: i32, %arg1: memref<4xi32, #tpu.memory_space<smem>>, %arg2: memref<4xi32, #tpu.memory_space<smem>>) -> (i32, i32) {
    %c0_i32 = arith.constant 0 : i32
    %c0_i32_0 = arith.constant 0 : i32
    %c0_i32_1 = arith.constant 0 : i32
    return %c0_i32, %c0_i32_0 : i32, i32
  }
  func.func @transform_15(%arg0: i32, %arg1: memref<4xi32, #tpu.memory_space<smem>>, %arg2: memref<4xi32, #tpu.memory_space<smem>>) -> (i32, i32) {
    %c0_i32 = arith.constant 0 : i32
    %c0_i32_0 = arith.constant 0 : i32
    %c0_i32_1 = arith.constant 0 : i32
    return %c0_i32, %c0_i32_0 : i32, i32
  }
  func.func @transform_16(%arg0: i32, %arg1: memref<4xi32, #tpu.memory_space<smem>>, %arg2: memref<4xi32, #tpu.memory_space<smem>>) -> (i32, i32) {
    %c0_i32 = arith.constant 0 : i32
    %c0_i32_0 = arith.constant 0 : i32
    %c0_i32_1 = arith.constant 0 : i32
    return %c0_i32, %c0_i32_0 : i32, i32
  }
  func.func @transform_17(%arg0: i32, %arg1: memref<4xi32, #tpu.memory_space<smem>>, %arg2: memref<4xi32, #tpu.memory_space<smem>>) -> (i32, i32) {
    %c0_i32 = arith.constant 0 : i32
    %c0_i32_0 = arith.constant 0 : i32
    %c0_i32_1 = arith.constant 0 : i32
    return %c0_i32, %c0_i32_0 : i32, i32
  }
  func.func @transform_18(%arg0: i32, %arg1: memref<4xi32, #tpu.memory_space<smem>>, %arg2: memref<4xi32, #tpu.memory_space<smem>>) -> (i32, i32) {
    %c0_i32 = arith.constant 0 : i32
    %c0_i32_0 = arith.constant 0 : i32
    %c0_i32_1 = arith.constant 0 : i32
    return %c0_i32, %c0_i32_0 : i32, i32
  }
  func.func @transform_19(%arg0: i32, %arg1: memref<4xi32, #tpu.memory_space<smem>>, %arg2: memref<4xi32, #tpu.memory_space<smem>>) -> (i32, i32) {
    %c0_i32 = arith.constant 0 : i32
    %c0_i32_0 = arith.constant 0 : i32
    %c0_i32_1 = arith.constant 0 : i32
    return %c0_i32, %c0_i32_0 : i32, i32
  }
  func.func @transform_20(%arg0: i32, %arg1: memref<4xi32, #tpu.memory_space<smem>>, %arg2: memref<4xi32, #tpu.memory_space<smem>>) -> (i32, i32) {
    %c0_i32 = arith.constant 0 : i32
    %c0_i32_0 = arith.constant 0 : i32
    %c0_i32_1 = arith.constant 0 : i32
    return %c0_i32, %c0_i32_0 : i32, i32
  }
  func.func @transform_21(%arg0: i32, %arg1: memref<4xi32, #tpu.memory_space<smem>>, %arg2: memref<4xi32, #tpu.memory_space<smem>>) -> (i32, i32) {
    %c0_i32 = arith.constant 0 : i32
    %c0_i32_0 = arith.constant 0 : i32
    %c0_i32_1 = arith.constant 0 : i32
    return %c0_i32, %c0_i32_0 : i32, i32
  }
  func.func @transform_22(%arg0: i32, %arg1: memref<4xi32, #tpu.memory_space<smem>>, %arg2: memref<4xi32, #tpu.memory_space<smem>>) -> (i32, i32, i32) {
    %c0_i32 = arith.constant 0 : i32
    %c0_i32_0 = arith.constant 0 : i32
    %c0_i32_1 = arith.constant 0 : i32
    return %arg0, %c0_i32, %c0_i32_0 : i32, i32, i32
  }
}

</mosaic_0001>

<llo_original>
// kernel: apply.5
$region0: #{apply.5}
  #allocation0 [shape = 'u32[]', space=smem, size = 0x4, offset = 0x4, fixed_abs, tag = 'smem constant byte address 0x4 - core index']
  #allocation1 [shape = 'u32[72,128]{1,0:T(1,128)}', space=vmem, size = 0x9000, scoped, tag = 'internal scratch']
  %s0 = inlined_call_operand.vmem [shape: bf16[64,32], index: 0, kind: input, shape index: {}]
  %s1 = inlined_call_operand.vmem [shape: bf16[32,128], index: 1, kind: input, shape index: {}]
  %s2 = inlined_call_operand.hbm [shape: f32[64,128], index: 2, kind: output, shape index: {}]
  %s3 = sld [smem:[#allocation0]]
  $region18: #{apply.5} parent=0
    _
  %s5 = ssub.s32 1, %s3
  %s6 = scalar_select 0, %s5, %s3
  $region1: #{apply.5} parent=0
    #allocation2 [shape = 'u8[32768]{0}', space=vmem, size = 0x8000, scoped, tag = 'output window, operand 0, single buffered']
    #allocation3 [shape = 's32[1]{0}', space=sflag, size = 0x4, scoped, tag = 'scoped memory for apply.5']
    %7 = vsyncpa [#allocation3], 0
    // Predicated region
    $region2: #{apply.5} parent=1 // pred_check
      _
    $region3: #{apply.5} parent=1 // pred_check_branch
      %9 = sbr.rel (0) target = $region5
    $region4: #{apply.5} parent=1 // pred_region
      _
    $region5: #{apply.5} parent=1 // pred_fallthru
      _
    // Predicated region
    $region6: #{apply.5} parent=1 // pred_check
      _
    $region7: #{apply.5} parent=1 // pred_check_branch
      %11 = sbr.rel (0) target = $region9
    $region8: #{apply.5} parent=1 // pred_region
      _
    $region9: #{apply.5} parent=1 // pred_fallthru
      _
    %v13 = vld [vmem:[%s0] sm:$0xf]
    %v14 = vld [vmem:[%s0 + $0x4] sm:$0xf]
    %v15 = vld [vmem:[%s0 + $0x8] sm:$0xf]
    %v16 = vld [vmem:[%s0 + $0xc] sm:$0xf]
    %v17 = vld [vmem:[%s0 + $0x10] sm:$0xf]
    %v18 = vld [vmem:[%s0 + $0x14] sm:$0xf]
    %v19 = vld [vmem:[%s0 + $0x18] sm:$0xf]
    %v20 = vld [vmem:[%s0 + $0x1c] sm:$0xf]
    %v21 = vld [vmem:[%s1] sm:$0xf]
    %v22 = vld [vmem:[%s1 + $0x4] sm:$0xf]
    %v23 = vld [vmem:[%s1 + $0x8] sm:$0xf]
    %v24 = vld [vmem:[%s1 + $0xc] sm:$0xf]
    %v33 = vunpack.c.l.b16 %v13
    %v34 = vunpack.c.l.b16 %v14
    %v35 = vunpack.c.l.b16 %v15
    %v36 = vunpack.c.l.b16 %v16
    %v37 = vunpack.c.l.b16 %v17
    %v38 = vunpack.c.l.b16 %v18
    %v39 = vunpack.c.l.b16 %v19
    %v40 = vunpack.c.l.b16 %v20
    %v41 = vpack.c.b16 %v34, %v33
    %v42 = vpack.c.b16 %v36, %v35
    %v43 = vpack.c.b16 %v38, %v37
    %v44 = vpack.c.b16 %v40, %v39
    %v49 = vunpack.c.l.b16 %v21
    %v50 = vunpack.c.l.b16 %v22
    %v51 = vunpack.c.l.b16 %v23
    %v52 = vunpack.c.l.b16 %v24
    %v53 = vpack.c.b16 %v50, %v49
    %v54 = vpack.c.b16 %v52, %v51
    %vm57 = vcmask 261120
    %v59 = vsel %vm57, %v41, 0
    %v62 = vsel %vm57, %v42, 0
    %v65 = vsel %vm57, %v43, 0
    %v68 = vsel %vm57, %v44, 0
    %70 = vmatpush.bf16.msra.mxu0 0
    %71 = vmatpush.bf16.msra.mxu0 0
    %72 = vmatpush.bf16.msra.mxu0 0
    %73 = vmatpush.bf16.msra.mxu0 0
    %74 = vmatpush.bf16.msra.mxu0 0
    %75 = vmatpush.bf16.msra.mxu0 0
    %76 = vmatpush.bf16.msra.mxu0 %v54
    %77 = vmatpush.bf16.msra.mxu0 %v53
    %78 = vmatmul.bf16.gmra.mxu0 %v59
    %v79 = vpop.f32.mrf.mxu0
    %v80 = vadd.f32 0.0, %v79
    %v81 = vpop.f32.mrf.mxu0
    %v82 = vadd.f32 0.0, %v81
    %83 = vmatmul.bf16.gmra.mxu0 %v62
    %v84 = vpop.f32.mrf.mxu0
    %v85 = vadd.f32 0.0, %v84
    %v86 = vpop.f32.mrf.mxu0
    %v87 = vadd.f32 0.0, %v86
    %88 = vmatmul.bf16.gmra.mxu0 %v65
    %v89 = vpop.f32.mrf.mxu0
    %v90 = vadd.f32 0.0, %v89
    %v91 = vpop.f32.mrf.mxu0
    %v92 = vadd.f32 0.0, %v91
    %93 = vmatmul.bf16.gmra.mxu0 %v68
    %v94 = vpop.f32.mrf.mxu0
    %v95 = vadd.f32 0.0, %v94
    %v96 = vpop.f32.mrf.mxu0
    %v97 = vadd.f32 0.0, %v96
    %98 = vdwg.mxu0
    %99 = vst [vmem:[#allocation2] sm:$0xff] %v80
    %100 = vst [vmem:[#allocation2 + $0x8] sm:$0xff] %v82
    %101 = vst [vmem:[#allocation2 + $0x10] sm:$0xff] %v85
    %102 = vst [vmem:[#allocation2 + $0x18] sm:$0xff] %v87
    %103 = vst [vmem:[#allocation2 + $0x20] sm:$0xff] %v90
    %104 = vst [vmem:[#allocation2 + $0x28] sm:$0xff] %v92
    %105 = vst [vmem:[#allocation2 + $0x30] sm:$0xff] %v95
    %106 = vst [vmem:[#allocation2 + $0x38] sm:$0xff] %v97
    // Predicated region
    $region10: #{apply.5} parent=1 // pred_check
      _
    $region11: #{apply.5} parent=1 // pred_check_branch
      %108 = sbr.rel (0) target = $region13
    $region12: #{apply.5} parent=1 // pred_region
      %110 = vsyncadd [#allocation3], 0
      %s111 = sshll.u32 [#allocation2], 4
      %s112 = int_to_ptr.vmem [resolvable:$true] %s111
      %s113 = sshll.u32 %s2, 4
      %s114 = int_to_ptr.hbm [resolvable:$true] %s113
      %119 = dma.vmem_to_hbm [thread:$0]  %s112, 1024, %s114, [#allocation3], 128, 128, 8
    $region13: #{apply.5} parent=1 // pred_fallthru
      _
    // Predicated region
    $region14: #{apply.5} parent=1 // pred_check
      _
    $region15: #{apply.5} parent=1 // pred_check_branch
      %121 = sbr.rel (0) target = $region17
    $region16: #{apply.5} parent=1 // pred_region
      %123 = dma.done [#allocation3], 1024
    $region17: #{apply.5} parent=1 // pred_fallthru
      _
    %124 = vsyncpa [#allocation3], 1

// kernel: apply.3
$region0: #{apply.3}
  #allocation0 [shape = 'u32[]', space=smem, size = 0x4, offset = 0x4, fixed_abs, tag = 'smem constant byte address 0x4 - core index']
  #allocation1 [shape = 'u32[72,128]{1,0:T(1,128)}', space=vmem, size = 0x9000, scoped, tag = 'internal scratch']
  #allocation2 [shape = 'bf16[32,32]{1,0:T(8,128)(2,1)}', space=vmem, size = 0x2000, scoped, tag = 'scratch operand']
  #allocation3 [shape = 's32[1]{0}', space=sflag, size = 0x4, scoped, tag = 'scoped memory for apply.3']
  #allocation4 [shape = 'u8[512]{0}', space=smem, size = 0x200, scoped, tag = 'prefetched SMEM operand 0']
  #allocation5 [shape = 'u8[512]{0}', space=smem, size = 0x200, scoped, tag = 'prefetched SMEM operand 1']
  %s0 = inlined_call_operand.vmem [shape: s32[4], index: 0, kind: input, shape index: {}]
  %s1 = inlined_call_operand.vmem [shape: s32[4], index: 1, kind: input, shape index: {}]
  %s2 = inlined_call_operand.vmem [shape: bf16[4,16,32], index: 2, kind: input, shape index: {}]
  %s3 = inlined_call_operand.vmem [shape: bf16[4,16,32], index: 3, kind: input, shape index: {}]
  %s4 = inlined_call_operand.vmem [shape: bf16[32,96], index: 4, kind: input, shape index: {}]
  %s5 = inlined_call_operand.vmem [shape: f32[1,96], index: 5, kind: input, shape index: {}]
  %s6 = inlined_call_operand.vmem [shape: bf16[32,32], index: 6, kind: input, shape index: {}]
  %s7 = inlined_call_operand.vmem [shape: f32[1,32], index: 7, kind: input, shape index: {}]
  %s8 = inlined_call_operand.vmem [shape: f32[1,32], index: 8, kind: input, shape index: {}]
  %s9 = inlined_call_operand.vmem [shape: f32[1,32], index: 9, kind: input, shape index: {}]
  %s10 = inlined_call_operand.vmem [shape: bf16[32,32], index: 10, kind: input, shape index: {}]
  %s11 = inlined_call_operand.vmem [shape: f32[1,32], index: 11, kind: input, shape index: {}]
  %s12 = inlined_call_operand.vmem [shape: bf16[32,64], index: 12, kind: input, shape index: {}]
  %s13 = inlined_call_operand.vmem [shape: f32[1,64], index: 13, kind: input, shape index: {}]
  %s14 = inlined_call_operand.vmem [shape: bf16[32,32], index: 14, kind: input, shape index: {}]
  %s15 = inlined_call_operand.vmem [shape: f32[1,32], index: 15, kind: input, shape index: {}]
  %s16 = inlined_call_operand.vmem [shape: f32[1,32], index: 16, kind: input, shape index: {}]
  %s17 = inlined_call_operand.vmem [shape: f32[1,32], index: 17, kind: input, shape index: {}]
  %s18 = inlined_call_operand.vmem [shape: bf16[32,64], index: 18, kind: input, shape index: {}]
  %s19 = inlined_call_operand.vmem [shape: f32[1,64], index: 19, kind: input, shape index: {}]
  %s20 = inlined_call_operand.vmem [shape: bf16[64,32], index: 20, kind: input, shape index: {}]
  %s21 = inlined_call_operand.vmem [shape: f32[1,32], index: 21, kind: input, shape index: {}]
  %s22 = inlined_call_operand.vmem [shape: f32[1,32], index: 22, kind: input, shape index: {}]
  %s23 = inlined_call_operand.vmem [shape: f32[1,32], index: 23, kind: input, shape index: {}]
  %s24 = inlined_call_operand.vmem [shape: bf16[4,16,32], index: 24, kind: output, shape index: {}]
  %s25 = sld [smem:[#allocation0]]
  $region121: #{apply.3} parent=0
    _
  %s27 = ssub.s32 1, %s25
  %s28 = scalar_select 0, %s27, %s25
  %s30 = sshll.u32 %s0, 4
  %s31 = int_to_ptr.vmem [resolvable:$true] %s30
  %33 = dma.vmem_to_smem %s31, 16, [#allocation4], [#allocation3]
  %s35 = sshll.u32 %s1, 4
  %s36 = int_to_ptr.vmem [resolvable:$true] %s35
  %38 = dma.vmem_to_smem %s36, 16, [#allocation5], [#allocation3]
  %40 = dma.done [#allocation3], 32
  %41 = sfence
  loop: start=0, step=1, limit=4
  $region2: #{apply.3} parent=0 // loop_pre_header
    _
  $region3: #{apply.3} parent=0 // loop_header
    %s43 = sphi 0, %s47
    %p44 = scmp.ge.s32.totalorder %s43, 4
    %s53 = sphi 0, %s55
    %s56 = sphi 0, %s53
    %s57 = sphi 0, %s56
    %s73 = sphi 0, %s57
    %s79 = sphi 0, %s81
    %s82 = sphi 0, %s79
    %s83 = sphi 0, %s82
    %s99 = sphi 0, %s83
    %s103 = sphi 0, %s103
    %s105 = sphi 0, %s103
    %s106 = sphi 0, %s105
    %s120 = sphi 0, %s106
    %s124 = sphi 0, %s124
    %s126 = sphi 0, %s124
    %s127 = sphi 0, %s126
    %s141 = sphi 0, %s127
    %s145 = sphi 0, %s145
    %s147 = sphi 0, %s145
    %s148 = sphi 0, %s147
    %s162 = sphi 0, %s148
    %s166 = sphi 0, %s166
    %s168 = sphi 0, %s166
    %s169 = sphi 0, %s168
    %s183 = sphi 0, %s169
    %s187 = sphi 0, %s187
    %s189 = sphi 0, %s187
    %s190 = sphi 0, %s189
    %s204 = sphi 0, %s190
    %s208 = sphi 0, %s208
    %s210 = sphi 0, %s208
    %s211 = sphi 0, %s210
    %s225 = sphi 0, %s211
    %s229 = sphi 0, %s229
    %s231 = sphi 0, %s229
    %s232 = sphi 0, %s231
    %s246 = sphi 0, %s232
    %s250 = sphi 0, %s250
    %s252 = sphi 0, %s250
    %s253 = sphi 0, %s252
    %s267 = sphi 0, %s253
    %s271 = sphi 0, %s271
    %s273 = sphi 0, %s271
    %s274 = sphi 0, %s273
    %s288 = sphi 0, %s274
    %s292 = sphi 0, %s292
    %s294 = sphi 0, %s292
    %s295 = sphi 0, %s294
    %s309 = sphi 0, %s295
    %s313 = sphi 0, %s313
    %s315 = sphi 0, %s313
    %s316 = sphi 0, %s315
    %s330 = sphi 0, %s316
    %s334 = sphi 0, %s334
    %s336 = sphi 0, %s334
    %s337 = sphi 0, %s336
    %s351 = sphi 0, %s337
    %s355 = sphi 0, %s355
    %s357 = sphi 0, %s355
    %s358 = sphi 0, %s357
    %s372 = sphi 0, %s358
    %s376 = sphi 0, %s376
    %s378 = sphi 0, %s376
    %s379 = sphi 0, %s378
    %s393 = sphi 0, %s379
    %s397 = sphi 0, %s397
    %s399 = sphi 0, %s397
    %s400 = sphi 0, %s399
    %s414 = sphi 0, %s400
    %s418 = sphi 0, %s418
    %s420 = sphi 0, %s418
    %s421 = sphi 0, %s420
    %s435 = sphi 0, %s421
    %s439 = sphi 0, %s439
    %s441 = sphi 0, %s439
    %s442 = sphi 0, %s441
    %s456 = sphi 0, %s442
    %s460 = sphi 0, %s460
    %s462 = sphi 0, %s460
    %s463 = sphi 0, %s462
    %s477 = sphi 0, %s463
    %s481 = sphi 0, %s481
    %s483 = sphi 0, %s481
    %s484 = sphi 0, %s483
    %s498 = sphi 0, %s484
    %s502 = sphi 0, %s502
    %s504 = sphi 0, %s502
    %s505 = sphi 0, %s504
    %s519 = sphi 0, %s505
    %s525 = sphi 0, %s527
    %s528 = sphi 0, %s525
    %s529 = sphi 0, %s528
    %s545 = sphi 0, %s529
  $region4: #{apply.3} parent=0 // loop_header_branch
    %46 = sbr.rel (%p44) target = $region8
  $region5: #{apply.3} parent=0 // loop_body
    %s48 = ssub.s32 %s43, 1
    %s49 = ssub.s32 %s43, 2
    %s50 = sadd.s32 %s43, 1
    %s51 = ssub.s32 %s43, %s50
    %p52 = scmp.eq.s32.totalorder %s51, 0
    %s54 = sadd.s32 %s53, 1
    %s55 = scalar_select %p52, %s53, %s54
    %p58 = pneg %p52
    %p59 = scmp.eq.s32.totalorder %s43, 1
    %p60 = por %p58, %p59
    %p61 = scmp.ne.s32.totalorder %s53, %s56
    %p62 = scmp.eq.s32.totalorder %s43, 0
    %p63 = por %p61, %p62
    %p64 = scmp.ne.s32.totalorder %s53, %s56
    %p65 = scmp.eq.s32.totalorder %s48, 1
    %p66 = por %p64, %p65
    %p67 = scmp.ne.s32.totalorder %s56, %s57
    %p68 = scmp.eq.s32.totalorder %s48, 0
    %p69 = por %p67, %p68
    %p70 = scmp.ne.s32.totalorder %s56, %s57
    %p71 = scmp.eq.s32.totalorder %s49, 1
    %p72 = por %p70, %p71
    %p74 = scmp.ne.s32.totalorder %s57, %s73
    %p75 = scmp.eq.s32.totalorder %s49, 0
    %p76 = por %p74, %p75
    %s77 = ssub.s32 %s43, %s50
    %p78 = scmp.eq.s32.totalorder %s77, 0
    %s80 = sadd.s32 %s79, 1
    %s81 = scalar_select %p78, %s79, %s80
    %p84 = pneg %p78
    %p85 = scmp.eq.s32.totalorder %s43, 1
    %p86 = por %p84, %p85
    %p87 = scmp.ne.s32.totalorder %s79, %s82
    %p88 = scmp.eq.s32.totalorder %s43, 0
    %p89 = por %p87, %p88
    %p90 = scmp.ne.s32.totalorder %s79, %s82
    %p91 = scmp.eq.s32.totalorder %s48, 1
    %p92 = por %p90, %p91
    %p93 = scmp.ne.s32.totalorder %s82, %s83
    %p94 = scmp.eq.s32.totalorder %s48, 0
    %p95 = por %p93, %p94
    %p96 = scmp.ne.s32.totalorder %s82, %s83
    %p97 = scmp.eq.s32.totalorder %s49, 1
    %p98 = por %p96, %p97
    %p100 = scmp.ne.s32.totalorder %s83, %s99
    %p101 = scmp.eq.s32.totalorder %s49, 0
    %p102 = por %p100, %p101
    %s104 = sadd.s32 %s103, 1
    %p107 = scmp.eq.s32.totalorder %s43, 1
    %p108 = scmp.ne.s32.totalorder %s103, %s105
    %p109 = scmp.eq.s32.totalorder %s43, 0
    %p110 = por %p108, %p109
    %p111 = scmp.ne.s32.totalorder %s103, %s105
    %p112 = scmp.eq.s32.totalorder %s48, 1
    %p113 = por %p111, %p112
    %p114 = scmp.ne.s32.totalorder %s105, %s106
    %p115 = scmp.eq.s32.totalorder %s48, 0
    %p116 = por %p114, %p115
    %p117 = scmp.ne.s32.totalorder %s105, %s106
    %p118 = scmp.eq.s32.totalorder %s49, 1
    %p119 = por %p117, %p118
    %p121 = scmp.ne.s32.totalorder %s106, %s120
    %p122 = scmp.eq.s32.totalorder %s49, 0
    %p123 = por %p121, %p122
    %s125 = sadd.s32 %s124, 1
    %p128 = scmp.eq.s32.totalorder %s43, 1
    %p129 = scmp.ne.s32.totalorder %s124, %s126
    %p130 = scmp.eq.s32.totalorder %s43, 0
    %p131 = por %p129, %p130
    %p132 = scmp.ne.s32.totalorder %s124, %s126
    %p133 = scmp.eq.s32.totalorder %s48, 1
    %p134 = por %p132, %p133
    %p135 = scmp.ne.s32.totalorder %s126, %s127
    %p136 = scmp.eq.s32.totalorder %s48, 0
    %p137 = por %p135, %p136
    %p138 = scmp.ne.s32.totalorder %s126, %s127
    %p139 = scmp.eq.s32.totalorder %s49, 1
    %p140 = por %p138, %p139
    %p142 = scmp.ne.s32.totalorder %s127, %s141
    %p143 = scmp.eq.s32.totalorder %s49, 0
    %p144 = por %p142, %p143
    %s146 = sadd.s32 %s145, 1
    %p149 = scmp.eq.s32.totalorder %s43, 1
    %p150 = scmp.ne.s32.totalorder %s145, %s147
    %p151 = scmp.eq.s32.totalorder %s43, 0
    %p152 = por %p150, %p151
    %p153 = scmp.ne.s32.totalorder %s145, %s147
    %p154 = scmp.eq.s32.totalorder %s48, 1
    %p155 = por %p153, %p154
    %p156 = scmp.ne.s32.totalorder %s147, %s148
    %p157 = scmp.eq.s32.totalorder %s48, 0
    %p158 = por %p156, %p157
    %p159 = scmp.ne.s32.totalorder %s147, %s148
    %p160 = scmp.eq.s32.totalorder %s49, 1
    %p161 = por %p159, %p160
    %p163 = scmp.ne.s32.totalorder %s148, %s162
    %p164 = scmp.eq.s32.totalorder %s49, 0
    %p165 = por %p163, %p164
    %s167 = sadd.s32 %s166, 1
    %p170 = scmp.eq.s32.totalorder %s43, 1
    %p171 = scmp.ne.s32.totalorder %s166, %s168
    %p172 = scmp.eq.s32.totalorder %s43, 0
    %p173 = por %p171, %p172
    %p174 = scmp.ne.s32.totalorder %s166, %s168
    %p175 = scmp.eq.s32.totalorder %s48, 1
    %p176 = por %p174, %p175
    %p177 = scmp.ne.s32.totalorder %s168, %s169
    %p178 = scmp.eq.s32.totalorder %s48, 0
    %p179 = por %p177, %p178
    %p180 = scmp.ne.s32.totalorder %s168, %s169
    %p181 = scmp.eq.s32.totalorder %s49, 1
    %p182 = por %p180, %p181
    %p184 = scmp.ne.s32.totalorder %s169, %s183
    %p185 = scmp.eq.s32.totalorder %s49, 0
    %p186 = por %p184, %p185
    %s188 = sadd.s32 %s187, 1
    %p191 = scmp.eq.s32.totalorder %s43, 1
    %p192 = scmp.ne.s32.totalorder %s187, %s189
    %p193 = scmp.eq.s32.totalorder %s43, 0
    %p194 = por %p192, %p193
    %p195 = scmp.ne.s32.totalorder %s187, %s189
    %p196 = scmp.eq.s32.totalorder %s48, 1
    %p197 = por %p195, %p196
    %p198 = scmp.ne.s32.totalorder %s189, %s190
    %p199 = scmp.eq.s32.totalorder %s48, 0
    %p200 = por %p198, %p199
    %p201 = scmp.ne.s32.totalorder %s189, %s190
    %p202 = scmp.eq.s32.totalorder %s49, 1
    %p203 = por %p201, %p202
    %p205 = scmp.ne.s32.totalorder %s190, %s204
    %p206 = scmp.eq.s32.totalorder %s49, 0
    %p207 = por %p205, %p206
    %s209 = sadd.s32 %s208, 1
    %p212 = scmp.eq.s32.totalorder %s43, 1
    %p213 = scmp.ne.s32.totalorder %s208, %s210
    %p214 = scmp.eq.s32.totalorder %s43, 0
    %p215 = por %p213, %p214
    %p216 = scmp.ne.s32.totalorder %s208, %s210
    %p217 = scmp.eq.s32.totalorder %s48, 1
    %p218 = por %p216, %p217
    %p219 = scmp.ne.s32.totalorder %s210, %s211
    %p220 = scmp.eq.s32.totalorder %s48, 0
    %p221 = por %p219, %p220
    %p222 = scmp.ne.s32.totalorder %s210, %s211
    %p223 = scmp.eq.s32.totalorder %s49, 1
    %p224 = por %p222, %p223
    %p226 = scmp.ne.s32.totalorder %s211, %s225
    %p227 = scmp.eq.s32.totalorder %s49, 0
    %p228 = por %p226, %p227
    %s230 = sadd.s32 %s229, 1
    %p233 = scmp.eq.s32.totalorder %s43, 1
    %p234 = scmp.ne.s32.totalorder %s229, %s231
    %p235 = scmp.eq.s32.totalorder %s43, 0
    %p236 = por %p234, %p235
    %p237 = scmp.ne.s32.totalorder %s229, %s231
    %p238 = scmp.eq.s32.totalorder %s48, 1
    %p239 = por %p237, %p238
    %p240 = scmp.ne.s32.totalorder %s231, %s232
    %p241 = scmp.eq.s32.totalorder %s48, 0
    %p242 = por %p240, %p241
    %p243 = scmp.ne.s32.totalorder %s231, %s232
    %p244 = scmp.eq.s32.totalorder %s49, 1
    %p245 = por %p243, %p244
    %p247 = scmp.ne.s32.totalorder %s232, %s246
    %p248 = scmp.eq.s32.totalorder %s49, 0
    %p249 = por %p247, %p248
    %s251 = sadd.s32 %s250, 1
    %p254 = scmp.eq.s32.totalorder %s43, 1
    %p255 = scmp.ne.s32.totalorder %s250, %s252
    %p256 = scmp.eq.s32.totalorder %s43, 0
    %p257 = por %p255, %p256
    %p258 = scmp.ne.s32.totalorder %s250, %s252
    %p259 = scmp.eq.s32.totalorder %s48, 1
    %p260 = por %p258, %p259
    %p261 = scmp.ne.s32.totalorder %s252, %s253
    %p262 = scmp.eq.s32.totalorder %s48, 0
    %p263 = por %p261, %p262
    %p264 = scmp.ne.s32.totalorder %s252, %s253
    %p265 = scmp.eq.s32.totalorder %s49, 1
    %p266 = por %p264, %p265
    %p268 = scmp.ne.s32.totalorder %s253, %s267
    %p269 = scmp.eq.s32.totalorder %s49, 0
    %p270 = por %p268, %p269
    %s272 = sadd.s32 %s271, 1
    %p275 = scmp.eq.s32.totalorder %s43, 1
    %p276 = scmp.ne.s32.totalorder %s271, %s273
    %p277 = scmp.eq.s32.totalorder %s43, 0
    %p278 = por %p276, %p277
    %p279 = scmp.ne.s32.totalorder %s271, %s273
    %p280 = scmp.eq.s32.totalorder %s48, 1
    %p281 = por %p279, %p280
    %p282 = scmp.ne.s32.totalorder %s273, %s274
    %p283 = scmp.eq.s32.totalorder %s48, 0
    %p284 = por %p282, %p283
    %p285 = scmp.ne.s32.totalorder %s273, %s274
    %p286 = scmp.eq.s32.totalorder %s49, 1
    %p287 = por %p285, %p286
    %p289 = scmp.ne.s32.totalorder %s274, %s288
    %p290 = scmp.eq.s32.totalorder %s49, 0
    %p291 = por %p289, %p290
    %s293 = sadd.s32 %s292, 1
    %p296 = scmp.eq.s32.totalorder %s43, 1
    %p297 = scmp.ne.s32.totalorder %s292, %s294
    %p298 = scmp.eq.s32.totalorder %s43, 0
    %p299 = por %p297, %p298
    %p300 = scmp.ne.s32.totalorder %s292, %s294
    %p301 = scmp.eq.s32.totalorder %s48, 1
    %p302 = por %p300, %p301
    %p303 = scmp.ne.s32.totalorder %s294, %s295
    %p304 = scmp.eq.s32.totalorder %s48, 0
    %p305 = por %p303, %p304
    %p306 = scmp.ne.s32.totalorder %s294, %s295
    %p307 = scmp.eq.s32.totalorder %s49, 1
    %p308 = por %p306, %p307
    %p310 = scmp.ne.s32.totalorder %s295, %s309
    %p311 = scmp.eq.s32.totalorder %s49, 0
    %p312 = por %p310, %p311
    %s314 = sadd.s32 %s313, 1
    %p317 = scmp.eq.s32.totalorder %s43, 1
    %p318 = scmp.ne.s32.totalorder %s313, %s315
    %p319 = scmp.eq.s32.totalorder %s43, 0
    %p320 = por %p318, %p319
    %p321 = scmp.ne.s32.totalorder %s313, %s315
    %p322 = scmp.eq.s32.totalorder %s48, 1
    %p323 = por %p321, %p322
    %p324 = scmp.ne.s32.totalorder %s315, %s316
    %p325 = scmp.eq.s32.totalorder %s48, 0
    %p326 = por %p324, %p325
    %p327 = scmp.ne.s32.totalorder %s315, %s316
    %p328 = scmp.eq.s32.totalorder %s49, 1
    %p329 = por %p327, %p328
    %p331 = scmp.ne.s32.totalorder %s316, %s330
    %p332 = scmp.eq.s32.totalorder %s49, 0
    %p333 = por %p331, %p332
    %s335 = sadd.s32 %s334, 1
    %p338 = scmp.eq.s32.totalorder %s43, 1
    %p339 = scmp.ne.s32.totalorder %s334, %s336
    %p340 = scmp.eq.s32.totalorder %s43, 0
    %p341 = por %p339, %p340
    %p342 = scmp.ne.s32.totalorder %s334, %s336
    %p343 = scmp.eq.s32.totalorder %s48, 1
    %p344 = por %p342, %p343
    %p345 = scmp.ne.s32.totalorder %s336, %s337
    %p346 = scmp.eq.s32.totalorder %s48, 0
    %p347 = por %p345, %p346
    %p348 = scmp.ne.s32.totalorder %s336, %s337
    %p349 = scmp.eq.s32.totalorder %s49, 1
    %p350 = por %p348, %p349
    %p352 = scmp.ne.s32.totalorder %s337, %s351
    %p353 = scmp.eq.s32.totalorder %s49, 0
    %p354 = por %p352, %p353
    %s356 = sadd.s32 %s355, 1
    %p359 = scmp.eq.s32.totalorder %s43, 1
    %p360 = scmp.ne.s32.totalorder %s355, %s357
    %p361 = scmp.eq.s32.totalorder %s43, 0
    %p362 = por %p360, %p361
    %p363 = scmp.ne.s32.totalorder %s355, %s357
    %p364 = scmp.eq.s32.totalorder %s48, 1
    %p365 = por %p363, %p364
    %p366 = scmp.ne.s32.totalorder %s357, %s358
    %p367 = scmp.eq.s32.totalorder %s48, 0
    %p368 = por %p366, %p367
    %p369 = scmp.ne.s32.totalorder %s357, %s358
    %p370 = scmp.eq.s32.totalorder %s49, 1
    %p371 = por %p369, %p370
    %p373 = scmp.ne.s32.totalorder %s358, %s372
    %p374 = scmp.eq.s32.totalorder %s49, 0
    %p375 = por %p373, %p374
    %s377 = sadd.s32 %s376, 1
    %p380 = scmp.eq.s32.totalorder %s43, 1
    %p381 = scmp.ne.s32.totalorder %s376, %s378
    %p382 = scmp.eq.s32.totalorder %s43, 0
    %p383 = por %p381, %p382
    %p384 = scmp.ne.s32.totalorder %s376, %s378
    %p385 = scmp.eq.s32.totalorder %s48, 1
    %p386 = por %p384, %p385
    %p387 = scmp.ne.s32.totalorder %s378, %s379
    %p388 = scmp.eq.s32.totalorder %s48, 0
    %p389 = por %p387, %p388
    %p390 = scmp.ne.s32.totalorder %s378, %s379
    %p391 = scmp.eq.s32.totalorder %s49, 1
    %p392 = por %p390, %p391
    %p394 = scmp.ne.s32.totalorder %s379, %s393
    %p395 = scmp.eq.s32.totalorder %s49, 0
    %p396 = por %p394, %p395
    %s398 = sadd.s32 %s397, 1
    %p401 = scmp.eq.s32.totalorder %s43, 1
    %p402 = scmp.ne.s32.totalorder %s397, %s399
    %p403 = scmp.eq.s32.totalorder %s43, 0
    %p404 = por %p402, %p403
    %p405 = scmp.ne.s32.totalorder %s397, %s399
    %p406 = scmp.eq.s32.totalorder %s48, 1
    %p407 = por %p405, %p406
    %p408 = scmp.ne.s32.totalorder %s399, %s400
    %p409 = scmp.eq.s32.totalorder %s48, 0
    %p410 = por %p408, %p409
    %p411 = scmp.ne.s32.totalorder %s399, %s400
    %p412 = scmp.eq.s32.totalorder %s49, 1
    %p413 = por %p411, %p412
    %p415 = scmp.ne.s32.totalorder %s400, %s414
    %p416 = scmp.eq.s32.totalorder %s49, 0
    %p417 = por %p415, %p416
    %s419 = sadd.s32 %s418, 1
    %p422 = scmp.eq.s32.totalorder %s43, 1
    %p423 = scmp.ne.s32.totalorder %s418, %s420
    %p424 = scmp.eq.s32.totalorder %s43, 0
    %p425 = por %p423, %p424
    %p426 = scmp.ne.s32.totalorder %s418, %s420
    %p427 = scmp.eq.s32.totalorder %s48, 1
    %p428 = por %p426, %p427
    %p429 = scmp.ne.s32.totalorder %s420, %s421
    %p430 = scmp.eq.s32.totalorder %s48, 0
    %p431 = por %p429, %p430
    %p432 = scmp.ne.s32.totalorder %s420, %s421
    %p433 = scmp.eq.s32.totalorder %s49, 1
    %p434 = por %p432, %p433
    %p436 = scmp.ne.s32.totalorder %s421, %s435
    %p437 = scmp.eq.s32.totalorder %s49, 0
    %p438 = por %p436, %p437
    %s440 = sadd.s32 %s439, 1
    %p443 = scmp.eq.s32.totalorder %s43, 1
    %p444 = scmp.ne.s32.totalorder %s439, %s441
    %p445 = scmp.eq.s32.totalorder %s43, 0
    %p446 = por %p444, %p445
    %p447 = scmp.ne.s32.totalorder %s439, %s441
    %p448 = scmp.eq.s32.totalorder %s48, 1
    %p449 = por %p447, %p448
    %p450 = scmp.ne.s32.totalorder %s441, %s442
    %p451 = scmp.eq.s32.totalorder %s48, 0
    %p452 = por %p450, %p451
    %p453 = scmp.ne.s32.totalorder %s441, %s442
    %p454 = scmp.eq.s32.totalorder %s49, 1
    %p455 = por %p453, %p454
    %p457 = scmp.ne.s32.totalorder %s442, %s456
    %p458 = scmp.eq.s32.totalorder %s49, 0
    %p459 = por %p457, %p458
    %s461 = sadd.s32 %s460, 1
    %p464 = scmp.eq.s32.totalorder %s43, 1
    %p465 = scmp.ne.s32.totalorder %s460, %s462
    %p466 = scmp.eq.s32.totalorder %s43, 0
    %p467 = por %p465, %p466
    %p468 = scmp.ne.s32.totalorder %s460, %s462
    %p469 = scmp.eq.s32.totalorder %s48, 1
    %p470 = por %p468, %p469
    %p471 = scmp.ne.s32.totalorder %s462, %s463
    %p472 = scmp.eq.s32.totalorder %s48, 0
    %p473 = por %p471, %p472
    %p474 = scmp.ne.s32.totalorder %s462, %s463
    %p475 = scmp.eq.s32.totalorder %s49, 1
    %p476 = por %p474, %p475
    %p478 = scmp.ne.s32.totalorder %s463, %s477
    %p479 = scmp.eq.s32.totalorder %s49, 0
    %p480 = por %p478, %p479
    %s482 = sadd.s32 %s481, 1
    %p485 = scmp.eq.s32.totalorder %s43, 1
    %p486 = scmp.ne.s32.totalorder %s481, %s483
    %p487 = scmp.eq.s32.totalorder %s43, 0
    %p488 = por %p486, %p487
    %p489 = scmp.ne.s32.totalorder %s481, %s483
    %p490 = scmp.eq.s32.totalorder %s48, 1
    %p491 = por %p489, %p490
    %p492 = scmp.ne.s32.totalorder %s483, %s484
    %p493 = scmp.eq.s32.totalorder %s48, 0
    %p494 = por %p492, %p493
    %p495 = scmp.ne.s32.totalorder %s483, %s484
    %p496 = scmp.eq.s32.totalorder %s49, 1
    %p497 = por %p495, %p496
    %p499 = scmp.ne.s32.totalorder %s484, %s498
    %p500 = scmp.eq.s32.totalorder %s49, 0
    %p501 = por %p499, %p500
    %s503 = sadd.s32 %s502, 1
    %p506 = scmp.eq.s32.totalorder %s43, 1
    %p507 = scmp.ne.s32.totalorder %s502, %s504
    %p508 = scmp.eq.s32.totalorder %s43, 0
    %p509 = por %p507, %p508
    %p510 = scmp.ne.s32.totalorder %s502, %s504
    %p511 = scmp.eq.s32.totalorder %s48, 1
    %p512 = por %p510, %p511
    %p513 = scmp.ne.s32.totalorder %s504, %s505
    %p514 = scmp.eq.s32.totalorder %s48, 0
    %p515 = por %p513, %p514
    %p516 = scmp.ne.s32.totalorder %s504, %s505
    %p517 = scmp.eq.s32.totalorder %s49, 1
    %p518 = por %p516, %p517
    %p520 = scmp.ne.s32.totalorder %s505, %s519
    %p521 = scmp.eq.s32.totalorder %s49, 0
    %p522 = por %p520, %p521
    %s523 = ssub.s32 %s43, %s50
    %p524 = scmp.eq.s32.totalorder %s523, 0
    %s526 = sadd.s32 %s525, 1
    %s527 = scalar_select %p524, %s525, %s526
    %p530 = pneg %p524
    %p531 = scmp.eq.s32.totalorder %s43, 1
    %p532 = por %p530, %p531
    %p533 = scmp.ne.s32.totalorder %s525, %s528
    %p534 = scmp.eq.s32.totalorder %s43, 0
    %p535 = por %p533, %p534
    %p536 = scmp.ne.s32.totalorder %s525, %s528
    %p537 = scmp.eq.s32.totalorder %s48, 1
    %p538 = por %p536, %p537
    %p539 = scmp.ne.s32.totalorder %s528, %s529
    %p540 = scmp.eq.s32.totalorder %s48, 0
    %p541 = por %p539, %p540
    %p542 = scmp.ne.s32.totalorder %s528, %s529
    %p543 = scmp.eq.s32.totalorder %s49, 1
    %p544 = por %p542, %p543
    %p546 = scmp.ne.s32.totalorder %s529, %s545
    %p547 = scmp.eq.s32.totalorder %s49, 0
    %p548 = por %p546, %p547
    %p549 = scmp.le.s32.totalorder 1, %s43
    %p550 = scmp.lt.s32.totalorder %s43, 3
    %p551 = pnand %p549, %p550
    %p552 = pneg %p551
    // Predicated region
    $region9: #{apply.3} parent=5 // pred_check
      _
    $region10: #{apply.3} parent=5 // pred_check_branch
      %554 = sbr.rel (%p551) target = $region12
    $region11: #{apply.3} parent=5 // pred_region
      %s555 = ssub.s32 %s43, 1
      // Predicated region
      $region13: #{apply.3} parent=11 // pred_check
        %p556 = pneg %p116
      $region14: #{apply.3} parent=11 // pred_check_branch
        %558 = sbr.rel (%p556) target = $region16
      $region15: #{apply.3} parent=11 // pred_region
        _
      $region16: #{apply.3} parent=11 // pred_fallthru
        _
      // Predicated region
      $region17: #{apply.3} parent=11 // pred_check
        %p559 = pneg %p137
      $region18: #{apply.3} parent=11 // pred_check_branch
        %561 = sbr.rel (%p559) target = $region20
      $region19: #{apply.3} parent=11 // pred_region
        _
      $region20: #{apply.3} parent=11 // pred_fallthru
        _
      // Predicated region
      $region21: #{apply.3} parent=11 // pred_check
        %p562 = pneg %p158
      $region22: #{apply.3} parent=11 // pred_check_branch
        %564 = sbr.rel (%p562) target = $region24
      $region23: #{apply.3} parent=11 // pred_region
        _
      $region24: #{apply.3} parent=11 // pred_fallthru
        _
      // Predicated region
      $region25: #{apply.3} parent=11 // pred_check
        %p565 = pneg %p179
      $region26: #{apply.3} parent=11 // pred_check_branch
        %567 = sbr.rel (%p565) target = $region28
      $region27: #{apply.3} parent=11 // pred_region
        _
      $region28: #{apply.3} parent=11 // pred_fallthru
        _
      // Predicated region
      $region29: #{apply.3} parent=11 // pred_check
        %p568 = pneg %p200
      $region30: #{apply.3} parent=11 // pred_check_branch
        %570 = sbr.rel (%p568) target = $region32
      $region31: #{apply.3} parent=11 // pred_region
        _
      $region32: #{apply.3} parent=11 // pred_fallthru
        _
      // Predicated region
      $region33: #{apply.3} parent=11 // pred_check
        %p571 = pneg %p221
      $region34: #{apply.3} parent=11 // pred_check_branch
        %573 = sbr.rel (%p571) target = $region36
      $region35: #{apply.3} parent=11 // pred_region
        _
      $region36: #{apply.3} parent=11 // pred_fallthru
        _
      // Predicated region
      $region37: #{apply.3} parent=11 // pred_check
        %p574 = pneg %p242
      $region38: #{apply.3} parent=11 // pred_check_branch
        %576 = sbr.rel (%p574) target = $region40
      $region39: #{apply.3} parent=11 // pred_region
        _
      $region40: #{apply.3} parent=11 // pred_fallthru
        _
      // Predicated region
      $region41: #{apply.3} parent=11 // pred_check
        %p577 = pneg %p263
      $region42: #{apply.3} parent=11 // pred_check_branch
        %579 = sbr.rel (%p577) target = $region44
      $region43: #{apply.3} parent=11 // pred_region
        _
      $region44: #{apply.3} parent=11 // pred_fallthru
        _
      // Predicated region
      $region45: #{apply.3} parent=11 // pred_check
        %p580 = pneg %p284
      $region46: #{apply.3} parent=11 // pred_check_branch
        %582 = sbr.rel (%p580) target = $region48
      $region47: #{apply.3} parent=11 // pred_region
        _
      $region48: #{apply.3} parent=11 // pred_fallthru
        _
      // Predicated region
      $region49: #{apply.3} parent=11 // pred_check
        %p583 = pneg %p305
      $region50: #{apply.3} parent=11 // pred_check_branch
        %585 = sbr.rel (%p583) target = $region52
      $region51: #{apply.3} parent=11 // pred_region
        _
      $region52: #{apply.3} parent=11 // pred_fallthru
        _
      // Predicated region
      $region53: #{apply.3} parent=11 // pred_check
        %p586 = pneg %p326
      $region54: #{apply.3} parent=11 // pred_check_branch
        %588 = sbr.rel (%p586) target = $region56
      $region55: #{apply.3} parent=11 // pred_region
        _
      $region56: #{apply.3} parent=11 // pred_fallthru
        _
      // Predicated region
      $region57: #{apply.3} parent=11 // pred_check
        %p589 = pneg %p347
      $region58: #{apply.3} parent=11 // pred_check_branch
        %591 = sbr.rel (%p589) target = $region60
      $region59: #{apply.3} parent=11 // pred_region
        _
      $region60: #{apply.3} parent=11 // pred_fallthru
        _
      // Predicated region
      $region61: #{apply.3} parent=11 // pred_check
        %p592 = pneg %p368
      $region62: #{apply.3} parent=11 // pred_check_branch
        %594 = sbr.rel (%p592) target = $region64
      $region63: #{apply.3} parent=11 // pred_region
        _
      $region64: #{apply.3} parent=11 // pred_fallthru
        _
      // Predicated region
      $region65: #{apply.3} parent=11 // pred_check
        %p595 = pneg %p389
      $region66: #{apply.3} parent=11 // pred_check_branch
        %597 = sbr.rel (%p595) target = $region68
      $region67: #{apply.3} parent=11 // pred_region
        _
      $region68: #{apply.3} parent=11 // pred_fallthru
        _
      // Predicated region
      $region69: #{apply.3} parent=11 // pred_check
        %p598 = pneg %p410
      $region70: #{apply.3} parent=11 // pred_check_branch
        %600 = sbr.rel (%p598) target = $region72
      $region71: #{apply.3} parent=11 // pred_region
        _
      $region72: #{apply.3} parent=11 // pred_fallthru
        _
      // Predicated region
      $region73: #{apply.3} parent=11 // pred_check
        %p601 = pneg %p431
      $region74: #{apply.3} parent=11 // pred_check_branch
        %603 = sbr.rel (%p601) target = $region76
      $region75: #{apply.3} parent=11 // pred_region
        _
      $region76: #{apply.3} parent=11 // pred_fallthru
        _
      // Predicated region
      $region77: #{apply.3} parent=11 // pred_check
        %p604 = pneg %p452
      $region78: #{apply.3} parent=11 // pred_check_branch
        %606 = sbr.rel (%p604) target = $region80
      $region79: #{apply.3} parent=11 // pred_region
        _
      $region80: #{apply.3} parent=11 // pred_fallthru
        _
      // Predicated region
      $region81: #{apply.3} parent=11 // pred_check
        %p607 = pneg %p473
      $region82: #{apply.3} parent=11 // pred_check_branch
        %609 = sbr.rel (%p607) target = $region84
      $region83: #{apply.3} parent=11 // pred_region
        _
      $region84: #{apply.3} parent=11 // pred_fallthru
        _
      // Predicated region
      $region85: #{apply.3} parent=11 // pred_check
        %p610 = pneg %p494
      $region86: #{apply.3} parent=11 // pred_check_branch
        %612 = sbr.rel (%p610) target = $region88
      $region87: #{apply.3} parent=11 // pred_region
        _
      $region88: #{apply.3} parent=11 // pred_fallthru
        _
      // Predicated region
      $region89: #{apply.3} parent=11 // pred_check
        %p613 = pneg %p515
      $region90: #{apply.3} parent=11 // pred_check_branch
        %615 = sbr.rel (%p613) target = $region92
      $region91: #{apply.3} parent=11 // pred_region
        _
      $region92: #{apply.3} parent=11 // pred_fallthru
        _
    $region12: #{apply.3} parent=5 // pred_fallthru
      _
    %p616 = scmp.lt.s32.totalorder %s43, 2
    // Predicated region
    $region93: #{apply.3} parent=5 // pred_check
      %p617 = pneg %p616
    $region94: #{apply.3} parent=5 // pred_check_branch
      %619 = sbr.rel (%p617) target = $region96
    $region95: #{apply.3} parent=5 // pred_region
      // Predicated region
      $region97: #{apply.3} parent=95 // pred_check
        %p620 = pneg %p63
      $region98: #{apply.3} parent=95 // pred_check_branch
        %622 = sbr.rel (%p620) target = $region100
      $region99: #{apply.3} parent=95 // pred_region
        %s623 = smul.u32 2, %s43
        %p624 = scmp.lt.s32.totalorder %s623, 3
        %s625 = scalar_select %p624, %s623, 3
        %s626 = smul.addr %s625, 2
        %s627 = smul.addr %s626, 4
        %s628 = scalar_lea.vmem %s2, %s627
        %s629 = smul.u32 2, %s43
      $region100: #{apply.3} parent=95 // pred_fallthru
        _
      // Predicated region
      $region101: #{apply.3} parent=95 // pred_check
        %p630 = pneg %p89
      $region102: #{apply.3} parent=95 // pred_check_branch
        %632 = sbr.rel (%p630) target = $region104
      $region103: #{apply.3} parent=95 // pred_region
        %s633 = smul.u32 2, %s43
        %p634 = scmp.lt.s32.totalorder %s633, 3
        %s635 = scalar_select %p634, %s633, 3
        %s636 = smul.addr %s635, 2
        %s637 = smul.addr %s636, 4
        %s638 = scalar_lea.vmem %s3, %s637
        %s639 = smul.u32 2, %s43
      $region104: #{apply.3} parent=95 // pred_fallthru
        _
    $region96: #{apply.3} parent=5 // pred_fallthru
      _
    %p640 = scmp.le.s32.totalorder 1, %s43
    %p641 = scmp.lt.s32.totalorder %s43, 3
    %p642 = pnand %p640, %p641
    %p643 = pneg %p642
    // Predicated region
    $region105: #{apply.3} parent=5 // pred_check
      _
    $region106: #{apply.3} parent=5 // pred_check_branch
      %645 = sbr.rel (%p642) target = $region108
    $region107: #{apply.3} parent=5 // pred_region
      %s646 = ssub.s32 %s43, 1
      %s647 = smul.u32 2, %s48
      %p648 = scmp.lt.s32.totalorder %s647, 3
      %s649 = scalar_select %p648, %s647, 3
      %s650 = smul.addr %s649, 2
      %s651 = smul.addr %s650, 4
      %s652 = scalar_lea.vmem %s2, %s651
      %p653 = pneg %p69
      %p654 = pneg %p66
      %s655 = smul.u32 2, %s48
      %p656 = scmp.lt.s32.totalorder %s655, 3
      %s657 = scalar_select %p656, %s655, 3
      %s658 = smul.addr %s657, 2
      %s659 = smul.addr %s658, 4
      %s660 = scalar_lea.vmem %s3, %s659
      %p661 = pneg %p95
      %p662 = pneg %p92
      %p663 = pneg %p116
      %p664 = pneg %p113
      %p665 = pneg %p137
      %p666 = pneg %p134
      %p667 = pneg %p158
      %p668 = pneg %p155
      %p669 = pneg %p179
      %p670 = pneg %p176
      %p671 = pneg %p200
      %p672 = pneg %p197
      %p673 = pneg %p221
      %p674 = pneg %p218
      %p675 = pneg %p242
      %p676 = pneg %p239
      %p677 = pneg %p263
      %p678 = pneg %p260
      %p679 = pneg %p284
      %p680 = pneg %p281
      %p681 = pneg %p305
      %p682 = pneg %p302
      %p683 = pneg %p326
      %p684 = pneg %p323
      %p685 = pneg %p347
      %p686 = pneg %p344
      %p687 = pneg %p368
      %p688 = pneg %p365
      %p689 = pneg %p389
      %p690 = pneg %p386
      %p691 = pneg %p410
      %p692 = pneg %p407
      %p693 = pneg %p431
      %p694 = pneg %p428
      %p695 = pneg %p452
      %p696 = pneg %p449
      %p697 = pneg %p473
      %p698 = pneg %p470
      %p699 = pneg %p494
      %p700 = pneg %p491
      %p701 = pneg %p515
      %p702 = pneg %p512
      %p703 = pneg %p541
      %p704 = pneg %p538
      %s705 = smul.u32 2, %s48
      %p706 = scmp.lt.s32.totalorder %s705, 3
      %s707 = scalar_select %p706, %s705, 3
      %s708 = smul.addr %s707, 2
      %s709 = smul.addr %s708, 4
      %s710 = scalar_lea.vmem %s24, %s709
      %s711 = smul.u32 2, %s48
      %p712 = scmp.lt.s32.totalorder %s711, 3
      %s713 = scalar_select %p712, %s711, 3
      %s714 = smul.addr %s713, 2
      %s715 = smul.addr %s714, 4
      %s716 = scalar_lea.vmem %s2, %s715
      %s717 = smul.u32 2, %s48
      %s718 = smul.u32 2, %s48
      %p719 = scmp.lt.s32.totalorder %s718, 3
      %s720 = scalar_select %p719, %s718, 3
      %s721 = smul.addr %s720, 2
      %s722 = smul.addr %s721, 4
      %s723 = scalar_lea.vmem %s3, %s722
      %s724 = smul.u32 2, %s48
      %s725 = smul.u32 2, %s48
      %p726 = scmp.lt.s32.totalorder %s725, 3
      %s727 = scalar_select %p726, %s725, 3
      %s728 = smul.addr %s727, 2
      %s729 = smul.addr %s728, 4
      %s730 = scalar_lea.vmem %s24, %s729
      %s731 = smul.u32 2, %s48
      %s733 = smul.u32 %s48, 2
      %v734 = vlaneseq
      %v735 = vshrl.u32 %v734, 7
      %v736 = vadd.s32 %v735, 8
      %v737 = vlaneseq
      %v738 = vand.u32 %v737, 127
      %v739 = vadd.s32 %v735, 16
      %v740 = vadd.s32 %v735, 24
      %s741 = sld [smem:[#allocation4 + %s733]]
      %s742 = sadd.s32 %s733, 1
      %s743 = sld [smem:[#allocation4 + %s742]]
      %s744 = sld [smem:[#allocation5 + %s733]]
      %s745 = sld [smem:[#allocation5 + %s742]]
      %vm746 = vcmp.ge.s32.totalorder %v735, 0
      %vm747 = vcmp.ge.s32.totalorder %v736, 0
      %vm748 = vcmp.ge.s32.totalorder %v739, 0
      %vm749 = vcmp.ge.s32.totalorder %v740, 0
      %v750 = vstv %s741
      %vm751 = vcmp.lt.s32.totalorder %v735, %v750
      %vm752 = vcmp.lt.s32.totalorder %v736, %v750
      %vm753 = vcmp.lt.s32.totalorder %v739, %v750
      %vm754 = vcmp.lt.s32.totalorder %v740, %v750
      %vm755 = vmand %vm746, %vm751
      %vm756 = vmand %vm747, %vm752
      %vm757 = vmand %vm748, %vm753
      %vm758 = vmand %vm749, %vm754
      %v759 = vsel %vm755, 1, 0
      %v760 = vsel %vm756, 1, 0
      %v761 = vsel %vm757, 1, 0
      %v762 = vsel %vm758, 1, 0
      %v763 = vcvt.s32.f32 %v759
      %v764 = vcvt.s32.f32 %v760
      %v765 = vcvt.s32.f32 %v761
      %v766 = vcvt.s32.f32 %v762
      %v767 = vadd.f32 %v763, 0.0
      %v768 = vadd.f32 %v764, 0.0
      %v769 = vadd.f32 %v765, 0.0
      %v770 = vadd.f32 %v766, 0.0
      %vm771 = vcmp.ge.s32.totalorder %v735, 16
      %vm772 = vcmp.ge.s32.totalorder %v736, 16
      %vm773 = vcmp.ge.s32.totalorder %v739, 16
      %vm774 = vcmp.ge.s32.totalorder %v740, 16
      %s775 = sadd.s32 %s743, 16
      %v776 = vstv %s775
      %vm777 = vcmp.lt.s32.totalorder %v735, %v776
      %vm778 = vcmp.lt.s32.totalorder %v736, %v776
      %vm779 = vcmp.lt.s32.totalorder %v739, %v776
      %vm780 = vcmp.lt.s32.totalorder %v740, %v776
      %vm781 = vmand %vm771, %vm777
      %vm782 = vmand %vm772, %vm778
      %vm783 = vmand %vm773, %vm779
      %vm784 = vmand %vm774, %vm780
      %v785 = vsel %vm781, 1, 0
      %v786 = vsel %vm782, 1, 0
      %v787 = vsel %vm783, 1, 0
      %v788 = vsel %vm784, 1, 0
      %v789 = vcvt.s32.f32 %v785
      %v790 = vcvt.s32.f32 %v786
      %v791 = vcvt.s32.f32 %v787
      %v792 = vcvt.s32.f32 %v788
      %v793 = vadd.f32 %v767, %v789
      %v794 = vadd.f32 %v768, %v790
      %v795 = vadd.f32 %v769, %v791
      %v796 = vadd.f32 %v770, %v792
      %vm797 = vcmp.gt.s32.totalorder %v738, %v735
      %vm798 = vcmp.gt.s32.totalorder %v738, %v736
      %vm799 = vcmp.ge.s32.totalorder %v738, %v750
      %v800 = vsel %vm799, 1, 0
      %vm801 = vcmp.eq.s32.totalorder %v800, 1
      %vm802 = vmor %vm797, %vm801
      %vm803 = vmor %vm798, %vm801
      %v804 = vsel %vm802, -1e+09, 0.0
      %v805 = vsel %vm803, -1e+09, 0.0
      %v806 = vstv %s743
      %vm807 = vcmp.ge.s32.totalorder %v738, %v806
      %v808 = vsel %vm807, 1, 0
      %vm809 = vcmp.eq.s32.totalorder %v808, 1
      %vm810 = vmor %vm797, %vm809
      %vm811 = vmor %vm798, %vm809
      %v812 = vsel %vm810, -1e+09, 0.0
      %v813 = vsel %vm811, -1e+09, 0.0
      %v814 = vstv %s744
      %vm815 = vcmp.ge.s32.totalorder %v738, %v814
      %v816 = vsel %vm815, -1e+09, 0.0
      %v817 = vstv %s745
      %vm818 = vcmp.ge.s32.totalorder %v738, %v817
      %v819 = vsel %vm818, -1e+09, 0.0
      %v820 = vld [vmem:[%s716] sm:$0xf]
      %v821 = vld [vmem:[%s716 + $0x4] sm:$0xf]
      %v822 = vld [vmem:[%s716 + $0x8] sm:$0xf]
      %v823 = vld [vmem:[%s716 + $0xc] sm:$0xf]
      %v824 = vunpack.c.l.bf16 %v820
      %v825 = vunpack.c.l.bf16 %v821
      %v826 = vunpack.c.l.bf16 %v822
      %v827 = vunpack.c.l.bf16 %v823
      %v828 = vld [vmem:[%s4] sm:$0xf]
      %v829 = vld [vmem:[%s4 + $0x4] sm:$0xf]
      %v830 = vld [vmem:[%s4 + $0x8] sm:$0xf]
      %v831 = vld [vmem:[%s4 + $0xc] sm:$0xf]
      %v832 = vld [vmem:[%s5] sm:$0x1]
      %v834 = vperm.slane %v832, 0
      %v840 = vunpack.c.l.b16 %v820
      %v841 = vunpack.c.l.b16 %v821
      %v842 = vunpack.c.l.b16 %v822
      %v843 = vunpack.c.l.b16 %v823
      %v844 = vpack.c.b16 %v841, %v840
      %v845 = vpack.c.b16 %v843, %v842
      %v850 = vunpack.c.l.b16 %v828
      %v851 = vunpack.c.l.b16 %v829
      %v852 = vunpack.c.l.b16 %v830
      %v853 = vunpack.c.l.b16 %v831
      %v854 = vpack.c.b16 %v851, %v850
      %v855 = vpack.c.b16 %v853, %v852
      %vm858 = vcmask 261120
      %v860 = vsel %vm858, %v844, 0
      %v863 = vsel %vm858, %v845, 0
      %865 = vmatpush.bf16.msra.mxu0 0
      %866 = vmatpush.bf16.msra.mxu0 0
      %867 = vmatpush.bf16.msra.mxu0 0
      %868 = vmatpush.bf16.msra.mxu0 0
      %869 = vmatpush.bf16.msra.mxu0 0
      %870 = vmatpush.bf16.msra.mxu0 0
      %871 = vmatpush.bf16.msra.mxu0 %v855
      %872 = vmatpush.bf16.msra.mxu0 %v854
      %873 = vmatmul.bf16.gmra.mxu0 %v860
      %v874 = vpop.f32.mrf.mxu0
      %v875 = vadd.f32 %v834, %v874
      %v876 = vpop.f32.mrf.mxu0
      %v877 = vadd.f32 %v834, %v876
      %878 = vmatmul.bf16.gmra.mxu0 %v863
      %v879 = vpop.f32.mrf.mxu0
      %v880 = vadd.f32 %v834, %v879
      %v881 = vpop.f32.mrf.mxu0
      %v882 = vadd.f32 %v834, %v881
      %883 = vdwg.mxu0
      %v884 = vpack.c.bf16 %v875, %v875
      %v885 = vpack.c.bf16 %v877, %v877
      %v888 = vunpack.c.l.b16 %v884
      %v889 = vunpack.c.l.b16 %v885
      %v890 = vpack.c.b16 %v889, %v888
      %891 = vrot.lane.b32.xlu0 %v890, 96
      %v892 = vpop.permute.xlu0 %891
      %vm893 = vcmask 130048
      %v895 = vsel %vm893, %v890, 0
      %v898 = vsel %vm893, %v892, 0
      %900 = vmatpush.bf16.xpose.msra.mxu0 0
      %901 = vmatpush.bf16.xpose.msra.mxu0 0
      %902 = vmatpush.bf16.xpose.msra.mxu0 0
      %903 = vmatpush.bf16.xpose.msra.mxu0 0
      %904 = vmatpush.bf16.xpose.msra.mxu0 0
      %905 = vmatpush.bf16.xpose.msra.mxu0 0
      %906 = vmatpush.bf16.xpose.msra.mxu0 0
      %907 = vmatpush.bf16.xpose.msra.mxu0 %v898
      %908 = vmatmul.bf16.gmra.mxu0 %v895
      %v909 = vpop.f32.mrf.mxu0
      %v910 = vadd.f32 0.0, %v909
      %v911 = vpop.f32.mrf.mxu0
      %v912 = vadd.f32 0.0, %v911
      %913 = vdwg.mxu0
      %v914 = vmul.f32 %v910, 0.25
      %v915 = vmul.f32 %v912, 0.25
      %v916 = vadd.f32 %v914, %v804
      %v917 = vadd.f32 %v915, %v805
      %v918 = vsel %vm893, %v916, -inf
      %919 = vmax.xlane.f32.xlu0 %v918
      %v920 = vpop.xlane.xlu0 %919
      %v921 = vsel %vm893, %v917, -inf
      %922 = vmax.xlane.f32.xlu0 %v921
      %v923 = vpop.xlane.xlu0 %922
      %v924 = vsub.f32 %v916, %v920
      %v925 = vsub.f32 %v917, %v923
      %v926 = vmul.f32 %v924, 1.442695
      %v927 = vpow.pop %v926
      %v928 = vmul.f32 %v925, 1.442695
      %v929 = vpow.pop %v928
      %v930 = vsel %vm893, %v927, 0.0
      %931 = vadd.xlane.f32.xlu0 %v930
      %v932 = vpop.xlane.xlu0 %931
      %v933 = vsel %vm893, %v929, 0.0
      %934 = vadd.xlane.f32.xlu0 %v933
      %v935 = vpop.xlane.xlu0 %934
      %v936 = vrcp.pop %v932
      %v937 = vrcp.pop %v935
      %v938 = vmul.f32 %v927, %v936
      %v939 = vmul.f32 %v929, %v937
      %v940 = vpack.c.bf16 %v939, %v938
      %941 = vrot.lane.b32.xlu0 %v890, 64
      %v942 = vpop.permute.xlu0 %941
      %v945 = vsel %vm893, %v940, 0
      %947 = vmatpush.bf16.msra.mxu0 0
      %948 = vmatpush.bf16.msra.mxu0 0
      %949 = vmatpush.bf16.msra.mxu0 0
      %950 = vmatpush.bf16.msra.mxu0 0
      %951 = vmatpush.bf16.msra.mxu0 0
      %952 = vmatpush.bf16.msra.mxu0 0
      %953 = vmatpush.bf16.msra.mxu0 0
      %954 = vmatpush.bf16.msra.mxu0 %v942
      %955 = vmatmul.bf16.gmra.mxu0 %v945
      %v956 = vpop.f32.mrf.mxu0
      %v957 = vadd.f32 0.0, %v956
      %v958 = vpop.f32.mrf.mxu0
      %v959 = vadd.f32 0.0, %v958
      %960 = vdwg.mxu0
      %v961 = vpack.c.bf16 %v957, %v957
      %v962 = vpack.c.bf16 %v959, %v959
      %vm963 = vcmask 125952
      %964 = vst.msk [vmem:[#allocation2] sm:$0xf] %vm963, %v961
      %965 = vst.msk [vmem:[#allocation2 + $0x4] sm:$0xf] %vm963, %v962
      %966 = vrot.lane.b32.xlu0 %v890, 112
      %v967 = vpop.permute.xlu0 %966
      %968 = vrot.lane.b32.xlu0 %v890, 80
      %v969 = vpop.permute.xlu0 %968
      %v971 = vsel %vm893, %v967, 0
      %v974 = vsel %vm893, %v969, 0
      %976 = vmatpush.bf16.xpose.msra.mxu0 0
      %977 = vmatpush.bf16.xpose.msra.mxu0 0
      %978 = vmatpush.bf16.xpose.msra.mxu0 0
      %979 = vmatpush.bf16.xpose.msra.mxu0 0
      %980 = vmatpush.bf16.xpose.msra.mxu0 0
      %981 = vmatpush.bf16.xpose.msra.mxu0 0
      %982 = vmatpush.bf16.xpose.msra.mxu0 0
      %983 = vmatpush.bf16.xpose.msra.mxu0 %v974
      %984 = vmatmul.bf16.gmra.mxu0 %v971
      %v985 = vpop.f32.mrf.mxu0
      %v986 = vadd.f32 0.0, %v985
      %v987 = vpop.f32.mrf.mxu0
      %v988 = vadd.f32 0.0, %v987
      %989 = vdwg.mxu0
      %v990 = vmul.f32 %v986, 0.25
      %v991 = vmul.f32 %v988, 0.25
      %v992 = vadd.f32 %v990, %v804
      %v993 = vadd.f32 %v991, %v805
      %v994 = vsel %vm893, %v992, -inf
      %995 = vmax.xlane.f32.xlu0 %v994
      %v996 = vpop.xlane.xlu0 %995
      %v997 = vsel %vm893, %v993, -inf
      %998 = vmax.xlane.f32.xlu0 %v997
      %v999 = vpop.xlane.xlu0 %998
      %v1000 = vsub.f32 %v992, %v996
      %v1001 = vsub.f32 %v993, %v999
      %v1002 = vmul.f32 %v1000, 1.442695
      %v1003 = vpow.pop %v1002
      %v1004 = vmul.f32 %v1001, 1.442695
      %v1005 = vpow.pop %v1004
      %v1006 = vsel %vm893, %v1003, 0.0
      %1007 = vadd.xlane.f32.xlu0 %v1006
      %v1008 = vpop.xlane.xlu0 %1007
      %v1009 = vsel %vm893, %v1005, 0.0
      %1010 = vadd.xlane.f32.xlu0 %v1009
      %v1011 = vpop.xlane.xlu0 %1010
      %v1012 = vrcp.pop %v1008
      %v1013 = vrcp.pop %v1011
      %v1014 = vmul.f32 %v1003, %v1012
      %v1015 = vmul.f32 %v1005, %v1013
      %v1016 = vpack.c.bf16 %v1015, %v1014
      %1017 = vrot.lane.b32.xlu0 %v890, 48
      %v1018 = vpop.permute.xlu0 %1017
      %v1021 = vsel %vm893, %v1016, 0
      %1023 = vmatpush.bf16.msra.mxu0 0
      %1024 = vmatpush.bf16.msra.mxu0 0
      %1025 = vmatpush.bf16.msra.mxu0 0
      %1026 = vmatpush.bf16.msra.mxu0 0
      %1027 = vmatpush.bf16.msra.mxu0 0
      %1028 = vmatpush.bf16.msra.mxu0 0
      %1029 = vmatpush.bf16.msra.mxu0 0
      %1030 = vmatpush.bf16.msra.mxu0 %v1018
      %1031 = vmatmul.bf16.gmra.mxu0 %v1021
      %v1032 = vpop.f32.mrf.mxu0
      %v1033 = vadd.f32 0.0, %v1032
      %v1034 = vpop.f32.mrf.mxu0
      %v1035 = vadd.f32 0.0, %v1034
      %1036 = vdwg.mxu0
      %v1037 = vpack.c.bf16 %v1033, %v1033
      %v1038 = vpack.c.bf16 %v1035, %v1035
      %1041 = vrot.lane.b32.xlu0 %v1037, 16
      %v1042 = vpop.permute.xlu0 %1041
      %1043 = vrot.lane.b32.xlu0 %v1038, 16
      %v1044 = vpop.permute.xlu0 %1043
      %vm1047 = vcmask 257152
      %1048 = vst.msk [vmem:[#allocation2] sm:$0xf] %vm1047, %v1042
      %1049 = vst.msk [vmem:[#allocation2 + $0x4] sm:$0xf] %vm1047, %v1044
      %v1050 = vpack.c.bf16 %v880, %v880
      %v1051 = vpack.c.bf16 %v882, %v882
      %v1054 = vunpack.c.l.b16 %v1050
      %v1055 = vunpack.c.l.b16 %v1051
      %v1056 = vpack.c.b16 %v1055, %v1054
      %1057 = vrot.lane.b32.xlu0 %v1056, 96
      %v1058 = vpop.permute.xlu0 %1057
      %v1060 = vsel %vm893, %v1056, 0
      %v1063 = vsel %vm893, %v1058, 0
      %1065 = vmatpush.bf16.xpose.msra.mxu0 0
      %1066 = vmatpush.bf16.xpose.msra.mxu0 0
      %1067 = vmatpush.bf16.xpose.msra.mxu0 0
      %1068 = vmatpush.bf16.xpose.msra.mxu0 0
      %1069 = vmatpush.bf16.xpose.msra.mxu0 0
      %1070 = vmatpush.bf16.xpose.msra.mxu0 0
      %1071 = vmatpush.bf16.xpose.msra.mxu0 0
      %1072 = vmatpush.bf16.xpose.msra.mxu0 %v1063
      %1073 = vmatmul.bf16.gmra.mxu0 %v1060
      %v1074 = vpop.f32.mrf.mxu0
      %v1075 = vadd.f32 0.0, %v1074
      %v1076 = vpop.f32.mrf.mxu0
      %v1077 = vadd.f32 0.0, %v1076
      %1078 = vdwg.mxu0
      %v1079 = vmul.f32 %v1075, 0.25
      %v1080 = vmul.f32 %v1077, 0.25
      %v1081 = vadd.f32 %v1079, %v812
      %v1082 = vadd.f32 %v1080, %v813
      %v1083 = vsel %vm893, %v1081, -inf
      %1084 = vmax.xlane.f32.xlu0 %v1083
      %v1085 = vpop.xlane.xlu0 %1084
      %v1086 = vsel %vm893, %v1082, -inf
      %1087 = vmax.xlane.f32.xlu0 %v1086
      %v1088 = vpop.xlane.xlu0 %1087
      %v1089 = vsub.f32 %v1081, %v1085
      %v1090 = vsub.f32 %v1082, %v1088
      %v1091 = vmul.f32 %v1089, 1.442695
      %v1092 = vpow.pop %v1091
      %v1093 = vmul.f32 %v1090, 1.442695
      %v1094 = vpow.pop %v1093
      %v1095 = vsel %vm893, %v1092, 0.0
      %1096 = vadd.xlane.f32.xlu0 %v1095
      %v1097 = vpop.xlane.xlu0 %1096
      %v1098 = vsel %vm893, %v1094, 0.0
      %1099 = vadd.xlane.f32.xlu0 %v1098
      %v1100 = vpop.xlane.xlu0 %1099
      %v1101 = vrcp.pop %v1097
      %v1102 = vrcp.pop %v1100
      %v1103 = vmul.f32 %v1092, %v1101
      %v1104 = vmul.f32 %v1094, %v1102
      %v1105 = vpack.c.bf16 %v1104, %v1103
      %1106 = vrot.lane.b32.xlu0 %v1056, 64
      %v1107 = vpop.permute.xlu0 %1106
      %v1110 = vsel %vm893, %v1105, 0
      %1112 = vmatpush.bf16.msra.mxu0 0
      %1113 = vmatpush.bf16.msra.mxu0 0
      %1114 = vmatpush.bf16.msra.mxu0 0
      %1115 = vmatpush.bf16.msra.mxu0 0
      %1116 = vmatpush.bf16.msra.mxu0 0
      %1117 = vmatpush.bf16.msra.mxu0 0
      %1118 = vmatpush.bf16.msra.mxu0 0
      %1119 = vmatpush.bf16.msra.mxu0 %v1107
      %1120 = vmatmul.bf16.gmra.mxu0 %v1110
      %v1121 = vpop.f32.mrf.mxu0
      %v1122 = vadd.f32 0.0, %v1121
      %v1123 = vpop.f32.mrf.mxu0
      %v1124 = vadd.f32 0.0, %v1123
      %1125 = vdwg.mxu0
      %v1126 = vpack.c.bf16 %v1122, %v1122
      %v1127 = vpack.c.bf16 %v1124, %v1124
      %1128 = vst.msk [vmem:[#allocation2 + $0x8] sm:$0xf] %vm963, %v1126
      %1129 = vst.msk [vmem:[#allocation2 + $0xc] sm:$0xf] %vm963, %v1127
      %1130 = vrot.lane.b32.xlu0 %v1056, 112
      %v1131 = vpop.permute.xlu0 %1130
      %1132 = vrot.lane.b32.xlu0 %v1056, 80
      %v1133 = vpop.permute.xlu0 %1132
      %v1135 = vsel %vm893, %v1131, 0
      %v1138 = vsel %vm893, %v1133, 0
      %1140 = vmatpush.bf16.xpose.msra.mxu0 0
      %1141 = vmatpush.bf16.xpose.msra.mxu0 0
      %1142 = vmatpush.bf16.xpose.msra.mxu0 0
      %1143 = vmatpush.bf16.xpose.msra.mxu0 0
      %1144 = vmatpush.bf16.xpose.msra.mxu0 0
      %1145 = vmatpush.bf16.xpose.msra.mxu0 0
      %1146 = vmatpush.bf16.xpose.msra.mxu0 0
      %1147 = vmatpush.bf16.xpose.msra.mxu0 %v1138
      %1148 = vmatmul.bf16.gmra.mxu0 %v1135
      %v1149 = vpop.f32.mrf.mxu0
      %v1150 = vadd.f32 0.0, %v1149
      %v1151 = vpop.f32.mrf.mxu0
      %v1152 = vadd.f32 0.0, %v1151
      %1153 = vdwg.mxu0
      %v1154 = vmul.f32 %v1150, 0.25
      %v1155 = vmul.f32 %v1152, 0.25
      %v1156 = vadd.f32 %v1154, %v812
      %v1157 = vadd.f32 %v1155, %v813
      %v1158 = vsel %vm893, %v1156, -inf
      %1159 = vmax.xlane.f32.xlu0 %v1158
      %v1160 = vpop.xlane.xlu0 %1159
      %v1161 = vsel %vm893, %v1157, -inf
      %1162 = vmax.xlane.f32.xlu0 %v1161
      %v1163 = vpop.xlane.xlu0 %1162
      %v1164 = vsub.f32 %v1156, %v1160
      %v1165 = vsub.f32 %v1157, %v1163
      %v1166 = vmul.f32 %v1164, 1.442695
      %v1167 = vpow.pop %v1166
      %v1168 = vmul.f32 %v1165, 1.442695
      %v1169 = vpow.pop %v1168
      %v1170 = vsel %vm893, %v1167, 0.0
      %1171 = vadd.xlane.f32.xlu0 %v1170
      %v1172 = vpop.xlane.xlu0 %1171
      %v1173 = vsel %vm893, %v1169, 0.0
      %1174 = vadd.xlane.f32.xlu0 %v1173
      %v1175 = vpop.xlane.xlu0 %1174
      %v1176 = vrcp.pop %v1172
      %v1177 = vrcp.pop %v1175
      %v1178 = vmul.f32 %v1167, %v1176
      %v1179 = vmul.f32 %v1169, %v1177
      %v1180 = vpack.c.bf16 %v1179, %v1178
      %1181 = vrot.lane.b32.xlu0 %v1056, 48
      %v1182 = vpop.permute.xlu0 %1181
      %v1185 = vsel %vm893, %v1180, 0
      %1187 = vmatpush.bf16.msra.mxu0 0
      %1188 = vmatpush.bf16.msra.mxu0 0
      %1189 = vmatpush.bf16.msra.mxu0 0
      %1190 = vmatpush.bf16.msra.mxu0 0
      %1191 = vmatpush.bf16.msra.mxu0 0
      %1192 = vmatpush.bf16.msra.mxu0 0
      %1193 = vmatpush.bf16.msra.mxu0 0
      %1194 = vmatpush.bf16.msra.mxu0 %v1182
      %1195 = vmatmul.bf16.gmra.mxu0 %v1185
      %v1196 = vpop.f32.mrf.mxu0
      %v1197 = vadd.f32 0.0, %v1196
      %v1198 = vpop.f32.mrf.mxu0
      %v1199 = vadd.f32 0.0, %v1198
      %1200 = vdwg.mxu0
      %v1201 = vpack.c.bf16 %v1197, %v1197
      %v1202 = vpack.c.bf16 %v1199, %v1199
      %1205 = vrot.lane.b32.xlu0 %v1201, 16
      %v1206 = vpop.permute.xlu0 %1205
      %1207 = vrot.lane.b32.xlu0 %v1202, 16
      %v1208 = vpop.permute.xlu0 %1207
      %1211 = vst.msk [vmem:[#allocation2 + $0x8] sm:$0xf] %vm1047, %v1206
      %1212 = vst.msk [vmem:[#allocation2 + $0xc] sm:$0xf] %vm1047, %v1208
      %v1213 = vld [vmem:[#allocation2] sm:$0xf]
      %v1214 = vld [vmem:[#allocation2 + $0x4] sm:$0xf]
      %v1215 = vld [vmem:[#allocation2 + $0x8] sm:$0xf]
      %v1216 = vld [vmem:[#allocation2 + $0xc] sm:$0xf]
      %v1217 = vld [vmem:[%s6] sm:$0xf]
      %v1218 = vld [vmem:[%s6 + $0x4] sm:$0xf]
      %v1219 = vld [vmem:[%s6 + $0x8] sm:$0xf]
      %v1220 = vld [vmem:[%s6 + $0xc] sm:$0xf]
      %v1221 = vld [vmem:[%s7] sm:$0x1]
      %v1223 = vperm.slane %v1221, 0
      %v1229 = vunpack.c.l.b16 %v1213
      %v1230 = vunpack.c.l.b16 %v1214
      %v1231 = vunpack.c.l.b16 %v1215
      %v1232 = vunpack.c.l.b16 %v1216
      %v1233 = vpack.c.b16 %v1230, %v1229
      %v1234 = vpack.c.b16 %v1232, %v1231
      %v1239 = vunpack.c.l.b16 %v1217
      %v1240 = vunpack.c.l.b16 %v1218
      %v1241 = vunpack.c.l.b16 %v1219
      %v1242 = vunpack.c.l.b16 %v1220
      %v1243 = vpack.c.b16 %v1240, %v1239
      %v1244 = vpack.c.b16 %v1242, %v1241
      %v1248 = vsel %vm858, %v1233, 0
      %v1251 = vsel %vm858, %v1234, 0
      %1253 = vmatpush.bf16.msra.mxu0 0
      %1254 = vmatpush.bf16.msra.mxu0 0
      %1255 = vmatpush.bf16.msra.mxu0 0
      %1256 = vmatpush.bf16.msra.mxu0 0
      %1257 = vmatpush.bf16.msra.mxu0 0
      %1258 = vmatpush.bf16.msra.mxu0 0
      %1259 = vmatpush.bf16.msra.mxu0 %v1244
      %1260 = vmatpush.bf16.msra.mxu0 %v1243
      %1261 = vmatmul.bf16.gmra.mxu0 %v1248
      %v1262 = vpop.f32.mrf.mxu0
      %v1263 = vadd.f32 %v1223, %v1262
      %v1264 = vpop.f32.mrf.mxu0
      %v1265 = vadd.f32 %v1223, %v1264
      %1266 = vmatmul.bf16.gmra.mxu0 %v1251
      %v1267 = vpop.f32.mrf.mxu0
      %v1268 = vadd.f32 %v1223, %v1267
      %v1269 = vpop.f32.mrf.mxu0
      %v1270 = vadd.f32 %v1223, %v1269
      %1271 = vdwg.mxu0
      %v1272 = vadd.f32 %v1263, %v824
      %v1273 = vadd.f32 %v1265, %v825
      %v1274 = vadd.f32 %v1268, %v826
      %v1275 = vadd.f32 %v1270, %v827
      %v1276 = vld [vmem:[%s8] sm:$0x1]
      %v1277 = vld [vmem:[%s9] sm:$0x1]
      %v1278 = vsel %vm858, %v1272, 0.0
      %1279 = vadd.xlane.f32.xlu0 %v1278
      %v1280 = vpop.xlane.xlu0 %1279
      %v1281 = vsel %vm858, %v1273, 0.0
      %1282 = vadd.xlane.f32.xlu0 %v1281
      %v1283 = vpop.xlane.xlu0 %1282
      %v1284 = vsel %vm858, %v1274, 0.0
      %1285 = vadd.xlane.f32.xlu0 %v1284
      %v1286 = vpop.xlane.xlu0 %1285
      %v1287 = vsel %vm858, %v1275, 0.0
      %1288 = vadd.xlane.f32.xlu0 %v1287
      %v1289 = vpop.xlane.xlu0 %1288
      %v1290 = vmul.f32 %v1280, 0.03125
      %v1291 = vmul.f32 %v1283, 0.03125
      %v1292 = vmul.f32 %v1286, 0.03125
      %v1293 = vmul.f32 %v1289, 0.03125
      %v1294 = vmul.f32 %v1272, %v1272
      %v1295 = vmul.f32 %v1273, %v1273
      %v1296 = vmul.f32 %v1274, %v1274
      %v1297 = vmul.f32 %v1275, %v1275
      %v1298 = vsel %vm858, %v1294, 0.0
      %1299 = vadd.xlane.f32.xlu0 %v1298
      %v1300 = vpop.xlane.xlu0 %1299
      %v1301 = vsel %vm858, %v1295, 0.0
      %1302 = vadd.xlane.f32.xlu0 %v1301
      %v1303 = vpop.xlane.xlu0 %1302
      %v1304 = vsel %vm858, %v1296, 0.0
      %1305 = vadd.xlane.f32.xlu0 %v1304
      %v1306 = vpop.xlane.xlu0 %1305
      %v1307 = vsel %vm858, %v1297, 0.0
      %1308 = vadd.xlane.f32.xlu0 %v1307
      %v1309 = vpop.xlane.xlu0 %1308
      %v1310 = vmul.f32 %v1300, 0.03125
      %v1311 = vmul.f32 %v1303, 0.03125
      %v1312 = vmul.f32 %v1306, 0.03125
      %v1313 = vmul.f32 %v1309, 0.03125
      %v1314 = vmul.f32 %v1290, %v1290
      %v1315 = vmul.f32 %v1291, %v1291
      %v1316 = vmul.f32 %v1292, %v1292
      %v1317 = vmul.f32 %v1293, %v1293
      %v1318 = vsub.f32 %v1310, %v1314
      %v1319 = vsub.f32 %v1311, %v1315
      %v1320 = vsub.f32 %v1312, %v1316
      %v1321 = vsub.f32 %v1313, %v1317
      %v1322 = vsub.f32 %v1272, %v1290
      %v1323 = vsub.f32 %v1273, %v1291
      %v1324 = vsub.f32 %v1274, %v1292
      %v1325 = vsub.f32 %v1275, %v1293
      %v1326 = vadd.f32 %v1318, 1e-05
      %v1327 = vadd.f32 %v1319, 1e-05
      %v1328 = vadd.f32 %v1320, 1e-05
      %v1329 = vadd.f32 %v1321, 1e-05
      %v1330 = vrsqrt.pop %v1326
      %v1331 = vmul.f32 %v1330, %v1326
      %v1332 = vmul.f32 %v1331, %v1330
      %v1333 = vmul.f32 0.5, %v1332
      %v1334 = vsub.f32 1.5, %v1333
      %v1335 = vmul.f32 %v1330, %v1334
      %vm1336 = vweird.f32 %v1326
      %vm1337 = vweird.f32 %v1330
      %vm1338 = vmor %vm1336, %vm1337
      %v1339 = vsel %vm1338, %v1330, %v1335
      %v1340 = vrsqrt.pop %v1327
      %v1341 = vmul.f32 %v1340, %v1327
      %v1342 = vmul.f32 %v1341, %v1340
      %v1343 = vmul.f32 0.5, %v1342
      %v1344 = vsub.f32 1.5, %v1343
      %v1345 = vmul.f32 %v1340, %v1344
      %vm1346 = vweird.f32 %v1327
      %vm1347 = vweird.f32 %v1340
      %vm1348 = vmor %vm1346, %vm1347
      %v1349 = vsel %vm1348, %v1340, %v1345
      %v1350 = vrsqrt.pop %v1328
      %v1351 = vmul.f32 %v1350, %v1328
      %v1352 = vmul.f32 %v1351, %v1350
      %v1353 = vmul.f32 0.5, %v1352
      %v1354 = vsub.f32 1.5, %v1353
      %v1355 = vmul.f32 %v1350, %v1354
      %vm1356 = vweird.f32 %v1328
      %vm1357 = vweird.f32 %v1350
      %vm1358 = vmor %vm1356, %vm1357
      %v1359 = vsel %vm1358, %v1350, %v1355
      %v1360 = vrsqrt.pop %v1329
      %v1361 = vmul.f32 %v1360, %v1329
      %v1362 = vmul.f32 %v1361, %v1360
      %v1363 = vmul.f32 0.5, %v1362
      %v1364 = vsub.f32 1.5, %v1363
      %v1365 = vmul.f32 %v1360, %v1364
      %vm1366 = vweird.f32 %v1329
      %vm1367 = vweird.f32 %v1360
      %vm1368 = vmor %vm1366, %vm1367
      %v1369 = vsel %vm1368, %v1360, %v1365
      %v1370 = vmul.f32 %v1322, %v1339
      %v1371 = vmul.f32 %v1323, %v1349
      %v1372 = vmul.f32 %v1324, %v1359
      %v1373 = vmul.f32 %v1325, %v1369
      %v1375 = vperm.slane %v1276, 0
      %v1377 = vmul.f32 %v1370, %v1375
      %v1378 = vmul.f32 %v1371, %v1375
      %v1379 = vmul.f32 %v1372, %v1375
      %v1380 = vmul.f32 %v1373, %v1375
      %v1382 = vperm.slane %v1277, 0
      %v1384 = vadd.f32 %v1377, %v1382
      %v1385 = vadd.f32 %v1378, %v1382
      %v1386 = vadd.f32 %v1379, %v1382
      %v1387 = vadd.f32 %v1380, %v1382
      %v1388 = vmul.f32 %v1384, %v793
      %v1389 = vmul.f32 %v1385, %v794
      %v1390 = vmul.f32 %v1386, %v795
      %v1391 = vmul.f32 %v1387, %v796
      %v1392 = vld [vmem:[%s723] sm:$0xf]
      %v1393 = vld [vmem:[%s723 + $0x4] sm:$0xf]
      %v1394 = vld [vmem:[%s723 + $0x8] sm:$0xf]
      %v1395 = vld [vmem:[%s723 + $0xc] sm:$0xf]
      %v1396 = vpack.c.bf16 %v1389, %v1388
      %v1397 = vpack.c.bf16 %v1391, %v1390
      %v1398 = vld [vmem:[%s10] sm:$0xf]
      %v1399 = vld [vmem:[%s10 + $0x4] sm:$0xf]
      %v1400 = vld [vmem:[%s10 + $0x8] sm:$0xf]
      %v1401 = vld [vmem:[%s10 + $0xc] sm:$0xf]
      %v1402 = vld [vmem:[%s11] sm:$0x1]
      %v1404 = vperm.slane %v1402, 0
      %v1410 = vunpack.c.l.b16 %v1398
      %v1411 = vunpack.c.l.b16 %v1399
      %v1412 = vunpack.c.l.b16 %v1400
      %v1413 = vunpack.c.l.b16 %v1401
      %v1414 = vpack.c.b16 %v1411, %v1410
      %v1415 = vpack.c.b16 %v1413, %v1412
      %v1419 = vsel %vm858, %v1396, 0
      %v1422 = vsel %vm858, %v1397, 0
      %1424 = vmatpush.bf16.msra.mxu0 0
      %1425 = vmatpush.bf16.msra.mxu0 0
      %1426 = vmatpush.bf16.msra.mxu0 0
      %1427 = vmatpush.bf16.msra.mxu0 0
      %1428 = vmatpush.bf16.msra.mxu0 0
      %1429 = vmatpush.bf16.msra.mxu0 0
      %1430 = vmatpush.bf16.msra.mxu0 %v1415
      %1431 = vmatpush.bf16.msra.mxu0 %v1414
      %1432 = vmatmul.bf16.gmra.mxu0 %v1419
      %v1433 = vpop.f32.mrf.mxu0
      %v1434 = vadd.f32 %v1404, %v1433
      %v1435 = vpop.f32.mrf.mxu0
      %v1436 = vadd.f32 %v1404, %v1435
      %1437 = vmatmul.bf16.gmra.mxu0 %v1422
      %v1438 = vpop.f32.mrf.mxu0
      %v1439 = vadd.f32 %v1404, %v1438
      %v1440 = vpop.f32.mrf.mxu0
      %v1441 = vadd.f32 %v1404, %v1440
      %1442 = vdwg.mxu0
      %v1443 = vld [vmem:[%s12] sm:$0xf]
      %v1444 = vld [vmem:[%s12 + $0x4] sm:$0xf]
      %v1445 = vld [vmem:[%s12 + $0x8] sm:$0xf]
      %v1446 = vld [vmem:[%s12 + $0xc] sm:$0xf]
      %v1447 = vld [vmem:[%s13] sm:$0x1]
      %v1449 = vperm.slane %v1447, 0
      %v1455 = vunpack.c.l.b16 %v1392
      %v1456 = vunpack.c.l.b16 %v1393
      %v1457 = vunpack.c.l.b16 %v1394
      %v1458 = vunpack.c.l.b16 %v1395
      %v1459 = vpack.c.b16 %v1456, %v1455
      %v1460 = vpack.c.b16 %v1458, %v1457
      %v1465 = vunpack.c.l.b16 %v1443
      %v1466 = vunpack.c.l.b16 %v1444
      %v1467 = vunpack.c.l.b16 %v1445
      %v1468 = vunpack.c.l.b16 %v1446
      %v1469 = vpack.c.b16 %v1466, %v1465
      %v1470 = vpack.c.b16 %v1468, %v1467
      %v1474 = vsel %vm858, %v1459, 0
      %v1477 = vsel %vm858, %v1460, 0
      %1479 = vmatpush.bf16.msra.mxu0 0
      %1480 = vmatpush.bf16.msra.mxu0 0
      %1481 = vmatpush.bf16.msra.mxu0 0
      %1482 = vmatpush.bf16.msra.mxu0 0
      %1483 = vmatpush.bf16.msra.mxu0 0
      %1484 = vmatpush.bf16.msra.mxu0 0
      %1485 = vmatpush.bf16.msra.mxu0 %v1470
      %1486 = vmatpush.bf16.msra.mxu0 %v1469
      %1487 = vmatmul.bf16.gmra.mxu0 %v1474
      %v1488 = vpop.f32.mrf.mxu0
      %v1489 = vadd.f32 %v1449, %v1488
      %v1490 = vpop.f32.mrf.mxu0
      %v1491 = vadd.f32 %v1449, %v1490
      %1492 = vmatmul.bf16.gmra.mxu0 %v1477
      %v1493 = vpop.f32.mrf.mxu0
      %v1494 = vadd.f32 %v1449, %v1493
      %v1495 = vpop.f32.mrf.mxu0
      %v1496 = vadd.f32 %v1449, %v1495
      %1497 = vdwg.mxu0
      %v1498 = vpack.c.bf16 %v1434, %v1434
      %v1499 = vpack.c.bf16 %v1436, %v1436
      %v1500 = vpack.c.bf16 %v1489, %v1489
      %v1501 = vpack.c.bf16 %v1491, %v1491
      %v1504 = vunpack.c.l.b16 %v1498
      %v1505 = vunpack.c.l.b16 %v1499
      %v1506 = vpack.c.b16 %v1505, %v1504
      %v1509 = vunpack.c.l.b16 %v1500
      %v1510 = vunpack.c.l.b16 %v1501
      %v1511 = vpack.c.b16 %v1510, %v1509
      %v1513 = vsel %vm893, %v1506, 0
      %v1516 = vsel %vm893, %v1511, 0
      %1518 = vmatpush.bf16.xpose.msra.mxu0 0
      %1519 = vmatpush.bf16.xpose.msra.mxu0 0
      %1520 = vmatpush.bf16.xpose.msra.mxu0 0
      %1521 = vmatpush.bf16.xpose.msra.mxu0 0
      %1522 = vmatpush.bf16.xpose.msra.mxu0 0
      %1523 = vmatpush.bf16.xpose.msra.mxu0 0
      %1524 = vmatpush.bf16.xpose.msra.mxu0 0
      %1525 = vmatpush.bf16.xpose.msra.mxu0 %v1516
      %1526 = vmatmul.bf16.gmra.mxu0 %v1513
      %v1527 = vpop.f32.mrf.mxu0
      %v1528 = vadd.f32 0.0, %v1527
      %v1529 = vpop.f32.mrf.mxu0
      %v1530 = vadd.f32 0.0, %v1529
      %1531 = vdwg.mxu0
      %v1532 = vmul.f32 %v1528, 0.25
      %v1533 = vmul.f32 %v1530, 0.25
      %v1534 = vadd.f32 %v1532, %v816
      %v1535 = vadd.f32 %v1533, %v816
      %v1536 = vsel %vm893, %v1534, -inf
      %1537 = vmax.xlane.f32.xlu0 %v1536
      %v1538 = vpop.xlane.xlu0 %1537
      %v1539 = vsel %vm893, %v1535, -inf
      %1540 = vmax.xlane.f32.xlu0 %v1539
      %v1541 = vpop.xlane.xlu0 %1540
      %v1542 = vsub.f32 %v1534, %v1538
      %v1543 = vsub.f32 %v1535, %v1541
      %v1544 = vmul.f32 %v1542, 1.442695
      %v1545 = vpow.pop %v1544
      %v1546 = vmul.f32 %v1543, 1.442695
      %v1547 = vpow.pop %v1546
      %v1548 = vsel %vm893, %v1545, 0.0
      %1549 = vadd.xlane.f32.xlu0 %v1548
      %v1550 = vpop.xlane.xlu0 %1549
      %v1551 = vsel %vm893, %v1547, 0.0
      %1552 = vadd.xlane.f32.xlu0 %v1551
      %v1553 = vpop.xlane.xlu0 %1552
      %v1554 = vrcp.pop %v1550
      %v1555 = vrcp.pop %v1553
      %v1556 = vmul.f32 %v1545, %v1554
      %v1557 = vmul.f32 %v1547, %v1555
      %v1558 = vpack.c.bf16 %v1557, %v1556
      %1559 = vrot.lane.b32.xlu0 %v1511, 96
      %v1560 = vpop.permute.xlu0 %1559
      %v1563 = vsel %vm893, %v1558, 0
      %1565 = vmatpush.bf16.msra.mxu0 0
      %1566 = vmatpush.bf16.msra.mxu0 0
      %1567 = vmatpush.bf16.msra.mxu0 0
      %1568 = vmatpush.bf16.msra.mxu0 0
      %1569 = vmatpush.bf16.msra.mxu0 0
      %1570 = vmatpush.bf16.msra.mxu0 0
      %1571 = vmatpush.bf16.msra.mxu0 0
      %1572 = vmatpush.bf16.msra.mxu0 %v1560
      %1573 = vmatmul.bf16.gmra.mxu0 %v1563
      %v1574 = vpop.f32.mrf.mxu0
      %v1575 = vadd.f32 0.0, %v1574
      %v1576 = vpop.f32.mrf.mxu0
      %v1577 = vadd.f32 0.0, %v1576
      %1578 = vdwg.mxu0
      %v1579 = vpack.c.bf16 %v1575, %v1575
      %v1580 = vpack.c.bf16 %v1577, %v1577
      %1581 = vst.msk [vmem:[#allocation2] sm:$0xf] %vm963, %v1579
      %1582 = vst.msk [vmem:[#allocation2 + $0x4] sm:$0xf] %vm963, %v1580
      %1583 = vrot.lane.b32.xlu0 %v1506, 112
      %v1584 = vpop.permute.xlu0 %1583
      %1585 = vrot.lane.b32.xlu0 %v1511, 112
      %v1586 = vpop.permute.xlu0 %1585
      %v1588 = vsel %vm893, %v1584, 0
      %v1591 = vsel %vm893, %v1586, 0
      %1593 = vmatpush.bf16.xpose.msra.mxu0 0
      %1594 = vmatpush.bf16.xpose.msra.mxu0 0
      %1595 = vmatpush.bf16.xpose.msra.mxu0 0
      %1596 = vmatpush.bf16.xpose.msra.mxu0 0
      %1597 = vmatpush.bf16.xpose.msra.mxu0 0
      %1598 = vmatpush.bf16.xpose.msra.mxu0 0
      %1599 = vmatpush.bf16.xpose.msra.mxu0 0
      %1600 = vmatpush.bf16.xpose.msra.mxu0 %v1591
      %1601 = vmatmul.bf16.gmra.mxu0 %v1588
      %v1602 = vpop.f32.mrf.mxu0
      %v1603 = vadd.f32 0.0, %v1602
      %v1604 = vpop.f32.mrf.mxu0
      %v1605 = vadd.f32 0.0, %v1604
      %1606 = vdwg.mxu0
      %v1607 = vmul.f32 %v1603, 0.25
      %v1608 = vmul.f32 %v1605, 0.25
      %v1609 = vadd.f32 %v1607, %v816
      %v1610 = vadd.f32 %v1608, %v816
      %v1611 = vsel %vm893, %v1609, -inf
      %1612 = vmax.xlane.f32.xlu0 %v1611
      %v1613 = vpop.xlane.xlu0 %1612
      %v1614 = vsel %vm893, %v1610, -inf
      %1615 = vmax.xlane.f32.xlu0 %v1614
      %v1616 = vpop.xlane.xlu0 %1615
      %v1617 = vsub.f32 %v1609, %v1613
      %v1618 = vsub.f32 %v1610, %v1616
      %v1619 = vmul.f32 %v1617, 1.442695
      %v1620 = vpow.pop %v1619
      %v1621 = vmul.f32 %v1618, 1.442695
      %v1622 = vpow.pop %v1621
      %v1623 = vsel %vm893, %v1620, 0.0
      %1624 = vadd.xlane.f32.xlu0 %v1623
      %v1625 = vpop.xlane.xlu0 %1624
      %v1626 = vsel %vm893, %v1622, 0.0
      %1627 = vadd.xlane.f32.xlu0 %v1626
      %v1628 = vpop.xlane.xlu0 %1627
      %v1629 = vrcp.pop %v1625
      %v1630 = vrcp.pop %v1628
      %v1631 = vmul.f32 %v1620, %v1629
      %v1632 = vmul.f32 %v1622, %v1630
      %v1633 = vpack.c.bf16 %v1632, %v1631
      %1634 = vrot.lane.b32.xlu0 %v1511, 80
      %v1635 = vpop.permute.xlu0 %1634
      %v1638 = vsel %vm893, %v1633, 0
      %1640 = vmatpush.bf16.msra.mxu0 0
      %1641 = vmatpush.bf16.msra.mxu0 0
      %1642 = vmatpush.bf16.msra.mxu0 0
      %1643 = vmatpush.bf16.msra.mxu0 0
      %1644 = vmatpush.bf16.msra.mxu0 0
      %1645 = vmatpush.bf16.msra.mxu0 0
      %1646 = vmatpush.bf16.msra.mxu0 0
      %1647 = vmatpush.bf16.msra.mxu0 %v1635
      %1648 = vmatmul.bf16.gmra.mxu0 %v1638
      %v1649 = vpop.f32.mrf.mxu0
      %v1650 = vadd.f32 0.0, %v1649
      %v1651 = vpop.f32.mrf.mxu0
      %v1652 = vadd.f32 0.0, %v1651
      %1653 = vdwg.mxu0
      %v1654 = vpack.c.bf16 %v1650, %v1650
      %v1655 = vpack.c.bf16 %v1652, %v1652
      %1658 = vrot.lane.b32.xlu0 %v1654, 16
      %v1659 = vpop.permute.xlu0 %1658
      %1660 = vrot.lane.b32.xlu0 %v1655, 16
      %v1661 = vpop.permute.xlu0 %1660
      %1664 = vst.msk [vmem:[#allocation2] sm:$0xf] %vm1047, %v1659
      %1665 = vst.msk [vmem:[#allocation2 + $0x4] sm:$0xf] %vm1047, %v1661
      %v1666 = vpack.c.bf16 %v1439, %v1439
      %v1667 = vpack.c.bf16 %v1441, %v1441
      %v1668 = vpack.c.bf16 %v1494, %v1494
      %v1669 = vpack.c.bf16 %v1496, %v1496
      %v1672 = vunpack.c.l.b16 %v1666
      %v1673 = vunpack.c.l.b16 %v1667
      %v1674 = vpack.c.b16 %v1673, %v1672
      %v1677 = vunpack.c.l.b16 %v1668
      %v1678 = vunpack.c.l.b16 %v1669
      %v1679 = vpack.c.b16 %v1678, %v1677
      %v1681 = vsel %vm893, %v1674, 0
      %v1684 = vsel %vm893, %v1679, 0
      %1686 = vmatpush.bf16.xpose.msra.mxu0 0
      %1687 = vmatpush.bf16.xpose.msra.mxu0 0
      %1688 = vmatpush.bf16.xpose.msra.mxu0 0
      %1689 = vmatpush.bf16.xpose.msra.mxu0 0
      %1690 = vmatpush.bf16.xpose.msra.mxu0 0
      %1691 = vmatpush.bf16.xpose.msra.mxu0 0
      %1692 = vmatpush.bf16.xpose.msra.mxu0 0
      %1693 = vmatpush.bf16.xpose.msra.mxu0 %v1684
      %1694 = vmatmul.bf16.gmra.mxu0 %v1681
      %v1695 = vpop.f32.mrf.mxu0
      %v1696 = vadd.f32 0.0, %v1695
      %v1697 = vpop.f32.mrf.mxu0
      %v1698 = vadd.f32 0.0, %v1697
      %1699 = vdwg.mxu0
      %v1700 = vmul.f32 %v1696, 0.25
      %v1701 = vmul.f32 %v1698, 0.25
      %v1702 = vadd.f32 %v1700, %v819
      %v1703 = vadd.f32 %v1701, %v819
      %v1704 = vsel %vm893, %v1702, -inf
      %1705 = vmax.xlane.f32.xlu0 %v1704
      %v1706 = vpop.xlane.xlu0 %1705
      %v1707 = vsel %vm893, %v1703, -inf
      %1708 = vmax.xlane.f32.xlu0 %v1707
      %v1709 = vpop.xlane.xlu0 %1708
      %v1710 = vsub.f32 %v1702, %v1706
      %v1711 = vsub.f32 %v1703, %v1709
      %v1712 = vmul.f32 %v1710, 1.442695
      %v1713 = vpow.pop %v1712
      %v1714 = vmul.f32 %v1711, 1.442695
      %v1715 = vpow.pop %v1714
      %v1716 = vsel %vm893, %v1713, 0.0
      %1717 = vadd.xlane.f32.xlu0 %v1716
      %v1718 = vpop.xlane.xlu0 %1717
      %v1719 = vsel %vm893, %v1715, 0.0
      %1720 = vadd.xlane.f32.xlu0 %v1719
      %v1721 = vpop.xlane.xlu0 %1720
      %v1722 = vrcp.pop %v1718
      %v1723 = vrcp.pop %v1721
      %v1724 = vmul.f32 %v1713, %v1722
      %v1725 = vmul.f32 %v1715, %v1723
      %v1726 = vpack.c.bf16 %v1725, %v1724
      %1727 = vrot.lane.b32.xlu0 %v1679, 96
      %v1728 = vpop.permute.xlu0 %1727
      %v1731 = vsel %vm893, %v1726, 0
      %1733 = vmatpush.bf16.msra.mxu0 0
      %1734 = vmatpush.bf16.msra.mxu0 0
      %1735 = vmatpush.bf16.msra.mxu0 0
      %1736 = vmatpush.bf16.msra.mxu0 0
      %1737 = vmatpush.bf16.msra.mxu0 0
      %1738 = vmatpush.bf16.msra.mxu0 0
      %1739 = vmatpush.bf16.msra.mxu0 0
      %1740 = vmatpush.bf16.msra.mxu0 %v1728
      %1741 = vmatmul.bf16.gmra.mxu0 %v1731
      %v1742 = vpop.f32.mrf.mxu0
      %v1743 = vadd.f32 0.0, %v1742
      %v1744 = vpop.f32.mrf.mxu0
      %v1745 = vadd.f32 0.0, %v1744
      %1746 = vdwg.mxu0
      %v1747 = vpack.c.bf16 %v1743, %v1743
      %v1748 = vpack.c.bf16 %v1745, %v1745
      %1749 = vst.msk [vmem:[#allocation2 + $0x8] sm:$0xf] %vm963, %v1747
      %1750 = vst.msk [vmem:[#allocation2 + $0xc] sm:$0xf] %vm963, %v1748
      %1751 = vrot.lane.b32.xlu0 %v1674, 112
      %v1752 = vpop.permute.xlu0 %1751
      %1753 = vrot.lane.b32.xlu0 %v1679, 112
      %v1754 = vpop.permute.xlu0 %1753
      %v1756 = vsel %vm893, %v1752, 0
      %v1759 = vsel %vm893, %v1754, 0
      %1761 = vmatpush.bf16.xpose.msra.mxu0 0
      %1762 = vmatpush.bf16.xpose.msra.mxu0 0
      %1763 = vmatpush.bf16.xpose.msra.mxu0 0
      %1764 = vmatpush.bf16.xpose.msra.mxu0 0
      %1765 = vmatpush.bf16.xpose.msra.mxu0 0
      %1766 = vmatpush.bf16.xpose.msra.mxu0 0
      %1767 = vmatpush.bf16.xpose.msra.mxu0 0
      %1768 = vmatpush.bf16.xpose.msra.mxu0 %v1759
      %1769 = vmatmul.bf16.gmra.mxu0 %v1756
      %v1770 = vpop.f32.mrf.mxu0
      %v1771 = vadd.f32 0.0, %v1770
      %v1772 = vpop.f32.mrf.mxu0
      %v1773 = vadd.f32 0.0, %v1772
      %1774 = vdwg.mxu0
      %v1775 = vmul.f32 %v1771, 0.25
      %v1776 = vmul.f32 %v1773, 0.25
      %v1777 = vadd.f32 %v1775, %v819
      %v1778 = vadd.f32 %v1776, %v819
      %v1779 = vsel %vm893, %v1777, -inf
      %1780 = vmax.xlane.f32.xlu0 %v1779
      %v1781 = vpop.xlane.xlu0 %1780
      %v1782 = vsel %vm893, %v1778, -inf
      %1783 = vmax.xlane.f32.xlu0 %v1782
      %v1784 = vpop.xlane.xlu0 %1783
      %v1785 = vsub.f32 %v1777, %v1781
      %v1786 = vsub.f32 %v1778, %v1784
      %v1787 = vmul.f32 %v1785, 1.442695
      %v1788 = vpow.pop %v1787
      %v1789 = vmul.f32 %v1786, 1.442695
      %v1790 = vpow.pop %v1789
      %v1791 = vsel %vm893, %v1788, 0.0
      %1792 = vadd.xlane.f32.xlu0 %v1791
      %v1793 = vpop.xlane.xlu0 %1792
      %v1794 = vsel %vm893, %v1790, 0.0
      %1795 = vadd.xlane.f32.xlu0 %v1794
      %v1796 = vpop.xlane.xlu0 %1795
      %v1797 = vrcp.pop %v1793
      %v1798 = vrcp.pop %v1796
      %v1799 = vmul.f32 %v1788, %v1797
      %v1800 = vmul.f32 %v1790, %v1798
      %v1801 = vpack.c.bf16 %v1800, %v1799
      %1802 = vrot.lane.b32.xlu0 %v1679, 80
      %v1803 = vpop.permute.xlu0 %1802
      %v1806 = vsel %vm893, %v1801, 0
      %1808 = vmatpush.bf16.msra.mxu0 0
      %1809 = vmatpush.bf16.msra.mxu0 0
      %1810 = vmatpush.bf16.msra.mxu0 0
      %1811 = vmatpush.bf16.msra.mxu0 0
      %1812 = vmatpush.bf16.msra.mxu0 0
      %1813 = vmatpush.bf16.msra.mxu0 0
      %1814 = vmatpush.bf16.msra.mxu0 0
      %1815 = vmatpush.bf16.msra.mxu0 %v1803
      %1816 = vmatmul.bf16.gmra.mxu0 %v1806
      %v1817 = vpop.f32.mrf.mxu0
      %v1818 = vadd.f32 0.0, %v1817
      %v1819 = vpop.f32.mrf.mxu0
      %v1820 = vadd.f32 0.0, %v1819
      %1821 = vdwg.mxu0
      %v1822 = vpack.c.bf16 %v1818, %v1818
      %v1823 = vpack.c.bf16 %v1820, %v1820
      %1826 = vrot.lane.b32.xlu0 %v1822, 16
      %v1827 = vpop.permute.xlu0 %1826
      %1828 = vrot.lane.b32.xlu0 %v1823, 16
      %v1829 = vpop.permute.xlu0 %1828
      %1832 = vst.msk [vmem:[#allocation2 + $0x8] sm:$0xf] %vm1047, %v1827
      %1833 = vst.msk [vmem:[#allocation2 + $0xc] sm:$0xf] %vm1047, %v1829
      %v1834 = vld [vmem:[#allocation2] sm:$0xf]
      %v1835 = vld [vmem:[#allocation2 + $0x4] sm:$0xf]
      %v1836 = vld [vmem:[#allocation2 + $0x8] sm:$0xf]
      %v1837 = vld [vmem:[#allocation2 + $0xc] sm:$0xf]
      %v1838 = vld [vmem:[%s14] sm:$0xf]
      %v1839 = vld [vmem:[%s14 + $0x4] sm:$0xf]
      %v1840 = vld [vmem:[%s14 + $0x8] sm:$0xf]
      %v1841 = vld [vmem:[%s14 + $0xc] sm:$0xf]
      %v1842 = vld [vmem:[%s15] sm:$0x1]
      %v1844 = vperm.slane %v1842, 0
      %v1850 = vunpack.c.l.b16 %v1834
      %v1851 = vunpack.c.l.b16 %v1835
      %v1852 = vunpack.c.l.b16 %v1836
      %v1853 = vunpack.c.l.b16 %v1837
      %v1854 = vpack.c.b16 %v1851, %v1850
      %v1855 = vpack.c.b16 %v1853, %v1852
      %v1860 = vunpack.c.l.b16 %v1838
      %v1861 = vunpack.c.l.b16 %v1839
      %v1862 = vunpack.c.l.b16 %v1840
      %v1863 = vunpack.c.l.b16 %v1841
      %v1864 = vpack.c.b16 %v1861, %v1860
      %v1865 = vpack.c.b16 %v1863, %v1862
      %v1869 = vsel %vm858, %v1854, 0
      %v1872 = vsel %vm858, %v1855, 0
      %1874 = vmatpush.bf16.msra.mxu0 0
      %1875 = vmatpush.bf16.msra.mxu0 0
      %1876 = vmatpush.bf16.msra.mxu0 0
      %1877 = vmatpush.bf16.msra.mxu0 0
      %1878 = vmatpush.bf16.msra.mxu0 0
      %1879 = vmatpush.bf16.msra.mxu0 0
      %1880 = vmatpush.bf16.msra.mxu0 %v1865
      %1881 = vmatpush.bf16.msra.mxu0 %v1864
      %1882 = vmatmul.bf16.gmra.mxu0 %v1869
      %v1883 = vpop.f32.mrf.mxu0
      %v1884 = vadd.f32 %v1844, %v1883
      %v1885 = vpop.f32.mrf.mxu0
      %v1886 = vadd.f32 %v1844, %v1885
      %1887 = vmatmul.bf16.gmra.mxu0 %v1872
      %v1888 = vpop.f32.mrf.mxu0
      %v1889 = vadd.f32 %v1844, %v1888
      %v1890 = vpop.f32.mrf.mxu0
      %v1891 = vadd.f32 %v1844, %v1890
      %1892 = vdwg.mxu0
      %v1893 = vadd.f32 %v1884, %v1388
      %v1894 = vadd.f32 %v1886, %v1389
      %v1895 = vadd.f32 %v1889, %v1390
      %v1896 = vadd.f32 %v1891, %v1391
      %v1897 = vld [vmem:[%s16] sm:$0x1]
      %v1898 = vld [vmem:[%s17] sm:$0x1]
      %v1899 = vsel %vm858, %v1893, 0.0
      %1900 = vadd.xlane.f32.xlu0 %v1899
      %v1901 = vpop.xlane.xlu0 %1900
      %v1902 = vsel %vm858, %v1894, 0.0
      %1903 = vadd.xlane.f32.xlu0 %v1902
      %v1904 = vpop.xlane.xlu0 %1903
      %v1905 = vsel %vm858, %v1895, 0.0
      %1906 = vadd.xlane.f32.xlu0 %v1905
      %v1907 = vpop.xlane.xlu0 %1906
      %v1908 = vsel %vm858, %v1896, 0.0
      %1909 = vadd.xlane.f32.xlu0 %v1908
      %v1910 = vpop.xlane.xlu0 %1909
      %v1911 = vmul.f32 %v1901, 0.03125
      %v1912 = vmul.f32 %v1904, 0.03125
      %v1913 = vmul.f32 %v1907, 0.03125
      %v1914 = vmul.f32 %v1910, 0.03125
      %v1915 = vmul.f32 %v1893, %v1893
      %v1916 = vmul.f32 %v1894, %v1894
      %v1917 = vmul.f32 %v1895, %v1895
      %v1918 = vmul.f32 %v1896, %v1896
      %v1919 = vsel %vm858, %v1915, 0.0
      %1920 = vadd.xlane.f32.xlu0 %v1919
      %v1921 = vpop.xlane.xlu0 %1920
      %v1922 = vsel %vm858, %v1916, 0.0
      %1923 = vadd.xlane.f32.xlu0 %v1922
      %v1924 = vpop.xlane.xlu0 %1923
      %v1925 = vsel %vm858, %v1917, 0.0
      %1926 = vadd.xlane.f32.xlu0 %v1925
      %v1927 = vpop.xlane.xlu0 %1926
      %v1928 = vsel %vm858, %v1918, 0.0
      %1929 = vadd.xlane.f32.xlu0 %v1928
      %v1930 = vpop.xlane.xlu0 %1929
      %v1931 = vmul.f32 %v1921, 0.03125
      %v1932 = vmul.f32 %v1924, 0.03125
      %v1933 = vmul.f32 %v1927, 0.03125
      %v1934 = vmul.f32 %v1930, 0.03125
      %v1935 = vmul.f32 %v1911, %v1911
      %v1936 = vmul.f32 %v1912, %v1912
      %v1937 = vmul.f32 %v1913, %v1913
      %v1938 = vmul.f32 %v1914, %v1914
      %v1939 = vsub.f32 %v1931, %v1935
      %v1940 = vsub.f32 %v1932, %v1936
      %v1941 = vsub.f32 %v1933, %v1937
      %v1942 = vsub.f32 %v1934, %v1938
      %v1943 = vsub.f32 %v1893, %v1911
      %v1944 = vsub.f32 %v1894, %v1912
      %v1945 = vsub.f32 %v1895, %v1913
      %v1946 = vsub.f32 %v1896, %v1914
      %v1947 = vadd.f32 %v1939, 1e-05
      %v1948 = vadd.f32 %v1940, 1e-05
      %v1949 = vadd.f32 %v1941, 1e-05
      %v1950 = vadd.f32 %v1942, 1e-05
      %v1951 = vrsqrt.pop %v1947
      %v1952 = vmul.f32 %v1951, %v1947
      %v1953 = vmul.f32 %v1952, %v1951
      %v1954 = vmul.f32 0.5, %v1953
      %v1955 = vsub.f32 1.5, %v1954
      %v1956 = vmul.f32 %v1951, %v1955
      %vm1957 = vweird.f32 %v1947
      %vm1958 = vweird.f32 %v1951
      %vm1959 = vmor %vm1957, %vm1958
      %v1960 = vsel %vm1959, %v1951, %v1956
      %v1961 = vrsqrt.pop %v1948
      %v1962 = vmul.f32 %v1961, %v1948
      %v1963 = vmul.f32 %v1962, %v1961
      %v1964 = vmul.f32 0.5, %v1963
      %v1965 = vsub.f32 1.5, %v1964
      %v1966 = vmul.f32 %v1961, %v1965
      %vm1967 = vweird.f32 %v1948
      %vm1968 = vweird.f32 %v1961
      %vm1969 = vmor %vm1967, %vm1968
      %v1970 = vsel %vm1969, %v1961, %v1966
      %v1971 = vrsqrt.pop %v1949
      %v1972 = vmul.f32 %v1971, %v1949
      %v1973 = vmul.f32 %v1972, %v1971
      %v1974 = vmul.f32 0.5, %v1973
      %v1975 = vsub.f32 1.5, %v1974
      %v1976 = vmul.f32 %v1971, %v1975
      %vm1977 = vweird.f32 %v1949
      %vm1978 = vweird.f32 %v1971
      %vm1979 = vmor %vm1977, %vm1978
      %v1980 = vsel %vm1979, %v1971, %v1976
      %v1981 = vrsqrt.pop %v1950
      %v1982 = vmul.f32 %v1981, %v1950
      %v1983 = vmul.f32 %v1982, %v1981
      %v1984 = vmul.f32 0.5, %v1983
      %v1985 = vsub.f32 1.5, %v1984
      %v1986 = vmul.f32 %v1981, %v1985
      %vm1987 = vweird.f32 %v1950
      %vm1988 = vweird.f32 %v1981
      %vm1989 = vmor %vm1987, %vm1988
      %v1990 = vsel %vm1989, %v1981, %v1986
      %v1991 = vmul.f32 %v1943, %v1960
      %v1992 = vmul.f32 %v1944, %v1970
      %v1993 = vmul.f32 %v1945, %v1980
      %v1994 = vmul.f32 %v1946, %v1990
      %v1996 = vperm.slane %v1897, 0
      %v1998 = vmul.f32 %v1991, %v1996
      %v1999 = vmul.f32 %v1992, %v1996
      %v2000 = vmul.f32 %v1993, %v1996
      %v2001 = vmul.f32 %v1994, %v1996
      %v2003 = vperm.slane %v1898, 0
      %v2005 = vadd.f32 %v1998, %v2003
      %v2006 = vadd.f32 %v1999, %v2003
      %v2007 = vadd.f32 %v2000, %v2003
      %v2008 = vadd.f32 %v2001, %v2003
      %v2009 = vmul.f32 %v2005, %v793
      %v2010 = vmul.f32 %v2006, %v794
      %v2011 = vmul.f32 %v2007, %v795
      %v2012 = vmul.f32 %v2008, %v796
      %v2013 = vpack.c.bf16 %v2010, %v2009
      %v2014 = vpack.c.bf16 %v2012, %v2011
      %v2015 = vld [vmem:[%s18] sm:$0xf]
      %v2016 = vld [vmem:[%s18 + $0x4] sm:$0xf]
      %v2017 = vld [vmem:[%s18 + $0x8] sm:$0xf]
      %v2018 = vld [vmem:[%s18 + $0xc] sm:$0xf]
      %v2019 = vld [vmem:[%s19] sm:$0x1]
      %v2021 = vperm.slane %v2019, 0
      %v2027 = vunpack.c.l.b16 %v2015
      %v2028 = vunpack.c.l.b16 %v2016
      %v2029 = vunpack.c.l.b16 %v2017
      %v2030 = vunpack.c.l.b16 %v2018
      %v2031 = vpack.c.b16 %v2028, %v2027
      %v2032 = vpack.c.b16 %v2030, %v2029
      %v2036 = vsel %vm858, %v2013, 0
      %v2039 = vsel %vm858, %v2014, 0
      %2041 = vmatpush.bf16.msra.mxu0 0
      %2042 = vmatpush.bf16.msra.mxu0 0
      %2043 = vmatpush.bf16.msra.mxu0 0
      %2044 = vmatpush.bf16.msra.mxu0 0
      %2045 = vmatpush.bf16.msra.mxu0 0
      %2046 = vmatpush.bf16.msra.mxu0 0
      %2047 = vmatpush.bf16.msra.mxu0 %v2032
      %2048 = vmatpush.bf16.msra.mxu0 %v2031
      %2049 = vmatmul.bf16.gmra.mxu0 %v2036
      %v2050 = vpop.f32.mrf.mxu0
      %v2051 = vadd.f32 %v2021, %v2050
      %v2052 = vpop.f32.mrf.mxu0
      %v2053 = vadd.f32 %v2021, %v2052
      %2054 = vmatmul.bf16.gmra.mxu0 %v2039
      %v2055 = vpop.f32.mrf.mxu0
      %v2056 = vadd.f32 %v2021, %v2055
      %v2057 = vpop.f32.mrf.mxu0
      %v2058 = vadd.f32 %v2021, %v2057
      %2059 = vdwg.mxu0
      %v2060 = vmax.f32 %v2051, 0.0
      %v2061 = vmax.f32 %v2053, 0.0
      %v2062 = vmax.f32 %v2056, 0.0
      %v2063 = vmax.f32 %v2058, 0.0
      %v2064 = vpack.c.bf16 %v2061, %v2060
      %v2065 = vpack.c.bf16 %v2063, %v2062
      %v2066 = vld [vmem:[%s20] sm:$0xf]
      %v2067 = vld [vmem:[%s20 + $0x4] sm:$0xf]
      %v2068 = vld [vmem:[%s20 + $0x8] sm:$0xf]
      %v2069 = vld [vmem:[%s20 + $0xc] sm:$0xf]
      %v2070 = vld [vmem:[%s20 + $0x10] sm:$0xf]
      %v2071 = vld [vmem:[%s20 + $0x14] sm:$0xf]
      %v2072 = vld [vmem:[%s20 + $0x18] sm:$0xf]
      %v2073 = vld [vmem:[%s20 + $0x1c] sm:$0xf]
      %v2074 = vld [vmem:[%s21] sm:$0x1]
      %v2076 = vperm.slane %v2074, 0
      %v2086 = vunpack.c.l.b16 %v2066
      %v2087 = vunpack.c.l.b16 %v2067
      %v2088 = vunpack.c.l.b16 %v2068
      %v2089 = vunpack.c.l.b16 %v2069
      %v2090 = vunpack.c.l.b16 %v2070
      %v2091 = vunpack.c.l.b16 %v2071
      %v2092 = vunpack.c.l.b16 %v2072
      %v2093 = vunpack.c.l.b16 %v2073
      %v2094 = vpack.c.b16 %v2087, %v2086
      %v2095 = vpack.c.b16 %v2089, %v2088
      %v2096 = vpack.c.b16 %v2091, %v2090
      %v2097 = vpack.c.b16 %v2093, %v2092
      %vm2102 = vcmask 523264
      %v2104 = vsel %vm2102, %v2064, 0
      %v2107 = vsel %vm2102, %v2065, 0
      %2109 = vmatpush.bf16.msra.mxu0 0
      %2110 = vmatpush.bf16.msra.mxu0 0
      %2111 = vmatpush.bf16.msra.mxu0 0
      %2112 = vmatpush.bf16.msra.mxu0 0
      %2113 = vmatpush.bf16.msra.mxu0 %v2097
      %2114 = vmatpush.bf16.msra.mxu0 %v2096
      %2115 = vmatpush.bf16.msra.mxu0 %v2095
      %2116 = vmatpush.bf16.msra.mxu0 %v2094
      %2117 = vmatmul.bf16.gmra.mxu0 %v2104
      %v2118 = vpop.f32.mrf.mxu0
      %v2119 = vadd.f32 %v2076, %v2118
      %v2120 = vpop.f32.mrf.mxu0
      %v2121 = vadd.f32 %v2076, %v2120
      %2122 = vmatmul.bf16.gmra.mxu0 %v2107
      %v2123 = vpop.f32.mrf.mxu0
      %v2124 = vadd.f32 %v2076, %v2123
      %v2125 = vpop.f32.mrf.mxu0
      %v2126 = vadd.f32 %v2076, %v2125
      %2127 = vdwg.mxu0
      %v2128 = vadd.f32 %v2119, %v2009
      %v2129 = vadd.f32 %v2121, %v2010
      %v2130 = vadd.f32 %v2124, %v2011
      %v2131 = vadd.f32 %v2126, %v2012
      %v2132 = vld [vmem:[%s22] sm:$0x1]
      %v2133 = vld [vmem:[%s23] sm:$0x1]
      %v2134 = vsel %vm858, %v2128, 0.0
      %2135 = vadd.xlane.f32.xlu0 %v2134
      %v2136 = vpop.xlane.xlu0 %2135
      %v2137 = vsel %vm858, %v2129, 0.0
      %2138 = vadd.xlane.f32.xlu0 %v2137
      %v2139 = vpop.xlane.xlu0 %2138
      %v2140 = vsel %vm858, %v2130, 0.0
      %2141 = vadd.xlane.f32.xlu0 %v2140
      %v2142 = vpop.xlane.xlu0 %2141
      %v2143 = vsel %vm858, %v2131, 0.0
      %2144 = vadd.xlane.f32.xlu0 %v2143
      %v2145 = vpop.xlane.xlu0 %2144
      %v2146 = vmul.f32 %v2136, 0.03125
      %v2147 = vmul.f32 %v2139, 0.03125
      %v2148 = vmul.f32 %v2142, 0.03125
      %v2149 = vmul.f32 %v2145, 0.03125
      %v2150 = vmul.f32 %v2128, %v2128
      %v2151 = vmul.f32 %v2129, %v2129
      %v2152 = vmul.f32 %v2130, %v2130
      %v2153 = vmul.f32 %v2131, %v2131
      %v2154 = vsel %vm858, %v2150, 0.0
      %2155 = vadd.xlane.f32.xlu0 %v2154
      %v2156 = vpop.xlane.xlu0 %2155
      %v2157 = vsel %vm858, %v2151, 0.0
      %2158 = vadd.xlane.f32.xlu0 %v2157
      %v2159 = vpop.xlane.xlu0 %2158
      %v2160 = vsel %vm858, %v2152, 0.0
      %2161 = vadd.xlane.f32.xlu0 %v2160
      %v2162 = vpop.xlane.xlu0 %2161
      %v2163 = vsel %vm858, %v2153, 0.0
      %2164 = vadd.xlane.f32.xlu0 %v2163
      %v2165 = vpop.xlane.xlu0 %2164
      %v2166 = vmul.f32 %v2156, 0.03125
      %v2167 = vmul.f32 %v2159, 0.03125
      %v2168 = vmul.f32 %v2162, 0.03125
      %v2169 = vmul.f32 %v2165, 0.03125
      %v2170 = vmul.f32 %v2146, %v2146
      %v2171 = vmul.f32 %v2147, %v2147
      %v2172 = vmul.f32 %v2148, %v2148
      %v2173 = vmul.f32 %v2149, %v2149
      %v2174 = vsub.f32 %v2166, %v2170
      %v2175 = vsub.f32 %v2167, %v2171
      %v2176 = vsub.f32 %v2168, %v2172
      %v2177 = vsub.f32 %v2169, %v2173
      %v2178 = vsub.f32 %v2128, %v2146
      %v2179 = vsub.f32 %v2129, %v2147
      %v2180 = vsub.f32 %v2130, %v2148
      %v2181 = vsub.f32 %v2131, %v2149
      %v2182 = vadd.f32 %v2174, 1e-05
      %v2183 = vadd.f32 %v2175, 1e-05
      %v2184 = vadd.f32 %v2176, 1e-05
      %v2185 = vadd.f32 %v2177, 1e-05
      %v2186 = vrsqrt.pop %v2182
      %v2187 = vmul.f32 %v2186, %v2182
      %v2188 = vmul.f32 %v2187, %v2186
      %v2189 = vmul.f32 0.5, %v2188
      %v2190 = vsub.f32 1.5, %v2189
      %v2191 = vmul.f32 %v2186, %v2190
      %vm2192 = vweird.f32 %v2182
      %vm2193 = vweird.f32 %v2186
      %vm2194 = vmor %vm2192, %vm2193
      %v2195 = vsel %vm2194, %v2186, %v2191
      %v2196 = vrsqrt.pop %v2183
      %v2197 = vmul.f32 %v2196, %v2183
      %v2198 = vmul.f32 %v2197, %v2196
      %v2199 = vmul.f32 0.5, %v2198
      %v2200 = vsub.f32 1.5, %v2199
      %v2201 = vmul.f32 %v2196, %v2200
      %vm2202 = vweird.f32 %v2183
      %vm2203 = vweird.f32 %v2196
      %vm2204 = vmor %vm2202, %vm2203
      %v2205 = vsel %vm2204, %v2196, %v2201
      %v2206 = vrsqrt.pop %v2184
      %v2207 = vmul.f32 %v2206, %v2184
      %v2208 = vmul.f32 %v2207, %v2206
      %v2209 = vmul.f32 0.5, %v2208
      %v2210 = vsub.f32 1.5, %v2209
      %v2211 = vmul.f32 %v2206, %v2210
      %vm2212 = vweird.f32 %v2184
      %vm2213 = vweird.f32 %v2206
      %vm2214 = vmor %vm2212, %vm2213
      %v2215 = vsel %vm2214, %v2206, %v2211
      %v2216 = vrsqrt.pop %v2185
      %v2217 = vmul.f32 %v2216, %v2185
      %v2218 = vmul.f32 %v2217, %v2216
      %v2219 = vmul.f32 0.5, %v2218
      %v2220 = vsub.f32 1.5, %v2219
      %v2221 = vmul.f32 %v2216, %v2220
      %vm2222 = vweird.f32 %v2185
      %vm2223 = vweird.f32 %v2216
      %vm2224 = vmor %vm2222, %vm2223
      %v2225 = vsel %vm2224, %v2216, %v2221
      %v2226 = vmul.f32 %v2178, %v2195
      %v2227 = vmul.f32 %v2179, %v2205
      %v2228 = vmul.f32 %v2180, %v2215
      %v2229 = vmul.f32 %v2181, %v2225
      %v2231 = vperm.slane %v2132, 0
      %v2233 = vmul.f32 %v2226, %v2231
      %v2234 = vmul.f32 %v2227, %v2231
      %v2235 = vmul.f32 %v2228, %v2231
      %v2236 = vmul.f32 %v2229, %v2231
      %v2238 = vperm.slane %v2133, 0
      %v2240 = vadd.f32 %v2233, %v2238
      %v2241 = vadd.f32 %v2234, %v2238
      %v2242 = vadd.f32 %v2235, %v2238
      %v2243 = vadd.f32 %v2236, %v2238
      %v2244 = vmul.f32 %v2240, %v793
      %v2245 = vmul.f32 %v2241, %v794
      %v2246 = vmul.f32 %v2242, %v795
      %v2247 = vmul.f32 %v2243, %v796
      %v2248 = vpack.c.bf16 %v2244, %v2244
      %v2249 = vpack.c.bf16 %v2245, %v2245
      %v2250 = vpack.c.bf16 %v2246, %v2246
      %v2251 = vpack.c.bf16 %v2247, %v2247
      %vm2252 = vcmask 257024
      %2253 = vst.msk [vmem:[%s730] sm:$0xf] %vm2252, %v2248
      %2254 = vst.msk [vmem:[%s730 + $0x4] sm:$0xf] %vm2252, %v2249
      %2255 = vst.msk [vmem:[%s730 + $0x8] sm:$0xf] %vm2252, %v2250
      %2256 = vst.msk [vmem:[%s730 + $0xc] sm:$0xf] %vm2252, %v2251
      %s2257 = smul.u32 2, %s48
      %p2258 = scmp.lt.s32.totalorder %s2257, 3
      %s2259 = scalar_select %p2258, %s2257, 3
      %s2260 = smul.addr %s2259, 2
      %s2261 = smul.addr %s2260, 4
      %s2262 = scalar_lea.vmem %s24, %s2261
      // Predicated region
      $region109: #{apply.3} parent=107 // pred_check
        %p2263 = pneg %p538
      $region110: #{apply.3} parent=107 // pred_check_branch
        %2265 = sbr.rel (%p2263) target = $region112
      $region111: #{apply.3} parent=107 // pred_region
        %s2266 = smul.u32 2, %s48
      $region112: #{apply.3} parent=107 // pred_fallthru
        _
    $region108: #{apply.3} parent=5 // pred_fallthru
      _
    %p2267 = scmp.le.s32.totalorder 2, %s43
    // Predicated region
    $region113: #{apply.3} parent=5 // pred_check
      %p2268 = pneg %p2267
    $region114: #{apply.3} parent=5 // pred_check_branch
      %2270 = sbr.rel (%p2268) target = $region116
    $region115: #{apply.3} parent=5 // pred_region
      %s2271 = ssub.s32 %s43, 2
      // Predicated region
      $region117: #{apply.3} parent=115 // pred_check
        %p2272 = pneg %p544
      $region118: #{apply.3} parent=115 // pred_check_branch
        %2274 = sbr.rel (%p2272) target = $region120
      $region119: #{apply.3} parent=115 // pred_region
        %s2275 = smul.u32 2, %s49
        %p2276 = scmp.lt.s32.totalorder %s2275, 3
        %s2277 = scalar_select %p2276, %s2275, 3
        %s2278 = smul.addr %s2277, 2
        %s2279 = smul.addr %s2278, 4
        %s2280 = scalar_lea.vmem %s24, %s2279
      $region120: #{apply.3} parent=115 // pred_fallthru
        _
    $region116: #{apply.3} parent=5 // pred_fallthru
      _
  $region6: #{apply.3} parent=0 // loop_footer
    %s47 = sadd.s32 1, %s43
  $region7: #{apply.3} parent=0 // loop_footer_branch
    %42 = sbr.rel target = $region3
  $region8: #{apply.3} parent=0 // loop_exit
    _

// kernel: apply.4
$region0: #{apply.4}
  #allocation0 [shape = 'u32[]', space=smem, size = 0x4, offset = 0x4, fixed_abs, tag = 'smem constant byte address 0x4 - core index']
  #allocation1 [shape = 'u32[72,128]{1,0:T(1,128)}', space=vmem, size = 0x9000, scoped, tag = 'internal scratch']
  #allocation2 [shape = 'bf16[32,32]{1,0:T(8,128)(2,1)}', space=vmem, size = 0x2000, scoped, tag = 'scratch operand']
  #allocation3 [shape = 's32[1]{0}', space=sflag, size = 0x4, scoped, tag = 'scoped memory for apply.4']
  #allocation4 [shape = 'u8[512]{0}', space=smem, size = 0x200, scoped, tag = 'prefetched SMEM operand 0']
  #allocation5 [shape = 'u8[512]{0}', space=smem, size = 0x200, scoped, tag = 'prefetched SMEM operand 1']
  %s0 = inlined_call_operand.vmem [shape: s32[4], index: 0, kind: input, shape index: {}]
  %s1 = inlined_call_operand.vmem [shape: s32[4], index: 1, kind: input, shape index: {}]
  %s2 = inlined_call_operand.vmem [shape: bf16[4,16,32], index: 2, kind: input, shape index: {}]
  %s3 = inlined_call_operand.vmem [shape: bf16[4,16,32], index: 3, kind: input, shape index: {}]
  %s4 = inlined_call_operand.vmem [shape: bf16[32,96], index: 4, kind: input, shape index: {}]
  %s5 = inlined_call_operand.vmem [shape: f32[1,96], index: 5, kind: input, shape index: {}]
  %s6 = inlined_call_operand.vmem [shape: bf16[32,32], index: 6, kind: input, shape index: {}]
  %s7 = inlined_call_operand.vmem [shape: f32[1,32], index: 7, kind: input, shape index: {}]
  %s8 = inlined_call_operand.vmem [shape: f32[1,32], index: 8, kind: input, shape index: {}]
  %s9 = inlined_call_operand.vmem [shape: f32[1,32], index: 9, kind: input, shape index: {}]
  %s10 = inlined_call_operand.vmem [shape: bf16[32,32], index: 10, kind: input, shape index: {}]
  %s11 = inlined_call_operand.vmem [shape: f32[1,32], index: 11, kind: input, shape index: {}]
  %s12 = inlined_call_operand.vmem [shape: bf16[32,64], index: 12, kind: input, shape index: {}]
  %s13 = inlined_call_operand.vmem [shape: f32[1,64], index: 13, kind: input, shape index: {}]
  %s14 = inlined_call_operand.vmem [shape: bf16[32,32], index: 14, kind: input, shape index: {}]
  %s15 = inlined_call_operand.vmem [shape: f32[1,32], index: 15, kind: input, shape index: {}]
  %s16 = inlined_call_operand.vmem [shape: f32[1,32], index: 16, kind: input, shape index: {}]
  %s17 = inlined_call_operand.vmem [shape: f32[1,32], index: 17, kind: input, shape index: {}]
  %s18 = inlined_call_operand.vmem [shape: bf16[32,64], index: 18, kind: input, shape index: {}]
  %s19 = inlined_call_operand.vmem [shape: f32[1,64], index: 19, kind: input, shape index: {}]
  %s20 = inlined_call_operand.vmem [shape: bf16[64,32], index: 20, kind: input, shape index: {}]
  %s21 = inlined_call_operand.hbm [shape: f32[1,32], index: 21, kind: input, shape index: {}]
  %s22 = inlined_call_operand.hbm [shape: f32[1,32], index: 22, kind: input, shape index: {}]
  %s23 = inlined_call_operand.hbm [shape: f32[1,32], index: 23, kind: input, shape index: {}]
  %s24 = inlined_call_operand.vmem [shape: bf16[4,16,32], index: 24, kind: output, shape index: {}]
  %s25 = sld [smem:[#allocation0]]
  $region133: #{apply.4} parent=0
    _
  %s27 = ssub.s32 1, %s25
  %s28 = scalar_select 0, %s27, %s25
  %s30 = sshll.u32 %s0, 4
  %s31 = int_to_ptr.vmem [resolvable:$true] %s30
  %33 = dma.vmem_to_smem %s31, 16, [#allocation4], [#allocation3]
  %s35 = sshll.u32 %s1, 4
  %s36 = int_to_ptr.vmem [resolvable:$true] %s35
  %38 = dma.vmem_to_smem %s36, 16, [#allocation5], [#allocation3]
  %40 = dma.done [#allocation3], 32
  %41 = sfence
  $region1: #{apply.4} parent=0
    #allocation6 [shape = 'u8[512]{0}', space=vmem, size = 0x400, scoped, tag = 'input window, operand 21, single buffered']
    #allocation7 [shape = 's32[2]{0}', space=sflag, size = 0x8, scoped, tag = 'scoped memory for apply.4']
    #allocation8 [shape = 'u8[512]{0}', space=vmem, size = 0x400, scoped, tag = 'input window, operand 22, single buffered']
    #allocation9 [shape = 's32[1]{0}', space=sflag, size = 0x4, scoped, tag = 'scoped memory for apply.4']
    #allocation10 [shape = 'u8[512]{0}', space=vmem, size = 0x400, scoped, tag = 'input window, operand 23, single buffered']
    %42 = vsyncpa [#allocation7], 0
    %43 = vsyncpa [#allocation9], 0
    loop: start=0, step=1, limit=4
    $region2: #{apply.4} parent=1 // loop_pre_header
      _
    $region3: #{apply.4} parent=1 // loop_header
      %s45 = sphi 0, %s49
      %p46 = scmp.ge.s32.totalorder %s45, 4
      %s55 = sphi 0, %s57
      %s58 = sphi 0, %s55
      %s59 = sphi 0, %s58
      %s75 = sphi 0, %s59
      %s81 = sphi 0, %s83
      %s84 = sphi 0, %s81
      %s85 = sphi 0, %s84
      %s101 = sphi 0, %s85
      %s105 = sphi 0, %s105
      %s107 = sphi 0, %s105
      %s108 = sphi 0, %s107
      %s122 = sphi 0, %s108
      %s126 = sphi 0, %s126
      %s128 = sphi 0, %s126
      %s129 = sphi 0, %s128
      %s143 = sphi 0, %s129
      %s147 = sphi 0, %s147
      %s149 = sphi 0, %s147
      %s150 = sphi 0, %s149
      %s164 = sphi 0, %s150
      %s168 = sphi 0, %s168
      %s170 = sphi 0, %s168
      %s171 = sphi 0, %s170
      %s185 = sphi 0, %s171
      %s189 = sphi 0, %s189
      %s191 = sphi 0, %s189
      %s192 = sphi 0, %s191
      %s206 = sphi 0, %s192
      %s210 = sphi 0, %s210
      %s212 = sphi 0, %s210
      %s213 = sphi 0, %s212
      %s227 = sphi 0, %s213
      %s231 = sphi 0, %s231
      %s233 = sphi 0, %s231
      %s234 = sphi 0, %s233
      %s248 = sphi 0, %s234
      %s252 = sphi 0, %s252
      %s254 = sphi 0, %s252
      %s255 = sphi 0, %s254
      %s269 = sphi 0, %s255
      %s273 = sphi 0, %s273
      %s275 = sphi 0, %s273
      %s276 = sphi 0, %s275
      %s290 = sphi 0, %s276
      %s294 = sphi 0, %s294
      %s296 = sphi 0, %s294
      %s297 = sphi 0, %s296
      %s311 = sphi 0, %s297
      %s315 = sphi 0, %s315
      %s317 = sphi 0, %s315
      %s318 = sphi 0, %s317
      %s332 = sphi 0, %s318
      %s336 = sphi 0, %s336
      %s338 = sphi 0, %s336
      %s339 = sphi 0, %s338
      %s353 = sphi 0, %s339
      %s357 = sphi 0, %s357
      %s359 = sphi 0, %s357
      %s360 = sphi 0, %s359
      %s374 = sphi 0, %s360
      %s378 = sphi 0, %s378
      %s380 = sphi 0, %s378
      %s381 = sphi 0, %s380
      %s395 = sphi 0, %s381
      %s399 = sphi 0, %s399
      %s401 = sphi 0, %s399
      %s402 = sphi 0, %s401
      %s416 = sphi 0, %s402
      %s420 = sphi 0, %s420
      %s422 = sphi 0, %s420
      %s423 = sphi 0, %s422
      %s437 = sphi 0, %s423
      %s441 = sphi 0, %s441
      %s443 = sphi 0, %s441
      %s444 = sphi 0, %s443
      %s458 = sphi 0, %s444
      %s462 = sphi 0, %s462
      %s464 = sphi 0, %s462
      %s465 = sphi 0, %s464
      %s479 = sphi 0, %s465
      %s483 = sphi 0, %s483
      %s485 = sphi 0, %s483
      %s486 = sphi 0, %s485
      %s500 = sphi 0, %s486
      %s504 = sphi 0, %s504
      %s506 = sphi 0, %s504
      %s507 = sphi 0, %s506
      %s521 = sphi 0, %s507
      %s527 = sphi 0, %s529
      %s530 = sphi 0, %s527
      %s531 = sphi 0, %s530
      %s547 = sphi 0, %s531
    $region4: #{apply.4} parent=1 // loop_header_branch
      %48 = sbr.rel (%p46) target = $region8
    $region5: #{apply.4} parent=1 // loop_body
      %s50 = ssub.s32 %s45, 1
      %s51 = ssub.s32 %s45, 2
      %s52 = sadd.s32 %s45, 1
      %s53 = ssub.s32 %s45, %s52
      %p54 = scmp.eq.s32.totalorder %s53, 0
      %s56 = sadd.s32 %s55, 1
      %s57 = scalar_select %p54, %s55, %s56
      %p60 = pneg %p54
      %p61 = scmp.eq.s32.totalorder %s45, 1
      %p62 = por %p60, %p61
      %p63 = scmp.ne.s32.totalorder %s55, %s58
      %p64 = scmp.eq.s32.totalorder %s45, 0
      %p65 = por %p63, %p64
      %p66 = scmp.ne.s32.totalorder %s55, %s58
      %p67 = scmp.eq.s32.totalorder %s50, 1
      %p68 = por %p66, %p67
      %p69 = scmp.ne.s32.totalorder %s58, %s59
      %p70 = scmp.eq.s32.totalorder %s50, 0
      %p71 = por %p69, %p70
      %p72 = scmp.ne.s32.totalorder %s58, %s59
      %p73 = scmp.eq.s32.totalorder %s51, 1
      %p74 = por %p72, %p73
      %p76 = scmp.ne.s32.totalorder %s59, %s75
      %p77 = scmp.eq.s32.totalorder %s51, 0
      %p78 = por %p76, %p77
      %s79 = ssub.s32 %s45, %s52
      %p80 = scmp.eq.s32.totalorder %s79, 0
      %s82 = sadd.s32 %s81, 1
      %s83 = scalar_select %p80, %s81, %s82
      %p86 = pneg %p80
      %p87 = scmp.eq.s32.totalorder %s45, 1
      %p88 = por %p86, %p87
      %p89 = scmp.ne.s32.totalorder %s81, %s84
      %p90 = scmp.eq.s32.totalorder %s45, 0
      %p91 = por %p89, %p90
      %p92 = scmp.ne.s32.totalorder %s81, %s84
      %p93 = scmp.eq.s32.totalorder %s50, 1
      %p94 = por %p92, %p93
      %p95 = scmp.ne.s32.totalorder %s84, %s85
      %p96 = scmp.eq.s32.totalorder %s50, 0
      %p97 = por %p95, %p96
      %p98 = scmp.ne.s32.totalorder %s84, %s85
      %p99 = scmp.eq.s32.totalorder %s51, 1
      %p100 = por %p98, %p99
      %p102 = scmp.ne.s32.totalorder %s85, %s101
      %p103 = scmp.eq.s32.totalorder %s51, 0
      %p104 = por %p102, %p103
      %s106 = sadd.s32 %s105, 1
      %p109 = scmp.eq.s32.totalorder %s45, 1
      %p110 = scmp.ne.s32.totalorder %s105, %s107
      %p111 = scmp.eq.s32.totalorder %s45, 0
      %p112 = por %p110, %p111
      %p113 = scmp.ne.s32.totalorder %s105, %s107
      %p114 = scmp.eq.s32.totalorder %s50, 1
      %p115 = por %p113, %p114
      %p116 = scmp.ne.s32.totalorder %s107, %s108
      %p117 = scmp.eq.s32.totalorder %s50, 0
      %p118 = por %p116, %p117
      %p119 = scmp.ne.s32.totalorder %s107, %s108
      %p120 = scmp.eq.s32.totalorder %s51, 1
      %p121 = por %p119, %p120
      %p123 = scmp.ne.s32.totalorder %s108, %s122
      %p124 = scmp.eq.s32.totalorder %s51, 0
      %p125 = por %p123, %p124
      %s127 = sadd.s32 %s126, 1
      %p130 = scmp.eq.s32.totalorder %s45, 1
      %p131 = scmp.ne.s32.totalorder %s126, %s128
      %p132 = scmp.eq.s32.totalorder %s45, 0
      %p133 = por %p131, %p132
      %p134 = scmp.ne.s32.totalorder %s126, %s128
      %p135 = scmp.eq.s32.totalorder %s50, 1
      %p136 = por %p134, %p135
      %p137 = scmp.ne.s32.totalorder %s128, %s129
      %p138 = scmp.eq.s32.totalorder %s50, 0
      %p139 = por %p137, %p138
      %p140 = scmp.ne.s32.totalorder %s128, %s129
      %p141 = scmp.eq.s32.totalorder %s51, 1
      %p142 = por %p140, %p141
      %p144 = scmp.ne.s32.totalorder %s129, %s143
      %p145 = scmp.eq.s32.totalorder %s51, 0
      %p146 = por %p144, %p145
      %s148 = sadd.s32 %s147, 1
      %p151 = scmp.eq.s32.totalorder %s45, 1
      %p152 = scmp.ne.s32.totalorder %s147, %s149
      %p153 = scmp.eq.s32.totalorder %s45, 0
      %p154 = por %p152, %p153
      %p155 = scmp.ne.s32.totalorder %s147, %s149
      %p156 = scmp.eq.s32.totalorder %s50, 1
      %p157 = por %p155, %p156
      %p158 = scmp.ne.s32.totalorder %s149, %s150
      %p159 = scmp.eq.s32.totalorder %s50, 0
      %p160 = por %p158, %p159
      %p161 = scmp.ne.s32.totalorder %s149, %s150
      %p162 = scmp.eq.s32.totalorder %s51, 1
      %p163 = por %p161, %p162
      %p165 = scmp.ne.s32.totalorder %s150, %s164
      %p166 = scmp.eq.s32.totalorder %s51, 0
      %p167 = por %p165, %p166
      %s169 = sadd.s32 %s168, 1
      %p172 = scmp.eq.s32.totalorder %s45, 1
      %p173 = scmp.ne.s32.totalorder %s168, %s170
      %p174 = scmp.eq.s32.totalorder %s45, 0
      %p175 = por %p173, %p174
      %p176 = scmp.ne.s32.totalorder %s168, %s170
      %p177 = scmp.eq.s32.totalorder %s50, 1
      %p178 = por %p176, %p177
      %p179 = scmp.ne.s32.totalorder %s170, %s171
      %p180 = scmp.eq.s32.totalorder %s50, 0
      %p181 = por %p179, %p180
      %p182 = scmp.ne.s32.totalorder %s170, %s171
      %p183 = scmp.eq.s32.totalorder %s51, 1
      %p184 = por %p182, %p183
      %p186 = scmp.ne.s32.totalorder %s171, %s185
      %p187 = scmp.eq.s32.totalorder %s51, 0
      %p188 = por %p186, %p187
      %s190 = sadd.s32 %s189, 1
      %p193 = scmp.eq.s32.totalorder %s45, 1
      %p194 = scmp.ne.s32.totalorder %s189, %s191
      %p195 = scmp.eq.s32.totalorder %s45, 0
      %p196 = por %p194, %p195
      %p197 = scmp.ne.s32.totalorder %s189, %s191
      %p198 = scmp.eq.s32.totalorder %s50, 1
      %p199 = por %p197, %p198
      %p200 = scmp.ne.s32.totalorder %s191, %s192
      %p201 = scmp.eq.s32.totalorder %s50, 0
      %p202 = por %p200, %p201
      %p203 = scmp.ne.s32.totalorder %s191, %s192
      %p204 = scmp.eq.s32.totalorder %s51, 1
      %p205 = por %p203, %p204
      %p207 = scmp.ne.s32.totalorder %s192, %s206
      %p208 = scmp.eq.s32.totalorder %s51, 0
      %p209 = por %p207, %p208
      %s211 = sadd.s32 %s210, 1
      %p214 = scmp.eq.s32.totalorder %s45, 1
      %p215 = scmp.ne.s32.totalorder %s210, %s212
      %p216 = scmp.eq.s32.totalorder %s45, 0
      %p217 = por %p215, %p216
      %p218 = scmp.ne.s32.totalorder %s210, %s212
      %p219 = scmp.eq.s32.totalorder %s50, 1
      %p220 = por %p218, %p219
      %p221 = scmp.ne.s32.totalorder %s212, %s213
      %p222 = scmp.eq.s32.totalorder %s50, 0
      %p223 = por %p221, %p222
      %p224 = scmp.ne.s32.totalorder %s212, %s213
      %p225 = scmp.eq.s32.totalorder %s51, 1
      %p226 = por %p224, %p225
      %p228 = scmp.ne.s32.totalorder %s213, %s227
      %p229 = scmp.eq.s32.totalorder %s51, 0
      %p230 = por %p228, %p229
      %s232 = sadd.s32 %s231, 1
      %p235 = scmp.eq.s32.totalorder %s45, 1
      %p236 = scmp.ne.s32.totalorder %s231, %s233
      %p237 = scmp.eq.s32.totalorder %s45, 0
      %p238 = por %p236, %p237
      %p239 = scmp.ne.s32.totalorder %s231, %s233
      %p240 = scmp.eq.s32.totalorder %s50, 1
      %p241 = por %p239, %p240
      %p242 = scmp.ne.s32.totalorder %s233, %s234
      %p243 = scmp.eq.s32.totalorder %s50, 0
      %p244 = por %p242, %p243
      %p245 = scmp.ne.s32.totalorder %s233, %s234
      %p246 = scmp.eq.s32.totalorder %s51, 1
      %p247 = por %p245, %p246
      %p249 = scmp.ne.s32.totalorder %s234, %s248
      %p250 = scmp.eq.s32.totalorder %s51, 0
      %p251 = por %p249, %p250
      %s253 = sadd.s32 %s252, 1
      %p256 = scmp.eq.s32.totalorder %s45, 1
      %p257 = scmp.ne.s32.totalorder %s252, %s254
      %p258 = scmp.eq.s32.totalorder %s45, 0
      %p259 = por %p257, %p258
      %p260 = scmp.ne.s32.totalorder %s252, %s254
      %p261 = scmp.eq.s32.totalorder %s50, 1
      %p262 = por %p260, %p261
      %p263 = scmp.ne.s32.totalorder %s254, %s255
      %p264 = scmp.eq.s32.totalorder %s50, 0
      %p265 = por %p263, %p264
      %p266 = scmp.ne.s32.totalorder %s254, %s255
      %p267 = scmp.eq.s32.totalorder %s51, 1
      %p268 = por %p266, %p267
      %p270 = scmp.ne.s32.totalorder %s255, %s269
      %p271 = scmp.eq.s32.totalorder %s51, 0
      %p272 = por %p270, %p271
      %s274 = sadd.s32 %s273, 1
      %p277 = scmp.eq.s32.totalorder %s45, 1
      %p278 = scmp.ne.s32.totalorder %s273, %s275
      %p279 = scmp.eq.s32.totalorder %s45, 0
      %p280 = por %p278, %p279
      %p281 = scmp.ne.s32.totalorder %s273, %s275
      %p282 = scmp.eq.s32.totalorder %s50, 1
      %p283 = por %p281, %p282
      %p284 = scmp.ne.s32.totalorder %s275, %s276
      %p285 = scmp.eq.s32.totalorder %s50, 0
      %p286 = por %p284, %p285
      %p287 = scmp.ne.s32.totalorder %s275, %s276
      %p288 = scmp.eq.s32.totalorder %s51, 1
      %p289 = por %p287, %p288
      %p291 = scmp.ne.s32.totalorder %s276, %s290
      %p292 = scmp.eq.s32.totalorder %s51, 0
      %p293 = por %p291, %p292
      %s295 = sadd.s32 %s294, 1
      %p298 = scmp.eq.s32.totalorder %s45, 1
      %p299 = scmp.ne.s32.totalorder %s294, %s296
      %p300 = scmp.eq.s32.totalorder %s45, 0
      %p301 = por %p299, %p300
      %p302 = scmp.ne.s32.totalorder %s294, %s296
      %p303 = scmp.eq.s32.totalorder %s50, 1
      %p304 = por %p302, %p303
      %p305 = scmp.ne.s32.totalorder %s296, %s297
      %p306 = scmp.eq.s32.totalorder %s50, 0
      %p307 = por %p305, %p306
      %p308 = scmp.ne.s32.totalorder %s296, %s297
      %p309 = scmp.eq.s32.totalorder %s51, 1
      %p310 = por %p308, %p309
      %p312 = scmp.ne.s32.totalorder %s297, %s311
      %p313 = scmp.eq.s32.totalorder %s51, 0
      %p314 = por %p312, %p313
      %s316 = sadd.s32 %s315, 1
      %p319 = scmp.eq.s32.totalorder %s45, 1
      %p320 = scmp.ne.s32.totalorder %s315, %s317
      %p321 = scmp.eq.s32.totalorder %s45, 0
      %p322 = por %p320, %p321
      %p323 = scmp.ne.s32.totalorder %s315, %s317
      %p324 = scmp.eq.s32.totalorder %s50, 1
      %p325 = por %p323, %p324
      %p326 = scmp.ne.s32.totalorder %s317, %s318
      %p327 = scmp.eq.s32.totalorder %s50, 0
      %p328 = por %p326, %p327
      %p329 = scmp.ne.s32.totalorder %s317, %s318
      %p330 = scmp.eq.s32.totalorder %s51, 1
      %p331 = por %p329, %p330
      %p333 = scmp.ne.s32.totalorder %s318, %s332
      %p334 = scmp.eq.s32.totalorder %s51, 0
      %p335 = por %p333, %p334
      %s337 = sadd.s32 %s336, 1
      %p340 = scmp.eq.s32.totalorder %s45, 1
      %p341 = scmp.ne.s32.totalorder %s336, %s338
      %p342 = scmp.eq.s32.totalorder %s45, 0
      %p343 = por %p341, %p342
      %p344 = scmp.ne.s32.totalorder %s336, %s338
      %p345 = scmp.eq.s32.totalorder %s50, 1
      %p346 = por %p344, %p345
      %p347 = scmp.ne.s32.totalorder %s338, %s339
      %p348 = scmp.eq.s32.totalorder %s50, 0
      %p349 = por %p347, %p348
      %p350 = scmp.ne.s32.totalorder %s338, %s339
      %p351 = scmp.eq.s32.totalorder %s51, 1
      %p352 = por %p350, %p351
      %p354 = scmp.ne.s32.totalorder %s339, %s353
      %p355 = scmp.eq.s32.totalorder %s51, 0
      %p356 = por %p354, %p355
      %s358 = sadd.s32 %s357, 1
      %p361 = scmp.eq.s32.totalorder %s45, 1
      %p362 = scmp.ne.s32.totalorder %s357, %s359
      %p363 = scmp.eq.s32.totalorder %s45, 0
      %p364 = por %p362, %p363
      %p365 = scmp.ne.s32.totalorder %s357, %s359
      %p366 = scmp.eq.s32.totalorder %s50, 1
      %p367 = por %p365, %p366
      %p368 = scmp.ne.s32.totalorder %s359, %s360
      %p369 = scmp.eq.s32.totalorder %s50, 0
      %p370 = por %p368, %p369
      %p371 = scmp.ne.s32.totalorder %s359, %s360
      %p372 = scmp.eq.s32.totalorder %s51, 1
      %p373 = por %p371, %p372
      %p375 = scmp.ne.s32.totalorder %s360, %s374
      %p376 = scmp.eq.s32.totalorder %s51, 0
      %p377 = por %p375, %p376
      %s379 = sadd.s32 %s378, 1
      %p382 = scmp.eq.s32.totalorder %s45, 1
      %p383 = scmp.ne.s32.totalorder %s378, %s380
      %p384 = scmp.eq.s32.totalorder %s45, 0
      %p385 = por %p383, %p384
      %p386 = scmp.ne.s32.totalorder %s378, %s380
      %p387 = scmp.eq.s32.totalorder %s50, 1
      %p388 = por %p386, %p387
      %p389 = scmp.ne.s32.totalorder %s380, %s381
      %p390 = scmp.eq.s32.totalorder %s50, 0
      %p391 = por %p389, %p390
      %p392 = scmp.ne.s32.totalorder %s380, %s381
      %p393 = scmp.eq.s32.totalorder %s51, 1
      %p394 = por %p392, %p393
      %p396 = scmp.ne.s32.totalorder %s381, %s395
      %p397 = scmp.eq.s32.totalorder %s51, 0
      %p398 = por %p396, %p397
      %s400 = sadd.s32 %s399, 1
      %p403 = scmp.eq.s32.totalorder %s45, 1
      %p404 = scmp.ne.s32.totalorder %s399, %s401
      %p405 = scmp.eq.s32.totalorder %s45, 0
      %p406 = por %p404, %p405
      %p407 = scmp.ne.s32.totalorder %s399, %s401
      %p408 = scmp.eq.s32.totalorder %s50, 1
      %p409 = por %p407, %p408
      %p410 = scmp.ne.s32.totalorder %s401, %s402
      %p411 = scmp.eq.s32.totalorder %s50, 0
      %p412 = por %p410, %p411
      %p413 = scmp.ne.s32.totalorder %s401, %s402
      %p414 = scmp.eq.s32.totalorder %s51, 1
      %p415 = por %p413, %p414
      %p417 = scmp.ne.s32.totalorder %s402, %s416
      %p418 = scmp.eq.s32.totalorder %s51, 0
      %p419 = por %p417, %p418
      %s421 = sadd.s32 %s420, 1
      %p424 = scmp.eq.s32.totalorder %s45, 1
      %p425 = scmp.ne.s32.totalorder %s420, %s422
      %p426 = scmp.eq.s32.totalorder %s45, 0
      %p427 = por %p425, %p426
      %p428 = scmp.ne.s32.totalorder %s420, %s422
      %p429 = scmp.eq.s32.totalorder %s50, 1
      %p430 = por %p428, %p429
      %p431 = scmp.ne.s32.totalorder %s422, %s423
      %p432 = scmp.eq.s32.totalorder %s50, 0
      %p433 = por %p431, %p432
      %p434 = scmp.ne.s32.totalorder %s422, %s423
      %p435 = scmp.eq.s32.totalorder %s51, 1
      %p436 = por %p434, %p435
      %p438 = scmp.ne.s32.totalorder %s423, %s437
      %p439 = scmp.eq.s32.totalorder %s51, 0
      %p440 = por %p438, %p439
      %s442 = sadd.s32 %s441, 1
      %p445 = scmp.eq.s32.totalorder %s45, 1
      %p446 = scmp.ne.s32.totalorder %s441, %s443
      %p447 = scmp.eq.s32.totalorder %s45, 0
      %p448 = por %p446, %p447
      %p449 = scmp.ne.s32.totalorder %s441, %s443
      %p450 = scmp.eq.s32.totalorder %s50, 1
      %p451 = por %p449, %p450
      %p452 = scmp.ne.s32.totalorder %s443, %s444
      %p453 = scmp.eq.s32.totalorder %s50, 0
      %p454 = por %p452, %p453
      %p455 = scmp.ne.s32.totalorder %s443, %s444
      %p456 = scmp.eq.s32.totalorder %s51, 1
      %p457 = por %p455, %p456
      %p459 = scmp.ne.s32.totalorder %s444, %s458
      %p460 = scmp.eq.s32.totalorder %s51, 0
      %p461 = por %p459, %p460
      %s463 = sadd.s32 %s462, 1
      %p466 = scmp.eq.s32.totalorder %s45, 1
      %p467 = scmp.ne.s32.totalorder %s462, %s464
      %p468 = scmp.eq.s32.totalorder %s45, 0
      %p469 = por %p467, %p468
      %p470 = scmp.ne.s32.totalorder %s462, %s464
      %p471 = scmp.eq.s32.totalorder %s50, 1
      %p472 = por %p470, %p471
      %p473 = scmp.ne.s32.totalorder %s464, %s465
      %p474 = scmp.eq.s32.totalorder %s50, 0
      %p475 = por %p473, %p474
      %p476 = scmp.ne.s32.totalorder %s464, %s465
      %p477 = scmp.eq.s32.totalorder %s51, 1
      %p478 = por %p476, %p477
      %p480 = scmp.ne.s32.totalorder %s465, %s479
      %p481 = scmp.eq.s32.totalorder %s51, 0
      %p482 = por %p480, %p481
      %s484 = sadd.s32 %s483, 1
      %p487 = scmp.eq.s32.totalorder %s45, 1
      %p488 = scmp.ne.s32.totalorder %s483, %s485
      %p489 = scmp.eq.s32.totalorder %s45, 0
      %p490 = por %p488, %p489
      %p491 = scmp.ne.s32.totalorder %s483, %s485
      %p492 = scmp.eq.s32.totalorder %s50, 1
      %p493 = por %p491, %p492
      %p494 = scmp.ne.s32.totalorder %s485, %s486
      %p495 = scmp.eq.s32.totalorder %s50, 0
      %p496 = por %p494, %p495
      %p497 = scmp.ne.s32.totalorder %s485, %s486
      %p498 = scmp.eq.s32.totalorder %s51, 1
      %p499 = por %p497, %p498
      %p501 = scmp.ne.s32.totalorder %s486, %s500
      %p502 = scmp.eq.s32.totalorder %s51, 0
      %p503 = por %p501, %p502
      %s505 = sadd.s32 %s504, 1
      %p508 = scmp.eq.s32.totalorder %s45, 1
      %p509 = scmp.ne.s32.totalorder %s504, %s506
      %p510 = scmp.eq.s32.totalorder %s45, 0
      %p511 = por %p509, %p510
      %p512 = scmp.ne.s32.totalorder %s504, %s506
      %p513 = scmp.eq.s32.totalorder %s50, 1
      %p514 = por %p512, %p513
      %p515 = scmp.ne.s32.totalorder %s506, %s507
      %p516 = scmp.eq.s32.totalorder %s50, 0
      %p517 = por %p515, %p516
      %p518 = scmp.ne.s32.totalorder %s506, %s507
      %p519 = scmp.eq.s32.totalorder %s51, 1
      %p520 = por %p518, %p519
      %p522 = scmp.ne.s32.totalorder %s507, %s521
      %p523 = scmp.eq.s32.totalorder %s51, 0
      %p524 = por %p522, %p523
      %s525 = ssub.s32 %s45, %s52
      %p526 = scmp.eq.s32.totalorder %s525, 0
      %s528 = sadd.s32 %s527, 1
      %s529 = scalar_select %p526, %s527, %s528
      %p532 = pneg %p526
      %p533 = scmp.eq.s32.totalorder %s45, 1
      %p534 = por %p532, %p533
      %p535 = scmp.ne.s32.totalorder %s527, %s530
      %p536 = scmp.eq.s32.totalorder %s45, 0
      %p537 = por %p535, %p536
      %p538 = scmp.ne.s32.totalorder %s527, %s530
      %p539 = scmp.eq.s32.totalorder %s50, 1
      %p540 = por %p538, %p539
      %p541 = scmp.ne.s32.totalorder %s530, %s531
      %p542 = scmp.eq.s32.totalorder %s50, 0
      %p543 = por %p541, %p542
      %p544 = scmp.ne.s32.totalorder %s530, %s531
      %p545 = scmp.eq.s32.totalorder %s51, 1
      %p546 = por %p544, %p545
      %p548 = scmp.ne.s32.totalorder %s531, %s547
      %p549 = scmp.eq.s32.totalorder %s51, 0
      %p550 = por %p548, %p549
      %p551 = scmp.le.s32.totalorder 1, %s45
      %p552 = scmp.lt.s32.totalorder %s45, 3
      %p553 = pnand %p551, %p552
      %p554 = pneg %p553
      // Predicated region
      $region9: #{apply.4} parent=5 // pred_check
        _
      $region10: #{apply.4} parent=5 // pred_check_branch
        %556 = sbr.rel (%p553) target = $region12
      $region11: #{apply.4} parent=5 // pred_region
        %s557 = ssub.s32 %s45, 1
        // Predicated region
        $region13: #{apply.4} parent=11 // pred_check
          %p558 = pneg %p118
        $region14: #{apply.4} parent=11 // pred_check_branch
          %560 = sbr.rel (%p558) target = $region16
        $region15: #{apply.4} parent=11 // pred_region
          _
        $region16: #{apply.4} parent=11 // pred_fallthru
          _
        // Predicated region
        $region17: #{apply.4} parent=11 // pred_check
          %p561 = pneg %p139
        $region18: #{apply.4} parent=11 // pred_check_branch
          %563 = sbr.rel (%p561) target = $region20
        $region19: #{apply.4} parent=11 // pred_region
          _
        $region20: #{apply.4} parent=11 // pred_fallthru
          _
        // Predicated region
        $region21: #{apply.4} parent=11 // pred_check
          %p564 = pneg %p160
        $region22: #{apply.4} parent=11 // pred_check_branch
          %566 = sbr.rel (%p564) target = $region24
        $region23: #{apply.4} parent=11 // pred_region
          _
        $region24: #{apply.4} parent=11 // pred_fallthru
          _
        // Predicated region
        $region25: #{apply.4} parent=11 // pred_check
          %p567 = pneg %p181
        $region26: #{apply.4} parent=11 // pred_check_branch
          %569 = sbr.rel (%p567) target = $region28
        $region27: #{apply.4} parent=11 // pred_region
          _
        $region28: #{apply.4} parent=11 // pred_fallthru
          _
        // Predicated region
        $region29: #{apply.4} parent=11 // pred_check
          %p570 = pneg %p202
        $region30: #{apply.4} parent=11 // pred_check_branch
          %572 = sbr.rel (%p570) target = $region32
        $region31: #{apply.4} parent=11 // pred_region
          _
        $region32: #{apply.4} parent=11 // pred_fallthru
          _
        // Predicated region
        $region33: #{apply.4} parent=11 // pred_check
          %p573 = pneg %p223
        $region34: #{apply.4} parent=11 // pred_check_branch
          %575 = sbr.rel (%p573) target = $region36
        $region35: #{apply.4} parent=11 // pred_region
          _
        $region36: #{apply.4} parent=11 // pred_fallthru
          _
        // Predicated region
        $region37: #{apply.4} parent=11 // pred_check
          %p576 = pneg %p244
        $region38: #{apply.4} parent=11 // pred_check_branch
          %578 = sbr.rel (%p576) target = $region40
        $region39: #{apply.4} parent=11 // pred_region
          _
        $region40: #{apply.4} parent=11 // pred_fallthru
          _
        // Predicated region
        $region41: #{apply.4} parent=11 // pred_check
          %p579 = pneg %p265
        $region42: #{apply.4} parent=11 // pred_check_branch
          %581 = sbr.rel (%p579) target = $region44
        $region43: #{apply.4} parent=11 // pred_region
          _
        $region44: #{apply.4} parent=11 // pred_fallthru
          _
        // Predicated region
        $region45: #{apply.4} parent=11 // pred_check
          %p582 = pneg %p286
        $region46: #{apply.4} parent=11 // pred_check_branch
          %584 = sbr.rel (%p582) target = $region48
        $region47: #{apply.4} parent=11 // pred_region
          _
        $region48: #{apply.4} parent=11 // pred_fallthru
          _
        // Predicated region
        $region49: #{apply.4} parent=11 // pred_check
          %p585 = pneg %p307
        $region50: #{apply.4} parent=11 // pred_check_branch
          %587 = sbr.rel (%p585) target = $region52
        $region51: #{apply.4} parent=11 // pred_region
          _
        $region52: #{apply.4} parent=11 // pred_fallthru
          _
        // Predicated region
        $region53: #{apply.4} parent=11 // pred_check
          %p588 = pneg %p328
        $region54: #{apply.4} parent=11 // pred_check_branch
          %590 = sbr.rel (%p588) target = $region56
        $region55: #{apply.4} parent=11 // pred_region
          _
        $region56: #{apply.4} parent=11 // pred_fallthru
          _
        // Predicated region
        $region57: #{apply.4} parent=11 // pred_check
          %p591 = pneg %p349
        $region58: #{apply.4} parent=11 // pred_check_branch
          %593 = sbr.rel (%p591) target = $region60
        $region59: #{apply.4} parent=11 // pred_region
          _
        $region60: #{apply.4} parent=11 // pred_fallthru
          _
        // Predicated region
        $region61: #{apply.4} parent=11 // pred_check
          %p594 = pneg %p370
        $region62: #{apply.4} parent=11 // pred_check_branch
          %596 = sbr.rel (%p594) target = $region64
        $region63: #{apply.4} parent=11 // pred_region
          _
        $region64: #{apply.4} parent=11 // pred_fallthru
          _
        // Predicated region
        $region65: #{apply.4} parent=11 // pred_check
          %p597 = pneg %p391
        $region66: #{apply.4} parent=11 // pred_check_branch
          %599 = sbr.rel (%p597) target = $region68
        $region67: #{apply.4} parent=11 // pred_region
          _
        $region68: #{apply.4} parent=11 // pred_fallthru
          _
        // Predicated region
        $region69: #{apply.4} parent=11 // pred_check
          %p600 = pneg %p412
        $region70: #{apply.4} parent=11 // pred_check_branch
          %602 = sbr.rel (%p600) target = $region72
        $region71: #{apply.4} parent=11 // pred_region
          _
        $region72: #{apply.4} parent=11 // pred_fallthru
          _
        // Predicated region
        $region73: #{apply.4} parent=11 // pred_check
          %p603 = pneg %p433
        $region74: #{apply.4} parent=11 // pred_check_branch
          %605 = sbr.rel (%p603) target = $region76
        $region75: #{apply.4} parent=11 // pred_region
          _
        $region76: #{apply.4} parent=11 // pred_fallthru
          _
        // Predicated region
        $region77: #{apply.4} parent=11 // pred_check
          %p606 = pneg %p454
        $region78: #{apply.4} parent=11 // pred_check_branch
          %608 = sbr.rel (%p606) target = $region80
        $region79: #{apply.4} parent=11 // pred_region
          _
        $region80: #{apply.4} parent=11 // pred_fallthru
          _
        // Predicated region
        $region81: #{apply.4} parent=11 // pred_check
          %p609 = pneg %p475
        $region82: #{apply.4} parent=11 // pred_check_branch
          %611 = sbr.rel (%p609) target = $region84
        $region83: #{apply.4} parent=11 // pred_region
          %613 = vsyncadd [#allocation7], 0
          %s615 = sshll.u32 %s21, 4
          %s616 = int_to_ptr.hbm [resolvable:$true] %s615
          %s617 = sshll.u32 [#allocation6], 4
          %s618 = int_to_ptr.vmem [resolvable:$true] %s617
          %620 = dma.hbm_to_vmem [thread:$0]  %s616, 16, %s618, [#allocation7]
        $region84: #{apply.4} parent=11 // pred_fallthru
          _
        // Predicated region
        $region85: #{apply.4} parent=11 // pred_check
          %p621 = pneg %p496
        $region86: #{apply.4} parent=11 // pred_check_branch
          %623 = sbr.rel (%p621) target = $region88
        $region87: #{apply.4} parent=11 // pred_region
          %625 = vsyncadd [#allocation9], 0
          %s627 = sshll.u32 %s22, 4
          %s628 = int_to_ptr.hbm [resolvable:$true] %s627
          %s629 = sshll.u32 [#allocation8], 4
          %s630 = int_to_ptr.vmem [resolvable:$true] %s629
          %632 = dma.hbm_to_vmem [thread:$0]  %s628, 16, %s630, [#allocation9]
        $region88: #{apply.4} parent=11 // pred_fallthru
          _
        // Predicated region
        $region89: #{apply.4} parent=11 // pred_check
          %p633 = pneg %p517
        $region90: #{apply.4} parent=11 // pred_check_branch
          %635 = sbr.rel (%p633) target = $region92
        $region91: #{apply.4} parent=11 // pred_region
          %637 = vsyncadd [#allocation9], 0
          %s639 = sshll.u32 %s23, 4
          %s640 = int_to_ptr.hbm [resolvable:$true] %s639
          %s641 = sshll.u32 [#allocation10], 4
          %s642 = int_to_ptr.vmem [resolvable:$true] %s641
          %644 = dma.hbm_to_vmem [thread:$0]  %s640, 16, %s642, [#allocation9]
        $region92: #{apply.4} parent=11 // pred_fallthru
          _
      $region12: #{apply.4} parent=5 // pred_fallthru
        _
      %p645 = scmp.lt.s32.totalorder %s45, 2
      // Predicated region
      $region93: #{apply.4} parent=5 // pred_check
        %p646 = pneg %p645
      $region94: #{apply.4} parent=5 // pred_check_branch
        %648 = sbr.rel (%p646) target = $region96
      $region95: #{apply.4} parent=5 // pred_region
        // Predicated region
        $region97: #{apply.4} parent=95 // pred_check
          %p649 = pneg %p65
        $region98: #{apply.4} parent=95 // pred_check_branch
          %651 = sbr.rel (%p649) target = $region100
        $region99: #{apply.4} parent=95 // pred_region
          %s652 = smul.u32 2, %s45
          %p653 = scmp.lt.s32.totalorder %s652, 3
          %s654 = scalar_select %p653, %s652, 3
          %s655 = smul.addr %s654, 2
          %s656 = smul.addr %s655, 4
          %s657 = scalar_lea.vmem %s2, %s656
          %s658 = smul.u32 2, %s45
        $region100: #{apply.4} parent=95 // pred_fallthru
          _
        // Predicated region
        $region101: #{apply.4} parent=95 // pred_check
          %p659 = pneg %p91
        $region102: #{apply.4} parent=95 // pred_check_branch
          %661 = sbr.rel (%p659) target = $region104
        $region103: #{apply.4} parent=95 // pred_region
          %s662 = smul.u32 2, %s45
          %p663 = scmp.lt.s32.totalorder %s662, 3
          %s664 = scalar_select %p663, %s662, 3
          %s665 = smul.addr %s664, 2
          %s666 = smul.addr %s665, 4
          %s667 = scalar_lea.vmem %s3, %s666
          %s668 = smul.u32 2, %s45
        $region104: #{apply.4} parent=95 // pred_fallthru
          _
      $region96: #{apply.4} parent=5 // pred_fallthru
        _
      %p669 = scmp.le.s32.totalorder 1, %s45
      %p670 = scmp.lt.s32.totalorder %s45, 3
      %p671 = pnand %p669, %p670
      %p672 = pneg %p671
      // Predicated region
      $region105: #{apply.4} parent=5 // pred_check
        _
      $region106: #{apply.4} parent=5 // pred_check_branch
        %674 = sbr.rel (%p671) target = $region108
      $region107: #{apply.4} parent=5 // pred_region
        %s675 = ssub.s32 %s45, 1
        // Predicated region
        $region109: #{apply.4} parent=107 // pred_check
          %p676 = pneg %p475
        $region110: #{apply.4} parent=107 // pred_check_branch
          %678 = sbr.rel (%p676) target = $region112
        $region111: #{apply.4} parent=107 // pred_region
          %680 = dma.done [#allocation7], 16
        $region112: #{apply.4} parent=107 // pred_fallthru
          _
        // Predicated region
        $region113: #{apply.4} parent=107 // pred_check
          %p681 = pneg %p496
        $region114: #{apply.4} parent=107 // pred_check_branch
          %683 = sbr.rel (%p681) target = $region116
        $region115: #{apply.4} parent=107 // pred_region
          %685 = dma.done [#allocation9], 16
        $region116: #{apply.4} parent=107 // pred_fallthru
          _
        // Predicated region
        $region117: #{apply.4} parent=107 // pred_check
          %p686 = pneg %p517
        $region118: #{apply.4} parent=107 // pred_check_branch
          %688 = sbr.rel (%p686) target = $region120
        $region119: #{apply.4} parent=107 // pred_region
          %690 = dma.done [#allocation9], 16
        $region120: #{apply.4} parent=107 // pred_fallthru
          _
        %s691 = smul.u32 2, %s50
        %p692 = scmp.lt.s32.totalorder %s691, 3
        %s693 = scalar_select %p692, %s691, 3
        %s694 = smul.addr %s693, 2
        %s695 = smul.addr %s694, 4
        %s696 = scalar_lea.vmem %s2, %s695
        %p697 = pneg %p71
        %p698 = pneg %p68
        %s699 = smul.u32 2, %s50
        %p700 = scmp.lt.s32.totalorder %s699, 3
        %s701 = scalar_select %p700, %s699, 3
        %s702 = smul.addr %s701, 2
        %s703 = smul.addr %s702, 4
        %s704 = scalar_lea.vmem %s3, %s703
        %p705 = pneg %p97
        %p706 = pneg %p94
        %p707 = pneg %p118
        %p708 = pneg %p115
        %p709 = pneg %p139
        %p710 = pneg %p136
        %p711 = pneg %p160
        %p712 = pneg %p157
        %p713 = pneg %p181
        %p714 = pneg %p178
        %p715 = pneg %p202
        %p716 = pneg %p199
        %p717 = pneg %p223
        %p718 = pneg %p220
        %p719 = pneg %p244
        %p720 = pneg %p241
        %p721 = pneg %p265
        %p722 = pneg %p262
        %p723 = pneg %p286
        %p724 = pneg %p283
        %p725 = pneg %p307
        %p726 = pneg %p304
        %p727 = pneg %p328
        %p728 = pneg %p325
        %p729 = pneg %p349
        %p730 = pneg %p346
        %p731 = pneg %p370
        %p732 = pneg %p367
        %p733 = pneg %p391
        %p734 = pneg %p388
        %p735 = pneg %p412
        %p736 = pneg %p409
        %p737 = pneg %p433
        %p738 = pneg %p430
        %p739 = pneg %p454
        %p740 = pneg %p451
        %p741 = pneg %p475
        %p742 = pneg %p472
        %p743 = pneg %p496
        %p744 = pneg %p493
        %p745 = pneg %p517
        %p746 = pneg %p514
        %p747 = pneg %p543
        %p748 = pneg %p540
        %s749 = smul.u32 2, %s50
        %p750 = scmp.lt.s32.totalorder %s749, 3
        %s751 = scalar_select %p750, %s749, 3
        %s752 = smul.addr %s751, 2
        %s753 = smul.addr %s752, 4
        %s754 = scalar_lea.vmem %s24, %s753
        %s755 = smul.u32 2, %s50
        %p756 = scmp.lt.s32.totalorder %s755, 3
        %s757 = scalar_select %p756, %s755, 3
        %s758 = smul.addr %s757, 2
        %s759 = smul.addr %s758, 4
        %s760 = scalar_lea.vmem %s2, %s759
        %s761 = smul.u32 2, %s50
        %s762 = smul.u32 2, %s50
        %p763 = scmp.lt.s32.totalorder %s762, 3
        %s764 = scalar_select %p763, %s762, 3
        %s765 = smul.addr %s764, 2
        %s766 = smul.addr %s765, 4
        %s767 = scalar_lea.vmem %s3, %s766
        %s768 = smul.u32 2, %s50
        %s769 = smul.u32 2, %s50
        %p770 = scmp.lt.s32.totalorder %s769, 3
        %s771 = scalar_select %p770, %s769, 3
        %s772 = smul.addr %s771, 2
        %s773 = smul.addr %s772, 4
        %s774 = scalar_lea.vmem %s24, %s773
        %s775 = smul.u32 2, %s50
        %s777 = smul.u32 %s50, 2
        %v778 = vlaneseq
        %v779 = vshrl.u32 %v778, 7
        %v780 = vadd.s32 %v779, 8
        %v781 = vlaneseq
        %v782 = vand.u32 %v781, 127
        %v783 = vadd.s32 %v779, 16
        %v784 = vadd.s32 %v779, 24
        %s785 = sld [smem:[#allocation4 + %s777]]
        %s786 = sadd.s32 %s777, 1
        %s787 = sld [smem:[#allocation4 + %s786]]
        %s788 = sld [smem:[#allocation5 + %s777]]
        %s789 = sld [smem:[#allocation5 + %s786]]
        %vm790 = vcmp.ge.s32.totalorder %v779, 0
        %vm791 = vcmp.ge.s32.totalorder %v780, 0
        %vm792 = vcmp.ge.s32.totalorder %v783, 0
        %vm793 = vcmp.ge.s32.totalorder %v784, 0
        %v794 = vstv %s785
        %vm795 = vcmp.lt.s32.totalorder %v779, %v794
        %vm796 = vcmp.lt.s32.totalorder %v780, %v794
        %vm797 = vcmp.lt.s32.totalorder %v783, %v794
        %vm798 = vcmp.lt.s32.totalorder %v784, %v794
        %vm799 = vmand %vm790, %vm795
        %vm800 = vmand %vm791, %vm796
        %vm801 = vmand %vm792, %vm797
        %vm802 = vmand %vm793, %vm798
        %v803 = vsel %vm799, 1, 0
        %v804 = vsel %vm800, 1, 0
        %v805 = vsel %vm801, 1, 0
        %v806 = vsel %vm802, 1, 0
        %v807 = vcvt.s32.f32 %v803
        %v808 = vcvt.s32.f32 %v804
        %v809 = vcvt.s32.f32 %v805
        %v810 = vcvt.s32.f32 %v806
        %v811 = vadd.f32 %v807, 0.0
        %v812 = vadd.f32 %v808, 0.0
        %v813 = vadd.f32 %v809, 0.0
        %v814 = vadd.f32 %v810, 0.0
        %vm815 = vcmp.ge.s32.totalorder %v779, 16
        %vm816 = vcmp.ge.s32.totalorder %v780, 16
        %vm817 = vcmp.ge.s32.totalorder %v783, 16
        %vm818 = vcmp.ge.s32.totalorder %v784, 16
        %s819 = sadd.s32 %s787, 16
        %v820 = vstv %s819
        %vm821 = vcmp.lt.s32.totalorder %v779, %v820
        %vm822 = vcmp.lt.s32.totalorder %v780, %v820
        %vm823 = vcmp.lt.s32.totalorder %v783, %v820
        %vm824 = vcmp.lt.s32.totalorder %v784, %v820
        %vm825 = vmand %vm815, %vm821
        %vm826 = vmand %vm816, %vm822
        %vm827 = vmand %vm817, %vm823
        %vm828 = vmand %vm818, %vm824
        %v829 = vsel %vm825, 1, 0
        %v830 = vsel %vm826, 1, 0
        %v831 = vsel %vm827, 1, 0
        %v832 = vsel %vm828, 1, 0
        %v833 = vcvt.s32.f32 %v829
        %v834 = vcvt.s32.f32 %v830
        %v835 = vcvt.s32.f32 %v831
        %v836 = vcvt.s32.f32 %v832
        %v837 = vadd.f32 %v811, %v833
        %v838 = vadd.f32 %v812, %v834
        %v839 = vadd.f32 %v813, %v835
        %v840 = vadd.f32 %v814, %v836
        %vm841 = vcmp.gt.s32.totalorder %v782, %v779
        %vm842 = vcmp.gt.s32.totalorder %v782, %v780
        %vm843 = vcmp.ge.s32.totalorder %v782, %v794
        %v844 = vsel %vm843, 1, 0
        %vm845 = vcmp.eq.s32.totalorder %v844, 1
        %vm846 = vmor %vm841, %vm845
        %vm847 = vmor %vm842, %vm845
        %v848 = vsel %vm846, -1e+09, 0.0
        %v849 = vsel %vm847, -1e+09, 0.0
        %v850 = vstv %s787
        %vm851 = vcmp.ge.s32.totalorder %v782, %v850
        %v852 = vsel %vm851, 1, 0
        %vm853 = vcmp.eq.s32.totalorder %v852, 1
        %vm854 = vmor %vm841, %vm853
        %vm855 = vmor %vm842, %vm853
        %v856 = vsel %vm854, -1e+09, 0.0
        %v857 = vsel %vm855, -1e+09, 0.0
        %v858 = vstv %s788
        %vm859 = vcmp.ge.s32.totalorder %v782, %v858
        %v860 = vsel %vm859, -1e+09, 0.0
        %v861 = vstv %s789
        %vm862 = vcmp.ge.s32.totalorder %v782, %v861
        %v863 = vsel %vm862, -1e+09, 0.0
        %v864 = vld [vmem:[%s760] sm:$0xf]
        %v865 = vld [vmem:[%s760 + $0x4] sm:$0xf]
        %v866 = vld [vmem:[%s760 + $0x8] sm:$0xf]
        %v867 = vld [vmem:[%s760 + $0xc] sm:$0xf]
        %v868 = vunpack.c.l.bf16 %v864
        %v869 = vunpack.c.l.bf16 %v865
        %v870 = vunpack.c.l.bf16 %v866
        %v871 = vunpack.c.l.bf16 %v867
        %v872 = vld [vmem:[%s4] sm:$0xf]
        %v873 = vld [vmem:[%s4 + $0x4] sm:$0xf]
        %v874 = vld [vmem:[%s4 + $0x8] sm:$0xf]
        %v875 = vld [vmem:[%s4 + $0xc] sm:$0xf]
        %v876 = vld [vmem:[%s5] sm:$0x1]
        %v878 = vperm.slane %v876, 0
        %v884 = vunpack.c.l.b16 %v864
        %v885 = vunpack.c.l.b16 %v865
        %v886 = vunpack.c.l.b16 %v866
        %v887 = vunpack.c.l.b16 %v867
        %v888 = vpack.c.b16 %v885, %v884
        %v889 = vpack.c.b16 %v887, %v886
        %v894 = vunpack.c.l.b16 %v872
        %v895 = vunpack.c.l.b16 %v873
        %v896 = vunpack.c.l.b16 %v874
        %v897 = vunpack.c.l.b16 %v875
        %v898 = vpack.c.b16 %v895, %v894
        %v899 = vpack.c.b16 %v897, %v896
        %vm902 = vcmask 261120
        %v904 = vsel %vm902, %v888, 0
        %v907 = vsel %vm902, %v889, 0
        %909 = vmatpush.bf16.msra.mxu0 0
        %910 = vmatpush.bf16.msra.mxu0 0
        %911 = vmatpush.bf16.msra.mxu0 0
        %912 = vmatpush.bf16.msra.mxu0 0
        %913 = vmatpush.bf16.msra.mxu0 0
        %914 = vmatpush.bf16.msra.mxu0 0
        %915 = vmatpush.bf16.msra.mxu0 %v899
        %916 = vmatpush.bf16.msra.mxu0 %v898
        %917 = vmatmul.bf16.gmra.mxu0 %v904
        %v918 = vpop.f32.mrf.mxu0
        %v919 = vadd.f32 %v878, %v918
        %v920 = vpop.f32.mrf.mxu0
        %v921 = vadd.f32 %v878, %v920
        %922 = vmatmul.bf16.gmra.mxu0 %v907
        %v923 = vpop.f32.mrf.mxu0
        %v924 = vadd.f32 %v878, %v923
        %v925 = vpop.f32.mrf.mxu0
        %v926 = vadd.f32 %v878, %v925
        %927 = vdwg.mxu0
        %v928 = vpack.c.bf16 %v919, %v919
        %v929 = vpack.c.bf16 %v921, %v921
        %v932 = vunpack.c.l.b16 %v928
        %v933 = vunpack.c.l.b16 %v929
        %v934 = vpack.c.b16 %v933, %v932
        %935 = vrot.lane.b32.xlu0 %v934, 96
        %v936 = vpop.permute.xlu0 %935
        %vm937 = vcmask 130048
        %v939 = vsel %vm937, %v934, 0
        %v942 = vsel %vm937, %v936, 0
        %944 = vmatpush.bf16.xpose.msra.mxu0 0
        %945 = vmatpush.bf16.xpose.msra.mxu0 0
        %946 = vmatpush.bf16.xpose.msra.mxu0 0
        %947 = vmatpush.bf16.xpose.msra.mxu0 0
        %948 = vmatpush.bf16.xpose.msra.mxu0 0
        %949 = vmatpush.bf16.xpose.msra.mxu0 0
        %950 = vmatpush.bf16.xpose.msra.mxu0 0
        %951 = vmatpush.bf16.xpose.msra.mxu0 %v942
        %952 = vmatmul.bf16.gmra.mxu0 %v939
        %v953 = vpop.f32.mrf.mxu0
        %v954 = vadd.f32 0.0, %v953
        %v955 = vpop.f32.mrf.mxu0
        %v956 = vadd.f32 0.0, %v955
        %957 = vdwg.mxu0
        %v958 = vmul.f32 %v954, 0.25
        %v959 = vmul.f32 %v956, 0.25
        %v960 = vadd.f32 %v958, %v848
        %v961 = vadd.f32 %v959, %v849
        %v962 = vsel %vm937, %v960, -inf
        %963 = vmax.xlane.f32.xlu0 %v962
        %v964 = vpop.xlane.xlu0 %963
        %v965 = vsel %vm937, %v961, -inf
        %966 = vmax.xlane.f32.xlu0 %v965
        %v967 = vpop.xlane.xlu0 %966
        %v968 = vsub.f32 %v960, %v964
        %v969 = vsub.f32 %v961, %v967
        %v970 = vmul.f32 %v968, 1.442695
        %v971 = vpow.pop %v970
        %v972 = vmul.f32 %v969, 1.442695
        %v973 = vpow.pop %v972
        %v974 = vsel %vm937, %v971, 0.0
        %975 = vadd.xlane.f32.xlu0 %v974
        %v976 = vpop.xlane.xlu0 %975
        %v977 = vsel %vm937, %v973, 0.0
        %978 = vadd.xlane.f32.xlu0 %v977
        %v979 = vpop.xlane.xlu0 %978
        %v980 = vrcp.pop %v976
        %v981 = vrcp.pop %v979
        %v982 = vmul.f32 %v971, %v980
        %v983 = vmul.f32 %v973, %v981
        %v984 = vpack.c.bf16 %v983, %v982
        %985 = vrot.lane.b32.xlu0 %v934, 64
        %v986 = vpop.permute.xlu0 %985
        %v989 = vsel %vm937, %v984, 0
        %991 = vmatpush.bf16.msra.mxu0 0
        %992 = vmatpush.bf16.msra.mxu0 0
        %993 = vmatpush.bf16.msra.mxu0 0
        %994 = vmatpush.bf16.msra.mxu0 0
        %995 = vmatpush.bf16.msra.mxu0 0
        %996 = vmatpush.bf16.msra.mxu0 0
        %997 = vmatpush.bf16.msra.mxu0 0
        %998 = vmatpush.bf16.msra.mxu0 %v986
        %999 = vmatmul.bf16.gmra.mxu0 %v989
        %v1000 = vpop.f32.mrf.mxu0
        %v1001 = vadd.f32 0.0, %v1000
        %v1002 = vpop.f32.mrf.mxu0
        %v1003 = vadd.f32 0.0, %v1002
        %1004 = vdwg.mxu0
        %v1005 = vpack.c.bf16 %v1001, %v1001
        %v1006 = vpack.c.bf16 %v1003, %v1003
        %vm1007 = vcmask 125952
        %1008 = vst.msk [vmem:[#allocation2] sm:$0xf] %vm1007, %v1005
        %1009 = vst.msk [vmem:[#allocation2 + $0x4] sm:$0xf] %vm1007, %v1006
        %1010 = vrot.lane.b32.xlu0 %v934, 112
        %v1011 = vpop.permute.xlu0 %1010
        %1012 = vrot.lane.b32.xlu0 %v934, 80
        %v1013 = vpop.permute.xlu0 %1012
        %v1015 = vsel %vm937, %v1011, 0
        %v1018 = vsel %vm937, %v1013, 0
        %1020 = vmatpush.bf16.xpose.msra.mxu0 0
        %1021 = vmatpush.bf16.xpose.msra.mxu0 0
        %1022 = vmatpush.bf16.xpose.msra.mxu0 0
        %1023 = vmatpush.bf16.xpose.msra.mxu0 0
        %1024 = vmatpush.bf16.xpose.msra.mxu0 0
        %1025 = vmatpush.bf16.xpose.msra.mxu0 0
        %1026 = vmatpush.bf16.xpose.msra.mxu0 0
        %1027 = vmatpush.bf16.xpose.msra.mxu0 %v1018
        %1028 = vmatmul.bf16.gmra.mxu0 %v1015
        %v1029 = vpop.f32.mrf.mxu0
        %v1030 = vadd.f32 0.0, %v1029
        %v1031 = vpop.f32.mrf.mxu0
        %v1032 = vadd.f32 0.0, %v1031
        %1033 = vdwg.mxu0
        %v1034 = vmul.f32 %v1030, 0.25
        %v1035 = vmul.f32 %v1032, 0.25
        %v1036 = vadd.f32 %v1034, %v848
        %v1037 = vadd.f32 %v1035, %v849
        %v1038 = vsel %vm937, %v1036, -inf
        %1039 = vmax.xlane.f32.xlu0 %v1038
        %v1040 = vpop.xlane.xlu0 %1039
        %v1041 = vsel %vm937, %v1037, -inf
        %1042 = vmax.xlane.f32.xlu0 %v1041
        %v1043 = vpop.xlane.xlu0 %1042
        %v1044 = vsub.f32 %v1036, %v1040
        %v1045 = vsub.f32 %v1037, %v1043
        %v1046 = vmul.f32 %v1044, 1.442695
        %v1047 = vpow.pop %v1046
        %v1048 = vmul.f32 %v1045, 1.442695
        %v1049 = vpow.pop %v1048
        %v1050 = vsel %vm937, %v1047, 0.0
        %1051 = vadd.xlane.f32.xlu0 %v1050
        %v1052 = vpop.xlane.xlu0 %1051
        %v1053 = vsel %vm937, %v1049, 0.0
        %1054 = vadd.xlane.f32.xlu0 %v1053
        %v1055 = vpop.xlane.xlu0 %1054
        %v1056 = vrcp.pop %v1052
        %v1057 = vrcp.pop %v1055
        %v1058 = vmul.f32 %v1047, %v1056
        %v1059 = vmul.f32 %v1049, %v1057
        %v1060 = vpack.c.bf16 %v1059, %v1058
        %1061 = vrot.lane.b32.xlu0 %v934, 48
        %v1062 = vpop.permute.xlu0 %1061
        %v1065 = vsel %vm937, %v1060, 0
        %1067 = vmatpush.bf16.msra.mxu0 0
        %1068 = vmatpush.bf16.msra.mxu0 0
        %1069 = vmatpush.bf16.msra.mxu0 0
        %1070 = vmatpush.bf16.msra.mxu0 0
        %1071 = vmatpush.bf16.msra.mxu0 0
        %1072 = vmatpush.bf16.msra.mxu0 0
        %1073 = vmatpush.bf16.msra.mxu0 0
        %1074 = vmatpush.bf16.msra.mxu0 %v1062
        %1075 = vmatmul.bf16.gmra.mxu0 %v1065
        %v1076 = vpop.f32.mrf.mxu0
        %v1077 = vadd.f32 0.0, %v1076
        %v1078 = vpop.f32.mrf.mxu0
        %v1079 = vadd.f32 0.0, %v1078
        %1080 = vdwg.mxu0
        %v1081 = vpack.c.bf16 %v1077, %v1077
        %v1082 = vpack.c.bf16 %v1079, %v1079
        %1085 = vrot.lane.b32.xlu0 %v1081, 16
        %v1086 = vpop.permute.xlu0 %1085
        %1087 = vrot.lane.b32.xlu0 %v1082, 16
        %v1088 = vpop.permute.xlu0 %1087
        %vm1091 = vcmask 257152
        %1092 = vst.msk [vmem:[#allocation2] sm:$0xf] %vm1091, %v1086
        %1093 = vst.msk [vmem:[#allocation2 + $0x4] sm:$0xf] %vm1091, %v1088
        %v1094 = vpack.c.bf16 %v924, %v924
        %v1095 = vpack.c.bf16 %v926, %v926
        %v1098 = vunpack.c.l.b16 %v1094
        %v1099 = vunpack.c.l.b16 %v1095
        %v1100 = vpack.c.b16 %v1099, %v1098
        %1101 = vrot.lane.b32.xlu0 %v1100, 96
        %v1102 = vpop.permute.xlu0 %1101
        %v1104 = vsel %vm937, %v1100, 0
        %v1107 = vsel %vm937, %v1102, 0
        %1109 = vmatpush.bf16.xpose.msra.mxu0 0
        %1110 = vmatpush.bf16.xpose.msra.mxu0 0
        %1111 = vmatpush.bf16.xpose.msra.mxu0 0
        %1112 = vmatpush.bf16.xpose.msra.mxu0 0
        %1113 = vmatpush.bf16.xpose.msra.mxu0 0
        %1114 = vmatpush.bf16.xpose.msra.mxu0 0
        %1115 = vmatpush.bf16.xpose.msra.mxu0 0
        %1116 = vmatpush.bf16.xpose.msra.mxu0 %v1107
        %1117 = vmatmul.bf16.gmra.mxu0 %v1104
        %v1118 = vpop.f32.mrf.mxu0
        %v1119 = vadd.f32 0.0, %v1118
        %v1120 = vpop.f32.mrf.mxu0
        %v1121 = vadd.f32 0.0, %v1120
        %1122 = vdwg.mxu0
        %v1123 = vmul.f32 %v1119, 0.25
        %v1124 = vmul.f32 %v1121, 0.25
        %v1125 = vadd.f32 %v1123, %v856
        %v1126 = vadd.f32 %v1124, %v857
        %v1127 = vsel %vm937, %v1125, -inf
        %1128 = vmax.xlane.f32.xlu0 %v1127
        %v1129 = vpop.xlane.xlu0 %1128
        %v1130 = vsel %vm937, %v1126, -inf
        %1131 = vmax.xlane.f32.xlu0 %v1130
        %v1132 = vpop.xlane.xlu0 %1131
        %v1133 = vsub.f32 %v1125, %v1129
        %v1134 = vsub.f32 %v1126, %v1132
        %v1135 = vmul.f32 %v1133, 1.442695
        %v1136 = vpow.pop %v1135
        %v1137 = vmul.f32 %v1134, 1.442695
        %v1138 = vpow.pop %v1137
        %v1139 = vsel %vm937, %v1136, 0.0
        %1140 = vadd.xlane.f32.xlu0 %v1139
        %v1141 = vpop.xlane.xlu0 %1140
        %v1142 = vsel %vm937, %v1138, 0.0
        %1143 = vadd.xlane.f32.xlu0 %v1142
        %v1144 = vpop.xlane.xlu0 %1143
        %v1145 = vrcp.pop %v1141
        %v1146 = vrcp.pop %v1144
        %v1147 = vmul.f32 %v1136, %v1145
        %v1148 = vmul.f32 %v1138, %v1146
        %v1149 = vpack.c.bf16 %v1148, %v1147
        %1150 = vrot.lane.b32.xlu0 %v1100, 64
        %v1151 = vpop.permute.xlu0 %1150
        %v1154 = vsel %vm937, %v1149, 0
        %1156 = vmatpush.bf16.msra.mxu0 0
        %1157 = vmatpush.bf16.msra.mxu0 0
        %1158 = vmatpush.bf16.msra.mxu0 0
        %1159 = vmatpush.bf16.msra.mxu0 0
        %1160 = vmatpush.bf16.msra.mxu0 0
        %1161 = vmatpush.bf16.msra.mxu0 0
        %1162 = vmatpush.bf16.msra.mxu0 0
        %1163 = vmatpush.bf16.msra.mxu0 %v1151
        %1164 = vmatmul.bf16.gmra.mxu0 %v1154
        %v1165 = vpop.f32.mrf.mxu0
        %v1166 = vadd.f32 0.0, %v1165
        %v1167 = vpop.f32.mrf.mxu0
        %v1168 = vadd.f32 0.0, %v1167
        %1169 = vdwg.mxu0
        %v1170 = vpack.c.bf16 %v1166, %v1166
        %v1171 = vpack.c.bf16 %v1168, %v1168
        %1172 = vst.msk [vmem:[#allocation2 + $0x8] sm:$0xf] %vm1007, %v1170
        %1173 = vst.msk [vmem:[#allocation2 + $0xc] sm:$0xf] %vm1007, %v1171
        %1174 = vrot.lane.b32.xlu0 %v1100, 112
        %v1175 = vpop.permute.xlu0 %1174
        %1176 = vrot.lane.b32.xlu0 %v1100, 80
        %v1177 = vpop.permute.xlu0 %1176
        %v1179 = vsel %vm937, %v1175, 0
        %v1182 = vsel %vm937, %v1177, 0
        %1184 = vmatpush.bf16.xpose.msra.mxu0 0
        %1185 = vmatpush.bf16.xpose.msra.mxu0 0
        %1186 = vmatpush.bf16.xpose.msra.mxu0 0
        %1187 = vmatpush.bf16.xpose.msra.mxu0 0
        %1188 = vmatpush.bf16.xpose.msra.mxu0 0
        %1189 = vmatpush.bf16.xpose.msra.mxu0 0
        %1190 = vmatpush.bf16.xpose.msra.mxu0 0
        %1191 = vmatpush.bf16.xpose.msra.mxu0 %v1182
        %1192 = vmatmul.bf16.gmra.mxu0 %v1179
        %v1193 = vpop.f32.mrf.mxu0
        %v1194 = vadd.f32 0.0, %v1193
        %v1195 = vpop.f32.mrf.mxu0
        %v1196 = vadd.f32 0.0, %v1195
        %1197 = vdwg.mxu0
        %v1198 = vmul.f32 %v1194, 0.25
        %v1199 = vmul.f32 %v1196, 0.25
        %v1200 = vadd.f32 %v1198, %v856
        %v1201 = vadd.f32 %v1199, %v857
        %v1202 = vsel %vm937, %v1200, -inf
        %1203 = vmax.xlane.f32.xlu0 %v1202
        %v1204 = vpop.xlane.xlu0 %1203
        %v1205 = vsel %vm937, %v1201, -inf
        %1206 = vmax.xlane.f32.xlu0 %v1205
        %v1207 = vpop.xlane.xlu0 %1206
        %v1208 = vsub.f32 %v1200, %v1204
        %v1209 = vsub.f32 %v1201, %v1207
        %v1210 = vmul.f32 %v1208, 1.442695
        %v1211 = vpow.pop %v1210
        %v1212 = vmul.f32 %v1209, 1.442695
        %v1213 = vpow.pop %v1212
        %v1214 = vsel %vm937, %v1211, 0.0
        %1215 = vadd.xlane.f32.xlu0 %v1214
        %v1216 = vpop.xlane.xlu0 %1215
        %v1217 = vsel %vm937, %v1213, 0.0
        %1218 = vadd.xlane.f32.xlu0 %v1217
        %v1219 = vpop.xlane.xlu0 %1218
        %v1220 = vrcp.pop %v1216
        %v1221 = vrcp.pop %v1219
        %v1222 = vmul.f32 %v1211, %v1220
        %v1223 = vmul.f32 %v1213, %v1221
        %v1224 = vpack.c.bf16 %v1223, %v1222
        %1225 = vrot.lane.b32.xlu0 %v1100, 48
        %v1226 = vpop.permute.xlu0 %1225
        %v1229 = vsel %vm937, %v1224, 0
        %1231 = vmatpush.bf16.msra.mxu0 0
        %1232 = vmatpush.bf16.msra.mxu0 0
        %1233 = vmatpush.bf16.msra.mxu0 0
        %1234 = vmatpush.bf16.msra.mxu0 0
        %1235 = vmatpush.bf16.msra.mxu0 0
        %1236 = vmatpush.bf16.msra.mxu0 0
        %1237 = vmatpush.bf16.msra.mxu0 0
        %1238 = vmatpush.bf16.msra.mxu0 %v1226
        %1239 = vmatmul.bf16.gmra.mxu0 %v1229
        %v1240 = vpop.f32.mrf.mxu0
        %v1241 = vadd.f32 0.0, %v1240
        %v1242 = vpop.f32.mrf.mxu0
        %v1243 = vadd.f32 0.0, %v1242
        %1244 = vdwg.mxu0
        %v1245 = vpack.c.bf16 %v1241, %v1241
        %v1246 = vpack.c.bf16 %v1243, %v1243
        %1249 = vrot.lane.b32.xlu0 %v1245, 16
        %v1250 = vpop.permute.xlu0 %1249
        %1251 = vrot.lane.b32.xlu0 %v1246, 16
        %v1252 = vpop.permute.xlu0 %1251
        %1255 = vst.msk [vmem:[#allocation2 + $0x8] sm:$0xf] %vm1091, %v1250
        %1256 = vst.msk [vmem:[#allocation2 + $0xc] sm:$0xf] %vm1091, %v1252
        %v1257 = vld [vmem:[#allocation2] sm:$0xf]
        %v1258 = vld [vmem:[#allocation2 + $0x4] sm:$0xf]
        %v1259 = vld [vmem:[#allocation2 + $0x8] sm:$0xf]
        %v1260 = vld [vmem:[#allocation2 + $0xc] sm:$0xf]
        %v1261 = vld [vmem:[%s6] sm:$0xf]
        %v1262 = vld [vmem:[%s6 + $0x4] sm:$0xf]
        %v1263 = vld [vmem:[%s6 + $0x8] sm:$0xf]
        %v1264 = vld [vmem:[%s6 + $0xc] sm:$0xf]
        %v1265 = vld [vmem:[%s7] sm:$0x1]
        %v1267 = vperm.slane %v1265, 0
        %v1273 = vunpack.c.l.b16 %v1257
        %v1274 = vunpack.c.l.b16 %v1258
        %v1275 = vunpack.c.l.b16 %v1259
        %v1276 = vunpack.c.l.b16 %v1260
        %v1277 = vpack.c.b16 %v1274, %v1273
        %v1278 = vpack.c.b16 %v1276, %v1275
        %v1283 = vunpack.c.l.b16 %v1261
        %v1284 = vunpack.c.l.b16 %v1262
        %v1285 = vunpack.c.l.b16 %v1263
        %v1286 = vunpack.c.l.b16 %v1264
        %v1287 = vpack.c.b16 %v1284, %v1283
        %v1288 = vpack.c.b16 %v1286, %v1285
        %v1292 = vsel %vm902, %v1277, 0
        %v1295 = vsel %vm902, %v1278, 0
        %1297 = vmatpush.bf16.msra.mxu0 0
        %1298 = vmatpush.bf16.msra.mxu0 0
        %1299 = vmatpush.bf16.msra.mxu0 0
        %1300 = vmatpush.bf16.msra.mxu0 0
        %1301 = vmatpush.bf16.msra.mxu0 0
        %1302 = vmatpush.bf16.msra.mxu0 0
        %1303 = vmatpush.bf16.msra.mxu0 %v1288
        %1304 = vmatpush.bf16.msra.mxu0 %v1287
        %1305 = vmatmul.bf16.gmra.mxu0 %v1292
        %v1306 = vpop.f32.mrf.mxu0
        %v1307 = vadd.f32 %v1267, %v1306
        %v1308 = vpop.f32.mrf.mxu0
        %v1309 = vadd.f32 %v1267, %v1308
        %1310 = vmatmul.bf16.gmra.mxu0 %v1295
        %v1311 = vpop.f32.mrf.mxu0
        %v1312 = vadd.f32 %v1267, %v1311
        %v1313 = vpop.f32.mrf.mxu0
        %v1314 = vadd.f32 %v1267, %v1313
        %1315 = vdwg.mxu0
        %v1316 = vadd.f32 %v1307, %v868
        %v1317 = vadd.f32 %v1309, %v869
        %v1318 = vadd.f32 %v1312, %v870
        %v1319 = vadd.f32 %v1314, %v871
        %v1320 = vld [vmem:[%s8] sm:$0x1]
        %v1321 = vld [vmem:[%s9] sm:$0x1]
        %v1322 = vsel %vm902, %v1316, 0.0
        %1323 = vadd.xlane.f32.xlu0 %v1322
        %v1324 = vpop.xlane.xlu0 %1323
        %v1325 = vsel %vm902, %v1317, 0.0
        %1326 = vadd.xlane.f32.xlu0 %v1325
        %v1327 = vpop.xlane.xlu0 %1326
        %v1328 = vsel %vm902, %v1318, 0.0
        %1329 = vadd.xlane.f32.xlu0 %v1328
        %v1330 = vpop.xlane.xlu0 %1329
        %v1331 = vsel %vm902, %v1319, 0.0
        %1332 = vadd.xlane.f32.xlu0 %v1331
        %v1333 = vpop.xlane.xlu0 %1332
        %v1334 = vmul.f32 %v1324, 0.03125
        %v1335 = vmul.f32 %v1327, 0.03125
        %v1336 = vmul.f32 %v1330, 0.03125
        %v1337 = vmul.f32 %v1333, 0.03125
        %v1338 = vmul.f32 %v1316, %v1316
        %v1339 = vmul.f32 %v1317, %v1317
        %v1340 = vmul.f32 %v1318, %v1318
        %v1341 = vmul.f32 %v1319, %v1319
        %v1342 = vsel %vm902, %v1338, 0.0
        %1343 = vadd.xlane.f32.xlu0 %v1342
        %v1344 = vpop.xlane.xlu0 %1343
        %v1345 = vsel %vm902, %v1339, 0.0
        %1346 = vadd.xlane.f32.xlu0 %v1345
        %v1347 = vpop.xlane.xlu0 %1346
        %v1348 = vsel %vm902, %v1340, 0.0
        %1349 = vadd.xlane.f32.xlu0 %v1348
        %v1350 = vpop.xlane.xlu0 %1349
        %v1351 = vsel %vm902, %v1341, 0.0
        %1352 = vadd.xlane.f32.xlu0 %v1351
        %v1353 = vpop.xlane.xlu0 %1352
        %v1354 = vmul.f32 %v1344, 0.03125
        %v1355 = vmul.f32 %v1347, 0.03125
        %v1356 = vmul.f32 %v1350, 0.03125
        %v1357 = vmul.f32 %v1353, 0.03125
        %v1358 = vmul.f32 %v1334, %v1334
        %v1359 = vmul.f32 %v1335, %v1335
        %v1360 = vmul.f32 %v1336, %v1336
        %v1361 = vmul.f32 %v1337, %v1337
        %v1362 = vsub.f32 %v1354, %v1358
        %v1363 = vsub.f32 %v1355, %v1359
        %v1364 = vsub.f32 %v1356, %v1360
        %v1365 = vsub.f32 %v1357, %v1361
        %v1366 = vsub.f32 %v1316, %v1334
        %v1367 = vsub.f32 %v1317, %v1335
        %v1368 = vsub.f32 %v1318, %v1336
        %v1369 = vsub.f32 %v1319, %v1337
        %v1370 = vadd.f32 %v1362, 1e-05
        %v1371 = vadd.f32 %v1363, 1e-05
        %v1372 = vadd.f32 %v1364, 1e-05
        %v1373 = vadd.f32 %v1365, 1e-05
        %v1374 = vrsqrt.pop %v1370
        %v1375 = vmul.f32 %v1374, %v1370
        %v1376 = vmul.f32 %v1375, %v1374
        %v1377 = vmul.f32 0.5, %v1376
        %v1378 = vsub.f32 1.5, %v1377
        %v1379 = vmul.f32 %v1374, %v1378
        %vm1380 = vweird.f32 %v1370
        %vm1381 = vweird.f32 %v1374
        %vm1382 = vmor %vm1380, %vm1381
        %v1383 = vsel %vm1382, %v1374, %v1379
        %v1384 = vrsqrt.pop %v1371
        %v1385 = vmul.f32 %v1384, %v1371
        %v1386 = vmul.f32 %v1385, %v1384
        %v1387 = vmul.f32 0.5, %v1386
        %v1388 = vsub.f32 1.5, %v1387
        %v1389 = vmul.f32 %v1384, %v1388
        %vm1390 = vweird.f32 %v1371
        %vm1391 = vweird.f32 %v1384
        %vm1392 = vmor %vm1390, %vm1391
        %v1393 = vsel %vm1392, %v1384, %v1389
        %v1394 = vrsqrt.pop %v1372
        %v1395 = vmul.f32 %v1394, %v1372
        %v1396 = vmul.f32 %v1395, %v1394
        %v1397 = vmul.f32 0.5, %v1396
        %v1398 = vsub.f32 1.5, %v1397
        %v1399 = vmul.f32 %v1394, %v1398
        %vm1400 = vweird.f32 %v1372
        %vm1401 = vweird.f32 %v1394
        %vm1402 = vmor %vm1400, %vm1401
        %v1403 = vsel %vm1402, %v1394, %v1399
        %v1404 = vrsqrt.pop %v1373
        %v1405 = vmul.f32 %v1404, %v1373
        %v1406 = vmul.f32 %v1405, %v1404
        %v1407 = vmul.f32 0.5, %v1406
        %v1408 = vsub.f32 1.5, %v1407
        %v1409 = vmul.f32 %v1404, %v1408
        %vm1410 = vweird.f32 %v1373
        %vm1411 = vweird.f32 %v1404
        %vm1412 = vmor %vm1410, %vm1411
        %v1413 = vsel %vm1412, %v1404, %v1409
        %v1414 = vmul.f32 %v1366, %v1383
        %v1415 = vmul.f32 %v1367, %v1393
        %v1416 = vmul.f32 %v1368, %v1403
        %v1417 = vmul.f32 %v1369, %v1413
        %v1419 = vperm.slane %v1320, 0
        %v1421 = vmul.f32 %v1414, %v1419
        %v1422 = vmul.f32 %v1415, %v1419
        %v1423 = vmul.f32 %v1416, %v1419
        %v1424 = vmul.f32 %v1417, %v1419
        %v1426 = vperm.slane %v1321, 0
        %v1428 = vadd.f32 %v1421, %v1426
        %v1429 = vadd.f32 %v1422, %v1426
        %v1430 = vadd.f32 %v1423, %v1426
        %v1431 = vadd.f32 %v1424, %v1426
        %v1432 = vmul.f32 %v1428, %v837
        %v1433 = vmul.f32 %v1429, %v838
        %v1434 = vmul.f32 %v1430, %v839
        %v1435 = vmul.f32 %v1431, %v840
        %v1436 = vld [vmem:[%s767] sm:$0xf]
        %v1437 = vld [vmem:[%s767 + $0x4] sm:$0xf]
        %v1438 = vld [vmem:[%s767 + $0x8] sm:$0xf]
        %v1439 = vld [vmem:[%s767 + $0xc] sm:$0xf]
        %v1440 = vpack.c.bf16 %v1433, %v1432
        %v1441 = vpack.c.bf16 %v1435, %v1434
        %v1442 = vld [vmem:[%s10] sm:$0xf]
        %v1443 = vld [vmem:[%s10 + $0x4] sm:$0xf]
        %v1444 = vld [vmem:[%s10 + $0x8] sm:$0xf]
        %v1445 = vld [vmem:[%s10 + $0xc] sm:$0xf]
        %v1446 = vld [vmem:[%s11] sm:$0x1]
        %v1448 = vperm.slane %v1446, 0
        %v1454 = vunpack.c.l.b16 %v1442
        %v1455 = vunpack.c.l.b16 %v1443
        %v1456 = vunpack.c.l.b16 %v1444
        %v1457 = vunpack.c.l.b16 %v1445
        %v1458 = vpack.c.b16 %v1455, %v1454
        %v1459 = vpack.c.b16 %v1457, %v1456
        %v1463 = vsel %vm902, %v1440, 0
        %v1466 = vsel %vm902, %v1441, 0
        %1468 = vmatpush.bf16.msra.mxu0 0
        %1469 = vmatpush.bf16.msra.mxu0 0
        %1470 = vmatpush.bf16.msra.mxu0 0
        %1471 = vmatpush.bf16.msra.mxu0 0
        %1472 = vmatpush.bf16.msra.mxu0 0
        %1473 = vmatpush.bf16.msra.mxu0 0
        %1474 = vmatpush.bf16.msra.mxu0 %v1459
        %1475 = vmatpush.bf16.msra.mxu0 %v1458
        %1476 = vmatmul.bf16.gmra.mxu0 %v1463
        %v1477 = vpop.f32.mrf.mxu0
        %v1478 = vadd.f32 %v1448, %v1477
        %v1479 = vpop.f32.mrf.mxu0
        %v1480 = vadd.f32 %v1448, %v1479
        %1481 = vmatmul.bf16.gmra.mxu0 %v1466
        %v1482 = vpop.f32.mrf.mxu0
        %v1483 = vadd.f32 %v1448, %v1482
        %v1484 = vpop.f32.mrf.mxu0
        %v1485 = vadd.f32 %v1448, %v1484
        %1486 = vdwg.mxu0
        %v1487 = vld [vmem:[%s12] sm:$0xf]
        %v1488 = vld [vmem:[%s12 + $0x4] sm:$0xf]
        %v1489 = vld [vmem:[%s12 + $0x8] sm:$0xf]
        %v1490 = vld [vmem:[%s12 + $0xc] sm:$0xf]
        %v1491 = vld [vmem:[%s13] sm:$0x1]
        %v1493 = vperm.slane %v1491, 0
        %v1499 = vunpack.c.l.b16 %v1436
        %v1500 = vunpack.c.l.b16 %v1437
        %v1501 = vunpack.c.l.b16 %v1438
        %v1502 = vunpack.c.l.b16 %v1439
        %v1503 = vpack.c.b16 %v1500, %v1499
        %v1504 = vpack.c.b16 %v1502, %v1501
        %v1509 = vunpack.c.l.b16 %v1487
        %v1510 = vunpack.c.l.b16 %v1488
        %v1511 = vunpack.c.l.b16 %v1489
        %v1512 = vunpack.c.l.b16 %v1490
        %v1513 = vpack.c.b16 %v1510, %v1509
        %v1514 = vpack.c.b16 %v1512, %v1511
        %v1518 = vsel %vm902, %v1503, 0
        %v1521 = vsel %vm902, %v1504, 0
        %1523 = vmatpush.bf16.msra.mxu0 0
        %1524 = vmatpush.bf16.msra.mxu0 0
        %1525 = vmatpush.bf16.msra.mxu0 0
        %1526 = vmatpush.bf16.msra.mxu0 0
        %1527 = vmatpush.bf16.msra.mxu0 0
        %1528 = vmatpush.bf16.msra.mxu0 0
        %1529 = vmatpush.bf16.msra.mxu0 %v1514
        %1530 = vmatpush.bf16.msra.mxu0 %v1513
        %1531 = vmatmul.bf16.gmra.mxu0 %v1518
        %v1532 = vpop.f32.mrf.mxu0
        %v1533 = vadd.f32 %v1493, %v1532
        %v1534 = vpop.f32.mrf.mxu0
        %v1535 = vadd.f32 %v1493, %v1534
        %1536 = vmatmul.bf16.gmra.mxu0 %v1521
        %v1537 = vpop.f32.mrf.mxu0
        %v1538 = vadd.f32 %v1493, %v1537
        %v1539 = vpop.f32.mrf.mxu0
        %v1540 = vadd.f32 %v1493, %v1539
        %1541 = vdwg.mxu0
        %v1542 = vpack.c.bf16 %v1478, %v1478
        %v1543 = vpack.c.bf16 %v1480, %v1480
        %v1544 = vpack.c.bf16 %v1533, %v1533
        %v1545 = vpack.c.bf16 %v1535, %v1535
        %v1548 = vunpack.c.l.b16 %v1542
        %v1549 = vunpack.c.l.b16 %v1543
        %v1550 = vpack.c.b16 %v1549, %v1548
        %v1553 = vunpack.c.l.b16 %v1544
        %v1554 = vunpack.c.l.b16 %v1545
        %v1555 = vpack.c.b16 %v1554, %v1553
        %v1557 = vsel %vm937, %v1550, 0
        %v1560 = vsel %vm937, %v1555, 0
        %1562 = vmatpush.bf16.xpose.msra.mxu0 0
        %1563 = vmatpush.bf16.xpose.msra.mxu0 0
        %1564 = vmatpush.bf16.xpose.msra.mxu0 0
        %1565 = vmatpush.bf16.xpose.msra.mxu0 0
        %1566 = vmatpush.bf16.xpose.msra.mxu0 0
        %1567 = vmatpush.bf16.xpose.msra.mxu0 0
        %1568 = vmatpush.bf16.xpose.msra.mxu0 0
        %1569 = vmatpush.bf16.xpose.msra.mxu0 %v1560
        %1570 = vmatmul.bf16.gmra.mxu0 %v1557
        %v1571 = vpop.f32.mrf.mxu0
        %v1572 = vadd.f32 0.0, %v1571
        %v1573 = vpop.f32.mrf.mxu0
        %v1574 = vadd.f32 0.0, %v1573
        %1575 = vdwg.mxu0
        %v1576 = vmul.f32 %v1572, 0.25
        %v1577 = vmul.f32 %v1574, 0.25
        %v1578 = vadd.f32 %v1576, %v860
        %v1579 = vadd.f32 %v1577, %v860
        %v1580 = vsel %vm937, %v1578, -inf
        %1581 = vmax.xlane.f32.xlu0 %v1580
        %v1582 = vpop.xlane.xlu0 %1581
        %v1583 = vsel %vm937, %v1579, -inf
        %1584 = vmax.xlane.f32.xlu0 %v1583
        %v1585 = vpop.xlane.xlu0 %1584
        %v1586 = vsub.f32 %v1578, %v1582
        %v1587 = vsub.f32 %v1579, %v1585
        %v1588 = vmul.f32 %v1586, 1.442695
        %v1589 = vpow.pop %v1588
        %v1590 = vmul.f32 %v1587, 1.442695
        %v1591 = vpow.pop %v1590
        %v1592 = vsel %vm937, %v1589, 0.0
        %1593 = vadd.xlane.f32.xlu0 %v1592
        %v1594 = vpop.xlane.xlu0 %1593
        %v1595 = vsel %vm937, %v1591, 0.0
        %1596 = vadd.xlane.f32.xlu0 %v1595
        %v1597 = vpop.xlane.xlu0 %1596
        %v1598 = vrcp.pop %v1594
        %v1599 = vrcp.pop %v1597
        %v1600 = vmul.f32 %v1589, %v1598
        %v1601 = vmul.f32 %v1591, %v1599
        %v1602 = vpack.c.bf16 %v1601, %v1600
        %1603 = vrot.lane.b32.xlu0 %v1555, 96
        %v1604 = vpop.permute.xlu0 %1603
        %v1607 = vsel %vm937, %v1602, 0
        %1609 = vmatpush.bf16.msra.mxu0 0
        %1610 = vmatpush.bf16.msra.mxu0 0
        %1611 = vmatpush.bf16.msra.mxu0 0
        %1612 = vmatpush.bf16.msra.mxu0 0
        %1613 = vmatpush.bf16.msra.mxu0 0
        %1614 = vmatpush.bf16.msra.mxu0 0
        %1615 = vmatpush.bf16.msra.mxu0 0
        %1616 = vmatpush.bf16.msra.mxu0 %v1604
        %1617 = vmatmul.bf16.gmra.mxu0 %v1607
        %v1618 = vpop.f32.mrf.mxu0
        %v1619 = vadd.f32 0.0, %v1618
        %v1620 = vpop.f32.mrf.mxu0
        %v1621 = vadd.f32 0.0, %v1620
        %1622 = vdwg.mxu0
        %v1623 = vpack.c.bf16 %v1619, %v1619
        %v1624 = vpack.c.bf16 %v1621, %v1621
        %1625 = vst.msk [vmem:[#allocation2] sm:$0xf] %vm1007, %v1623
        %1626 = vst.msk [vmem:[#allocation2 + $0x4] sm:$0xf] %vm1007, %v1624
        %1627 = vrot.lane.b32.xlu0 %v1550, 112
        %v1628 = vpop.permute.xlu0 %1627
        %1629 = vrot.lane.b32.xlu0 %v1555, 112
        %v1630 = vpop.permute.xlu0 %1629
        %v1632 = vsel %vm937, %v1628, 0
        %v1635 = vsel %vm937, %v1630, 0
        %1637 = vmatpush.bf16.xpose.msra.mxu0 0
        %1638 = vmatpush.bf16.xpose.msra.mxu0 0
        %1639 = vmatpush.bf16.xpose.msra.mxu0 0
        %1640 = vmatpush.bf16.xpose.msra.mxu0 0
        %1641 = vmatpush.bf16.xpose.msra.mxu0 0
        %1642 = vmatpush.bf16.xpose.msra.mxu0 0
        %1643 = vmatpush.bf16.xpose.msra.mxu0 0
        %1644 = vmatpush.bf16.xpose.msra.mxu0 %v1635
        %1645 = vmatmul.bf16.gmra.mxu0 %v1632
        %v1646 = vpop.f32.mrf.mxu0
        %v1647 = vadd.f32 0.0, %v1646
        %v1648 = vpop.f32.mrf.mxu0
        %v1649 = vadd.f32 0.0, %v1648
        %1650 = vdwg.mxu0
        %v1651 = vmul.f32 %v1647, 0.25
        %v1652 = vmul.f32 %v1649, 0.25
        %v1653 = vadd.f32 %v1651, %v860
        %v1654 = vadd.f32 %v1652, %v860
        %v1655 = vsel %vm937, %v1653, -inf
        %1656 = vmax.xlane.f32.xlu0 %v1655
        %v1657 = vpop.xlane.xlu0 %1656
        %v1658 = vsel %vm937, %v1654, -inf
        %1659 = vmax.xlane.f32.xlu0 %v1658
        %v1660 = vpop.xlane.xlu0 %1659
        %v1661 = vsub.f32 %v1653, %v1657
        %v1662 = vsub.f32 %v1654, %v1660
        %v1663 = vmul.f32 %v1661, 1.442695
        %v1664 = vpow.pop %v1663
        %v1665 = vmul.f32 %v1662, 1.442695
        %v1666 = vpow.pop %v1665
        %v1667 = vsel %vm937, %v1664, 0.0
        %1668 = vadd.xlane.f32.xlu0 %v1667
        %v1669 = vpop.xlane.xlu0 %1668
        %v1670 = vsel %vm937, %v1666, 0.0
        %1671 = vadd.xlane.f32.xlu0 %v1670
        %v1672 = vpop.xlane.xlu0 %1671
        %v1673 = vrcp.pop %v1669
        %v1674 = vrcp.pop %v1672
        %v1675 = vmul.f32 %v1664, %v1673
        %v1676 = vmul.f32 %v1666, %v1674
        %v1677 = vpack.c.bf16 %v1676, %v1675
        %1678 = vrot.lane.b32.xlu0 %v1555, 80
        %v1679 = vpop.permute.xlu0 %1678
        %v1682 = vsel %vm937, %v1677, 0
        %1684 = vmatpush.bf16.msra.mxu0 0
        %1685 = vmatpush.bf16.msra.mxu0 0
        %1686 = vmatpush.bf16.msra.mxu0 0
        %1687 = vmatpush.bf16.msra.mxu0 0
        %1688 = vmatpush.bf16.msra.mxu0 0
        %1689 = vmatpush.bf16.msra.mxu0 0
        %1690 = vmatpush.bf16.msra.mxu0 0
        %1691 = vmatpush.bf16.msra.mxu0 %v1679
        %1692 = vmatmul.bf16.gmra.mxu0 %v1682
        %v1693 = vpop.f32.mrf.mxu0
        %v1694 = vadd.f32 0.0, %v1693
        %v1695 = vpop.f32.mrf.mxu0
        %v1696 = vadd.f32 0.0, %v1695
        %1697 = vdwg.mxu0
        %v1698 = vpack.c.bf16 %v1694, %v1694
        %v1699 = vpack.c.bf16 %v1696, %v1696
        %1702 = vrot.lane.b32.xlu0 %v1698, 16
        %v1703 = vpop.permute.xlu0 %1702
        %1704 = vrot.lane.b32.xlu0 %v1699, 16
        %v1705 = vpop.permute.xlu0 %1704
        %1708 = vst.msk [vmem:[#allocation2] sm:$0xf] %vm1091, %v1703
        %1709 = vst.msk [vmem:[#allocation2 + $0x4] sm:$0xf] %vm1091, %v1705
        %v1710 = vpack.c.bf16 %v1483, %v1483
        %v1711 = vpack.c.bf16 %v1485, %v1485
        %v1712 = vpack.c.bf16 %v1538, %v1538
        %v1713 = vpack.c.bf16 %v1540, %v1540
        %v1716 = vunpack.c.l.b16 %v1710
        %v1717 = vunpack.c.l.b16 %v1711
        %v1718 = vpack.c.b16 %v1717, %v1716
        %v1721 = vunpack.c.l.b16 %v1712
        %v1722 = vunpack.c.l.b16 %v1713
        %v1723 = vpack.c.b16 %v1722, %v1721
        %v1725 = vsel %vm937, %v1718, 0
        %v1728 = vsel %vm937, %v1723, 0
        %1730 = vmatpush.bf16.xpose.msra.mxu0 0
        %1731 = vmatpush.bf16.xpose.msra.mxu0 0
        %1732 = vmatpush.bf16.xpose.msra.mxu0 0
        %1733 = vmatpush.bf16.xpose.msra.mxu0 0
        %1734 = vmatpush.bf16.xpose.msra.mxu0 0
        %1735 = vmatpush.bf16.xpose.msra.mxu0 0
        %1736 = vmatpush.bf16.xpose.msra.mxu0 0
        %1737 = vmatpush.bf16.xpose.msra.mxu0 %v1728
        %1738 = vmatmul.bf16.gmra.mxu0 %v1725
        %v1739 = vpop.f32.mrf.mxu0
        %v1740 = vadd.f32 0.0, %v1739
        %v1741 = vpop.f32.mrf.mxu0
        %v1742 = vadd.f32 0.0, %v1741
        %1743 = vdwg.mxu0
        %v1744 = vmul.f32 %v1740, 0.25
        %v1745 = vmul.f32 %v1742, 0.25
        %v1746 = vadd.f32 %v1744, %v863
        %v1747 = vadd.f32 %v1745, %v863
        %v1748 = vsel %vm937, %v1746, -inf
        %1749 = vmax.xlane.f32.xlu0 %v1748
        %v1750 = vpop.xlane.xlu0 %1749
        %v1751 = vsel %vm937, %v1747, -inf
        %1752 = vmax.xlane.f32.xlu0 %v1751
        %v1753 = vpop.xlane.xlu0 %1752
        %v1754 = vsub.f32 %v1746, %v1750
        %v1755 = vsub.f32 %v1747, %v1753
        %v1756 = vmul.f32 %v1754, 1.442695
        %v1757 = vpow.pop %v1756
        %v1758 = vmul.f32 %v1755, 1.442695
        %v1759 = vpow.pop %v1758
        %v1760 = vsel %vm937, %v1757, 0.0
        %1761 = vadd.xlane.f32.xlu0 %v1760
        %v1762 = vpop.xlane.xlu0 %1761
        %v1763 = vsel %vm937, %v1759, 0.0
        %1764 = vadd.xlane.f32.xlu0 %v1763
        %v1765 = vpop.xlane.xlu0 %1764
        %v1766 = vrcp.pop %v1762
        %v1767 = vrcp.pop %v1765
        %v1768 = vmul.f32 %v1757, %v1766
        %v1769 = vmul.f32 %v1759, %v1767
        %v1770 = vpack.c.bf16 %v1769, %v1768
        %1771 = vrot.lane.b32.xlu0 %v1723, 96
        %v1772 = vpop.permute.xlu0 %1771
        %v1775 = vsel %vm937, %v1770, 0
        %1777 = vmatpush.bf16.msra.mxu0 0
        %1778 = vmatpush.bf16.msra.mxu0 0
        %1779 = vmatpush.bf16.msra.mxu0 0
        %1780 = vmatpush.bf16.msra.mxu0 0
        %1781 = vmatpush.bf16.msra.mxu0 0
        %1782 = vmatpush.bf16.msra.mxu0 0
        %1783 = vmatpush.bf16.msra.mxu0 0
        %1784 = vmatpush.bf16.msra.mxu0 %v1772
        %1785 = vmatmul.bf16.gmra.mxu0 %v1775
        %v1786 = vpop.f32.mrf.mxu0
        %v1787 = vadd.f32 0.0, %v1786
        %v1788 = vpop.f32.mrf.mxu0
        %v1789 = vadd.f32 0.0, %v1788
        %1790 = vdwg.mxu0
        %v1791 = vpack.c.bf16 %v1787, %v1787
        %v1792 = vpack.c.bf16 %v1789, %v1789
        %1793 = vst.msk [vmem:[#allocation2 + $0x8] sm:$0xf] %vm1007, %v1791
        %1794 = vst.msk [vmem:[#allocation2 + $0xc] sm:$0xf] %vm1007, %v1792
        %1795 = vrot.lane.b32.xlu0 %v1718, 112
        %v1796 = vpop.permute.xlu0 %1795
        %1797 = vrot.lane.b32.xlu0 %v1723, 112
        %v1798 = vpop.permute.xlu0 %1797
        %v1800 = vsel %vm937, %v1796, 0
        %v1803 = vsel %vm937, %v1798, 0
        %1805 = vmatpush.bf16.xpose.msra.mxu0 0
        %1806 = vmatpush.bf16.xpose.msra.mxu0 0
        %1807 = vmatpush.bf16.xpose.msra.mxu0 0
        %1808 = vmatpush.bf16.xpose.msra.mxu0 0
        %1809 = vmatpush.bf16.xpose.msra.mxu0 0
        %1810 = vmatpush.bf16.xpose.msra.mxu0 0
        %1811 = vmatpush.bf16.xpose.msra.mxu0 0
        %1812 = vmatpush.bf16.xpose.msra.mxu0 %v1803
        %1813 = vmatmul.bf16.gmra.mxu0 %v1800
        %v1814 = vpop.f32.mrf.mxu0
        %v1815 = vadd.f32 0.0, %v1814
        %v1816 = vpop.f32.mrf.mxu0
        %v1817 = vadd.f32 0.0, %v1816
        %1818 = vdwg.mxu0
        %v1819 = vmul.f32 %v1815, 0.25
        %v1820 = vmul.f32 %v1817, 0.25
        %v1821 = vadd.f32 %v1819, %v863
        %v1822 = vadd.f32 %v1820, %v863
        %v1823 = vsel %vm937, %v1821, -inf
        %1824 = vmax.xlane.f32.xlu0 %v1823
        %v1825 = vpop.xlane.xlu0 %1824
        %v1826 = vsel %vm937, %v1822, -inf
        %1827 = vmax.xlane.f32.xlu0 %v1826
        %v1828 = vpop.xlane.xlu0 %1827
        %v1829 = vsub.f32 %v1821, %v1825
        %v1830 = vsub.f32 %v1822, %v1828
        %v1831 = vmul.f32 %v1829, 1.442695
        %v1832 = vpow.pop %v1831
        %v1833 = vmul.f32 %v1830, 1.442695
        %v1834 = vpow.pop %v1833
        %v1835 = vsel %vm937, %v1832, 0.0
        %1836 = vadd.xlane.f32.xlu0 %v1835
        %v1837 = vpop.xlane.xlu0 %1836
        %v1838 = vsel %vm937, %v1834, 0.0
        %1839 = vadd.xlane.f32.xlu0 %v1838
        %v1840 = vpop.xlane.xlu0 %1839
        %v1841 = vrcp.pop %v1837
        %v1842 = vrcp.pop %v1840
        %v1843 = vmul.f32 %v1832, %v1841
        %v1844 = vmul.f32 %v1834, %v1842
        %v1845 = vpack.c.bf16 %v1844, %v1843
        %1846 = vrot.lane.b32.xlu0 %v1723, 80
        %v1847 = vpop.permute.xlu0 %1846
        %v1850 = vsel %vm937, %v1845, 0
        %1852 = vmatpush.bf16.msra.mxu0 0
        %1853 = vmatpush.bf16.msra.mxu0 0
        %1854 = vmatpush.bf16.msra.mxu0 0
        %1855 = vmatpush.bf16.msra.mxu0 0
        %1856 = vmatpush.bf16.msra.mxu0 0
        %1857 = vmatpush.bf16.msra.mxu0 0
        %1858 = vmatpush.bf16.msra.mxu0 0
        %1859 = vmatpush.bf16.msra.mxu0 %v1847
        %1860 = vmatmul.bf16.gmra.mxu0 %v1850
        %v1861 = vpop.f32.mrf.mxu0
        %v1862 = vadd.f32 0.0, %v1861
        %v1863 = vpop.f32.mrf.mxu0
        %v1864 = vadd.f32 0.0, %v1863
        %1865 = vdwg.mxu0
        %v1866 = vpack.c.bf16 %v1862, %v1862
        %v1867 = vpack.c.bf16 %v1864, %v1864
        %1870 = vrot.lane.b32.xlu0 %v1866, 16
        %v1871 = vpop.permute.xlu0 %1870
        %1872 = vrot.lane.b32.xlu0 %v1867, 16
        %v1873 = vpop.permute.xlu0 %1872
        %1876 = vst.msk [vmem:[#allocation2 + $0x8] sm:$0xf] %vm1091, %v1871
        %1877 = vst.msk [vmem:[#allocation2 + $0xc] sm:$0xf] %vm1091, %v1873
        %v1878 = vld [vmem:[#allocation2] sm:$0xf]
        %v1879 = vld [vmem:[#allocation2 + $0x4] sm:$0xf]
        %v1880 = vld [vmem:[#allocation2 + $0x8] sm:$0xf]
        %v1881 = vld [vmem:[#allocation2 + $0xc] sm:$0xf]
        %v1882 = vld [vmem:[%s14] sm:$0xf]
        %v1883 = vld [vmem:[%s14 + $0x4] sm:$0xf]
        %v1884 = vld [vmem:[%s14 + $0x8] sm:$0xf]
        %v1885 = vld [vmem:[%s14 + $0xc] sm:$0xf]
        %v1886 = vld [vmem:[%s15] sm:$0x1]
        %v1888 = vperm.slane %v1886, 0
        %v1894 = vunpack.c.l.b16 %v1878
        %v1895 = vunpack.c.l.b16 %v1879
        %v1896 = vunpack.c.l.b16 %v1880
        %v1897 = vunpack.c.l.b16 %v1881
        %v1898 = vpack.c.b16 %v1895, %v1894
        %v1899 = vpack.c.b16 %v1897, %v1896
        %v1904 = vunpack.c.l.b16 %v1882
        %v1905 = vunpack.c.l.b16 %v1883
        %v1906 = vunpack.c.l.b16 %v1884
        %v1907 = vunpack.c.l.b16 %v1885
        %v1908 = vpack.c.b16 %v1905, %v1904
        %v1909 = vpack.c.b16 %v1907, %v1906
        %v1913 = vsel %vm902, %v1898, 0
        %v1916 = vsel %vm902, %v1899, 0
        %1918 = vmatpush.bf16.msra.mxu0 0
        %1919 = vmatpush.bf16.msra.mxu0 0
        %1920 = vmatpush.bf16.msra.mxu0 0
        %1921 = vmatpush.bf16.msra.mxu0 0
        %1922 = vmatpush.bf16.msra.mxu0 0
        %1923 = vmatpush.bf16.msra.mxu0 0
        %1924 = vmatpush.bf16.msra.mxu0 %v1909
        %1925 = vmatpush.bf16.msra.mxu0 %v1908
        %1926 = vmatmul.bf16.gmra.mxu0 %v1913
        %v1927 = vpop.f32.mrf.mxu0
        %v1928 = vadd.f32 %v1888, %v1927
        %v1929 = vpop.f32.mrf.mxu0
        %v1930 = vadd.f32 %v1888, %v1929
        %1931 = vmatmul.bf16.gmra.mxu0 %v1916
        %v1932 = vpop.f32.mrf.mxu0
        %v1933 = vadd.f32 %v1888, %v1932
        %v1934 = vpop.f32.mrf.mxu0
        %v1935 = vadd.f32 %v1888, %v1934
        %1936 = vdwg.mxu0
        %v1937 = vadd.f32 %v1928, %v1432
        %v1938 = vadd.f32 %v1930, %v1433
        %v1939 = vadd.f32 %v1933, %v1434
        %v1940 = vadd.f32 %v1935, %v1435
        %v1941 = vld [vmem:[%s16] sm:$0x1]
        %v1942 = vld [vmem:[%s17] sm:$0x1]
        %v1943 = vsel %vm902, %v1937, 0.0
        %1944 = vadd.xlane.f32.xlu0 %v1943
        %v1945 = vpop.xlane.xlu0 %1944
        %v1946 = vsel %vm902, %v1938, 0.0
        %1947 = vadd.xlane.f32.xlu0 %v1946
        %v1948 = vpop.xlane.xlu0 %1947
        %v1949 = vsel %vm902, %v1939, 0.0
        %1950 = vadd.xlane.f32.xlu0 %v1949
        %v1951 = vpop.xlane.xlu0 %1950
        %v1952 = vsel %vm902, %v1940, 0.0
        %1953 = vadd.xlane.f32.xlu0 %v1952
        %v1954 = vpop.xlane.xlu0 %1953
        %v1955 = vmul.f32 %v1945, 0.03125
        %v1956 = vmul.f32 %v1948, 0.03125
        %v1957 = vmul.f32 %v1951, 0.03125
        %v1958 = vmul.f32 %v1954, 0.03125
        %v1959 = vmul.f32 %v1937, %v1937
        %v1960 = vmul.f32 %v1938, %v1938
        %v1961 = vmul.f32 %v1939, %v1939
        %v1962 = vmul.f32 %v1940, %v1940
        %v1963 = vsel %vm902, %v1959, 0.0
        %1964 = vadd.xlane.f32.xlu0 %v1963
        %v1965 = vpop.xlane.xlu0 %1964
        %v1966 = vsel %vm902, %v1960, 0.0
        %1967 = vadd.xlane.f32.xlu0 %v1966
        %v1968 = vpop.xlane.xlu0 %1967
        %v1969 = vsel %vm902, %v1961, 0.0
        %1970 = vadd.xlane.f32.xlu0 %v1969
        %v1971 = vpop.xlane.xlu0 %1970
        %v1972 = vsel %vm902, %v1962, 0.0
        %1973 = vadd.xlane.f32.xlu0 %v1972
        %v1974 = vpop.xlane.xlu0 %1973
        %v1975 = vmul.f32 %v1965, 0.03125
        %v1976 = vmul.f32 %v1968, 0.03125
        %v1977 = vmul.f32 %v1971, 0.03125
        %v1978 = vmul.f32 %v1974, 0.03125
        %v1979 = vmul.f32 %v1955, %v1955
        %v1980 = vmul.f32 %v1956, %v1956
        %v1981 = vmul.f32 %v1957, %v1957
        %v1982 = vmul.f32 %v1958, %v1958
        %v1983 = vsub.f32 %v1975, %v1979
        %v1984 = vsub.f32 %v1976, %v1980
        %v1985 = vsub.f32 %v1977, %v1981
        %v1986 = vsub.f32 %v1978, %v1982
        %v1987 = vsub.f32 %v1937, %v1955
        %v1988 = vsub.f32 %v1938, %v1956
        %v1989 = vsub.f32 %v1939, %v1957
        %v1990 = vsub.f32 %v1940, %v1958
        %v1991 = vadd.f32 %v1983, 1e-05
        %v1992 = vadd.f32 %v1984, 1e-05
        %v1993 = vadd.f32 %v1985, 1e-05
        %v1994 = vadd.f32 %v1986, 1e-05
        %v1995 = vrsqrt.pop %v1991
        %v1996 = vmul.f32 %v1995, %v1991
        %v1997 = vmul.f32 %v1996, %v1995
        %v1998 = vmul.f32 0.5, %v1997
        %v1999 = vsub.f32 1.5, %v1998
        %v2000 = vmul.f32 %v1995, %v1999
        %vm2001 = vweird.f32 %v1991
        %vm2002 = vweird.f32 %v1995
        %vm2003 = vmor %vm2001, %vm2002
        %v2004 = vsel %vm2003, %v1995, %v2000
        %v2005 = vrsqrt.pop %v1992
        %v2006 = vmul.f32 %v2005, %v1992
        %v2007 = vmul.f32 %v2006, %v2005
        %v2008 = vmul.f32 0.5, %v2007
        %v2009 = vsub.f32 1.5, %v2008
        %v2010 = vmul.f32 %v2005, %v2009
        %vm2011 = vweird.f32 %v1992
        %vm2012 = vweird.f32 %v2005
        %vm2013 = vmor %vm2011, %vm2012
        %v2014 = vsel %vm2013, %v2005, %v2010
        %v2015 = vrsqrt.pop %v1993
        %v2016 = vmul.f32 %v2015, %v1993
        %v2017 = vmul.f32 %v2016, %v2015
        %v2018 = vmul.f32 0.5, %v2017
        %v2019 = vsub.f32 1.5, %v2018
        %v2020 = vmul.f32 %v2015, %v2019
        %vm2021 = vweird.f32 %v1993
        %vm2022 = vweird.f32 %v2015
        %vm2023 = vmor %vm2021, %vm2022
        %v2024 = vsel %vm2023, %v2015, %v2020
        %v2025 = vrsqrt.pop %v1994
        %v2026 = vmul.f32 %v2025, %v1994
        %v2027 = vmul.f32 %v2026, %v2025
        %v2028 = vmul.f32 0.5, %v2027
        %v2029 = vsub.f32 1.5, %v2028
        %v2030 = vmul.f32 %v2025, %v2029
        %vm2031 = vweird.f32 %v1994
        %vm2032 = vweird.f32 %v2025
        %vm2033 = vmor %vm2031, %vm2032
        %v2034 = vsel %vm2033, %v2025, %v2030
        %v2035 = vmul.f32 %v1987, %v2004
        %v2036 = vmul.f32 %v1988, %v2014
        %v2037 = vmul.f32 %v1989, %v2024
        %v2038 = vmul.f32 %v1990, %v2034
        %v2040 = vperm.slane %v1941, 0
        %v2042 = vmul.f32 %v2035, %v2040
        %v2043 = vmul.f32 %v2036, %v2040
        %v2044 = vmul.f32 %v2037, %v2040
        %v2045 = vmul.f32 %v2038, %v2040
        %v2047 = vperm.slane %v1942, 0
        %v2049 = vadd.f32 %v2042, %v2047
        %v2050 = vadd.f32 %v2043, %v2047
        %v2051 = vadd.f32 %v2044, %v2047
        %v2052 = vadd.f32 %v2045, %v2047
        %v2053 = vmul.f32 %v2049, %v837
        %v2054 = vmul.f32 %v2050, %v838
        %v2055 = vmul.f32 %v2051, %v839
        %v2056 = vmul.f32 %v2052, %v840
        %v2057 = vpack.c.bf16 %v2054, %v2053
        %v2058 = vpack.c.bf16 %v2056, %v2055
        %v2059 = vld [vmem:[%s18] sm:$0xf]
        %v2060 = vld [vmem:[%s18 + $0x4] sm:$0xf]
        %v2061 = vld [vmem:[%s18 + $0x8] sm:$0xf]
        %v2062 = vld [vmem:[%s18 + $0xc] sm:$0xf]
        %v2063 = vld [vmem:[%s19] sm:$0x1]
        %v2065 = vperm.slane %v2063, 0
        %v2071 = vunpack.c.l.b16 %v2059
        %v2072 = vunpack.c.l.b16 %v2060
        %v2073 = vunpack.c.l.b16 %v2061
        %v2074 = vunpack.c.l.b16 %v2062
        %v2075 = vpack.c.b16 %v2072, %v2071
        %v2076 = vpack.c.b16 %v2074, %v2073
        %v2080 = vsel %vm902, %v2057, 0
        %v2083 = vsel %vm902, %v2058, 0
        %2085 = vmatpush.bf16.msra.mxu0 0
        %2086 = vmatpush.bf16.msra.mxu0 0
        %2087 = vmatpush.bf16.msra.mxu0 0
        %2088 = vmatpush.bf16.msra.mxu0 0
        %2089 = vmatpush.bf16.msra.mxu0 0
        %2090 = vmatpush.bf16.msra.mxu0 0
        %2091 = vmatpush.bf16.msra.mxu0 %v2076
        %2092 = vmatpush.bf16.msra.mxu0 %v2075
        %2093 = vmatmul.bf16.gmra.mxu0 %v2080
        %v2094 = vpop.f32.mrf.mxu0
        %v2095 = vadd.f32 %v2065, %v2094
        %v2096 = vpop.f32.mrf.mxu0
        %v2097 = vadd.f32 %v2065, %v2096
        %2098 = vmatmul.bf16.gmra.mxu0 %v2083
        %v2099 = vpop.f32.mrf.mxu0
        %v2100 = vadd.f32 %v2065, %v2099
        %v2101 = vpop.f32.mrf.mxu0
        %v2102 = vadd.f32 %v2065, %v2101
        %2103 = vdwg.mxu0
        %v2104 = vmax.f32 %v2095, 0.0
        %v2105 = vmax.f32 %v2097, 0.0
        %v2106 = vmax.f32 %v2100, 0.0
        %v2107 = vmax.f32 %v2102, 0.0
        %v2108 = vpack.c.bf16 %v2105, %v2104
        %v2109 = vpack.c.bf16 %v2107, %v2106
        %v2110 = vld [vmem:[%s20] sm:$0xf]
        %v2111 = vld [vmem:[%s20 + $0x4] sm:$0xf]
        %v2112 = vld [vmem:[%s20 + $0x8] sm:$0xf]
        %v2113 = vld [vmem:[%s20 + $0xc] sm:$0xf]
        %v2114 = vld [vmem:[%s20 + $0x10] sm:$0xf]
        %v2115 = vld [vmem:[%s20 + $0x14] sm:$0xf]
        %v2116 = vld [vmem:[%s20 + $0x18] sm:$0xf]
        %v2117 = vld [vmem:[%s20 + $0x1c] sm:$0xf]
        %v2118 = vld [vmem:[#allocation6] sm:$0x1]
        %v2120 = vperm.slane %v2118, 0
        %v2130 = vunpack.c.l.b16 %v2110
        %v2131 = vunpack.c.l.b16 %v2111
        %v2132 = vunpack.c.l.b16 %v2112
        %v2133 = vunpack.c.l.b16 %v2113
        %v2134 = vunpack.c.l.b16 %v2114
        %v2135 = vunpack.c.l.b16 %v2115
        %v2136 = vunpack.c.l.b16 %v2116
        %v2137 = vunpack.c.l.b16 %v2117
        %v2138 = vpack.c.b16 %v2131, %v2130
        %v2139 = vpack.c.b16 %v2133, %v2132
        %v2140 = vpack.c.b16 %v2135, %v2134
        %v2141 = vpack.c.b16 %v2137, %v2136
        %vm2146 = vcmask 523264
        %v2148 = vsel %vm2146, %v2108, 0
        %v2151 = vsel %vm2146, %v2109, 0
        %2153 = vmatpush.bf16.msra.mxu0 0
        %2154 = vmatpush.bf16.msra.mxu0 0
        %2155 = vmatpush.bf16.msra.mxu0 0
        %2156 = vmatpush.bf16.msra.mxu0 0
        %2157 = vmatpush.bf16.msra.mxu0 %v2141
        %2158 = vmatpush.bf16.msra.mxu0 %v2140
        %2159 = vmatpush.bf16.msra.mxu0 %v2139
        %2160 = vmatpush.bf16.msra.mxu0 %v2138
        %2161 = vmatmul.bf16.gmra.mxu0 %v2148
        %v2162 = vpop.f32.mrf.mxu0
        %v2163 = vadd.f32 %v2120, %v2162
        %v2164 = vpop.f32.mrf.mxu0
        %v2165 = vadd.f32 %v2120, %v2164
        %2166 = vmatmul.bf16.gmra.mxu0 %v2151
        %v2167 = vpop.f32.mrf.mxu0
        %v2168 = vadd.f32 %v2120, %v2167
        %v2169 = vpop.f32.mrf.mxu0
        %v2170 = vadd.f32 %v2120, %v2169
        %2171 = vdwg.mxu0
        %v2172 = vadd.f32 %v2163, %v2053
        %v2173 = vadd.f32 %v2165, %v2054
        %v2174 = vadd.f32 %v2168, %v2055
        %v2175 = vadd.f32 %v2170, %v2056
        %v2176 = vld [vmem:[#allocation8] sm:$0x1]
        %v2177 = vld [vmem:[#allocation10] sm:$0x1]
        %v2178 = vsel %vm902, %v2172, 0.0
        %2179 = vadd.xlane.f32.xlu0 %v2178
        %v2180 = vpop.xlane.xlu0 %2179
        %v2181 = vsel %vm902, %v2173, 0.0
        %2182 = vadd.xlane.f32.xlu0 %v2181
        %v2183 = vpop.xlane.xlu0 %2182
        %v2184 = vsel %vm902, %v2174, 0.0
        %2185 = vadd.xlane.f32.xlu0 %v2184
        %v2186 = vpop.xlane.xlu0 %2185
        %v2187 = vsel %vm902, %v2175, 0.0
        %2188 = vadd.xlane.f32.xlu0 %v2187
        %v2189 = vpop.xlane.xlu0 %2188
        %v2190 = vmul.f32 %v2180, 0.03125
        %v2191 = vmul.f32 %v2183, 0.03125
        %v2192 = vmul.f32 %v2186, 0.03125
        %v2193 = vmul.f32 %v2189, 0.03125
        %v2194 = vmul.f32 %v2172, %v2172
        %v2195 = vmul.f32 %v2173, %v2173
        %v2196 = vmul.f32 %v2174, %v2174
        %v2197 = vmul.f32 %v2175, %v2175
        %v2198 = vsel %vm902, %v2194, 0.0
        %2199 = vadd.xlane.f32.xlu0 %v2198
        %v2200 = vpop.xlane.xlu0 %2199
        %v2201 = vsel %vm902, %v2195, 0.0
        %2202 = vadd.xlane.f32.xlu0 %v2201
        %v2203 = vpop.xlane.xlu0 %2202
        %v2204 = vsel %vm902, %v2196, 0.0
        %2205 = vadd.xlane.f32.xlu0 %v2204
        %v2206 = vpop.xlane.xlu0 %2205
        %v2207 = vsel %vm902, %v2197, 0.0
        %2208 = vadd.xlane.f32.xlu0 %v2207
        %v2209 = vpop.xlane.xlu0 %2208
        %v2210 = vmul.f32 %v2200, 0.03125
        %v2211 = vmul.f32 %v2203, 0.03125
        %v2212 = vmul.f32 %v2206, 0.03125
        %v2213 = vmul.f32 %v2209, 0.03125
        %v2214 = vmul.f32 %v2190, %v2190
        %v2215 = vmul.f32 %v2191, %v2191
        %v2216 = vmul.f32 %v2192, %v2192
        %v2217 = vmul.f32 %v2193, %v2193
        %v2218 = vsub.f32 %v2210, %v2214
        %v2219 = vsub.f32 %v2211, %v2215
        %v2220 = vsub.f32 %v2212, %v2216
        %v2221 = vsub.f32 %v2213, %v2217
        %v2222 = vsub.f32 %v2172, %v2190
        %v2223 = vsub.f32 %v2173, %v2191
        %v2224 = vsub.f32 %v2174, %v2192
        %v2225 = vsub.f32 %v2175, %v2193
        %v2226 = vadd.f32 %v2218, 1e-05
        %v2227 = vadd.f32 %v2219, 1e-05
        %v2228 = vadd.f32 %v2220, 1e-05
        %v2229 = vadd.f32 %v2221, 1e-05
        %v2230 = vrsqrt.pop %v2226
        %v2231 = vmul.f32 %v2230, %v2226
        %v2232 = vmul.f32 %v2231, %v2230
        %v2233 = vmul.f32 0.5, %v2232
        %v2234 = vsub.f32 1.5, %v2233
        %v2235 = vmul.f32 %v2230, %v2234
        %vm2236 = vweird.f32 %v2226
        %vm2237 = vweird.f32 %v2230
        %vm2238 = vmor %vm2236, %vm2237
        %v2239 = vsel %vm2238, %v2230, %v2235
        %v2240 = vrsqrt.pop %v2227
        %v2241 = vmul.f32 %v2240, %v2227
        %v2242 = vmul.f32 %v2241, %v2240
        %v2243 = vmul.f32 0.5, %v2242
        %v2244 = vsub.f32 1.5, %v2243
        %v2245 = vmul.f32 %v2240, %v2244
        %vm2246 = vweird.f32 %v2227
        %vm2247 = vweird.f32 %v2240
        %vm2248 = vmor %vm2246, %vm2247
        %v2249 = vsel %vm2248, %v2240, %v2245
        %v2250 = vrsqrt.pop %v2228
        %v2251 = vmul.f32 %v2250, %v2228
        %v2252 = vmul.f32 %v2251, %v2250
        %v2253 = vmul.f32 0.5, %v2252
        %v2254 = vsub.f32 1.5, %v2253
        %v2255 = vmul.f32 %v2250, %v2254
        %vm2256 = vweird.f32 %v2228
        %vm2257 = vweird.f32 %v2250
        %vm2258 = vmor %vm2256, %vm2257
        %v2259 = vsel %vm2258, %v2250, %v2255
        %v2260 = vrsqrt.pop %v2229
        %v2261 = vmul.f32 %v2260, %v2229
        %v2262 = vmul.f32 %v2261, %v2260
        %v2263 = vmul.f32 0.5, %v2262
        %v2264 = vsub.f32 1.5, %v2263
        %v2265 = vmul.f32 %v2260, %v2264
        %vm2266 = vweird.f32 %v2229
        %vm2267 = vweird.f32 %v2260
        %vm2268 = vmor %vm2266, %vm2267
        %v2269 = vsel %vm2268, %v2260, %v2265
        %v2270 = vmul.f32 %v2222, %v2239
        %v2271 = vmul.f32 %v2223, %v2249
        %v2272 = vmul.f32 %v2224, %v2259
        %v2273 = vmul.f32 %v2225, %v2269
        %v2275 = vperm.slane %v2176, 0
        %v2277 = vmul.f32 %v2270, %v2275
        %v2278 = vmul.f32 %v2271, %v2275
        %v2279 = vmul.f32 %v2272, %v2275
        %v2280 = vmul.f32 %v2273, %v2275
        %v2282 = vperm.slane %v2177, 0
        %v2284 = vadd.f32 %v2277, %v2282
        %v2285 = vadd.f32 %v2278, %v2282
        %v2286 = vadd.f32 %v2279, %v2282
        %v2287 = vadd.f32 %v2280, %v2282
        %v2288 = vmul.f32 %v2284, %v837
        %v2289 = vmul.f32 %v2285, %v838
        %v2290 = vmul.f32 %v2286, %v839
        %v2291 = vmul.f32 %v2287, %v840
        %v2292 = vpack.c.bf16 %v2288, %v2288
        %v2293 = vpack.c.bf16 %v2289, %v2289
        %v2294 = vpack.c.bf16 %v2290, %v2290
        %v2295 = vpack.c.bf16 %v2291, %v2291
        %vm2296 = vcmask 257024
        %2297 = vst.msk [vmem:[%s774] sm:$0xf] %vm2296, %v2292
        %2298 = vst.msk [vmem:[%s774 + $0x4] sm:$0xf] %vm2296, %v2293
        %2299 = vst.msk [vmem:[%s774 + $0x8] sm:$0xf] %vm2296, %v2294
        %2300 = vst.msk [vmem:[%s774 + $0xc] sm:$0xf] %vm2296, %v2295
        %s2301 = smul.u32 2, %s50
        %p2302 = scmp.lt.s32.totalorder %s2301, 3
        %s2303 = scalar_select %p2302, %s2301, 3
        %s2304 = smul.addr %s2303, 2
        %s2305 = smul.addr %s2304, 4
        %s2306 = scalar_lea.vmem %s24, %s2305
        // Predicated region
        $region121: #{apply.4} parent=107 // pred_check
          %p2307 = pneg %p540
        $region122: #{apply.4} parent=107 // pred_check_branch
          %2309 = sbr.rel (%p2307) target = $region124
        $region123: #{apply.4} parent=107 // pred_region
          %s2310 = smul.u32 2, %s50
        $region124: #{apply.4} parent=107 // pred_fallthru
          _
      $region108: #{apply.4} parent=5 // pred_fallthru
        _
      %p2311 = scmp.le.s32.totalorder 2, %s45
      // Predicated region
      $region125: #{apply.4} parent=5 // pred_check
        %p2312 = pneg %p2311
      $region126: #{apply.4} parent=5 // pred_check_branch
        %2314 = sbr.rel (%p2312) target = $region128
      $region127: #{apply.4} parent=5 // pred_region
        %s2315 = ssub.s32 %s45, 2
        // Predicated region
        $region129: #{apply.4} parent=127 // pred_check
          %p2316 = pneg %p546
        $region130: #{apply.4} parent=127 // pred_check_branch
          %2318 = sbr.rel (%p2316) target = $region132
        $region131: #{apply.4} parent=127 // pred_region
          %s2319 = smul.u32 2, %s51
          %p2320 = scmp.lt.s32.totalorder %s2319, 3
          %s2321 = scalar_select %p2320, %s2319, 3
          %s2322 = smul.addr %s2321, 2
          %s2323 = smul.addr %s2322, 4
          %s2324 = scalar_lea.vmem %s24, %s2323
        $region132: #{apply.4} parent=127 // pred_fallthru
          _
      $region128: #{apply.4} parent=5 // pred_fallthru
        _
    $region6: #{apply.4} parent=1 // loop_footer
      %s49 = sadd.s32 1, %s45
    $region7: #{apply.4} parent=1 // loop_footer_branch
      %44 = sbr.rel target = $region3
    $region8: #{apply.4} parent=1 // loop_exit
      _
    %2325 = vsyncpa [#allocation7], 1
    %s2326 = scalar_lea.sflag [#allocation7], 1
    %2327 = vsyncpa %s2326, 1
    %2328 = vsyncpa [#allocation9], 1

</llo_original>
